<compile_context>
chip_gen: v5e
topology: v5e:2x2
jax: 0.10.0
libtpu: 0.0.40
codegen_flags: <defaults>
</compile_context>

<pallas_src>
import functools

import jax
import jax.numpy as jnp
from jax.experimental import pallas as pl
from jax.experimental.pallas import tpu as pltpu

BN_EPS = 1e-5
LANE = 128
EXPANSION = 4
VMEM_LIMIT = 32 * 1024 * 1024  # explicit budget; fits v5e/v6e (128 MiB) and v7x (64 MiB)


# ----------------------------------------------------------------------------
# helpers
# ----------------------------------------------------------------------------
def _round_up(x, m):
    return ((x + m - 1) // m) * m


def _row_tile(m, cap=512):
    """Row tile: biggest multiple-of-8 tile <= cap; grid uses cdiv + masked tail."""
    return min(cap, _round_up(m, 8))


def _pick_strip(ho, wo, max_rows=1024):
    """Output-row strip height for the 3x3 conv: th | Ho and th*Wo <= max_rows."""
    th = 1
    for t in range(1, ho + 1):
        if ho % t == 0 and t * wo <= max_rows:
            th = t
    return th


def _bn_scale_bias(csum, csq, m):
    """Training-mode BatchNorm scale/bias from batch sums (gamma=1, beta=0).

    TODO(synk): running-stats (eval mode) and learned gamma/beta are not
    implemented -- matches a freshly initialized nn.BatchNorm2d in train mode.
    TODO(synk): E[x^2]-E[x]^2 in f32 can cancel for very large activations.
    """
    mean = csum / m
    var = jnp.maximum(csq / m - mean * mean, 0.0)
    inv = jax.lax.rsqrt(var + BN_EPS)
    return jnp.stack([inv, -mean * inv]).astype(jnp.float32)  # (2, C): scale, bias


def _reduce_stats(st, ntiles, n):
    """Host-side reduction of the per-tile (row0=sum, row1=sumsq) stat blocks."""
    st = st.reshape(ntiles, 8, n)
    return st[:, 0, :].sum(axis=0), st[:, 1, :].sum(axis=0)


def _stats_epilogue(acc, st_ref, *, tm, m_true, masked):
    """Per-tile channel sum (row 0) and sum-of-squares (row 1) in one store."""
    if masked:  # ragged last row-tile: exclude padded rows from the statistics
        gid = pl.program_id(0) * tm + jax.lax.broadcasted_iota(
            jnp.int32, acc.shape, 0)
        acc = jnp.where(gid < m_true, acc, 0.0)
    s = jnp.sum(acc, axis=0, keepdims=True)
    q = jnp.sum(acc * acc, axis=0, keepdims=True)
    rid = jax.lax.broadcasted_iota(jnp.int32, st_ref.shape, 0)
    st_ref[...] = jnp.where(rid == 0, s, jnp.where(rid == 1, q, 0.0))


# ----------------------------------------------------------------------------
# Kernels 1a/1b/1c: 1x1 convs as matmuls (optionally with fused producer-BN+ReLU
# on the input, optionally with a second merged output), BN stats in epilogue.
# ----------------------------------------------------------------------------
def _mm_stats_kernel(x_ref, w_ref, y_ref, st_ref, *, tm, m_true, masked):
    acc = jnp.dot(x_ref[...], w_ref[...], preferred_element_type=jnp.float32)
    y_ref[...] = acc.astype(y_ref.dtype)
    _stats_epilogue(acc, st_ref, tm=tm, m_true=m_true, masked=masked)


def _mm_affine_relu_stats_kernel(x_ref, sb_ref, w_ref, y_ref, st_ref, *,
                                 tm, m_true, masked):
    # Producer's BN-affine + ReLU folded into this consumer matmul.
    x = x_ref[...].astype(jnp.float32) * sb_ref[0:1, :] + sb_ref[1:2, :]
    x = jnp.maximum(x, 0.0).astype(jnp.bfloat16)
    acc = jnp.dot(x, w_ref[...], preferred_element_type=jnp.float32)
    y_ref[...] = acc.astype(y_ref.dtype)
    _stats_epilogue(acc, st_ref, tm=tm, m_true=m_true, masked=masked)


def _mm_dual_stats_kernel(x_ref, w_ref, ya_ref, yb_ref, st_ref, *,
                          split, tm, m_true, masked):
    # conv1 and the stride-1 downsample read the same x: one wide matmul,
    # split in-register at a lane-aligned (multiple-of-128) boundary.
    acc = jnp.dot(x_ref[...], w_ref[...], preferred_element_type=jnp.float32)
    ya_ref[...] = acc[:, :split].astype(ya_ref.dtype)
    yb_ref[...] = acc[:, split:].astype(yb_ref.dtype)
    _stats_epilogue(acc, st_ref, tm=tm, m_true=m_true, masked=masked)


def matmul_bn_stats(x2d, w, *, sb=None, tm_cap=512):
    """y = [relu(x*scale+bias)] @ w, bf16 in / f32 MXU acc, + channel sum/sumsq."""
    M, K = x2d.shape
    Nw = w.shape[1]
    tm = _row_tile(M, tm_cap)
    ntiles = pl.cdiv(M, tm)
    masked = (M % tm) != 0
    row = pl.BlockSpec((tm, K), lambda i: (i, 0))
    wsp = pl.BlockSpec((K, Nw), lambda i: (0, 0))
    vec = pl.BlockSpec((2, K), lambda i: (0, 0))
    ysp = pl.BlockSpec((tm, Nw), lambda i: (i, 0))
    stsp = pl.BlockSpec((8, Nw), lambda i: (i, 0))
    if sb is None:
        kern = functools.partial(_mm_stats_kernel, tm=tm, m_true=M, masked=masked)
        in_specs, args = [row, wsp], (x2d, w)
    else:
        kern = functools.partial(_mm_affine_relu_stats_kernel, tm=tm, m_true=M,
                                 masked=masked)
        in_specs, args = [row, vec, wsp], (x2d, sb, w)
    y, st = pl.pallas_call(
        kern,
        out_shape=(jax.ShapeDtypeStruct((M, Nw), jnp.bfloat16),
                   jax.ShapeDtypeStruct((ntiles * 8, Nw), jnp.float32)),
        grid=(ntiles,),
        in_specs=in_specs,
        out_specs=(ysp, stsp),
        compiler_params=pltpu.CompilerParams(
            dimension_semantics=("parallel",), vmem_limit_bytes=VMEM_LIMIT),
    )(*args)
    csum, csq = _reduce_stats(st, ntiles, Nw)
    return y, csum, csq


def matmul_dual_bn_stats(x2d, w_merged, split, *, tm_cap=512):
    """x @ [wA | wB] -> (yA, yB) plus joint channel sum/sumsq."""
    M, K = x2d.shape
    Nw = w_merged.shape[1]
    tm = _row_tile(M, tm_cap)
    ntiles = pl.cdiv(M, tm)
    masked = (M % tm) != 0
    kern = functools.partial(_mm_dual_stats_kernel, split=split, tm=tm,
                             m_true=M, masked=masked)
    ya, yb, st = pl.pallas_call(
        kern,
        out_shape=(jax.ShapeDtypeStruct((M, split), jnp.bfloat16),
                   jax.ShapeDtypeStruct((M, Nw - split), jnp.bfloat16),
                   jax.ShapeDtypeStruct((ntiles * 8, Nw), jnp.float32)),
        grid=(ntiles,),
        in_specs=[pl.BlockSpec((tm, K), lambda i: (i, 0)),
                  pl.BlockSpec((K, Nw), lambda i: (0, 0))],
        out_specs=(pl.BlockSpec((tm, split), lambda i: (i, 0)),
                   pl.BlockSpec((tm, Nw - split), lambda i: (i, 0)),
                   pl.BlockSpec((8, Nw), lambda i: (i, 0))),
        compiler_params=pltpu.CompilerParams(
            dimension_semantics=("parallel",), vmem_limit_bytes=VMEM_LIMIT),
    )(x2d, w_merged)
    csum, csq = _reduce_stats(st, ntiles, Nw)
    return ya, yb, csum, csq


# ----------------------------------------------------------------------------
# Kernel 2: 3x3 conv (pad=1, stride) with BN1+ReLU fused on the input, spatial
# zero-padding built in VMEM, strip-wise f32 VMEM accumulator, BN2 stats out.
# ----------------------------------------------------------------------------
def _conv3x3_kernel(y1_ref, sb_ref, w_ref, o_ref, st_ref, xpad_ref, acc_ref, *,
                    stride, H, W, Ho, Wo, th):
    cp = y1_ref.shape[-1]
    # (1) Fused BN1-affine + ReLU; padded border is a true post-activation zero.
    xpad_ref[...] = jnp.zeros_like(xpad_ref)
    act = y1_ref[0].astype(jnp.float32) * sb_ref[0:1, :] + sb_ref[1:2, :]
    xpad_ref[1:H + 1, 1:W + 1, :] = jnp.maximum(act, 0.0).astype(xpad_ref.dtype)
    # (2) BN2 stats accumulator for this image (row 0 = sum, row 1 = sumsq).
    st_ref[...] = jnp.zeros_like(st_ref)
    # (3) Strip loop: bounded VMEM accumulator, 9 shifted-tap matmuls per strip.
    n_strips = Ho // th

    @pl.loop(0, n_strips)
    def _(t):
        r0 = pl.multiple_of(t * th, th)
        acc_ref[...] = jnp.zeros_like(acc_ref)
        for dy in range(3):
            for dx in range(3):
                if stride == 1:
                    patch = xpad_ref[pl.ds(r0 + dy, th), pl.ds(dx, Wo), :]
                else:
                    # TODO(synk): in-kernel strided loads; pre-split phases or
                    # DMA-side striding would make these dense.
                    patch = xpad_ref[pl.ds(r0 * stride + dy, th, stride=stride),
                                     pl.ds(dx, Wo, stride=stride), :]
                acc_ref[...] += jnp.dot(patch.reshape(th * Wo, cp),
                                        w_ref[dy * 3 + dx],
                                        preferred_element_type=jnp.float32)
        acc = acc_ref[...]
        o_ref[0, t] = acc.astype(o_ref.dtype)
        st_ref[0:1, :] += jnp.sum(acc, axis=0, keepdims=True)
        st_ref[1:2, :] += jnp.sum(acc * acc, axis=0, keepdims=True)


def conv3x3_bn_stats(y1_nhwc, sb1, w9, stride):
    """3x3 conv with producer BN+ReLU fused in; returns raw output + BN stats."""
    # TODO(synk): groups>1 and dilation>1 are not implemented (module defaults).
    N, H, W, Cp = y1_nhwc.shape
    Cop = w9.shape[-1]
    Ho = (H + 2 - 3) // stride + 1
    Wo = (W + 2 - 3) // stride + 1
    th = _pick_strip(Ho, Wo)
    n_strips = Ho // th
    kern = functools.partial(_conv3x3_kernel, stride=stride, H=H, W=W,
                             Ho=Ho, Wo=Wo, th=th)
    y2, st = pl.pallas_call(
        kern,
        out_shape=(jax.ShapeDtypeStruct((N, n_strips, th * Wo, Cop), jnp.bfloat16),
                   jax.ShapeDtypeStruct((N * 8, Cop), jnp.float32)),
        grid=(N,),
        in_specs=[pl.BlockSpec((1, H, W, Cp), lambda n: (n, 0, 0, 0)),
                  pl.BlockSpec((2, Cp), lambda n: (0, 0)),
                  pl.BlockSpec((9, Cp, Cop), lambda n: (0, 0, 0))],
        out_specs=(pl.BlockSpec((1, n_strips, th * Wo, Cop),
                                lambda n: (n, 0, 0, 0)),
                   pl.BlockSpec((8, Cop), lambda n: (n, 0))),
        scratch_shapes=[pltpu.VMEM((H + 2, W + 2, Cp), jnp.bfloat16),
                        pltpu.VMEM((th * Wo, Cop), jnp.float32)],
        compiler_params=pltpu.CompilerParams(
            dimension_semantics=("parallel",), vmem_limit_bytes=VMEM_LIMIT),
    )(y1_nhwc, sb1, w9)
    csum, csq = _reduce_stats(st, N, Cop)
    return y2.reshape(N * Ho * Wo, Cop), csum, csq


# ----------------------------------------------------------------------------
# Kernel 3: BN3-affine + identity-BN-affine + residual add + ReLU (one pass).
# ----------------------------------------------------------------------------
def _bn_add_relu_kernel(y_ref, sb_ref, id_ref, sbi_ref, o_ref):
    v = y_ref[...].astype(jnp.float32) * sb_ref[0:1, :] + sb_ref[1:2, :]
    r = id_ref[...].astype(jnp.float32) * sbi_ref[0:1, :] + sbi_ref[1:2, :]
    o_ref[...] = jnp.maximum(v + r, 0.0).astype(o_ref.dtype)


def bn_add_relu(y2d, sb, identity, sb_id, *, out_dtype=jnp.bfloat16, tm_cap=1024):
    M, C = y2d.shape
    tm = _row_tile(M, tm_cap)
    ntiles = pl.cdiv(M, tm)
    row = pl.BlockSpec((tm, C), lambda i: (i, 0))
    vec = pl.BlockSpec((2, C), lambda i: (0, 0))
    return pl.pallas_call(
        _bn_add_relu_kernel,
        out_shape=jax.ShapeDtypeStruct((M, C), out_dtype),
        grid=(ntiles,),
        in_specs=[row, vec, row, vec],
        out_specs=row,
        compiler_params=pltpu.CompilerParams(
            dimension_semantics=("parallel",), vmem_limit_bytes=VMEM_LIMIT),
    )(y2d, sb, identity, sb_id)


# ----------------------------------------------------------------------------
# parameter init (PyTorch layouts) + one-time relayout to matmul layouts
# ----------------------------------------------------------------------------
def init_bottleneck_params(key, inplanes, planes, stride=1, base_width=64,
                           groups=1, expansion=EXPANSION, with_downsample=None):
    width = int(planes * (base_width / 64.0)) * groups
    cout = planes * expansion
    if with_downsample is None:
        with_downsample = (stride != 1 or inplanes != cout)
    ks = jax.random.split(key, 4)

    def conv_w(k, co, ci, ksz):
        fan_out = co * ksz * ksz
        std = (2.0 / fan_out) ** 0.5
        return std * jax.random.normal(k, (co, ci, ksz, ksz), jnp.float32)

    raw = {'conv1.weight': conv_w(ks[0], width, inplanes, 1),
           'conv2.weight': conv_w(ks[1], width, width, 3),
           'conv3.weight': conv_w(ks[2], cout, width, 1)}
    if with_downsample:
        raw['downsample.0.weight'] = conv_w(ks[3], cout, inplanes, 1)
    return raw


def prepare_params(raw):
    """One-time: PyTorch (Cout,Cin,k,k) f32 -> padded bf16 matmul layouts."""
    def pad2(a, rp, cp):
        return jnp.zeros((rp, cp), jnp.bfloat16).at[:a.shape[0], :a.shape[1]].set(
            a.astype(jnp.bfloat16))

    w1 = raw['conv1.weight']                      # (width, inplanes, 1, 1)
    width, inplanes = w1.shape[0], w1.shape[1]
    w3 = raw['conv3.weight']                      # (cout, width, 1, 1)
    cout = w3.shape[0]
    cin_p = _round_up(inplanes, LANE)
    w_p = _round_up(width, LANE)
    cout_p = _round_up(cout, LANE)

    p = {'w1': pad2(w1[:, :, 0, 0].T, cin_p, w_p)}                # (Cin_p, W_p)

    w2 = raw['conv2.weight']                      # (width, width, 3, 3)
    w2m = jnp.transpose(w2, (2, 3, 1, 0)).reshape(9, width, width)
    p['w2'] = jnp.zeros((9, w_p, w_p), jnp.bfloat16).at[:, :width, :width].set(
        w2m.astype(jnp.bfloat16))                                 # (9, W_p, W_p)

    p['w3'] = pad2(w3[:, :, 0, 0].T, w_p, cout_p)                 # (W_p, Cout_p)

    if 'downsample.0.weight' in raw:
        wd = raw['downsample.0.weight']           # (cout, inplanes, 1, 1)
        p['w_ds'] = pad2(wd[:, :, 0, 0].T, cin_p, cout_p)         # (Cin_p, Cout_p)
        # Merged conv1+downsample weight (used when stride==1; shared input x).
        p['w1_ds'] = jnp.concatenate([p['w1'], p['w_ds']], axis=1)
    return p


# ----------------------------------------------------------------------------
# Bottleneck forward (weights=None path of the PyTorch module; BN in train mode)
# ----------------------------------------------------------------------------
def bottleneck_forward(params, x_nchw, *, stride, cout):
    N, Cin, H, W = x_nchw.shape
    cin_p = params['w1'].shape[0]
    width_p = params['w1'].shape[1]
    cout_p = params['w3'].shape[1]
    has_ds = 'w_ds' in params
    if (stride != 1 or Cin != cout) and not has_ds:
        raise ValueError("downsample weights are required when stride != 1 or "
                         "inplanes != planes * expansion")

    # One-time layout change: NCHW f32 -> channel-padded NHWC bf16 (128-lane).
    x = jnp.transpose(x_nchw.astype(jnp.float32), (0, 2, 3, 1))
    x = jnp.pad(x, ((0, 0), (0, 0), (0, 0), (0, cin_p - Cin))).astype(jnp.bfloat16)
    M = N * H * W
    x2d = x.reshape(M, cin_p)

    Ho = (H + 2 - 3) // stride + 1
    Wo = (W + 2 - 3) // stride + 1
    M2 = N * Ho * Wo

    # conv1 (1x1) [+ downsample 1x1 merged when it shares the same input].
    if has_ds and stride == 1:
        y1, yd, csum, csq = matmul_dual_bn_stats(x2d, params['w1_ds'], width_p)
        sb1 = _bn_scale_bias(csum[:width_p], csq[:width_p], M)
        identity, sb_id = yd, _bn_scale_bias(csum[width_p:], csq[width_p:], M)
    else:
        y1, c1, q1 = matmul_bn_stats(x2d, params['w1'])
        sb1 = _bn_scale_bias(c1, q1, M)
        if has_ds:
            # TODO(synk): stride-2 identity subsample via XLA strided slice; move
            # the stride into the downsample matmul's DMA/index_map if hot.
            xs = x[:, ::stride, ::stride, :].reshape(M2, cin_p)
            yd, cd, qd = matmul_bn_stats(xs, params['w_ds'])
            identity, sb_id = yd, _bn_scale_bias(cd, qd, M2)
        else:
            identity = x2d                       # stride==1 and Cin==cout
            sb_id = jnp.stack([jnp.ones((cout_p,), jnp.float32),
                               jnp.zeros((cout_p,), jnp.float32)])

    # conv2 (3x3, stride): BN1+ReLU fused in, BN2 stats out.
    y2, c2, q2 = conv3x3_bn_stats(y1.reshape(N, H, W, width_p), sb1,
                                  params['w2'], stride)
    sb2 = _bn_scale_bias(c2, q2, M2)

    # conv3 (1x1): BN2+ReLU fused in, BN3 stats out.
    y3, c3, q3 = matmul_bn_stats(y2, params['w3'], sb=sb2)
    sb3 = _bn_scale_bias(c3, q3, M2)

    # BN3 + downsample-BN (fused affines) + residual add + ReLU, bf16 output.
    out = bn_add_relu(y3, sb3, identity, sb_id)                  # (M2, cout_p)

    # One-time layout change back to the module's NCHW f32 output.
    # TODO(synk): keep padded-NHWC bf16 here when chaining bottleneck blocks.
    out = out.reshape(N, Ho, Wo, cout_p)[..., :cout].astype(jnp.float32)
    return jnp.transpose(out, (0, 3, 1, 2))


# ----------------------------------------------------------------------------
# pure-JAX f32 reference (PyTorch Bottleneck, training-mode BN, fresh init)
# ----------------------------------------------------------------------------
def _ref_bottleneck(raw, x_nchw, stride):
    def conv(v, w, s, pad):
        return jax.lax.conv_general_dilated(
            v, jnp.transpose(w, (2, 3, 1, 0)), (s, s), pad,
            dimension_numbers=('NHWC', 'HWIO', 'NHWC'))

    def bn(v):
        mean = v.mean(axis=(0, 1, 2))
        var = ((v - mean) ** 2).mean(axis=(0, 1, 2))
        return (v - mean) * jax.lax.rsqrt(var + BN_EPS)

    x = jnp.transpose(x_nchw, (0, 2, 3, 1))
    out = jax.nn.relu(bn(conv(x, raw['conv1.weight'], 1, 'VALID')))
    out = jax.nn.relu(bn(conv(out, raw['conv2.weight'], stride,
                              [(1, 1), (1, 1)])))
    out = bn(conv(out, raw['conv3.weight'], 1, 'VALID'))
    if 'downsample.0.weight' in raw:
        idt = bn(conv(x, raw['downsample.0.weight'], stride, 'VALID'))
    else:
        idt = x
    return jnp.transpose(jax.nn.relu(out + idt), (0, 3, 1, 2))


if __name__ == "__main__":
    key = jax.random.PRNGKey(0)
    kx, kp = jax.random.split(key)

    # Bottleneck(inplanes=4, planes=4): width=4, out=16, stride=1, with downsample.
    inplanes, planes, stride = 4, 4, 1
    cout = planes * EXPANSION
    x = jax.random.normal(kx, (2, inplanes, 16, 16), jnp.float32)

    raw = init_bottleneck_params(kp, inplanes, planes, stride=stride)
    params = prepare_params(raw)             # one-time weight relayout (bf16, padded)

    fwd = jax.jit(functools.partial(bottleneck_forward, stride=stride, cout=cout))
    out = fwd(params, x)
    jax.block_until_ready(out)

    assert out.shape == (2, cout, 16, 16), out.shape
    assert bool(jnp.all(jnp.isfinite(out)))

    # loose tolerance: intermediates/weights are bf16, BN stats accumulate in f32
    ref = _ref_bottleneck(raw, x, stride)
    err = float(jnp.max(jnp.abs(out - ref)))
    assert err < 0.35, f"max |pallas - reference| = {err}"
    print("KERNEL_OK")
</pallas_src>

<mosaic_0001>
module attributes {stable_mosaic.version = 11 : i64} {
  func.func @_mm_dual_stats_kernel(%arg0: i32, %arg1: memref<512x128xbf16, #tpu.memory_space<vmem>>, %arg2: memref<128x256xbf16, #tpu.memory_space<vmem>>, %arg3: memref<512x128xbf16, #tpu.memory_space<vmem>>, %arg4: memref<512x128xbf16, #tpu.memory_space<vmem>>, %arg5: memref<8x256xf32, #tpu.memory_space<vmem>>) attributes {dimension_semantics = [#tpu.dimension_semantics<parallel>], iteration_bounds = array<i64: 1>, scalar_prefetch = 0 : i64, scratch_operands = 0 : i64, tpu.core_type = #tpu.core_type<tc>, window_params = [{transform_indices = @transform_0, window_bounds = array<i64: 512, 128>}, {pipeline_mode = #tpu.pipeline_mode<synchronous>, transform_indices = @transform_1, window_bounds = array<i64: 128, 256>}, {transform_indices = @transform_2, window_bounds = array<i64: 512, 128>}, {transform_indices = @transform_3, window_bounds = array<i64: 512, 128>}, {transform_indices = @transform_4, window_bounds = array<i64: 8, 256>}]} {
    %c0 = arith.constant 0 : index
    %c0_0 = arith.constant 0 : index
    %0 = vector.load %arg1[%c0, %c0_0] : memref<512x128xbf16, #tpu.memory_space<vmem>>, vector<512x128xbf16>
    %c0_1 = arith.constant 0 : index
    %c0_2 = arith.constant 0 : index
    %1 = vector.load %arg2[%c0_1, %c0_2] : memref<128x256xbf16, #tpu.memory_space<vmem>>, vector<128x256xbf16>
    %cst = arith.constant dense<0.000000e+00> : vector<512x256xf32>
    %2 = tpu.matmul %0, %1, %cst {dimension_numbers = #tpu.dot_dimension_numbers<[1], [0], [0], [1], [0, 0, 1, 1], [], []>} : vector<512x128xbf16>, vector<128x256xbf16>, vector<512x256xf32> -> vector<512x256xf32>
    %3 = vector.extract_strided_slice %2 {offsets = [0, 0], sizes = [512, 128], strides = [1, 1]} : vector<512x256xf32> to vector<512x128xf32>
    %4 = arith.truncf %3 : vector<512x128xf32> to vector<512x128xbf16>
    %c0_3 = arith.constant 0 : index
    %c0_4 = arith.constant 0 : index
    %5 = vector.load %arg3[%c0_3, %c0_4] : memref<512x128xbf16, #tpu.memory_space<vmem>>, vector<512x128xbf16>
    tpu.vector_store %arg3[%c0_3, %c0_4], %4 {strides = array<i32>} : memref<512x128xbf16, #tpu.memory_space<vmem>>, vector<512x128xbf16>,
    %6 = vector.extract_strided_slice %2 {offsets = [0, 128], sizes = [512, 128], strides = [1, 1]} : vector<512x256xf32> to vector<512x128xf32>
    %7 = arith.truncf %6 : vector<512x128xf32> to vector<512x128xbf16>
    %c0_5 = arith.constant 0 : index
    %c0_6 = arith.constant 0 : index
    %8 = vector.load %arg4[%c0_5, %c0_6] : memref<512x128xbf16, #tpu.memory_space<vmem>>, vector<512x128xbf16>
    tpu.vector_store %arg4[%c0_5, %c0_6], %7 {strides = array<i32>} : memref<512x128xbf16, #tpu.memory_space<vmem>>, vector<512x128xbf16>,
    %cst_7 = arith.constant dense<0.000000e+00> : vector<256xf32>
    %9 = vector.multi_reduction <add>, %2, %cst_7 [0] : vector<512x256xf32> to vector<256xf32>
    %10 = vector.shape_cast %9 : vector<256xf32> to vector<1x256xf32>
    %11 = arith.mulf %2, %2 : vector<512x256xf32>
    %cst_8 = arith.constant dense<0.000000e+00> : vector<256xf32>
    %12 = vector.multi_reduction <add>, %11, %cst_8 [0] : vector<512x256xf32> to vector<256xf32>
    %13 = vector.shape_cast %12 : vector<256xf32> to vector<1x256xf32>
    %14 = tpu.iota {dimensions = array<i32: 0>} : vector<8x256xi32>
    %c0_i32 = arith.constant 0 : i32
    %15 = vector.broadcast %c0_i32 : i32 to vector<8x256xi32>
    %16 = arith.cmpi eq, %14, %15 : vector<8x256xi32>
    %c1_i32 = arith.constant 1 : i32
    %17 = vector.broadcast %c1_i32 : i32 to vector<8x256xi32>
    %18 = arith.cmpi eq, %14, %17 : vector<8x256xi32>
    %cst_9 = arith.constant 0.000000e+00 : f32
    %19 = vector.shape_cast %13 : vector<1x256xf32> to vector<1x256xf32>
    %20 = vector.broadcast %19 : vector<1x256xf32> to vector<8x256xf32>
    %21 = vector.broadcast %cst_9 : f32 to vector<8x256xf32>
    %22 = arith.select %18, %20, %21 : vector<8x256xi1>, vector<8x256xf32>
    %23 = vector.shape_cast %10 : vector<1x256xf32> to vector<1x256xf32>
    %24 = vector.broadcast %23 : vector<1x256xf32> to vector<8x256xf32>
    %25 = arith.select %16, %24, %22 : vector<8x256xi1>, vector<8x256xf32>
    %c0_10 = arith.constant 0 : index
    %c0_11 = arith.constant 0 : index
    %26 = vector.load %arg5[%c0_10, %c0_11] : memref<8x256xf32, #tpu.memory_space<vmem>>, vector<8x256xf32>
    tpu.vector_store %arg5[%c0_10, %c0_11], %25 {strides = array<i32>} : memref<8x256xf32, #tpu.memory_space<vmem>>, vector<8x256xf32>,
    return
  }
  func.func @transform_0(%arg0: i32) -> (i32, i32) {
    %c0_i32 = arith.constant 0 : i32
    %c0_i32_0 = arith.constant 0 : i32
    return %arg0, %c0_i32 : i32, i32
  }
  func.func @transform_1(%arg0: i32) -> (i32, i32) {
    %c0_i32 = arith.constant 0 : i32
    %c0_i32_0 = arith.constant 0 : i32
    %c0_i32_1 = arith.constant 0 : i32
    return %c0_i32, %c0_i32_0 : i32, i32
  }
  func.func @transform_2(%arg0: i32) -> (i32, i32) {
    %c0_i32 = arith.constant 0 : i32
    %c0_i32_0 = arith.constant 0 : i32
    return %arg0, %c0_i32 : i32, i32
  }
  func.func @transform_3(%arg0: i32) -> (i32, i32) {
    %c0_i32 = arith.constant 0 : i32
    %c0_i32_0 = arith.constant 0 : i32
    return %arg0, %c0_i32 : i32, i32
  }
  func.func @transform_4(%arg0: i32) -> (i32, i32) {
    %c0_i32 = arith.constant 0 : i32
    %c0_i32_0 = arith.constant 0 : i32
    return %arg0, %c0_i32 : i32, i32
  }
}

module attributes {stable_mosaic.version = 11 : i64} {
  func.func @_conv3x3_kernel(%arg0: i32, %arg1: memref<1x16x16x128xbf16, #tpu.memory_space<vmem>>, %arg2: memref<2x128xf32, #tpu.memory_space<vmem>>, %arg3: memref<9x128x128xbf16, #tpu.memory_space<vmem>>, %arg4: memref<1x1x256x128xbf16, #tpu.memory_space<vmem>>, %arg5: memref<8x128xf32, #tpu.memory_space<vmem>>, %arg6: memref<18x18x128xbf16, #tpu.memory_space<vmem>>, %arg7: memref<256x128xf32, #tpu.memory_space<vmem>>) attributes {dimension_semantics = [#tpu.dimension_semantics<parallel>], iteration_bounds = array<i64: 2>, scalar_prefetch = 0 : i64, scratch_operands = 2 : i64, tpu.core_type = #tpu.core_type<tc>, window_params = [{transform_indices = @transform_0, window_bounds = array<i64: 1, 16, 16, 128>}, {pipeline_mode = #tpu.pipeline_mode<synchronous>, transform_indices = @transform_1, window_bounds = array<i64: 2, 128>}, {pipeline_mode = #tpu.pipeline_mode<synchronous>, transform_indices = @transform_2, window_bounds = array<i64: 9, 128, 128>}, {transform_indices = @transform_3, window_bounds = array<i64: 1, 1, 256, 128>}, {transform_indices = @transform_4, window_bounds = array<i64: 8, 128>}]} {
    %cst = arith.constant 0.000000e+00 : bf16
    %0 = vector.broadcast %cst : bf16 to vector<18x18x128xbf16>
    %c0 = arith.constant 0 : index
    %c0_0 = arith.constant 0 : index
    %c0_1 = arith.constant 0 : index
    %1 = vector.load %arg6[%c0, %c0_0, %c0_1] : memref<18x18x128xbf16, #tpu.memory_space<vmem>>, vector<18x18x128xbf16>
    tpu.vector_store %arg6[%c0, %c0_0, %c0_1], %0 {strides = array<i32>} : memref<18x18x128xbf16, #tpu.memory_space<vmem>>, vector<18x18x128xbf16>,
    %c0_2 = arith.constant 0 : index
    %c0_3 = arith.constant 0 : index
    %c0_4 = arith.constant 0 : index
    %c0_5 = arith.constant 0 : index
    %2 = vector.load %arg1[%c0_2, %c0_3, %c0_4, %c0_5] : memref<1x16x16x128xbf16, #tpu.memory_space<vmem>>, vector<1x16x16x128xbf16>
    %3 = vector.shape_cast %2 : vector<1x16x16x128xbf16> to vector<16x16x128xbf16>
    %4 = arith.extf %3 : vector<16x16x128xbf16> to vector<16x16x128xf32>
    %c0_6 = arith.constant 0 : index
    %c0_7 = arith.constant 0 : index
    %5 = vector.load %arg2[%c0_6, %c0_7] : memref<2x128xf32, #tpu.memory_space<vmem>>, vector<1x128xf32>
    %6 = vector.shape_cast %5 : vector<1x128xf32> to vector<1x1x128xf32>
    %7 = vector.broadcast %6 : vector<1x1x128xf32> to vector<16x16x128xf32>
    %8 = arith.mulf %4, %7 : vector<16x16x128xf32>
    %c1 = arith.constant 1 : index
    %c0_8 = arith.constant 0 : index
    %9 = vector.load %arg2[%c1, %c0_8] : memref<2x128xf32, #tpu.memory_space<vmem>>, vector<1x128xf32>
    %10 = vector.shape_cast %9 : vector<1x128xf32> to vector<1x1x128xf32>
    %11 = vector.broadcast %10 : vector<1x1x128xf32> to vector<16x16x128xf32>
    %12 = arith.addf %8, %11 : vector<16x16x128xf32>
    %cst_9 = arith.constant 0.000000e+00 : f32
    %13 = vector.broadcast %cst_9 : f32 to vector<16x16x128xf32>
    %14 = arith.maximumf %12, %13 : vector<16x16x128xf32>
    %15 = arith.truncf %14 : vector<16x16x128xf32> to vector<16x16x128xbf16>
    %c1_10 = arith.constant 1 : index
    %c1_11 = arith.constant 1 : index
    %c0_12 = arith.constant 0 : index
    %16 = vector.load %arg6[%c1_10, %c1_11, %c0_12] : memref<18x18x128xbf16, #tpu.memory_space<vmem>>, vector<16x16x128xbf16>
    tpu.vector_store %arg6[%c1_10, %c1_11, %c0_12], %15 {strides = array<i32>} : memref<18x18x128xbf16, #tpu.memory_space<vmem>>, vector<16x16x128xbf16>,
    %cst_13 = arith.constant 0.000000e+00 : f32
    %17 = vector.broadcast %cst_13 : f32 to vector<8x128xf32>
    %c0_14 = arith.constant 0 : index
    %c0_15 = arith.constant 0 : index
    %18 = vector.load %arg5[%c0_14, %c0_15] : memref<8x128xf32, #tpu.memory_space<vmem>>, vector<8x128xf32>
    tpu.vector_store %arg5[%c0_14, %c0_15], %17 {strides = array<i32>} : memref<8x128xf32, #tpu.memory_space<vmem>>, vector<8x128xf32>,
    %c0_i32 = arith.constant 0 : i32
    %c1_i32 = arith.constant 1 : i32
    %19 = arith.muli %c0_i32, %c1_i32 : i32
    %c0_i32_16 = arith.constant 0 : i32
    %20 = arith.addi %c0_i32_16, %19 : i32
    %c16_i32 = arith.constant 16 : i32
    %21 = arith.muli %20, %c16_i32 : i32
    %22 = tpu.assume_multiple %21, 16 : i32
    %cst_17 = arith.constant 0.000000e+00 : f32
    %23 = vector.broadcast %cst_17 : f32 to vector<256x128xf32>
    %c0_18 = arith.constant 0 : index
    %c0_19 = arith.constant 0 : index
    %24 = vector.load %arg7[%c0_18, %c0_19] : memref<256x128xf32, #tpu.memory_space<vmem>>, vector<256x128xf32>
    tpu.vector_store %arg7[%c0_18, %c0_19], %23 {strides = array<i32>} : memref<256x128xf32, #tpu.memory_space<vmem>>, vector<256x128xf32>,
    %c0_i32_20 = arith.constant 0 : i32
    %25 = arith.addi %22, %c0_i32_20 : i32
    %26 = arith.index_cast %25 : i32 to index
    %c0_21 = arith.constant 0 : index
    %c0_22 = arith.constant 0 : index
    %27 = vector.load %arg6[%26, %c0_21, %c0_22] : memref<18x18x128xbf16, #tpu.memory_space<vmem>>, vector<16x16x128xbf16>
    %c0_23 = arith.constant 0 : index
    %c0_24 = arith.constant 0 : index
    %28 = vector.load %arg7[%c0_23, %c0_24] : memref<256x128xf32, #tpu.memory_space<vmem>>, vector<256x128xf32>
    %29 = vector.shape_cast %27 : vector<16x16x128xbf16> to vector<256x128xbf16>
    %c0_25 = arith.constant 0 : index
    %c0_26 = arith.constant 0 : index
    %c0_27 = arith.constant 0 : index
    %30 = vector.load %arg3[%c0_25, %c0_26, %c0_27] : memref<9x128x128xbf16, #tpu.memory_space<vmem>>, vector<1x128x128xbf16>
    %31 = vector.shape_cast %30 : vector<1x128x128xbf16> to vector<128x128xbf16>
    %cst_28 = arith.constant dense<0.000000e+00> : vector<256x128xf32>
    %32 = tpu.matmul %29, %31, %cst_28 {dimension_numbers = #tpu.dot_dimension_numbers<[1], [0], [0], [1], [0, 0, 1, 1], [], []>} : vector<256x128xbf16>, vector<128x128xbf16>, vector<256x128xf32> -> vector<256x128xf32>
    %33 = arith.addf %28, %32 : vector<256x128xf32>
    %c0_29 = arith.constant 0 : index
    %c0_30 = arith.constant 0 : index
    %34 = vector.load %arg7[%c0_29, %c0_30] : memref<256x128xf32, #tpu.memory_space<vmem>>, vector<256x128xf32>
    tpu.vector_store %arg7[%c0_29, %c0_30], %33 {strides = array<i32>} : memref<256x128xf32, #tpu.memory_space<vmem>>, vector<256x128xf32>,
    %c0_i32_31 = arith.constant 0 : i32
    %35 = arith.addi %22, %c0_i32_31 : i32
    %36 = arith.index_cast %35 : i32 to index
    %c1_32 = arith.constant 1 : index
    %c0_33 = arith.constant 0 : index
    %37 = vector.load %arg6[%36, %c1_32, %c0_33] : memref<18x18x128xbf16, #tpu.memory_space<vmem>>, vector<16x16x128xbf16>
    %c0_34 = arith.constant 0 : index
    %c0_35 = arith.constant 0 : index
    %38 = vector.load %arg7[%c0_34, %c0_35] : memref<256x128xf32, #tpu.memory_space<vmem>>, vector<256x128xf32>
    %39 = vector.shape_cast %37 : vector<16x16x128xbf16> to vector<256x128xbf16>
    %c1_36 = arith.constant 1 : index
    %c0_37 = arith.constant 0 : index
    %c0_38 = arith.constant 0 : index
    %40 = vector.load %arg3[%c1_36, %c0_37, %c0_38] : memref<9x128x128xbf16, #tpu.memory_space<vmem>>, vector<1x128x128xbf16>
    %41 = vector.shape_cast %40 : vector<1x128x128xbf16> to vector<128x128xbf16>
    %cst_39 = arith.constant dense<0.000000e+00> : vector<256x128xf32>
    %42 = tpu.matmul %39, %41, %cst_39 {dimension_numbers = #tpu.dot_dimension_numbers<[1], [0], [0], [1], [0, 0, 1, 1], [], []>} : vector<256x128xbf16>, vector<128x128xbf16>, vector<256x128xf32> -> vector<256x128xf32>
    %43 = arith.addf %38, %42 : vector<256x128xf32>
    %c0_40 = arith.constant 0 : index
    %c0_41 = arith.constant 0 : index
    %44 = vector.load %arg7[%c0_40, %c0_41] : memref<256x128xf32, #tpu.memory_space<vmem>>, vector<256x128xf32>
    tpu.vector_store %arg7[%c0_40, %c0_41], %43 {strides = array<i32>} : memref<256x128xf32, #tpu.memory_space<vmem>>, vector<256x128xf32>,
    %c0_i32_42 = arith.constant 0 : i32
    %45 = arith.addi %22, %c0_i32_42 : i32
    %46 = arith.index_cast %45 : i32 to index
    %c2 = arith.constant 2 : index
    %c0_43 = arith.constant 0 : index
    %47 = vector.load %arg6[%46, %c2, %c0_43] : memref<18x18x128xbf16, #tpu.memory_space<vmem>>, vector<16x16x128xbf16>
    %c0_44 = arith.constant 0 : index
    %c0_45 = arith.constant 0 : index
    %48 = vector.load %arg7[%c0_44, %c0_45] : memref<256x128xf32, #tpu.memory_space<vmem>>, vector<256x128xf32>
    %49 = vector.shape_cast %47 : vector<16x16x128xbf16> to vector<256x128xbf16>
    %c2_46 = arith.constant 2 : index
    %c0_47 = arith.constant 0 : index
    %c0_48 = arith.constant 0 : index
    %50 = vector.load %arg3[%c2_46, %c0_47, %c0_48] : memref<9x128x128xbf16, #tpu.memory_space<vmem>>, vector<1x128x128xbf16>
    %51 = vector.shape_cast %50 : vector<1x128x128xbf16> to vector<128x128xbf16>
    %cst_49 = arith.constant dense<0.000000e+00> : vector<256x128xf32>
    %52 = tpu.matmul %49, %51, %cst_49 {dimension_numbers = #tpu.dot_dimension_numbers<[1], [0], [0], [1], [0, 0, 1, 1], [], []>} : vector<256x128xbf16>, vector<128x128xbf16>, vector<256x128xf32> -> vector<256x128xf32>
    %53 = arith.addf %48, %52 : vector<256x128xf32>
    %c0_50 = arith.constant 0 : index
    %c0_51 = arith.constant 0 : index
    %54 = vector.load %arg7[%c0_50, %c0_51] : memref<256x128xf32, #tpu.memory_space<vmem>>, vector<256x128xf32>
    tpu.vector_store %arg7[%c0_50, %c0_51], %53 {strides = array<i32>} : memref<256x128xf32, #tpu.memory_space<vmem>>, vector<256x128xf32>,
    %c1_i32_52 = arith.constant 1 : i32
    %55 = arith.addi %22, %c1_i32_52 : i32
    %56 = arith.index_cast %55 : i32 to index
    %c0_53 = arith.constant 0 : index
    %c0_54 = arith.constant 0 : index
    %57 = vector.load %arg6[%56, %c0_53, %c0_54] : memref<18x18x128xbf16, #tpu.memory_space<vmem>>, vector<16x16x128xbf16>
    %c0_55 = arith.constant 0 : index
    %c0_56 = arith.constant 0 : index
    %58 = vector.load %arg7[%c0_55, %c0_56] : memref<256x128xf32, #tpu.memory_space<vmem>>, vector<256x128xf32>
    %59 = vector.shape_cast %57 : vector<16x16x128xbf16> to vector<256x128xbf16>
    %c3 = arith.constant 3 : index
    %c0_57 = arith.constant 0 : index
    %c0_58 = arith.constant 0 : index
    %60 = vector.load %arg3[%c3, %c0_57, %c0_58] : memref<9x128x128xbf16, #tpu.memory_space<vmem>>, vector<1x128x128xbf16>
    %61 = vector.shape_cast %60 : vector<1x128x128xbf16> to vector<128x128xbf16>
    %cst_59 = arith.constant dense<0.000000e+00> : vector<256x128xf32>
    %62 = tpu.matmul %59, %61, %cst_59 {dimension_numbers = #tpu.dot_dimension_numbers<[1], [0], [0], [1], [0, 0, 1, 1], [], []>} : vector<256x128xbf16>, vector<128x128xbf16>, vector<256x128xf32> -> vector<256x128xf32>
    %63 = arith.addf %58, %62 : vector<256x128xf32>
    %c0_60 = arith.constant 0 : index
    %c0_61 = arith.constant 0 : index
    %64 = vector.load %arg7[%c0_60, %c0_61] : memref<256x128xf32, #tpu.memory_space<vmem>>, vector<256x128xf32>
    tpu.vector_store %arg7[%c0_60, %c0_61], %63 {strides = array<i32>} : memref<256x128xf32, #tpu.memory_space<vmem>>, vector<256x128xf32>,
    %c1_i32_62 = arith.constant 1 : i32
    %65 = arith.addi %22, %c1_i32_62 : i32
    %66 = arith.index_cast %65 : i32 to index
    %c1_63 = arith.constant 1 : index
    %c0_64 = arith.constant 0 : index
    %67 = vector.load %arg6[%66, %c1_63, %c0_64] : memref<18x18x128xbf16, #tpu.memory_space<vmem>>, vector<16x16x128xbf16>
    %c0_65 = arith.constant 0 : index
    %c0_66 = arith.constant 0 : index
    %68 = vector.load %arg7[%c0_65, %c0_66] : memref<256x128xf32, #tpu.memory_space<vmem>>, vector<256x128xf32>
    %69 = vector.shape_cast %67 : vector<16x16x128xbf16> to vector<256x128xbf16>
    %c4 = arith.constant 4 : index
    %c0_67 = arith.constant 0 : index
    %c0_68 = arith.constant 0 : index
    %70 = vector.load %arg3[%c4, %c0_67, %c0_68] : memref<9x128x128xbf16, #tpu.memory_space<vmem>>, vector<1x128x128xbf16>
    %71 = vector.shape_cast %70 : vector<1x128x128xbf16> to vector<128x128xbf16>
    %cst_69 = arith.constant dense<0.000000e+00> : vector<256x128xf32>
    %72 = tpu.matmul %69, %71, %cst_69 {dimension_numbers = #tpu.dot_dimension_numbers<[1], [0], [0], [1], [0, 0, 1, 1], [], []>} : vector<256x128xbf16>, vector<128x128xbf16>, vector<256x128xf32> -> vector<256x128xf32>
    %73 = arith.addf %68, %72 : vector<256x128xf32>
    %c0_70 = arith.constant 0 : index
    %c0_71 = arith.constant 0 : index
    %74 = vector.load %arg7[%c0_70, %c0_71] : memref<256x128xf32, #tpu.memory_space<vmem>>, vector<256x128xf32>
    tpu.vector_store %arg7[%c0_70, %c0_71], %73 {strides = array<i32>} : memref<256x128xf32, #tpu.memory_space<vmem>>, vector<256x128xf32>,
    %c1_i32_72 = arith.constant 1 : i32
    %75 = arith.addi %22, %c1_i32_72 : i32
    %76 = arith.index_cast %75 : i32 to index
    %c2_73 = arith.constant 2 : index
    %c0_74 = arith.constant 0 : index
    %77 = vector.load %arg6[%76, %c2_73, %c0_74] : memref<18x18x128xbf16, #tpu.memory_space<vmem>>, vector<16x16x128xbf16>
    %c0_75 = arith.constant 0 : index
    %c0_76 = arith.constant 0 : index
    %78 = vector.load %arg7[%c0_75, %c0_76] : memref<256x128xf32, #tpu.memory_space<vmem>>, vector<256x128xf32>
    %79 = vector.shape_cast %77 : vector<16x16x128xbf16> to vector<256x128xbf16>
    %c5 = arith.constant 5 : index
    %c0_77 = arith.constant 0 : index
    %c0_78 = arith.constant 0 : index
    %80 = vector.load %arg3[%c5, %c0_77, %c0_78] : memref<9x128x128xbf16, #tpu.memory_space<vmem>>, vector<1x128x128xbf16>
    %81 = vector.shape_cast %80 : vector<1x128x128xbf16> to vector<128x128xbf16>
    %cst_79 = arith.constant dense<0.000000e+00> : vector<256x128xf32>
    %82 = tpu.matmul %79, %81, %cst_79 {dimension_numbers = #tpu.dot_dimension_numbers<[1], [0], [0], [1], [0, 0, 1, 1], [], []>} : vector<256x128xbf16>, vector<128x128xbf16>, vector<256x128xf32> -> vector<256x128xf32>
    %83 = arith.addf %78, %82 : vector<256x128xf32>
    %c0_80 = arith.constant 0 : index
    %c0_81 = arith.constant 0 : index
    %84 = vector.load %arg7[%c0_80, %c0_81] : memref<256x128xf32, #tpu.memory_space<vmem>>, vector<256x128xf32>
    tpu.vector_store %arg7[%c0_80, %c0_81], %83 {strides = array<i32>} : memref<256x128xf32, #tpu.memory_space<vmem>>, vector<256x128xf32>,
    %c2_i32 = arith.constant 2 : i32
    %85 = arith.addi %22, %c2_i32 : i32
    %86 = arith.index_cast %85 : i32 to index
    %c0_82 = arith.constant 0 : index
    %c0_83 = arith.constant 0 : index
    %87 = vector.load %arg6[%86, %c0_82, %c0_83] : memref<18x18x128xbf16, #tpu.memory_space<vmem>>, vector<16x16x128xbf16>
    %c0_84 = arith.constant 0 : index
    %c0_85 = arith.constant 0 : index
    %88 = vector.load %arg7[%c0_84, %c0_85] : memref<256x128xf32, #tpu.memory_space<vmem>>, vector<256x128xf32>
    %89 = vector.shape_cast %87 : vector<16x16x128xbf16> to vector<256x128xbf16>
    %c6 = arith.constant 6 : index
    %c0_86 = arith.constant 0 : index
    %c0_87 = arith.constant 0 : index
    %90 = vector.load %arg3[%c6, %c0_86, %c0_87] : memref<9x128x128xbf16, #tpu.memory_space<vmem>>, vector<1x128x128xbf16>
    %91 = vector.shape_cast %90 : vector<1x128x128xbf16> to vector<128x128xbf16>
    %cst_88 = arith.constant dense<0.000000e+00> : vector<256x128xf32>
    %92 = tpu.matmul %89, %91, %cst_88 {dimension_numbers = #tpu.dot_dimension_numbers<[1], [0], [0], [1], [0, 0, 1, 1], [], []>} : vector<256x128xbf16>, vector<128x128xbf16>, vector<256x128xf32> -> vector<256x128xf32>
    %93 = arith.addf %88, %92 : vector<256x128xf32>
    %c0_89 = arith.constant 0 : index
    %c0_90 = arith.constant 0 : index
    %94 = vector.load %arg7[%c0_89, %c0_90] : memref<256x128xf32, #tpu.memory_space<vmem>>, vector<256x128xf32>
    tpu.vector_store %arg7[%c0_89, %c0_90], %93 {strides = array<i32>} : memref<256x128xf32, #tpu.memory_space<vmem>>, vector<256x128xf32>,
    %c2_i32_91 = arith.constant 2 : i32
    %95 = arith.addi %22, %c2_i32_91 : i32
    %96 = arith.index_cast %95 : i32 to index
    %c1_92 = arith.constant 1 : index
    %c0_93 = arith.constant 0 : index
    %97 = vector.load %arg6[%96, %c1_92, %c0_93] : memref<18x18x128xbf16, #tpu.memory_space<vmem>>, vector<16x16x128xbf16>
    %c0_94 = arith.constant 0 : index
    %c0_95 = arith.constant 0 : index
    %98 = vector.load %arg7[%c0_94, %c0_95] : memref<256x128xf32, #tpu.memory_space<vmem>>, vector<256x128xf32>
    %99 = vector.shape_cast %97 : vector<16x16x128xbf16> to vector<256x128xbf16>
    %c7 = arith.constant 7 : index
    %c0_96 = arith.constant 0 : index
    %c0_97 = arith.constant 0 : index
    %100 = vector.load %arg3[%c7, %c0_96, %c0_97] : memref<9x128x128xbf16, #tpu.memory_space<vmem>>, vector<1x128x128xbf16>
    %101 = vector.shape_cast %100 : vector<1x128x128xbf16> to vector<128x128xbf16>
    %cst_98 = arith.constant dense<0.000000e+00> : vector<256x128xf32>
    %102 = tpu.matmul %99, %101, %cst_98 {dimension_numbers = #tpu.dot_dimension_numbers<[1], [0], [0], [1], [0, 0, 1, 1], [], []>} : vector<256x128xbf16>, vector<128x128xbf16>, vector<256x128xf32> -> vector<256x128xf32>
    %103 = arith.addf %98, %102 : vector<256x128xf32>
    %c0_99 = arith.constant 0 : index
    %c0_100 = arith.constant 0 : index
    %104 = vector.load %arg7[%c0_99, %c0_100] : memref<256x128xf32, #tpu.memory_space<vmem>>, vector<256x128xf32>
    tpu.vector_store %arg7[%c0_99, %c0_100], %103 {strides = array<i32>} : memref<256x128xf32, #tpu.memory_space<vmem>>, vector<256x128xf32>,
    %c2_i32_101 = arith.constant 2 : i32
    %105 = arith.addi %22, %c2_i32_101 : i32
    %106 = arith.index_cast %105 : i32 to index
    %c2_102 = arith.constant 2 : index
    %c0_103 = arith.constant 0 : index
    %107 = vector.load %arg6[%106, %c2_102, %c0_103] : memref<18x18x128xbf16, #tpu.memory_space<vmem>>, vector<16x16x128xbf16>
    %c0_104 = arith.constant 0 : index
    %c0_105 = arith.constant 0 : index
    %108 = vector.load %arg7[%c0_104, %c0_105] : memref<256x128xf32, #tpu.memory_space<vmem>>, vector<256x128xf32>
    %109 = vector.shape_cast %107 : vector<16x16x128xbf16> to vector<256x128xbf16>
    %c8 = arith.constant 8 : index
    %c0_106 = arith.constant 0 : index
    %c0_107 = arith.constant 0 : index
    %110 = vector.load %arg3[%c8, %c0_106, %c0_107] : memref<9x128x128xbf16, #tpu.memory_space<vmem>>, vector<1x128x128xbf16>
    %111 = vector.shape_cast %110 : vector<1x128x128xbf16> to vector<128x128xbf16>
    %cst_108 = arith.constant dense<0.000000e+00> : vector<256x128xf32>
    %112 = tpu.matmul %109, %111, %cst_108 {dimension_numbers = #tpu.dot_dimension_numbers<[1], [0], [0], [1], [0, 0, 1, 1], [], []>} : vector<256x128xbf16>, vector<128x128xbf16>, vector<256x128xf32> -> vector<256x128xf32>
    %113 = arith.addf %108, %112 : vector<256x128xf32>
    %c0_109 = arith.constant 0 : index
    %c0_110 = arith.constant 0 : index
    %114 = vector.load %arg7[%c0_109, %c0_110] : memref<256x128xf32, #tpu.memory_space<vmem>>, vector<256x128xf32>
    tpu.vector_store %arg7[%c0_109, %c0_110], %113 {strides = array<i32>} : memref<256x128xf32, #tpu.memory_space<vmem>>, vector<256x128xf32>,
    %c0_111 = arith.constant 0 : index
    %c0_112 = arith.constant 0 : index
    %115 = vector.load %arg7[%c0_111, %c0_112] : memref<256x128xf32, #tpu.memory_space<vmem>>, vector<256x128xf32>
    %116 = arith.truncf %115 : vector<256x128xf32> to vector<256x128xbf16>
    %c0_113 = arith.constant 0 : index
    %117 = arith.index_cast %20 : i32 to index
    %c0_114 = arith.constant 0 : index
    %c0_115 = arith.constant 0 : index
    %118 = vector.load %arg4[%c0_113, %117, %c0_114, %c0_115] : memref<1x1x256x128xbf16, #tpu.memory_space<vmem>>, vector<1x1x256x128xbf16>
    %119 = vector.shape_cast %118 : vector<1x1x256x128xbf16> to vector<256x128xbf16>
    %120 = vector.shape_cast %116 : vector<256x128xbf16> to vector<1x1x256x128xbf16>
    tpu.vector_store %arg4[%c0_113, %117, %c0_114, %c0_115], %120 {strides = array<i32>} : memref<1x1x256x128xbf16, #tpu.memory_space<vmem>>, vector<1x1x256x128xbf16>,
    %c0_116 = arith.constant 0 : index
    %c0_117 = arith.constant 0 : index
    %121 = vector.load %arg5[%c0_116, %c0_117] : memref<8x128xf32, #tpu.memory_space<vmem>>, vector<1x128xf32>
    %cst_118 = arith.constant dense<0.000000e+00> : vector<128xf32>
    %122 = vector.multi_reduction <add>, %115, %cst_118 [0] : vector<256x128xf32> to vector<128xf32>
    %123 = vector.shape_cast %122 : vector<128xf32> to vector<1x128xf32>
    %124 = arith.addf %121, %123 : vector<1x128xf32>
    %c0_119 = arith.constant 0 : index
    %c0_120 = arith.constant 0 : index
    %125 = vector.load %arg5[%c0_119, %c0_120] : memref<8x128xf32, #tpu.memory_space<vmem>>, vector<1x128xf32>
    tpu.vector_store %arg5[%c0_119, %c0_120], %124 {strides = array<i32>} : memref<8x128xf32, #tpu.memory_space<vmem>>, vector<1x128xf32>,
    %c1_121 = arith.constant 1 : index
    %c0_122 = arith.constant 0 : index
    %126 = vector.load %arg5[%c1_121, %c0_122] : memref<8x128xf32, #tpu.memory_space<vmem>>, vector<1x128xf32>
    %127 = arith.mulf %115, %115 : vector<256x128xf32>
    %cst_123 = arith.constant dense<0.000000e+00> : vector<128xf32>
    %128 = vector.multi_reduction <add>, %127, %cst_123 [0] : vector<256x128xf32> to vector<128xf32>
    %129 = vector.shape_cast %128 : vector<128xf32> to vector<1x128xf32>
    %130 = arith.addf %126, %129 : vector<1x128xf32>
    %c1_124 = arith.constant 1 : index
    %c0_125 = arith.constant 0 : index
    %131 = vector.load %arg5[%c1_124, %c0_125] : memref<8x128xf32, #tpu.memory_space<vmem>>, vector<1x128xf32>
    tpu.vector_store %arg5[%c1_124, %c0_125], %130 {strides = array<i32>} : memref<8x128xf32, #tpu.memory_space<vmem>>, vector<1x128xf32>,
    %c1_i32_126 = arith.constant 1 : i32
    return
  }
  func.func @transform_0(%arg0: i32) -> (i32, i32, i32, i32) {
    %c0_i32 = arith.constant 0 : i32
    %c0_i32_0 = arith.constant 0 : i32
    %c0_i32_1 = arith.constant 0 : i32
    %c0_i32_2 = arith.constant 0 : i32
    return %arg0, %c0_i32, %c0_i32_0, %c0_i32_1 : i32, i32, i32, i32
  }
  func.func @transform_1(%arg0: i32) -> (i32, i32) {
    %c0_i32 = arith.constant 0 : i32
    %c0_i32_0 = arith.constant 0 : i32
    %c0_i32_1 = arith.constant 0 : i32
    return %c0_i32, %c0_i32_0 : i32, i32
  }
  func.func @transform_2(%arg0: i32) -> (i32, i32, i32) {
    %c0_i32 = arith.constant 0 : i32
    %c0_i32_0 = arith.constant 0 : i32
    %c0_i32_1 = arith.constant 0 : i32
    %c0_i32_2 = arith.constant 0 : i32
    return %c0_i32, %c0_i32_0, %c0_i32_1 : i32, i32, i32
  }
  func.func @transform_3(%arg0: i32) -> (i32, i32, i32, i32) {
    %c0_i32 = arith.constant 0 : i32
    %c0_i32_0 = arith.constant 0 : i32
    %c0_i32_1 = arith.constant 0 : i32
    %c0_i32_2 = arith.constant 0 : i32
    return %arg0, %c0_i32, %c0_i32_0, %c0_i32_1 : i32, i32, i32, i32
  }
  func.func @transform_4(%arg0: i32) -> (i32, i32) {
    %c0_i32 = arith.constant 0 : i32
    %c0_i32_0 = arith.constant 0 : i32
    return %arg0, %c0_i32 : i32, i32
  }
}

module attributes {stable_mosaic.version = 11 : i64} {
  func.func @_bn_add_relu_kernel(%arg0: i32, %arg1: memref<512x128xbf16, #tpu.memory_space<vmem>>, %arg2: memref<2x128xf32, #tpu.memory_space<vmem>>, %arg3: memref<512x128xbf16, #tpu.memory_space<vmem>>, %arg4: memref<2x128xf32, #tpu.memory_space<vmem>>, %arg5: memref<512x128xbf16, #tpu.memory_space<vmem>>) attributes {dimension_semantics = [#tpu.dimension_semantics<parallel>], iteration_bounds = array<i64: 1>, scalar_prefetch = 0 : i64, scratch_operands = 0 : i64, tpu.core_type = #tpu.core_type<tc>, window_params = [{transform_indices = @transform_0, window_bounds = array<i64: 512, 128>}, {pipeline_mode = #tpu.pipeline_mode<synchronous>, transform_indices = @transform_1, window_bounds = array<i64: 2, 128>}, {transform_indices = @transform_2, window_bounds = array<i64: 512, 128>}, {pipeline_mode = #tpu.pipeline_mode<synchronous>, transform_indices = @transform_3, window_bounds = array<i64: 2, 128>}, {transform_indices = @transform_4, window_bounds = array<i64: 512, 128>}]} {
    %c0 = arith.constant 0 : index
    %c0_0 = arith.constant 0 : index
    %0 = vector.load %arg1[%c0, %c0_0] : memref<512x128xbf16, #tpu.memory_space<vmem>>, vector<512x128xbf16>
    %1 = arith.extf %0 : vector<512x128xbf16> to vector<512x128xf32>
    %c0_1 = arith.constant 0 : index
    %c0_2 = arith.constant 0 : index
    %2 = vector.load %arg2[%c0_1, %c0_2] : memref<2x128xf32, #tpu.memory_space<vmem>>, vector<1x128xf32>
    %3 = vector.broadcast %2 : vector<1x128xf32> to vector<512x128xf32>
    %4 = arith.mulf %1, %3 : vector<512x128xf32>
    %c1 = arith.constant 1 : index
    %c0_3 = arith.constant 0 : index
    %5 = vector.load %arg2[%c1, %c0_3] : memref<2x128xf32, #tpu.memory_space<vmem>>, vector<1x128xf32>
    %6 = vector.broadcast %5 : vector<1x128xf32> to vector<512x128xf32>
    %7 = arith.addf %4, %6 : vector<512x128xf32>
    %c0_4 = arith.constant 0 : index
    %c0_5 = arith.constant 0 : index
    %8 = vector.load %arg3[%c0_4, %c0_5] : memref<512x128xbf16, #tpu.memory_space<vmem>>, vector<512x128xbf16>
    %9 = arith.extf %8 : vector<512x128xbf16> to vector<512x128xf32>
    %c0_6 = arith.constant 0 : index
    %c0_7 = arith.constant 0 : index
    %10 = vector.load %arg4[%c0_6, %c0_7] : memref<2x128xf32, #tpu.memory_space<vmem>>, vector<1x128xf32>
    %11 = vector.broadcast %10 : vector<1x128xf32> to vector<512x128xf32>
    %12 = arith.mulf %9, %11 : vector<512x128xf32>
    %c1_8 = arith.constant 1 : index
    %c0_9 = arith.constant 0 : index
    %13 = vector.load %arg4[%c1_8, %c0_9] : memref<2x128xf32, #tpu.memory_space<vmem>>, vector<1x128xf32>
    %14 = vector.broadcast %13 : vector<1x128xf32> to vector<512x128xf32>
    %15 = arith.addf %12, %14 : vector<512x128xf32>
    %16 = arith.addf %7, %15 : vector<512x128xf32>
    %cst = arith.constant 0.000000e+00 : f32
    %17 = vector.broadcast %cst : f32 to vector<512x128xf32>
    %18 = arith.maximumf %16, %17 : vector<512x128xf32>
    %19 = arith.truncf %18 : vector<512x128xf32> to vector<512x128xbf16>
    %c0_10 = arith.constant 0 : index
    %c0_11 = arith.constant 0 : index
    %20 = vector.load %arg5[%c0_10, %c0_11] : memref<512x128xbf16, #tpu.memory_space<vmem>>, vector<512x128xbf16>
    tpu.vector_store %arg5[%c0_10, %c0_11], %19 {strides = array<i32>} : memref<512x128xbf16, #tpu.memory_space<vmem>>, vector<512x128xbf16>,
    return
  }
  func.func @transform_0(%arg0: i32) -> (i32, i32) {
    %c0_i32 = arith.constant 0 : i32
    %c0_i32_0 = arith.constant 0 : i32
    return %arg0, %c0_i32 : i32, i32
  }
  func.func @transform_1(%arg0: i32) -> (i32, i32) {
    %c0_i32 = arith.constant 0 : i32
    %c0_i32_0 = arith.constant 0 : i32
    %c0_i32_1 = arith.constant 0 : i32
    return %c0_i32, %c0_i32_0 : i32, i32
  }
  func.func @transform_2(%arg0: i32) -> (i32, i32) {
    %c0_i32 = arith.constant 0 : i32
    %c0_i32_0 = arith.constant 0 : i32
    return %arg0, %c0_i32 : i32, i32
  }
  func.func @transform_3(%arg0: i32) -> (i32, i32) {
    %c0_i32 = arith.constant 0 : i32
    %c0_i32_0 = arith.constant 0 : i32
    %c0_i32_1 = arith.constant 0 : i32
    return %c0_i32, %c0_i32_0 : i32, i32
  }
  func.func @transform_4(%arg0: i32) -> (i32, i32) {
    %c0_i32 = arith.constant 0 : i32
    %c0_i32_0 = arith.constant 0 : i32
    return %arg0, %c0_i32 : i32, i32
  }
}

module attributes {stable_mosaic.version = 11 : i64} {
  func.func @_mm_affine_relu_stats_kernel(%arg0: i32, %arg1: memref<512x128xbf16, #tpu.memory_space<vmem>>, %arg2: memref<2x128xf32, #tpu.memory_space<vmem>>, %arg3: memref<128x128xbf16, #tpu.memory_space<vmem>>, %arg4: memref<512x128xbf16, #tpu.memory_space<vmem>>, %arg5: memref<8x128xf32, #tpu.memory_space<vmem>>) attributes {dimension_semantics = [#tpu.dimension_semantics<parallel>], iteration_bounds = array<i64: 1>, scalar_prefetch = 0 : i64, scratch_operands = 0 : i64, tpu.core_type = #tpu.core_type<tc>, window_params = [{transform_indices = @transform_0, window_bounds = array<i64: 512, 128>}, {pipeline_mode = #tpu.pipeline_mode<synchronous>, transform_indices = @transform_1, window_bounds = array<i64: 2, 128>}, {pipeline_mode = #tpu.pipeline_mode<synchronous>, transform_indices = @transform_2, window_bounds = array<i64: 128, 128>}, {transform_indices = @transform_3, window_bounds = array<i64: 512, 128>}, {transform_indices = @transform_4, window_bounds = array<i64: 8, 128>}]} {
    %c0 = arith.constant 0 : index
    %c0_0 = arith.constant 0 : index
    %0 = vector.load %arg1[%c0, %c0_0] : memref<512x128xbf16, #tpu.memory_space<vmem>>, vector<512x128xbf16>
    %1 = arith.extf %0 : vector<512x128xbf16> to vector<512x128xf32>
    %c0_1 = arith.constant 0 : index
    %c0_2 = arith.constant 0 : index
    %2 = vector.load %arg2[%c0_1, %c0_2] : memref<2x128xf32, #tpu.memory_space<vmem>>, vector<1x128xf32>
    %3 = vector.broadcast %2 : vector<1x128xf32> to vector<512x128xf32>
    %4 = arith.mulf %1, %3 : vector<512x128xf32>
    %c1 = arith.constant 1 : index
    %c0_3 = arith.constant 0 : index
    %5 = vector.load %arg2[%c1, %c0_3] : memref<2x128xf32, #tpu.memory_space<vmem>>, vector<1x128xf32>
    %6 = vector.broadcast %5 : vector<1x128xf32> to vector<512x128xf32>
    %7 = arith.addf %4, %6 : vector<512x128xf32>
    %cst = arith.constant 0.000000e+00 : f32
    %8 = vector.broadcast %cst : f32 to vector<512x128xf32>
    %9 = arith.maximumf %7, %8 : vector<512x128xf32>
    %10 = arith.truncf %9 : vector<512x128xf32> to vector<512x128xbf16>
    %c0_4 = arith.constant 0 : index
    %c0_5 = arith.constant 0 : index
    %11 = vector.load %arg3[%c0_4, %c0_5] : memref<128x128xbf16, #tpu.memory_space<vmem>>, vector<128x128xbf16>
    %cst_6 = arith.constant dense<0.000000e+00> : vector<512x128xf32>
    %12 = tpu.matmul %10, %11, %cst_6 {dimension_numbers = #tpu.dot_dimension_numbers<[1], [0], [0], [1], [0, 0, 1, 1], [], []>} : vector<512x128xbf16>, vector<128x128xbf16>, vector<512x128xf32> -> vector<512x128xf32>
    %13 = arith.truncf %12 : vector<512x128xf32> to vector<512x128xbf16>
    %c0_7 = arith.constant 0 : index
    %c0_8 = arith.constant 0 : index
    %14 = vector.load %arg4[%c0_7, %c0_8] : memref<512x128xbf16, #tpu.memory_space<vmem>>, vector<512x128xbf16>
    tpu.vector_store %arg4[%c0_7, %c0_8], %13 {strides = array<i32>} : memref<512x128xbf16, #tpu.memory_space<vmem>>, vector<512x128xbf16>,
    %cst_9 = arith.constant dense<0.000000e+00> : vector<128xf32>
    %15 = vector.multi_reduction <add>, %12, %cst_9 [0] : vector<512x128xf32> to vector<128xf32>
    %16 = vector.shape_cast %15 : vector<128xf32> to vector<1x128xf32>
    %17 = arith.mulf %12, %12 : vector<512x128xf32>
    %cst_10 = arith.constant dense<0.000000e+00> : vector<128xf32>
    %18 = vector.multi_reduction <add>, %17, %cst_10 [0] : vector<512x128xf32> to vector<128xf32>
    %19 = vector.shape_cast %18 : vector<128xf32> to vector<1x128xf32>
    %20 = tpu.iota {dimensions = array<i32: 0>} : vector<8x128xi32>
    %c0_i32 = arith.constant 0 : i32
    %21 = vector.broadcast %c0_i32 : i32 to vector<8x128xi32>
    %22 = arith.cmpi eq, %20, %21 : vector<8x128xi32>
    %c1_i32 = arith.constant 1 : i32
    %23 = vector.broadcast %c1_i32 : i32 to vector<8x128xi32>
    %24 = arith.cmpi eq, %20, %23 : vector<8x128xi32>
    %cst_11 = arith.constant 0.000000e+00 : f32
    %25 = vector.shape_cast %19 : vector<1x128xf32> to vector<1x128xf32>
    %26 = vector.broadcast %25 : vector<1x128xf32> to vector<8x128xf32>
    %27 = vector.broadcast %cst_11 : f32 to vector<8x128xf32>
    %28 = arith.select %24, %26, %27 : vector<8x128xi1>, vector<8x128xf32>
    %29 = vector.shape_cast %16 : vector<1x128xf32> to vector<1x128xf32>
    %30 = vector.broadcast %29 : vector<1x128xf32> to vector<8x128xf32>
    %31 = arith.select %22, %30, %28 : vector<8x128xi1>, vector<8x128xf32>
    %c0_12 = arith.constant 0 : index
    %c0_13 = arith.constant 0 : index
    %32 = vector.load %arg5[%c0_12, %c0_13] : memref<8x128xf32, #tpu.memory_space<vmem>>, vector<8x128xf32>
    tpu.vector_store %arg5[%c0_12, %c0_13], %31 {strides = array<i32>} : memref<8x128xf32, #tpu.memory_space<vmem>>, vector<8x128xf32>,
    return
  }
  func.func @transform_0(%arg0: i32) -> (i32, i32) {
    %c0_i32 = arith.constant 0 : i32
    %c0_i32_0 = arith.constant 0 : i32
    return %arg0, %c0_i32 : i32, i32
  }
  func.func @transform_1(%arg0: i32) -> (i32, i32) {
    %c0_i32 = arith.constant 0 : i32
    %c0_i32_0 = arith.constant 0 : i32
    %c0_i32_1 = arith.constant 0 : i32
    return %c0_i32, %c0_i32_0 : i32, i32
  }
  func.func @transform_2(%arg0: i32) -> (i32, i32) {
    %c0_i32 = arith.constant 0 : i32
    %c0_i32_0 = arith.constant 0 : i32
    %c0_i32_1 = arith.constant 0 : i32
    return %c0_i32, %c0_i32_0 : i32, i32
  }
  func.func @transform_3(%arg0: i32) -> (i32, i32) {
    %c0_i32 = arith.constant 0 : i32
    %c0_i32_0 = arith.constant 0 : i32
    return %arg0, %c0_i32 : i32, i32
  }
  func.func @transform_4(%arg0: i32) -> (i32, i32) {
    %c0_i32 = arith.constant 0 : i32
    %c0_i32_0 = arith.constant 0 : i32
    return %arg0, %c0_i32 : i32, i32
  }
}

</mosaic_0001>

<llo_original>
// kernel: bottleneck_forward.4
$region0: #{bottleneck_forward.4}
  #allocation0 [shape = 'u32[]', space=smem, size = 0x4, offset = 0x4, fixed_abs, tag = 'smem constant byte address 0x4 - core index']
  #allocation1 [shape = 'u32[72,128]{1,0:T(1,128)}', space=vmem, size = 0x9000, scoped, tag = 'internal scratch']
  %s0 = inlined_call_operand.vmem [shape: bf16[512,128], index: 0, kind: input, shape index: {}]
  %s1 = inlined_call_operand.vmem [shape: bf16[128,256], index: 1, kind: input, shape index: {}]
  %s2 = inlined_call_operand.vmem [shape: bf16[512,128], index: 2, kind: output, shape index: {0}]
  %s3 = inlined_call_operand.vmem [shape: bf16[512,128], index: 3, kind: output, shape index: {1}]
  %s4 = inlined_call_operand.vmem [shape: f32[8,256], index: 4, kind: output, shape index: {2}]
  %5 = xla_tuple %s2, %s3, %s4
  %s6 = sld [smem:[#allocation0]]
  $region34: #{bottleneck_forward.4} parent=0
    _
  %s8 = ssub.s32 1, %s6
  %s9 = scalar_select 0, %s8, %s6
  // Predicated region
  $region2: #{bottleneck_forward.4} parent=0 // pred_check
    _
  $region3: #{bottleneck_forward.4} parent=0 // pred_check_branch
    %11 = sbr.rel (0) target = $region5
  $region4: #{bottleneck_forward.4} parent=0 // pred_region
    _
  $region5: #{bottleneck_forward.4} parent=0 // pred_fallthru
    _
  // Predicated region
  $region6: #{bottleneck_forward.4} parent=0 // pred_check
    _
  $region7: #{bottleneck_forward.4} parent=0 // pred_check_branch
    %13 = sbr.rel (0) target = $region9
  $region8: #{bottleneck_forward.4} parent=0 // pred_region
    _
  $region9: #{bottleneck_forward.4} parent=0 // pred_fallthru
    _
  %v14 = vld [vmem:[%s0] sm:$0xf]
  %v15 = vld [vmem:[%s0 + $0x4] sm:$0xf]
  %v16 = vld [vmem:[%s0 + $0x8] sm:$0xf]
  %v17 = vld [vmem:[%s0 + $0xc] sm:$0xf]
  %v18 = vld [vmem:[%s0 + $0x10] sm:$0xf]
  %v19 = vld [vmem:[%s0 + $0x14] sm:$0xf]
  %v20 = vld [vmem:[%s0 + $0x18] sm:$0xf]
  %v21 = vld [vmem:[%s0 + $0x1c] sm:$0xf]
  %v22 = vld [vmem:[%s0 + $0x20] sm:$0xf]
  %v23 = vld [vmem:[%s0 + $0x24] sm:$0xf]
  %v24 = vld [vmem:[%s0 + $0x28] sm:$0xf]
  %v25 = vld [vmem:[%s0 + $0x2c] sm:$0xf]
  %v26 = vld [vmem:[%s0 + $0x30] sm:$0xf]
  %v27 = vld [vmem:[%s0 + $0x34] sm:$0xf]
  %v28 = vld [vmem:[%s0 + $0x38] sm:$0xf]
  %v29 = vld [vmem:[%s0 + $0x3c] sm:$0xf]
  %v30 = vld [vmem:[%s0 + $0x40] sm:$0xf]
  %v31 = vld [vmem:[%s0 + $0x44] sm:$0xf]
  %v32 = vld [vmem:[%s0 + $0x48] sm:$0xf]
  %v33 = vld [vmem:[%s0 + $0x4c] sm:$0xf]
  %v34 = vld [vmem:[%s0 + $0x50] sm:$0xf]
  %v35 = vld [vmem:[%s0 + $0x54] sm:$0xf]
  %v36 = vld [vmem:[%s0 + $0x58] sm:$0xf]
  %v37 = vld [vmem:[%s0 + $0x5c] sm:$0xf]
  %v38 = vld [vmem:[%s0 + $0x60] sm:$0xf]
  %v39 = vld [vmem:[%s0 + $0x64] sm:$0xf]
  %v40 = vld [vmem:[%s0 + $0x68] sm:$0xf]
  %v41 = vld [vmem:[%s0 + $0x6c] sm:$0xf]
  %v42 = vld [vmem:[%s0 + $0x70] sm:$0xf]
  %v43 = vld [vmem:[%s0 + $0x74] sm:$0xf]
  %v44 = vld [vmem:[%s0 + $0x78] sm:$0xf]
  %v45 = vld [vmem:[%s0 + $0x7c] sm:$0xf]
  %v46 = vld [vmem:[%s0 + $0x80] sm:$0xf]
  %v47 = vld [vmem:[%s0 + $0x84] sm:$0xf]
  %v48 = vld [vmem:[%s0 + $0x88] sm:$0xf]
  %v49 = vld [vmem:[%s0 + $0x8c] sm:$0xf]
  %v50 = vld [vmem:[%s0 + $0x90] sm:$0xf]
  %v51 = vld [vmem:[%s0 + $0x94] sm:$0xf]
  %v52 = vld [vmem:[%s0 + $0x98] sm:$0xf]
  %v53 = vld [vmem:[%s0 + $0x9c] sm:$0xf]
  %v54 = vld [vmem:[%s0 + $0xa0] sm:$0xf]
  %v55 = vld [vmem:[%s0 + $0xa4] sm:$0xf]
  %v56 = vld [vmem:[%s0 + $0xa8] sm:$0xf]
  %v57 = vld [vmem:[%s0 + $0xac] sm:$0xf]
  %v58 = vld [vmem:[%s0 + $0xb0] sm:$0xf]
  %v59 = vld [vmem:[%s0 + $0xb4] sm:$0xf]
  %v60 = vld [vmem:[%s0 + $0xb8] sm:$0xf]
  %v61 = vld [vmem:[%s0 + $0xbc] sm:$0xf]
  %v62 = vld [vmem:[%s0 + $0xc0] sm:$0xf]
  %v63 = vld [vmem:[%s0 + $0xc4] sm:$0xf]
  %v64 = vld [vmem:[%s0 + $0xc8] sm:$0xf]
  %v65 = vld [vmem:[%s0 + $0xcc] sm:$0xf]
  %v66 = vld [vmem:[%s0 + $0xd0] sm:$0xf]
  %v67 = vld [vmem:[%s0 + $0xd4] sm:$0xf]
  %v68 = vld [vmem:[%s0 + $0xd8] sm:$0xf]
  %v69 = vld [vmem:[%s0 + $0xdc] sm:$0xf]
  %v70 = vld [vmem:[%s0 + $0xe0] sm:$0xf]
  %v71 = vld [vmem:[%s0 + $0xe4] sm:$0xf]
  %v72 = vld [vmem:[%s0 + $0xe8] sm:$0xf]
  %v73 = vld [vmem:[%s0 + $0xec] sm:$0xf]
  %v74 = vld [vmem:[%s0 + $0xf0] sm:$0xf]
  %v75 = vld [vmem:[%s0 + $0xf4] sm:$0xf]
  %v76 = vld [vmem:[%s0 + $0xf8] sm:$0xf]
  %v77 = vld [vmem:[%s0 + $0xfc] sm:$0xf]
  %v78 = vld [vmem:[%s1] sm:$0xff]
  %v79 = vld [vmem:[%s1 + $0x8] sm:$0xff]
  %v80 = vld [vmem:[%s1 + $0x10] sm:$0xff]
  %v81 = vld [vmem:[%s1 + $0x18] sm:$0xff]
  %v82 = vld [vmem:[%s1 + $0x20] sm:$0xff]
  %v83 = vld [vmem:[%s1 + $0x28] sm:$0xff]
  %v84 = vld [vmem:[%s1 + $0x30] sm:$0xff]
  %v85 = vld [vmem:[%s1 + $0x38] sm:$0xff]
  %v86 = vld [vmem:[%s1 + $0x40] sm:$0xff]
  %v87 = vld [vmem:[%s1 + $0x48] sm:$0xff]
  %v88 = vld [vmem:[%s1 + $0x50] sm:$0xff]
  %v89 = vld [vmem:[%s1 + $0x58] sm:$0xff]
  %v90 = vld [vmem:[%s1 + $0x60] sm:$0xff]
  %v91 = vld [vmem:[%s1 + $0x68] sm:$0xff]
  %v92 = vld [vmem:[%s1 + $0x70] sm:$0xff]
  %v93 = vld [vmem:[%s1 + $0x78] sm:$0xff]
  %v158 = vunpack.c.l.b16 %v14
  %v159 = vunpack.c.l.b16 %v15
  %v160 = vunpack.c.l.b16 %v16
  %v161 = vunpack.c.l.b16 %v17
  %v162 = vunpack.c.l.b16 %v18
  %v163 = vunpack.c.l.b16 %v19
  %v164 = vunpack.c.l.b16 %v20
  %v165 = vunpack.c.l.b16 %v21
  %v166 = vunpack.c.l.b16 %v22
  %v167 = vunpack.c.l.b16 %v23
  %v168 = vunpack.c.l.b16 %v24
  %v169 = vunpack.c.l.b16 %v25
  %v170 = vunpack.c.l.b16 %v26
  %v171 = vunpack.c.l.b16 %v27
  %v172 = vunpack.c.l.b16 %v28
  %v173 = vunpack.c.l.b16 %v29
  %v174 = vunpack.c.l.b16 %v30
  %v175 = vunpack.c.l.b16 %v31
  %v176 = vunpack.c.l.b16 %v32
  %v177 = vunpack.c.l.b16 %v33
  %v178 = vunpack.c.l.b16 %v34
  %v179 = vunpack.c.l.b16 %v35
  %v180 = vunpack.c.l.b16 %v36
  %v181 = vunpack.c.l.b16 %v37
  %v182 = vunpack.c.l.b16 %v38
  %v183 = vunpack.c.l.b16 %v39
  %v184 = vunpack.c.l.b16 %v40
  %v185 = vunpack.c.l.b16 %v41
  %v186 = vunpack.c.l.b16 %v42
  %v187 = vunpack.c.l.b16 %v43
  %v188 = vunpack.c.l.b16 %v44
  %v189 = vunpack.c.l.b16 %v45
  %v190 = vunpack.c.l.b16 %v46
  %v191 = vunpack.c.l.b16 %v47
  %v192 = vunpack.c.l.b16 %v48
  %v193 = vunpack.c.l.b16 %v49
  %v194 = vunpack.c.l.b16 %v50
  %v195 = vunpack.c.l.b16 %v51
  %v196 = vunpack.c.l.b16 %v52
  %v197 = vunpack.c.l.b16 %v53
  %v198 = vunpack.c.l.b16 %v54
  %v199 = vunpack.c.l.b16 %v55
  %v200 = vunpack.c.l.b16 %v56
  %v201 = vunpack.c.l.b16 %v57
  %v202 = vunpack.c.l.b16 %v58
  %v203 = vunpack.c.l.b16 %v59
  %v204 = vunpack.c.l.b16 %v60
  %v205 = vunpack.c.l.b16 %v61
  %v206 = vunpack.c.l.b16 %v62
  %v207 = vunpack.c.l.b16 %v63
  %v208 = vunpack.c.l.b16 %v64
  %v209 = vunpack.c.l.b16 %v65
  %v210 = vunpack.c.l.b16 %v66
  %v211 = vunpack.c.l.b16 %v67
  %v212 = vunpack.c.l.b16 %v68
  %v213 = vunpack.c.l.b16 %v69
  %v214 = vunpack.c.l.b16 %v70
  %v215 = vunpack.c.l.b16 %v71
  %v216 = vunpack.c.l.b16 %v72
  %v217 = vunpack.c.l.b16 %v73
  %v218 = vunpack.c.l.b16 %v74
  %v219 = vunpack.c.l.b16 %v75
  %v220 = vunpack.c.l.b16 %v76
  %v221 = vunpack.c.l.b16 %v77
  %v222 = vpack.c.b16 %v159, %v158
  %v223 = vpack.c.b16 %v161, %v160
  %v224 = vpack.c.b16 %v163, %v162
  %v225 = vpack.c.b16 %v165, %v164
  %v226 = vpack.c.b16 %v167, %v166
  %v227 = vpack.c.b16 %v169, %v168
  %v228 = vpack.c.b16 %v171, %v170
  %v229 = vpack.c.b16 %v173, %v172
  %v230 = vpack.c.b16 %v175, %v174
  %v231 = vpack.c.b16 %v177, %v176
  %v232 = vpack.c.b16 %v179, %v178
  %v233 = vpack.c.b16 %v181, %v180
  %v234 = vpack.c.b16 %v183, %v182
  %v235 = vpack.c.b16 %v185, %v184
  %v236 = vpack.c.b16 %v187, %v186
  %v237 = vpack.c.b16 %v189, %v188
  %v238 = vpack.c.b16 %v191, %v190
  %v239 = vpack.c.b16 %v193, %v192
  %v240 = vpack.c.b16 %v195, %v194
  %v241 = vpack.c.b16 %v197, %v196
  %v242 = vpack.c.b16 %v199, %v198
  %v243 = vpack.c.b16 %v201, %v200
  %v244 = vpack.c.b16 %v203, %v202
  %v245 = vpack.c.b16 %v205, %v204
  %v246 = vpack.c.b16 %v207, %v206
  %v247 = vpack.c.b16 %v209, %v208
  %v248 = vpack.c.b16 %v211, %v210
  %v249 = vpack.c.b16 %v213, %v212
  %v250 = vpack.c.b16 %v215, %v214
  %v251 = vpack.c.b16 %v217, %v216
  %v252 = vpack.c.b16 %v219, %v218
  %v253 = vpack.c.b16 %v221, %v220
  %v302 = vunpack.c.l.b16 %v78
  %v303 = vunpack.c.h.b16 %v78
  %v304 = vunpack.c.l.b16 %v79
  %v305 = vunpack.c.h.b16 %v79
  %v306 = vunpack.c.l.b16 %v80
  %v307 = vunpack.c.h.b16 %v80
  %v308 = vunpack.c.l.b16 %v81
  %v309 = vunpack.c.h.b16 %v81
  %v310 = vunpack.c.l.b16 %v82
  %v311 = vunpack.c.h.b16 %v82
  %v312 = vunpack.c.l.b16 %v83
  %v313 = vunpack.c.h.b16 %v83
  %v314 = vunpack.c.l.b16 %v84
  %v315 = vunpack.c.h.b16 %v84
  %v316 = vunpack.c.l.b16 %v85
  %v317 = vunpack.c.h.b16 %v85
  %v318 = vunpack.c.l.b16 %v86
  %v319 = vunpack.c.h.b16 %v86
  %v320 = vunpack.c.l.b16 %v87
  %v321 = vunpack.c.h.b16 %v87
  %v322 = vunpack.c.l.b16 %v88
  %v323 = vunpack.c.h.b16 %v88
  %v324 = vunpack.c.l.b16 %v89
  %v325 = vunpack.c.h.b16 %v89
  %v326 = vunpack.c.l.b16 %v90
  %v327 = vunpack.c.h.b16 %v90
  %v328 = vunpack.c.l.b16 %v91
  %v329 = vunpack.c.h.b16 %v91
  %v330 = vunpack.c.l.b16 %v92
  %v331 = vunpack.c.h.b16 %v92
  %v332 = vunpack.c.l.b16 %v93
  %v333 = vunpack.c.h.b16 %v93
  %v334 = vpack.c.b16 %v304, %v302
  %v335 = vpack.c.b16 %v305, %v303
  %v336 = vpack.c.b16 %v308, %v306
  %v337 = vpack.c.b16 %v309, %v307
  %v338 = vpack.c.b16 %v312, %v310
  %v339 = vpack.c.b16 %v313, %v311
  %v340 = vpack.c.b16 %v316, %v314
  %v341 = vpack.c.b16 %v317, %v315
  %v342 = vpack.c.b16 %v320, %v318
  %v343 = vpack.c.b16 %v321, %v319
  %v344 = vpack.c.b16 %v324, %v322
  %v345 = vpack.c.b16 %v325, %v323
  %v346 = vpack.c.b16 %v328, %v326
  %v347 = vpack.c.b16 %v329, %v327
  %v348 = vpack.c.b16 %v332, %v330
  %v349 = vpack.c.b16 %v333, %v331
  %366 = vmatpush.bf16.msra.mxu0 %v348
  %367 = vmatpush.bf16.msra.mxu0 %v346
  %368 = vmatpush.bf16.msra.mxu0 %v344
  %369 = vmatpush.bf16.msra.mxu0 %v342
  %370 = vmatpush.bf16.msra.mxu0 %v340
  %371 = vmatpush.bf16.msra.mxu0 %v338
  %372 = vmatpush.bf16.msra.mxu0 %v336
  %373 = vmatpush.bf16.msra.mxu0 %v334
  %374 = vmatmul.bf16.gmra.mxu0 %v222
  %v375 = vpop.f32.mrf.mxu0
  %v376 = vadd.f32 0.0, %v375
  %v377 = vpop.f32.mrf.mxu0
  %v378 = vadd.f32 0.0, %v377
  %379 = vmatmul.bf16.gmra.mxu0 %v223
  %v380 = vpop.f32.mrf.mxu0
  %v381 = vadd.f32 0.0, %v380
  %v382 = vpop.f32.mrf.mxu0
  %v383 = vadd.f32 0.0, %v382
  %384 = vmatmul.bf16.gmra.mxu0 %v224
  %v385 = vpop.f32.mrf.mxu0
  %v386 = vadd.f32 0.0, %v385
  %v387 = vpop.f32.mrf.mxu0
  %v388 = vadd.f32 0.0, %v387
  %389 = vmatmul.bf16.gmra.mxu0 %v225
  %v390 = vpop.f32.mrf.mxu0
  %v391 = vadd.f32 0.0, %v390
  %v392 = vpop.f32.mrf.mxu0
  %v393 = vadd.f32 0.0, %v392
  %394 = vmatmul.bf16.gmra.mxu0 %v226
  %v395 = vpop.f32.mrf.mxu0
  %v396 = vadd.f32 0.0, %v395
  %v397 = vpop.f32.mrf.mxu0
  %v398 = vadd.f32 0.0, %v397
  %399 = vmatmul.bf16.gmra.mxu0 %v227
  %v400 = vpop.f32.mrf.mxu0
  %v401 = vadd.f32 0.0, %v400
  %v402 = vpop.f32.mrf.mxu0
  %v403 = vadd.f32 0.0, %v402
  %404 = vmatmul.bf16.gmra.mxu0 %v228
  %v405 = vpop.f32.mrf.mxu0
  %v406 = vadd.f32 0.0, %v405
  %v407 = vpop.f32.mrf.mxu0
  %v408 = vadd.f32 0.0, %v407
  %409 = vmatmul.bf16.gmra.mxu0 %v229
  %v410 = vpop.f32.mrf.mxu0
  %v411 = vadd.f32 0.0, %v410
  %v412 = vpop.f32.mrf.mxu0
  %v413 = vadd.f32 0.0, %v412
  %414 = vmatmul.bf16.gmra.mxu0 %v230
  %v415 = vpop.f32.mrf.mxu0
  %v416 = vadd.f32 0.0, %v415
  %v417 = vpop.f32.mrf.mxu0
  %v418 = vadd.f32 0.0, %v417
  %419 = vmatmul.bf16.gmra.mxu0 %v231
  %v420 = vpop.f32.mrf.mxu0
  %v421 = vadd.f32 0.0, %v420
  %v422 = vpop.f32.mrf.mxu0
  %v423 = vadd.f32 0.0, %v422
  %424 = vmatmul.bf16.gmra.mxu0 %v232
  %v425 = vpop.f32.mrf.mxu0
  %v426 = vadd.f32 0.0, %v425
  %v427 = vpop.f32.mrf.mxu0
  %v428 = vadd.f32 0.0, %v427
  %429 = vmatmul.bf16.gmra.mxu0 %v233
  %v430 = vpop.f32.mrf.mxu0
  %v431 = vadd.f32 0.0, %v430
  %v432 = vpop.f32.mrf.mxu0
  %v433 = vadd.f32 0.0, %v432
  %434 = vmatmul.bf16.gmra.mxu0 %v234
  %v435 = vpop.f32.mrf.mxu0
  %v436 = vadd.f32 0.0, %v435
  %v437 = vpop.f32.mrf.mxu0
  %v438 = vadd.f32 0.0, %v437
  %439 = vmatmul.bf16.gmra.mxu0 %v235
  %v440 = vpop.f32.mrf.mxu0
  %v441 = vadd.f32 0.0, %v440
  %v442 = vpop.f32.mrf.mxu0
  %v443 = vadd.f32 0.0, %v442
  %444 = vmatmul.bf16.gmra.mxu0 %v236
  %v445 = vpop.f32.mrf.mxu0
  %v446 = vadd.f32 0.0, %v445
  %v447 = vpop.f32.mrf.mxu0
  %v448 = vadd.f32 0.0, %v447
  %449 = vmatmul.bf16.gmra.mxu0 %v237
  %v450 = vpop.f32.mrf.mxu0
  %v451 = vadd.f32 0.0, %v450
  %v452 = vpop.f32.mrf.mxu0
  %v453 = vadd.f32 0.0, %v452
  %454 = vmatmul.bf16.gmra.mxu0 %v238
  %v455 = vpop.f32.mrf.mxu0
  %v456 = vadd.f32 0.0, %v455
  %v457 = vpop.f32.mrf.mxu0
  %v458 = vadd.f32 0.0, %v457
  %459 = vmatmul.bf16.gmra.mxu0 %v239
  %v460 = vpop.f32.mrf.mxu0
  %v461 = vadd.f32 0.0, %v460
  %v462 = vpop.f32.mrf.mxu0
  %v463 = vadd.f32 0.0, %v462
  %464 = vmatmul.bf16.gmra.mxu0 %v240
  %v465 = vpop.f32.mrf.mxu0
  %v466 = vadd.f32 0.0, %v465
  %v467 = vpop.f32.mrf.mxu0
  %v468 = vadd.f32 0.0, %v467
  %469 = vmatmul.bf16.gmra.mxu0 %v241
  %v470 = vpop.f32.mrf.mxu0
  %v471 = vadd.f32 0.0, %v470
  %v472 = vpop.f32.mrf.mxu0
  %v473 = vadd.f32 0.0, %v472
  %474 = vmatmul.bf16.gmra.mxu0 %v242
  %v475 = vpop.f32.mrf.mxu0
  %v476 = vadd.f32 0.0, %v475
  %v477 = vpop.f32.mrf.mxu0
  %v478 = vadd.f32 0.0, %v477
  %479 = vmatmul.bf16.gmra.mxu0 %v243
  %v480 = vpop.f32.mrf.mxu0
  %v481 = vadd.f32 0.0, %v480
  %v482 = vpop.f32.mrf.mxu0
  %v483 = vadd.f32 0.0, %v482
  %484 = vmatmul.bf16.gmra.mxu0 %v244
  %v485 = vpop.f32.mrf.mxu0
  %v486 = vadd.f32 0.0, %v485
  %v487 = vpop.f32.mrf.mxu0
  %v488 = vadd.f32 0.0, %v487
  %489 = vmatmul.bf16.gmra.mxu0 %v245
  %v490 = vpop.f32.mrf.mxu0
  %v491 = vadd.f32 0.0, %v490
  %v492 = vpop.f32.mrf.mxu0
  %v493 = vadd.f32 0.0, %v492
  %494 = vmatmul.bf16.gmra.mxu0 %v246
  %v495 = vpop.f32.mrf.mxu0
  %v496 = vadd.f32 0.0, %v495
  %v497 = vpop.f32.mrf.mxu0
  %v498 = vadd.f32 0.0, %v497
  %499 = vmatmul.bf16.gmra.mxu0 %v247
  %v500 = vpop.f32.mrf.mxu0
  %v501 = vadd.f32 0.0, %v500
  %v502 = vpop.f32.mrf.mxu0
  %v503 = vadd.f32 0.0, %v502
  %504 = vmatmul.bf16.gmra.mxu0 %v248
  %v505 = vpop.f32.mrf.mxu0
  %v506 = vadd.f32 0.0, %v505
  %v507 = vpop.f32.mrf.mxu0
  %v508 = vadd.f32 0.0, %v507
  %509 = vmatmul.bf16.gmra.mxu0 %v249
  %v510 = vpop.f32.mrf.mxu0
  %v511 = vadd.f32 0.0, %v510
  %v512 = vpop.f32.mrf.mxu0
  %v513 = vadd.f32 0.0, %v512
  %514 = vmatmul.bf16.gmra.mxu0 %v250
  %v515 = vpop.f32.mrf.mxu0
  %v516 = vadd.f32 0.0, %v515
  %v517 = vpop.f32.mrf.mxu0
  %v518 = vadd.f32 0.0, %v517
  %519 = vmatmul.bf16.gmra.mxu0 %v251
  %v520 = vpop.f32.mrf.mxu0
  %v521 = vadd.f32 0.0, %v520
  %v522 = vpop.f32.mrf.mxu0
  %v523 = vadd.f32 0.0, %v522
  %524 = vmatmul.bf16.gmra.mxu0 %v252
  %v525 = vpop.f32.mrf.mxu0
  %v526 = vadd.f32 0.0, %v525
  %v527 = vpop.f32.mrf.mxu0
  %v528 = vadd.f32 0.0, %v527
  %529 = vmatmul.bf16.gmra.mxu0 %v253
  %v530 = vpop.f32.mrf.mxu0
  %v531 = vadd.f32 0.0, %v530
  %v532 = vpop.f32.mrf.mxu0
  %v533 = vadd.f32 0.0, %v532
  %534 = vdwg.mxu0
  %535 = vmatpush.bf16.msra.mxu0 %v349
  %536 = vmatpush.bf16.msra.mxu0 %v347
  %537 = vmatpush.bf16.msra.mxu0 %v345
  %538 = vmatpush.bf16.msra.mxu0 %v343
  %539 = vmatpush.bf16.msra.mxu0 %v341
  %540 = vmatpush.bf16.msra.mxu0 %v339
  %541 = vmatpush.bf16.msra.mxu0 %v337
  %542 = vmatpush.bf16.msra.mxu0 %v335
  %543 = vmatmul.bf16.gmra.mxu0 %v222
  %v544 = vpop.f32.mrf.mxu0
  %v545 = vadd.f32 0.0, %v544
  %v546 = vpop.f32.mrf.mxu0
  %v547 = vadd.f32 0.0, %v546
  %548 = vmatmul.bf16.gmra.mxu0 %v223
  %v549 = vpop.f32.mrf.mxu0
  %v550 = vadd.f32 0.0, %v549
  %v551 = vpop.f32.mrf.mxu0
  %v552 = vadd.f32 0.0, %v551
  %553 = vmatmul.bf16.gmra.mxu0 %v224
  %v554 = vpop.f32.mrf.mxu0
  %v555 = vadd.f32 0.0, %v554
  %v556 = vpop.f32.mrf.mxu0
  %v557 = vadd.f32 0.0, %v556
  %558 = vmatmul.bf16.gmra.mxu0 %v225
  %v559 = vpop.f32.mrf.mxu0
  %v560 = vadd.f32 0.0, %v559
  %v561 = vpop.f32.mrf.mxu0
  %v562 = vadd.f32 0.0, %v561
  %563 = vmatmul.bf16.gmra.mxu0 %v226
  %v564 = vpop.f32.mrf.mxu0
  %v565 = vadd.f32 0.0, %v564
  %v566 = vpop.f32.mrf.mxu0
  %v567 = vadd.f32 0.0, %v566
  %568 = vmatmul.bf16.gmra.mxu0 %v227
  %v569 = vpop.f32.mrf.mxu0
  %v570 = vadd.f32 0.0, %v569
  %v571 = vpop.f32.mrf.mxu0
  %v572 = vadd.f32 0.0, %v571
  %573 = vmatmul.bf16.gmra.mxu0 %v228
  %v574 = vpop.f32.mrf.mxu0
  %v575 = vadd.f32 0.0, %v574
  %v576 = vpop.f32.mrf.mxu0
  %v577 = vadd.f32 0.0, %v576
  %578 = vmatmul.bf16.gmra.mxu0 %v229
  %v579 = vpop.f32.mrf.mxu0
  %v580 = vadd.f32 0.0, %v579
  %v581 = vpop.f32.mrf.mxu0
  %v582 = vadd.f32 0.0, %v581
  %583 = vmatmul.bf16.gmra.mxu0 %v230
  %v584 = vpop.f32.mrf.mxu0
  %v585 = vadd.f32 0.0, %v584
  %v586 = vpop.f32.mrf.mxu0
  %v587 = vadd.f32 0.0, %v586
  %588 = vmatmul.bf16.gmra.mxu0 %v231
  %v589 = vpop.f32.mrf.mxu0
  %v590 = vadd.f32 0.0, %v589
  %v591 = vpop.f32.mrf.mxu0
  %v592 = vadd.f32 0.0, %v591
  %593 = vmatmul.bf16.gmra.mxu0 %v232
  %v594 = vpop.f32.mrf.mxu0
  %v595 = vadd.f32 0.0, %v594
  %v596 = vpop.f32.mrf.mxu0
  %v597 = vadd.f32 0.0, %v596
  %598 = vmatmul.bf16.gmra.mxu0 %v233
  %v599 = vpop.f32.mrf.mxu0
  %v600 = vadd.f32 0.0, %v599
  %v601 = vpop.f32.mrf.mxu0
  %v602 = vadd.f32 0.0, %v601
  %603 = vmatmul.bf16.gmra.mxu0 %v234
  %v604 = vpop.f32.mrf.mxu0
  %v605 = vadd.f32 0.0, %v604
  %v606 = vpop.f32.mrf.mxu0
  %v607 = vadd.f32 0.0, %v606
  %608 = vmatmul.bf16.gmra.mxu0 %v235
  %v609 = vpop.f32.mrf.mxu0
  %v610 = vadd.f32 0.0, %v609
  %v611 = vpop.f32.mrf.mxu0
  %v612 = vadd.f32 0.0, %v611
  %613 = vmatmul.bf16.gmra.mxu0 %v236
  %v614 = vpop.f32.mrf.mxu0
  %v615 = vadd.f32 0.0, %v614
  %v616 = vpop.f32.mrf.mxu0
  %v617 = vadd.f32 0.0, %v616
  %618 = vmatmul.bf16.gmra.mxu0 %v237
  %v619 = vpop.f32.mrf.mxu0
  %v620 = vadd.f32 0.0, %v619
  %v621 = vpop.f32.mrf.mxu0
  %v622 = vadd.f32 0.0, %v621
  %623 = vmatmul.bf16.gmra.mxu0 %v238
  %v624 = vpop.f32.mrf.mxu0
  %v625 = vadd.f32 0.0, %v624
  %v626 = vpop.f32.mrf.mxu0
  %v627 = vadd.f32 0.0, %v626
  %628 = vmatmul.bf16.gmra.mxu0 %v239
  %v629 = vpop.f32.mrf.mxu0
  %v630 = vadd.f32 0.0, %v629
  %v631 = vpop.f32.mrf.mxu0
  %v632 = vadd.f32 0.0, %v631
  %633 = vmatmul.bf16.gmra.mxu0 %v240
  %v634 = vpop.f32.mrf.mxu0
  %v635 = vadd.f32 0.0, %v634
  %v636 = vpop.f32.mrf.mxu0
  %v637 = vadd.f32 0.0, %v636
  %638 = vmatmul.bf16.gmra.mxu0 %v241
  %v639 = vpop.f32.mrf.mxu0
  %v640 = vadd.f32 0.0, %v639
  %v641 = vpop.f32.mrf.mxu0
  %v642 = vadd.f32 0.0, %v641
  %643 = vmatmul.bf16.gmra.mxu0 %v242
  %v644 = vpop.f32.mrf.mxu0
  %v645 = vadd.f32 0.0, %v644
  %v646 = vpop.f32.mrf.mxu0
  %v647 = vadd.f32 0.0, %v646
  %648 = vmatmul.bf16.gmra.mxu0 %v243
  %v649 = vpop.f32.mrf.mxu0
  %v650 = vadd.f32 0.0, %v649
  %v651 = vpop.f32.mrf.mxu0
  %v652 = vadd.f32 0.0, %v651
  %653 = vmatmul.bf16.gmra.mxu0 %v244
  %v654 = vpop.f32.mrf.mxu0
  %v655 = vadd.f32 0.0, %v654
  %v656 = vpop.f32.mrf.mxu0
  %v657 = vadd.f32 0.0, %v656
  %658 = vmatmul.bf16.gmra.mxu0 %v245
  %v659 = vpop.f32.mrf.mxu0
  %v660 = vadd.f32 0.0, %v659
  %v661 = vpop.f32.mrf.mxu0
  %v662 = vadd.f32 0.0, %v661
  %663 = vmatmul.bf16.gmra.mxu0 %v246
  %v664 = vpop.f32.mrf.mxu0
  %v665 = vadd.f32 0.0, %v664
  %v666 = vpop.f32.mrf.mxu0
  %v667 = vadd.f32 0.0, %v666
  %668 = vmatmul.bf16.gmra.mxu0 %v247
  %v669 = vpop.f32.mrf.mxu0
  %v670 = vadd.f32 0.0, %v669
  %v671 = vpop.f32.mrf.mxu0
  %v672 = vadd.f32 0.0, %v671
  %673 = vmatmul.bf16.gmra.mxu0 %v248
  %v674 = vpop.f32.mrf.mxu0
  %v675 = vadd.f32 0.0, %v674
  %v676 = vpop.f32.mrf.mxu0
  %v677 = vadd.f32 0.0, %v676
  %678 = vmatmul.bf16.gmra.mxu0 %v249
  %v679 = vpop.f32.mrf.mxu0
  %v680 = vadd.f32 0.0, %v679
  %v681 = vpop.f32.mrf.mxu0
  %v682 = vadd.f32 0.0, %v681
  %683 = vmatmul.bf16.gmra.mxu0 %v250
  %v684 = vpop.f32.mrf.mxu0
  %v685 = vadd.f32 0.0, %v684
  %v686 = vpop.f32.mrf.mxu0
  %v687 = vadd.f32 0.0, %v686
  %688 = vmatmul.bf16.gmra.mxu0 %v251
  %v689 = vpop.f32.mrf.mxu0
  %v690 = vadd.f32 0.0, %v689
  %v691 = vpop.f32.mrf.mxu0
  %v692 = vadd.f32 0.0, %v691
  %693 = vmatmul.bf16.gmra.mxu0 %v252
  %v694 = vpop.f32.mrf.mxu0
  %v695 = vadd.f32 0.0, %v694
  %v696 = vpop.f32.mrf.mxu0
  %v697 = vadd.f32 0.0, %v696
  %698 = vmatmul.bf16.gmra.mxu0 %v253
  %v699 = vpop.f32.mrf.mxu0
  %v700 = vadd.f32 0.0, %v699
  %v701 = vpop.f32.mrf.mxu0
  %v702 = vadd.f32 0.0, %v701
  %703 = vdwg.mxu0
  %v704 = vpack.c.bf16 %v376, %v376
  %v705 = vpack.c.bf16 %v378, %v378
  %v706 = vpack.c.bf16 %v381, %v381
  %v707 = vpack.c.bf16 %v383, %v383
  %v708 = vpack.c.bf16 %v386, %v386
  %v709 = vpack.c.bf16 %v388, %v388
  %v710 = vpack.c.bf16 %v391, %v391
  %v711 = vpack.c.bf16 %v393, %v393
  %v712 = vpack.c.bf16 %v396, %v396
  %v713 = vpack.c.bf16 %v398, %v398
  %v714 = vpack.c.bf16 %v401, %v401
  %v715 = vpack.c.bf16 %v403, %v403
  %v716 = vpack.c.bf16 %v406, %v406
  %v717 = vpack.c.bf16 %v408, %v408
  %v718 = vpack.c.bf16 %v411, %v411
  %v719 = vpack.c.bf16 %v413, %v413
  %v720 = vpack.c.bf16 %v416, %v416
  %v721 = vpack.c.bf16 %v418, %v418
  %v722 = vpack.c.bf16 %v421, %v421
  %v723 = vpack.c.bf16 %v423, %v423
  %v724 = vpack.c.bf16 %v426, %v426
  %v725 = vpack.c.bf16 %v428, %v428
  %v726 = vpack.c.bf16 %v431, %v431
  %v727 = vpack.c.bf16 %v433, %v433
  %v728 = vpack.c.bf16 %v436, %v436
  %v729 = vpack.c.bf16 %v438, %v438
  %v730 = vpack.c.bf16 %v441, %v441
  %v731 = vpack.c.bf16 %v443, %v443
  %v732 = vpack.c.bf16 %v446, %v446
  %v733 = vpack.c.bf16 %v448, %v448
  %v734 = vpack.c.bf16 %v451, %v451
  %v735 = vpack.c.bf16 %v453, %v453
  %v736 = vpack.c.bf16 %v456, %v456
  %v737 = vpack.c.bf16 %v458, %v458
  %v738 = vpack.c.bf16 %v461, %v461
  %v739 = vpack.c.bf16 %v463, %v463
  %v740 = vpack.c.bf16 %v466, %v466
  %v741 = vpack.c.bf16 %v468, %v468
  %v742 = vpack.c.bf16 %v471, %v471
  %v743 = vpack.c.bf16 %v473, %v473
  %v744 = vpack.c.bf16 %v476, %v476
  %v745 = vpack.c.bf16 %v478, %v478
  %v746 = vpack.c.bf16 %v481, %v481
  %v747 = vpack.c.bf16 %v483, %v483
  %v748 = vpack.c.bf16 %v486, %v486
  %v749 = vpack.c.bf16 %v488, %v488
  %v750 = vpack.c.bf16 %v491, %v491
  %v751 = vpack.c.bf16 %v493, %v493
  %v752 = vpack.c.bf16 %v496, %v496
  %v753 = vpack.c.bf16 %v498, %v498
  %v754 = vpack.c.bf16 %v501, %v501
  %v755 = vpack.c.bf16 %v503, %v503
  %v756 = vpack.c.bf16 %v506, %v506
  %v757 = vpack.c.bf16 %v508, %v508
  %v758 = vpack.c.bf16 %v511, %v511
  %v759 = vpack.c.bf16 %v513, %v513
  %v760 = vpack.c.bf16 %v516, %v516
  %v761 = vpack.c.bf16 %v518, %v518
  %v762 = vpack.c.bf16 %v521, %v521
  %v763 = vpack.c.bf16 %v523, %v523
  %v764 = vpack.c.bf16 %v526, %v526
  %v765 = vpack.c.bf16 %v528, %v528
  %v766 = vpack.c.bf16 %v531, %v531
  %v767 = vpack.c.bf16 %v533, %v533
  %768 = vst [vmem:[%s2] sm:$0xf] %v704
  %769 = vst [vmem:[%s2 + $0x4] sm:$0xf] %v705
  %770 = vst [vmem:[%s2 + $0x8] sm:$0xf] %v706
  %771 = vst [vmem:[%s2 + $0xc] sm:$0xf] %v707
  %772 = vst [vmem:[%s2 + $0x10] sm:$0xf] %v708
  %773 = vst [vmem:[%s2 + $0x14] sm:$0xf] %v709
  %774 = vst [vmem:[%s2 + $0x18] sm:$0xf] %v710
  %775 = vst [vmem:[%s2 + $0x1c] sm:$0xf] %v711
  %776 = vst [vmem:[%s2 + $0x20] sm:$0xf] %v712
  %777 = vst [vmem:[%s2 + $0x24] sm:$0xf] %v713
  %778 = vst [vmem:[%s2 + $0x28] sm:$0xf] %v714
  %779 = vst [vmem:[%s2 + $0x2c] sm:$0xf] %v715
  %780 = vst [vmem:[%s2 + $0x30] sm:$0xf] %v716
  %781 = vst [vmem:[%s2 + $0x34] sm:$0xf] %v717
  %782 = vst [vmem:[%s2 + $0x38] sm:$0xf] %v718
  %783 = vst [vmem:[%s2 + $0x3c] sm:$0xf] %v719
  %784 = vst [vmem:[%s2 + $0x40] sm:$0xf] %v720
  %785 = vst [vmem:[%s2 + $0x44] sm:$0xf] %v721
  %786 = vst [vmem:[%s2 + $0x48] sm:$0xf] %v722
  %787 = vst [vmem:[%s2 + $0x4c] sm:$0xf] %v723
  %788 = vst [vmem:[%s2 + $0x50] sm:$0xf] %v724
  %789 = vst [vmem:[%s2 + $0x54] sm:$0xf] %v725
  %790 = vst [vmem:[%s2 + $0x58] sm:$0xf] %v726
  %791 = vst [vmem:[%s2 + $0x5c] sm:$0xf] %v727
  %792 = vst [vmem:[%s2 + $0x60] sm:$0xf] %v728
  %793 = vst [vmem:[%s2 + $0x64] sm:$0xf] %v729
  %794 = vst [vmem:[%s2 + $0x68] sm:$0xf] %v730
  %795 = vst [vmem:[%s2 + $0x6c] sm:$0xf] %v731
  %796 = vst [vmem:[%s2 + $0x70] sm:$0xf] %v732
  %797 = vst [vmem:[%s2 + $0x74] sm:$0xf] %v733
  %798 = vst [vmem:[%s2 + $0x78] sm:$0xf] %v734
  %799 = vst [vmem:[%s2 + $0x7c] sm:$0xf] %v735
  %800 = vst [vmem:[%s2 + $0x80] sm:$0xf] %v736
  %801 = vst [vmem:[%s2 + $0x84] sm:$0xf] %v737
  %802 = vst [vmem:[%s2 + $0x88] sm:$0xf] %v738
  %803 = vst [vmem:[%s2 + $0x8c] sm:$0xf] %v739
  %804 = vst [vmem:[%s2 + $0x90] sm:$0xf] %v740
  %805 = vst [vmem:[%s2 + $0x94] sm:$0xf] %v741
  %806 = vst [vmem:[%s2 + $0x98] sm:$0xf] %v742
  %807 = vst [vmem:[%s2 + $0x9c] sm:$0xf] %v743
  %808 = vst [vmem:[%s2 + $0xa0] sm:$0xf] %v744
  %809 = vst [vmem:[%s2 + $0xa4] sm:$0xf] %v745
  %810 = vst [vmem:[%s2 + $0xa8] sm:$0xf] %v746
  %811 = vst [vmem:[%s2 + $0xac] sm:$0xf] %v747
  %812 = vst [vmem:[%s2 + $0xb0] sm:$0xf] %v748
  %813 = vst [vmem:[%s2 + $0xb4] sm:$0xf] %v749
  %814 = vst [vmem:[%s2 + $0xb8] sm:$0xf] %v750
  %815 = vst [vmem:[%s2 + $0xbc] sm:$0xf] %v751
  %816 = vst [vmem:[%s2 + $0xc0] sm:$0xf] %v752
  %817 = vst [vmem:[%s2 + $0xc4] sm:$0xf] %v753
  %818 = vst [vmem:[%s2 + $0xc8] sm:$0xf] %v754
  %819 = vst [vmem:[%s2 + $0xcc] sm:$0xf] %v755
  %820 = vst [vmem:[%s2 + $0xd0] sm:$0xf] %v756
  %821 = vst [vmem:[%s2 + $0xd4] sm:$0xf] %v757
  %822 = vst [vmem:[%s2 + $0xd8] sm:$0xf] %v758
  %823 = vst [vmem:[%s2 + $0xdc] sm:$0xf] %v759
  %824 = vst [vmem:[%s2 + $0xe0] sm:$0xf] %v760
  %825 = vst [vmem:[%s2 + $0xe4] sm:$0xf] %v761
  %826 = vst [vmem:[%s2 + $0xe8] sm:$0xf] %v762
  %827 = vst [vmem:[%s2 + $0xec] sm:$0xf] %v763
  %828 = vst [vmem:[%s2 + $0xf0] sm:$0xf] %v764
  %829 = vst [vmem:[%s2 + $0xf4] sm:$0xf] %v765
  %830 = vst [vmem:[%s2 + $0xf8] sm:$0xf] %v766
  %831 = vst [vmem:[%s2 + $0xfc] sm:$0xf] %v767
  %v832 = vpack.c.bf16 %v545, %v545
  %v833 = vpack.c.bf16 %v547, %v547
  %v834 = vpack.c.bf16 %v550, %v550
  %v835 = vpack.c.bf16 %v552, %v552
  %v836 = vpack.c.bf16 %v555, %v555
  %v837 = vpack.c.bf16 %v557, %v557
  %v838 = vpack.c.bf16 %v560, %v560
  %v839 = vpack.c.bf16 %v562, %v562
  %v840 = vpack.c.bf16 %v565, %v565
  %v841 = vpack.c.bf16 %v567, %v567
  %v842 = vpack.c.bf16 %v570, %v570
  %v843 = vpack.c.bf16 %v572, %v572
  %v844 = vpack.c.bf16 %v575, %v575
  %v845 = vpack.c.bf16 %v577, %v577
  %v846 = vpack.c.bf16 %v580, %v580
  %v847 = vpack.c.bf16 %v582, %v582
  %v848 = vpack.c.bf16 %v585, %v585
  %v849 = vpack.c.bf16 %v587, %v587
  %v850 = vpack.c.bf16 %v590, %v590
  %v851 = vpack.c.bf16 %v592, %v592
  %v852 = vpack.c.bf16 %v595, %v595
  %v853 = vpack.c.bf16 %v597, %v597
  %v854 = vpack.c.bf16 %v600, %v600
  %v855 = vpack.c.bf16 %v602, %v602
  %v856 = vpack.c.bf16 %v605, %v605
  %v857 = vpack.c.bf16 %v607, %v607
  %v858 = vpack.c.bf16 %v610, %v610
  %v859 = vpack.c.bf16 %v612, %v612
  %v860 = vpack.c.bf16 %v615, %v615
  %v861 = vpack.c.bf16 %v617, %v617
  %v862 = vpack.c.bf16 %v620, %v620
  %v863 = vpack.c.bf16 %v622, %v622
  %v864 = vpack.c.bf16 %v625, %v625
  %v865 = vpack.c.bf16 %v627, %v627
  %v866 = vpack.c.bf16 %v630, %v630
  %v867 = vpack.c.bf16 %v632, %v632
  %v868 = vpack.c.bf16 %v635, %v635
  %v869 = vpack.c.bf16 %v637, %v637
  %v870 = vpack.c.bf16 %v640, %v640
  %v871 = vpack.c.bf16 %v642, %v642
  %v872 = vpack.c.bf16 %v645, %v645
  %v873 = vpack.c.bf16 %v647, %v647
  %v874 = vpack.c.bf16 %v650, %v650
  %v875 = vpack.c.bf16 %v652, %v652
  %v876 = vpack.c.bf16 %v655, %v655
  %v877 = vpack.c.bf16 %v657, %v657
  %v878 = vpack.c.bf16 %v660, %v660
  %v879 = vpack.c.bf16 %v662, %v662
  %v880 = vpack.c.bf16 %v665, %v665
  %v881 = vpack.c.bf16 %v667, %v667
  %v882 = vpack.c.bf16 %v670, %v670
  %v883 = vpack.c.bf16 %v672, %v672
  %v884 = vpack.c.bf16 %v675, %v675
  %v885 = vpack.c.bf16 %v677, %v677
  %v886 = vpack.c.bf16 %v680, %v680
  %v887 = vpack.c.bf16 %v682, %v682
  %v888 = vpack.c.bf16 %v685, %v685
  %v889 = vpack.c.bf16 %v687, %v687
  %v890 = vpack.c.bf16 %v690, %v690
  %v891 = vpack.c.bf16 %v692, %v692
  %v892 = vpack.c.bf16 %v695, %v695
  %v893 = vpack.c.bf16 %v697, %v697
  %v894 = vpack.c.bf16 %v700, %v700
  %v895 = vpack.c.bf16 %v702, %v702
  %896 = vst [vmem:[%s3] sm:$0xf] %v832
  %897 = vst [vmem:[%s3 + $0x4] sm:$0xf] %v833
  %898 = vst [vmem:[%s3 + $0x8] sm:$0xf] %v834
  %899 = vst [vmem:[%s3 + $0xc] sm:$0xf] %v835
  %900 = vst [vmem:[%s3 + $0x10] sm:$0xf] %v836
  %901 = vst [vmem:[%s3 + $0x14] sm:$0xf] %v837
  %902 = vst [vmem:[%s3 + $0x18] sm:$0xf] %v838
  %903 = vst [vmem:[%s3 + $0x1c] sm:$0xf] %v839
  %904 = vst [vmem:[%s3 + $0x20] sm:$0xf] %v840
  %905 = vst [vmem:[%s3 + $0x24] sm:$0xf] %v841
  %906 = vst [vmem:[%s3 + $0x28] sm:$0xf] %v842
  %907 = vst [vmem:[%s3 + $0x2c] sm:$0xf] %v843
  %908 = vst [vmem:[%s3 + $0x30] sm:$0xf] %v844
  %909 = vst [vmem:[%s3 + $0x34] sm:$0xf] %v845
  %910 = vst [vmem:[%s3 + $0x38] sm:$0xf] %v846
  %911 = vst [vmem:[%s3 + $0x3c] sm:$0xf] %v847
  %912 = vst [vmem:[%s3 + $0x40] sm:$0xf] %v848
  %913 = vst [vmem:[%s3 + $0x44] sm:$0xf] %v849
  %914 = vst [vmem:[%s3 + $0x48] sm:$0xf] %v850
  %915 = vst [vmem:[%s3 + $0x4c] sm:$0xf] %v851
  %916 = vst [vmem:[%s3 + $0x50] sm:$0xf] %v852
  %917 = vst [vmem:[%s3 + $0x54] sm:$0xf] %v853
  %918 = vst [vmem:[%s3 + $0x58] sm:$0xf] %v854
  %919 = vst [vmem:[%s3 + $0x5c] sm:$0xf] %v855
  %920 = vst [vmem:[%s3 + $0x60] sm:$0xf] %v856
  %921 = vst [vmem:[%s3 + $0x64] sm:$0xf] %v857
  %922 = vst [vmem:[%s3 + $0x68] sm:$0xf] %v858
  %923 = vst [vmem:[%s3 + $0x6c] sm:$0xf] %v859
  %924 = vst [vmem:[%s3 + $0x70] sm:$0xf] %v860
  %925 = vst [vmem:[%s3 + $0x74] sm:$0xf] %v861
  %926 = vst [vmem:[%s3 + $0x78] sm:$0xf] %v862
  %927 = vst [vmem:[%s3 + $0x7c] sm:$0xf] %v863
  %928 = vst [vmem:[%s3 + $0x80] sm:$0xf] %v864
  %929 = vst [vmem:[%s3 + $0x84] sm:$0xf] %v865
  %930 = vst [vmem:[%s3 + $0x88] sm:$0xf] %v866
  %931 = vst [vmem:[%s3 + $0x8c] sm:$0xf] %v867
  %932 = vst [vmem:[%s3 + $0x90] sm:$0xf] %v868
  %933 = vst [vmem:[%s3 + $0x94] sm:$0xf] %v869
  %934 = vst [vmem:[%s3 + $0x98] sm:$0xf] %v870
  %935 = vst [vmem:[%s3 + $0x9c] sm:$0xf] %v871
  %936 = vst [vmem:[%s3 + $0xa0] sm:$0xf] %v872
  %937 = vst [vmem:[%s3 + $0xa4] sm:$0xf] %v873
  %938 = vst [vmem:[%s3 + $0xa8] sm:$0xf] %v874
  %939 = vst [vmem:[%s3 + $0xac] sm:$0xf] %v875
  %940 = vst [vmem:[%s3 + $0xb0] sm:$0xf] %v876
  %941 = vst [vmem:[%s3 + $0xb4] sm:$0xf] %v877
  %942 = vst [vmem:[%s3 + $0xb8] sm:$0xf] %v878
  %943 = vst [vmem:[%s3 + $0xbc] sm:$0xf] %v879
  %944 = vst [vmem:[%s3 + $0xc0] sm:$0xf] %v880
  %945 = vst [vmem:[%s3 + $0xc4] sm:$0xf] %v881
  %946 = vst [vmem:[%s3 + $0xc8] sm:$0xf] %v882
  %947 = vst [vmem:[%s3 + $0xcc] sm:$0xf] %v883
  %948 = vst [vmem:[%s3 + $0xd0] sm:$0xf] %v884
  %949 = vst [vmem:[%s3 + $0xd4] sm:$0xf] %v885
  %950 = vst [vmem:[%s3 + $0xd8] sm:$0xf] %v886
  %951 = vst [vmem:[%s3 + $0xdc] sm:$0xf] %v887
  %952 = vst [vmem:[%s3 + $0xe0] sm:$0xf] %v888
  %953 = vst [vmem:[%s3 + $0xe4] sm:$0xf] %v889
  %954 = vst [vmem:[%s3 + $0xe8] sm:$0xf] %v890
  %955 = vst [vmem:[%s3 + $0xec] sm:$0xf] %v891
  %956 = vst [vmem:[%s3 + $0xf0] sm:$0xf] %v892
  %957 = vst [vmem:[%s3 + $0xf4] sm:$0xf] %v893
  %958 = vst [vmem:[%s3 + $0xf8] sm:$0xf] %v894
  %959 = vst [vmem:[%s3 + $0xfc] sm:$0xf] %v895
  %v960 = vadd.f32 %v376, %v378
  %v961 = vadd.f32 %v960, %v381
  %v962 = vadd.f32 %v961, %v383
  %v963 = vadd.f32 %v962, %v386
  %v964 = vadd.f32 %v963, %v388
  %v965 = vadd.f32 %v964, %v391
  %v966 = vadd.f32 %v965, %v393
  %v967 = vadd.f32 %v966, %v396
  %v968 = vadd.f32 %v967, %v398
  %v969 = vadd.f32 %v968, %v401
  %v970 = vadd.f32 %v969, %v403
  %v971 = vadd.f32 %v970, %v406
  %v972 = vadd.f32 %v971, %v408
  %v973 = vadd.f32 %v972, %v411
  %v974 = vadd.f32 %v973, %v413
  %v975 = vadd.f32 %v974, %v416
  %v976 = vadd.f32 %v975, %v418
  %v977 = vadd.f32 %v976, %v421
  %v978 = vadd.f32 %v977, %v423
  %v979 = vadd.f32 %v978, %v426
  %v980 = vadd.f32 %v979, %v428
  %v981 = vadd.f32 %v980, %v431
  %v982 = vadd.f32 %v981, %v433
  %v983 = vadd.f32 %v982, %v436
  %v984 = vadd.f32 %v983, %v438
  %v985 = vadd.f32 %v984, %v441
  %v986 = vadd.f32 %v985, %v443
  %v987 = vadd.f32 %v986, %v446
  %v988 = vadd.f32 %v987, %v448
  %v989 = vadd.f32 %v988, %v451
  %v990 = vadd.f32 %v989, %v453
  %v991 = vadd.f32 %v990, %v456
  %v992 = vadd.f32 %v991, %v458
  %v993 = vadd.f32 %v992, %v461
  %v994 = vadd.f32 %v993, %v463
  %v995 = vadd.f32 %v994, %v466
  %v996 = vadd.f32 %v995, %v468
  %v997 = vadd.f32 %v996, %v471
  %v998 = vadd.f32 %v997, %v473
  %v999 = vadd.f32 %v998, %v476
  %v1000 = vadd.f32 %v999, %v478
  %v1001 = vadd.f32 %v1000, %v481
  %v1002 = vadd.f32 %v1001, %v483
  %v1003 = vadd.f32 %v1002, %v486
  %v1004 = vadd.f32 %v1003, %v488
  %v1005 = vadd.f32 %v1004, %v491
  %v1006 = vadd.f32 %v1005, %v493
  %v1007 = vadd.f32 %v1006, %v496
  %v1008 = vadd.f32 %v1007, %v498
  %v1009 = vadd.f32 %v1008, %v501
  %v1010 = vadd.f32 %v1009, %v503
  %v1011 = vadd.f32 %v1010, %v506
  %v1012 = vadd.f32 %v1011, %v508
  %v1013 = vadd.f32 %v1012, %v511
  %v1014 = vadd.f32 %v1013, %v513
  %v1015 = vadd.f32 %v1014, %v516
  %v1016 = vadd.f32 %v1015, %v518
  %v1017 = vadd.f32 %v1016, %v521
  %v1018 = vadd.f32 %v1017, %v523
  %v1019 = vadd.f32 %v1018, %v526
  %v1020 = vadd.f32 %v1019, %v528
  %v1021 = vadd.f32 %v1020, %v531
  %v1022 = vadd.f32 %v1021, %v533
  %v1023 = vrot.slane %v1022, 4
  %v1024 = vadd.f32 %v1022, %v1023
  %v1025 = vrot.slane %v1024, 2
  %v1026 = vadd.f32 %v1024, %v1025
  %v1027 = vrot.slane %v1026, 1
  %v1028 = vadd.f32 %v1026, %v1027
  %v1029 = vadd.f32 %v545, %v547
  %v1030 = vadd.f32 %v1029, %v550
  %v1031 = vadd.f32 %v1030, %v552
  %v1032 = vadd.f32 %v1031, %v555
  %v1033 = vadd.f32 %v1032, %v557
  %v1034 = vadd.f32 %v1033, %v560
  %v1035 = vadd.f32 %v1034, %v562
  %v1036 = vadd.f32 %v1035, %v565
  %v1037 = vadd.f32 %v1036, %v567
  %v1038 = vadd.f32 %v1037, %v570
  %v1039 = vadd.f32 %v1038, %v572
  %v1040 = vadd.f32 %v1039, %v575
  %v1041 = vadd.f32 %v1040, %v577
  %v1042 = vadd.f32 %v1041, %v580
  %v1043 = vadd.f32 %v1042, %v582
  %v1044 = vadd.f32 %v1043, %v585
  %v1045 = vadd.f32 %v1044, %v587
  %v1046 = vadd.f32 %v1045, %v590
  %v1047 = vadd.f32 %v1046, %v592
  %v1048 = vadd.f32 %v1047, %v595
  %v1049 = vadd.f32 %v1048, %v597
  %v1050 = vadd.f32 %v1049, %v600
  %v1051 = vadd.f32 %v1050, %v602
  %v1052 = vadd.f32 %v1051, %v605
  %v1053 = vadd.f32 %v1052, %v607
  %v1054 = vadd.f32 %v1053, %v610
  %v1055 = vadd.f32 %v1054, %v612
  %v1056 = vadd.f32 %v1055, %v615
  %v1057 = vadd.f32 %v1056, %v617
  %v1058 = vadd.f32 %v1057, %v620
  %v1059 = vadd.f32 %v1058, %v622
  %v1060 = vadd.f32 %v1059, %v625
  %v1061 = vadd.f32 %v1060, %v627
  %v1062 = vadd.f32 %v1061, %v630
  %v1063 = vadd.f32 %v1062, %v632
  %v1064 = vadd.f32 %v1063, %v635
  %v1065 = vadd.f32 %v1064, %v637
  %v1066 = vadd.f32 %v1065, %v640
  %v1067 = vadd.f32 %v1066, %v642
  %v1068 = vadd.f32 %v1067, %v645
  %v1069 = vadd.f32 %v1068, %v647
  %v1070 = vadd.f32 %v1069, %v650
  %v1071 = vadd.f32 %v1070, %v652
  %v1072 = vadd.f32 %v1071, %v655
  %v1073 = vadd.f32 %v1072, %v657
  %v1074 = vadd.f32 %v1073, %v660
  %v1075 = vadd.f32 %v1074, %v662
  %v1076 = vadd.f32 %v1075, %v665
  %v1077 = vadd.f32 %v1076, %v667
  %v1078 = vadd.f32 %v1077, %v670
  %v1079 = vadd.f32 %v1078, %v672
  %v1080 = vadd.f32 %v1079, %v675
  %v1081 = vadd.f32 %v1080, %v677
  %v1082 = vadd.f32 %v1081, %v680
  %v1083 = vadd.f32 %v1082, %v682
  %v1084 = vadd.f32 %v1083, %v685
  %v1085 = vadd.f32 %v1084, %v687
  %v1086 = vadd.f32 %v1085, %v690
  %v1087 = vadd.f32 %v1086, %v692
  %v1088 = vadd.f32 %v1087, %v695
  %v1089 = vadd.f32 %v1088, %v697
  %v1090 = vadd.f32 %v1089, %v700
  %v1091 = vadd.f32 %v1090, %v702
  %v1092 = vrot.slane %v1091, 4
  %v1093 = vadd.f32 %v1091, %v1092
  %v1094 = vrot.slane %v1093, 2
  %v1095 = vadd.f32 %v1093, %v1094
  %v1096 = vrot.slane %v1095, 1
  %v1097 = vadd.f32 %v1095, %v1096
  %v1098 = vmul.f32 %v376, %v376
  %v1099 = vmul.f32 %v545, %v545
  %v1100 = vmul.f32 %v378, %v378
  %v1101 = vmul.f32 %v547, %v547
  %v1102 = vmul.f32 %v381, %v381
  %v1103 = vmul.f32 %v550, %v550
  %v1104 = vmul.f32 %v383, %v383
  %v1105 = vmul.f32 %v552, %v552
  %v1106 = vmul.f32 %v386, %v386
  %v1107 = vmul.f32 %v555, %v555
  %v1108 = vmul.f32 %v388, %v388
  %v1109 = vmul.f32 %v557, %v557
  %v1110 = vmul.f32 %v391, %v391
  %v1111 = vmul.f32 %v560, %v560
  %v1112 = vmul.f32 %v393, %v393
  %v1113 = vmul.f32 %v562, %v562
  %v1114 = vmul.f32 %v396, %v396
  %v1115 = vmul.f32 %v565, %v565
  %v1116 = vmul.f32 %v398, %v398
  %v1117 = vmul.f32 %v567, %v567
  %v1118 = vmul.f32 %v401, %v401
  %v1119 = vmul.f32 %v570, %v570
  %v1120 = vmul.f32 %v403, %v403
  %v1121 = vmul.f32 %v572, %v572
  %v1122 = vmul.f32 %v406, %v406
  %v1123 = vmul.f32 %v575, %v575
  %v1124 = vmul.f32 %v408, %v408
  %v1125 = vmul.f32 %v577, %v577
  %v1126 = vmul.f32 %v411, %v411
  %v1127 = vmul.f32 %v580, %v580
  %v1128 = vmul.f32 %v413, %v413
  %v1129 = vmul.f32 %v582, %v582
  %v1130 = vmul.f32 %v416, %v416
  %v1131 = vmul.f32 %v585, %v585
  %v1132 = vmul.f32 %v418, %v418
  %v1133 = vmul.f32 %v587, %v587
  %v1134 = vmul.f32 %v421, %v421
  %v1135 = vmul.f32 %v590, %v590
  %v1136 = vmul.f32 %v423, %v423
  %v1137 = vmul.f32 %v592, %v592
  %v1138 = vmul.f32 %v426, %v426
  %v1139 = vmul.f32 %v595, %v595
  %v1140 = vmul.f32 %v428, %v428
  %v1141 = vmul.f32 %v597, %v597
  %v1142 = vmul.f32 %v431, %v431
  %v1143 = vmul.f32 %v600, %v600
  %v1144 = vmul.f32 %v433, %v433
  %v1145 = vmul.f32 %v602, %v602
  %v1146 = vmul.f32 %v436, %v436
  %v1147 = vmul.f32 %v605, %v605
  %v1148 = vmul.f32 %v438, %v438
  %v1149 = vmul.f32 %v607, %v607
  %v1150 = vmul.f32 %v441, %v441
  %v1151 = vmul.f32 %v610, %v610
  %v1152 = vmul.f32 %v443, %v443
  %v1153 = vmul.f32 %v612, %v612
  %v1154 = vmul.f32 %v446, %v446
  %v1155 = vmul.f32 %v615, %v615
  %v1156 = vmul.f32 %v448, %v448
  %v1157 = vmul.f32 %v617, %v617
  %v1158 = vmul.f32 %v451, %v451
  %v1159 = vmul.f32 %v620, %v620
  %v1160 = vmul.f32 %v453, %v453
  %v1161 = vmul.f32 %v622, %v622
  %v1162 = vmul.f32 %v456, %v456
  %v1163 = vmul.f32 %v625, %v625
  %v1164 = vmul.f32 %v458, %v458
  %v1165 = vmul.f32 %v627, %v627
  %v1166 = vmul.f32 %v461, %v461
  %v1167 = vmul.f32 %v630, %v630
  %v1168 = vmul.f32 %v463, %v463
  %v1169 = vmul.f32 %v632, %v632
  %v1170 = vmul.f32 %v466, %v466
  %v1171 = vmul.f32 %v635, %v635
  %v1172 = vmul.f32 %v468, %v468
  %v1173 = vmul.f32 %v637, %v637
  %v1174 = vmul.f32 %v471, %v471
  %v1175 = vmul.f32 %v640, %v640
  %v1176 = vmul.f32 %v473, %v473
  %v1177 = vmul.f32 %v642, %v642
  %v1178 = vmul.f32 %v476, %v476
  %v1179 = vmul.f32 %v645, %v645
  %v1180 = vmul.f32 %v478, %v478
  %v1181 = vmul.f32 %v647, %v647
  %v1182 = vmul.f32 %v481, %v481
  %v1183 = vmul.f32 %v650, %v650
  %v1184 = vmul.f32 %v483, %v483
  %v1185 = vmul.f32 %v652, %v652
  %v1186 = vmul.f32 %v486, %v486
  %v1187 = vmul.f32 %v655, %v655
  %v1188 = vmul.f32 %v488, %v488
  %v1189 = vmul.f32 %v657, %v657
  %v1190 = vmul.f32 %v491, %v491
  %v1191 = vmul.f32 %v660, %v660
  %v1192 = vmul.f32 %v493, %v493
  %v1193 = vmul.f32 %v662, %v662
  %v1194 = vmul.f32 %v496, %v496
  %v1195 = vmul.f32 %v665, %v665
  %v1196 = vmul.f32 %v498, %v498
  %v1197 = vmul.f32 %v667, %v667
  %v1198 = vmul.f32 %v501, %v501
  %v1199 = vmul.f32 %v670, %v670
  %v1200 = vmul.f32 %v503, %v503
  %v1201 = vmul.f32 %v672, %v672
  %v1202 = vmul.f32 %v506, %v506
  %v1203 = vmul.f32 %v675, %v675
  %v1204 = vmul.f32 %v508, %v508
  %v1205 = vmul.f32 %v677, %v677
  %v1206 = vmul.f32 %v511, %v511
  %v1207 = vmul.f32 %v680, %v680
  %v1208 = vmul.f32 %v513, %v513
  %v1209 = vmul.f32 %v682, %v682
  %v1210 = vmul.f32 %v516, %v516
  %v1211 = vmul.f32 %v685, %v685
  %v1212 = vmul.f32 %v518, %v518
  %v1213 = vmul.f32 %v687, %v687
  %v1214 = vmul.f32 %v521, %v521
  %v1215 = vmul.f32 %v690, %v690
  %v1216 = vmul.f32 %v523, %v523
  %v1217 = vmul.f32 %v692, %v692
  %v1218 = vmul.f32 %v526, %v526
  %v1219 = vmul.f32 %v695, %v695
  %v1220 = vmul.f32 %v528, %v528
  %v1221 = vmul.f32 %v697, %v697
  %v1222 = vmul.f32 %v531, %v531
  %v1223 = vmul.f32 %v700, %v700
  %v1224 = vmul.f32 %v533, %v533
  %v1225 = vmul.f32 %v702, %v702
  %v1226 = vadd.f32 %v1098, %v1100
  %v1227 = vadd.f32 %v1226, %v1102
  %v1228 = vadd.f32 %v1227, %v1104
  %v1229 = vadd.f32 %v1228, %v1106
  %v1230 = vadd.f32 %v1229, %v1108
  %v1231 = vadd.f32 %v1230, %v1110
  %v1232 = vadd.f32 %v1231, %v1112
  %v1233 = vadd.f32 %v1232, %v1114
  %v1234 = vadd.f32 %v1233, %v1116
  %v1235 = vadd.f32 %v1234, %v1118
  %v1236 = vadd.f32 %v1235, %v1120
  %v1237 = vadd.f32 %v1236, %v1122
  %v1238 = vadd.f32 %v1237, %v1124
  %v1239 = vadd.f32 %v1238, %v1126
  %v1240 = vadd.f32 %v1239, %v1128
  %v1241 = vadd.f32 %v1240, %v1130
  %v1242 = vadd.f32 %v1241, %v1132
  %v1243 = vadd.f32 %v1242, %v1134
  %v1244 = vadd.f32 %v1243, %v1136
  %v1245 = vadd.f32 %v1244, %v1138
  %v1246 = vadd.f32 %v1245, %v1140
  %v1247 = vadd.f32 %v1246, %v1142
  %v1248 = vadd.f32 %v1247, %v1144
  %v1249 = vadd.f32 %v1248, %v1146
  %v1250 = vadd.f32 %v1249, %v1148
  %v1251 = vadd.f32 %v1250, %v1150
  %v1252 = vadd.f32 %v1251, %v1152
  %v1253 = vadd.f32 %v1252, %v1154
  %v1254 = vadd.f32 %v1253, %v1156
  %v1255 = vadd.f32 %v1254, %v1158
  %v1256 = vadd.f32 %v1255, %v1160
  %v1257 = vadd.f32 %v1256, %v1162
  %v1258 = vadd.f32 %v1257, %v1164
  %v1259 = vadd.f32 %v1258, %v1166
  %v1260 = vadd.f32 %v1259, %v1168
  %v1261 = vadd.f32 %v1260, %v1170
  %v1262 = vadd.f32 %v1261, %v1172
  %v1263 = vadd.f32 %v1262, %v1174
  %v1264 = vadd.f32 %v1263, %v1176
  %v1265 = vadd.f32 %v1264, %v1178
  %v1266 = vadd.f32 %v1265, %v1180
  %v1267 = vadd.f32 %v1266, %v1182
  %v1268 = vadd.f32 %v1267, %v1184
  %v1269 = vadd.f32 %v1268, %v1186
  %v1270 = vadd.f32 %v1269, %v1188
  %v1271 = vadd.f32 %v1270, %v1190
  %v1272 = vadd.f32 %v1271, %v1192
  %v1273 = vadd.f32 %v1272, %v1194
  %v1274 = vadd.f32 %v1273, %v1196
  %v1275 = vadd.f32 %v1274, %v1198
  %v1276 = vadd.f32 %v1275, %v1200
  %v1277 = vadd.f32 %v1276, %v1202
  %v1278 = vadd.f32 %v1277, %v1204
  %v1279 = vadd.f32 %v1278, %v1206
  %v1280 = vadd.f32 %v1279, %v1208
  %v1281 = vadd.f32 %v1280, %v1210
  %v1282 = vadd.f32 %v1281, %v1212
  %v1283 = vadd.f32 %v1282, %v1214
  %v1284 = vadd.f32 %v1283, %v1216
  %v1285 = vadd.f32 %v1284, %v1218
  %v1286 = vadd.f32 %v1285, %v1220
  %v1287 = vadd.f32 %v1286, %v1222
  %v1288 = vadd.f32 %v1287, %v1224
  %v1289 = vrot.slane %v1288, 4
  %v1290 = vadd.f32 %v1288, %v1289
  %v1291 = vrot.slane %v1290, 2
  %v1292 = vadd.f32 %v1290, %v1291
  %v1293 = vrot.slane %v1292, 1
  %v1294 = vadd.f32 %v1292, %v1293
  %v1295 = vadd.f32 %v1099, %v1101
  %v1296 = vadd.f32 %v1295, %v1103
  %v1297 = vadd.f32 %v1296, %v1105
  %v1298 = vadd.f32 %v1297, %v1107
  %v1299 = vadd.f32 %v1298, %v1109
  %v1300 = vadd.f32 %v1299, %v1111
  %v1301 = vadd.f32 %v1300, %v1113
  %v1302 = vadd.f32 %v1301, %v1115
  %v1303 = vadd.f32 %v1302, %v1117
  %v1304 = vadd.f32 %v1303, %v1119
  %v1305 = vadd.f32 %v1304, %v1121
  %v1306 = vadd.f32 %v1305, %v1123
  %v1307 = vadd.f32 %v1306, %v1125
  %v1308 = vadd.f32 %v1307, %v1127
  %v1309 = vadd.f32 %v1308, %v1129
  %v1310 = vadd.f32 %v1309, %v1131
  %v1311 = vadd.f32 %v1310, %v1133
  %v1312 = vadd.f32 %v1311, %v1135
  %v1313 = vadd.f32 %v1312, %v1137
  %v1314 = vadd.f32 %v1313, %v1139
  %v1315 = vadd.f32 %v1314, %v1141
  %v1316 = vadd.f32 %v1315, %v1143
  %v1317 = vadd.f32 %v1316, %v1145
  %v1318 = vadd.f32 %v1317, %v1147
  %v1319 = vadd.f32 %v1318, %v1149
  %v1320 = vadd.f32 %v1319, %v1151
  %v1321 = vadd.f32 %v1320, %v1153
  %v1322 = vadd.f32 %v1321, %v1155
  %v1323 = vadd.f32 %v1322, %v1157
  %v1324 = vadd.f32 %v1323, %v1159
  %v1325 = vadd.f32 %v1324, %v1161
  %v1326 = vadd.f32 %v1325, %v1163
  %v1327 = vadd.f32 %v1326, %v1165
  %v1328 = vadd.f32 %v1327, %v1167
  %v1329 = vadd.f32 %v1328, %v1169
  %v1330 = vadd.f32 %v1329, %v1171
  %v1331 = vadd.f32 %v1330, %v1173
  %v1332 = vadd.f32 %v1331, %v1175
  %v1333 = vadd.f32 %v1332, %v1177
  %v1334 = vadd.f32 %v1333, %v1179
  %v1335 = vadd.f32 %v1334, %v1181
  %v1336 = vadd.f32 %v1335, %v1183
  %v1337 = vadd.f32 %v1336, %v1185
  %v1338 = vadd.f32 %v1337, %v1187
  %v1339 = vadd.f32 %v1338, %v1189
  %v1340 = vadd.f32 %v1339, %v1191
  %v1341 = vadd.f32 %v1340, %v1193
  %v1342 = vadd.f32 %v1341, %v1195
  %v1343 = vadd.f32 %v1342, %v1197
  %v1344 = vadd.f32 %v1343, %v1199
  %v1345 = vadd.f32 %v1344, %v1201
  %v1346 = vadd.f32 %v1345, %v1203
  %v1347 = vadd.f32 %v1346, %v1205
  %v1348 = vadd.f32 %v1347, %v1207
  %v1349 = vadd.f32 %v1348, %v1209
  %v1350 = vadd.f32 %v1349, %v1211
  %v1351 = vadd.f32 %v1350, %v1213
  %v1352 = vadd.f32 %v1351, %v1215
  %v1353 = vadd.f32 %v1352, %v1217
  %v1354 = vadd.f32 %v1353, %v1219
  %v1355 = vadd.f32 %v1354, %v1221
  %v1356 = vadd.f32 %v1355, %v1223
  %v1357 = vadd.f32 %v1356, %v1225
  %v1358 = vrot.slane %v1357, 4
  %v1359 = vadd.f32 %v1357, %v1358
  %v1360 = vrot.slane %v1359, 2
  %v1361 = vadd.f32 %v1359, %v1360
  %v1362 = vrot.slane %v1361, 1
  %v1363 = vadd.f32 %v1361, %v1362
  %v1364 = vlaneseq
  %v1365 = vshrl.u32 %v1364, 7
  %vm1366 = vcmp.eq.s32.totalorder %v1365, 0
  %vm1367 = vcmp.eq.s32.totalorder %v1365, 1
  %v1368 = vsel %vm1367, %v1294, 0.0
  %v1369 = vsel %vm1367, %v1363, 0.0
  %v1370 = vsel %vm1366, %v1028, %v1368
  %v1371 = vsel %vm1366, %v1097, %v1369
  %1372 = vst [vmem:[%s4] sm:$0xff] %v1370
  %1373 = vst [vmem:[%s4 + $0x8] sm:$0xff] %v1371
  // Predicated region
  $region10: #{bottleneck_forward.4} parent=0 // pred_check
    _
  $region11: #{bottleneck_forward.4} parent=0 // pred_check_branch
    %1375 = sbr.rel (0) target = $region13
  $region12: #{bottleneck_forward.4} parent=0 // pred_region
    _
  $region13: #{bottleneck_forward.4} parent=0 // pred_fallthru
    _
  // Predicated region
  $region14: #{bottleneck_forward.4} parent=0 // pred_check
    _
  $region15: #{bottleneck_forward.4} parent=0 // pred_check_branch
    %1377 = sbr.rel (0) target = $region17
  $region16: #{bottleneck_forward.4} parent=0 // pred_region
    _
  $region17: #{bottleneck_forward.4} parent=0 // pred_fallthru
    _
  // Predicated region
  $region18: #{bottleneck_forward.4} parent=0 // pred_check
    _
  $region19: #{bottleneck_forward.4} parent=0 // pred_check_branch
    %1379 = sbr.rel (0) target = $region21
  $region20: #{bottleneck_forward.4} parent=0 // pred_region
    _
  $region21: #{bottleneck_forward.4} parent=0 // pred_fallthru
    _
  // Predicated region
  $region22: #{bottleneck_forward.4} parent=0 // pred_check
    _
  $region23: #{bottleneck_forward.4} parent=0 // pred_check_branch
    %1381 = sbr.rel (0) target = $region25
  $region24: #{bottleneck_forward.4} parent=0 // pred_region
    _
  $region25: #{bottleneck_forward.4} parent=0 // pred_fallthru
    _
  // Predicated region
  $region26: #{bottleneck_forward.4} parent=0 // pred_check
    _
  $region27: #{bottleneck_forward.4} parent=0 // pred_check_branch
    %1383 = sbr.rel (0) target = $region29
  $region28: #{bottleneck_forward.4} parent=0 // pred_region
    _
  $region29: #{bottleneck_forward.4} parent=0 // pred_fallthru
    _
  // Predicated region
  $region30: #{bottleneck_forward.4} parent=0 // pred_check
    _
  $region31: #{bottleneck_forward.4} parent=0 // pred_check_branch
    %1385 = sbr.rel (0) target = $region33
  $region32: #{bottleneck_forward.4} parent=0 // pred_region
    _
  $region33: #{bottleneck_forward.4} parent=0 // pred_fallthru
    _

// kernel: bottleneck_forward.7
$region0: #{bottleneck_forward.7}
  #allocation0 [shape = 'u32[]', space=smem, size = 0x4, offset = 0x4, fixed_abs, tag = 'smem constant byte address 0x4 - core index']
  #allocation1 [shape = 'u32[72,128]{1,0:T(1,128)}', space=vmem, size = 0x9000, scoped, tag = 'internal scratch']
  %s0 = inlined_call_operand.vmem [shape: bf16[512,128], index: 0, kind: input, shape index: {}]
  %s1 = inlined_call_operand.vmem [shape: f32[2,128], index: 1, kind: input, shape index: {}]
  %s2 = inlined_call_operand.vmem [shape: bf16[512,128], index: 2, kind: input, shape index: {}]
  %s3 = inlined_call_operand.vmem [shape: f32[2,128], index: 3, kind: input, shape index: {}]
  %s4 = inlined_call_operand.vmem [shape: bf16[512,128], index: 4, kind: output, shape index: {}]
  %s5 = sld [smem:[#allocation0]]
  $region26: #{bottleneck_forward.7} parent=0
    _
  %s7 = ssub.s32 1, %s5
  %s8 = scalar_select 0, %s7, %s5
  // Predicated region
  $region2: #{bottleneck_forward.7} parent=0 // pred_check
    _
  $region3: #{bottleneck_forward.7} parent=0 // pred_check_branch
    %10 = sbr.rel (0) target = $region5
  $region4: #{bottleneck_forward.7} parent=0 // pred_region
    _
  $region5: #{bottleneck_forward.7} parent=0 // pred_fallthru
    _
  // Predicated region
  $region6: #{bottleneck_forward.7} parent=0 // pred_check
    _
  $region7: #{bottleneck_forward.7} parent=0 // pred_check_branch
    %12 = sbr.rel (0) target = $region9
  $region8: #{bottleneck_forward.7} parent=0 // pred_region
    _
  $region9: #{bottleneck_forward.7} parent=0 // pred_fallthru
    _
  // Predicated region
  $region10: #{bottleneck_forward.7} parent=0 // pred_check
    _
  $region11: #{bottleneck_forward.7} parent=0 // pred_check_branch
    %14 = sbr.rel (0) target = $region13
  $region12: #{bottleneck_forward.7} parent=0 // pred_region
    _
  $region13: #{bottleneck_forward.7} parent=0 // pred_fallthru
    _
  // Predicated region
  $region14: #{bottleneck_forward.7} parent=0 // pred_check
    _
  $region15: #{bottleneck_forward.7} parent=0 // pred_check_branch
    %16 = sbr.rel (0) target = $region17
  $region16: #{bottleneck_forward.7} parent=0 // pred_region
    _
  $region17: #{bottleneck_forward.7} parent=0 // pred_fallthru
    _
  %v17 = vld [vmem:[%s0] sm:$0xf]
  %v18 = vld [vmem:[%s0 + $0x4] sm:$0xf]
  %v19 = vld [vmem:[%s0 + $0x8] sm:$0xf]
  %v20 = vld [vmem:[%s0 + $0xc] sm:$0xf]
  %v21 = vld [vmem:[%s0 + $0x10] sm:$0xf]
  %v22 = vld [vmem:[%s0 + $0x14] sm:$0xf]
  %v23 = vld [vmem:[%s0 + $0x18] sm:$0xf]
  %v24 = vld [vmem:[%s0 + $0x1c] sm:$0xf]
  %v25 = vld [vmem:[%s0 + $0x20] sm:$0xf]
  %v26 = vld [vmem:[%s0 + $0x24] sm:$0xf]
  %v27 = vld [vmem:[%s0 + $0x28] sm:$0xf]
  %v28 = vld [vmem:[%s0 + $0x2c] sm:$0xf]
  %v29 = vld [vmem:[%s0 + $0x30] sm:$0xf]
  %v30 = vld [vmem:[%s0 + $0x34] sm:$0xf]
  %v31 = vld [vmem:[%s0 + $0x38] sm:$0xf]
  %v32 = vld [vmem:[%s0 + $0x3c] sm:$0xf]
  %v33 = vld [vmem:[%s0 + $0x40] sm:$0xf]
  %v34 = vld [vmem:[%s0 + $0x44] sm:$0xf]
  %v35 = vld [vmem:[%s0 + $0x48] sm:$0xf]
  %v36 = vld [vmem:[%s0 + $0x4c] sm:$0xf]
  %v37 = vld [vmem:[%s0 + $0x50] sm:$0xf]
  %v38 = vld [vmem:[%s0 + $0x54] sm:$0xf]
  %v39 = vld [vmem:[%s0 + $0x58] sm:$0xf]
  %v40 = vld [vmem:[%s0 + $0x5c] sm:$0xf]
  %v41 = vld [vmem:[%s0 + $0x60] sm:$0xf]
  %v42 = vld [vmem:[%s0 + $0x64] sm:$0xf]
  %v43 = vld [vmem:[%s0 + $0x68] sm:$0xf]
  %v44 = vld [vmem:[%s0 + $0x6c] sm:$0xf]
  %v45 = vld [vmem:[%s0 + $0x70] sm:$0xf]
  %v46 = vld [vmem:[%s0 + $0x74] sm:$0xf]
  %v47 = vld [vmem:[%s0 + $0x78] sm:$0xf]
  %v48 = vld [vmem:[%s0 + $0x7c] sm:$0xf]
  %v49 = vld [vmem:[%s0 + $0x80] sm:$0xf]
  %v50 = vld [vmem:[%s0 + $0x84] sm:$0xf]
  %v51 = vld [vmem:[%s0 + $0x88] sm:$0xf]
  %v52 = vld [vmem:[%s0 + $0x8c] sm:$0xf]
  %v53 = vld [vmem:[%s0 + $0x90] sm:$0xf]
  %v54 = vld [vmem:[%s0 + $0x94] sm:$0xf]
  %v55 = vld [vmem:[%s0 + $0x98] sm:$0xf]
  %v56 = vld [vmem:[%s0 + $0x9c] sm:$0xf]
  %v57 = vld [vmem:[%s0 + $0xa0] sm:$0xf]
  %v58 = vld [vmem:[%s0 + $0xa4] sm:$0xf]
  %v59 = vld [vmem:[%s0 + $0xa8] sm:$0xf]
  %v60 = vld [vmem:[%s0 + $0xac] sm:$0xf]
  %v61 = vld [vmem:[%s0 + $0xb0] sm:$0xf]
  %v62 = vld [vmem:[%s0 + $0xb4] sm:$0xf]
  %v63 = vld [vmem:[%s0 + $0xb8] sm:$0xf]
  %v64 = vld [vmem:[%s0 + $0xbc] sm:$0xf]
  %v65 = vld [vmem:[%s0 + $0xc0] sm:$0xf]
  %v66 = vld [vmem:[%s0 + $0xc4] sm:$0xf]
  %v67 = vld [vmem:[%s0 + $0xc8] sm:$0xf]
  %v68 = vld [vmem:[%s0 + $0xcc] sm:$0xf]
  %v69 = vld [vmem:[%s0 + $0xd0] sm:$0xf]
  %v70 = vld [vmem:[%s0 + $0xd4] sm:$0xf]
  %v71 = vld [vmem:[%s0 + $0xd8] sm:$0xf]
  %v72 = vld [vmem:[%s0 + $0xdc] sm:$0xf]
  %v73 = vld [vmem:[%s0 + $0xe0] sm:$0xf]
  %v74 = vld [vmem:[%s0 + $0xe4] sm:$0xf]
  %v75 = vld [vmem:[%s0 + $0xe8] sm:$0xf]
  %v76 = vld [vmem:[%s0 + $0xec] sm:$0xf]
  %v77 = vld [vmem:[%s0 + $0xf0] sm:$0xf]
  %v78 = vld [vmem:[%s0 + $0xf4] sm:$0xf]
  %v79 = vld [vmem:[%s0 + $0xf8] sm:$0xf]
  %v80 = vld [vmem:[%s0 + $0xfc] sm:$0xf]
  %v81 = vunpack.c.l.bf16 %v17
  %v82 = vunpack.c.l.bf16 %v18
  %v83 = vunpack.c.l.bf16 %v19
  %v84 = vunpack.c.l.bf16 %v20
  %v85 = vunpack.c.l.bf16 %v21
  %v86 = vunpack.c.l.bf16 %v22
  %v87 = vunpack.c.l.bf16 %v23
  %v88 = vunpack.c.l.bf16 %v24
  %v89 = vunpack.c.l.bf16 %v25
  %v90 = vunpack.c.l.bf16 %v26
  %v91 = vunpack.c.l.bf16 %v27
  %v92 = vunpack.c.l.bf16 %v28
  %v93 = vunpack.c.l.bf16 %v29
  %v94 = vunpack.c.l.bf16 %v30
  %v95 = vunpack.c.l.bf16 %v31
  %v96 = vunpack.c.l.bf16 %v32
  %v97 = vunpack.c.l.bf16 %v33
  %v98 = vunpack.c.l.bf16 %v34
  %v99 = vunpack.c.l.bf16 %v35
  %v100 = vunpack.c.l.bf16 %v36
  %v101 = vunpack.c.l.bf16 %v37
  %v102 = vunpack.c.l.bf16 %v38
  %v103 = vunpack.c.l.bf16 %v39
  %v104 = vunpack.c.l.bf16 %v40
  %v105 = vunpack.c.l.bf16 %v41
  %v106 = vunpack.c.l.bf16 %v42
  %v107 = vunpack.c.l.bf16 %v43
  %v108 = vunpack.c.l.bf16 %v44
  %v109 = vunpack.c.l.bf16 %v45
  %v110 = vunpack.c.l.bf16 %v46
  %v111 = vunpack.c.l.bf16 %v47
  %v112 = vunpack.c.l.bf16 %v48
  %v113 = vunpack.c.l.bf16 %v49
  %v114 = vunpack.c.l.bf16 %v50
  %v115 = vunpack.c.l.bf16 %v51
  %v116 = vunpack.c.l.bf16 %v52
  %v117 = vunpack.c.l.bf16 %v53
  %v118 = vunpack.c.l.bf16 %v54
  %v119 = vunpack.c.l.bf16 %v55
  %v120 = vunpack.c.l.bf16 %v56
  %v121 = vunpack.c.l.bf16 %v57
  %v122 = vunpack.c.l.bf16 %v58
  %v123 = vunpack.c.l.bf16 %v59
  %v124 = vunpack.c.l.bf16 %v60
  %v125 = vunpack.c.l.bf16 %v61
  %v126 = vunpack.c.l.bf16 %v62
  %v127 = vunpack.c.l.bf16 %v63
  %v128 = vunpack.c.l.bf16 %v64
  %v129 = vunpack.c.l.bf16 %v65
  %v130 = vunpack.c.l.bf16 %v66
  %v131 = vunpack.c.l.bf16 %v67
  %v132 = vunpack.c.l.bf16 %v68
  %v133 = vunpack.c.l.bf16 %v69
  %v134 = vunpack.c.l.bf16 %v70
  %v135 = vunpack.c.l.bf16 %v71
  %v136 = vunpack.c.l.bf16 %v72
  %v137 = vunpack.c.l.bf16 %v73
  %v138 = vunpack.c.l.bf16 %v74
  %v139 = vunpack.c.l.bf16 %v75
  %v140 = vunpack.c.l.bf16 %v76
  %v141 = vunpack.c.l.bf16 %v77
  %v142 = vunpack.c.l.bf16 %v78
  %v143 = vunpack.c.l.bf16 %v79
  %v144 = vunpack.c.l.bf16 %v80
  %v145 = vld [vmem:[%s1] sm:$0x1]
  %v146 = vperm.slane %v145, 0
  %v147 = vmul.f32 %v81, %v146
  %v148 = vmul.f32 %v82, %v146
  %v149 = vmul.f32 %v83, %v146
  %v150 = vmul.f32 %v84, %v146
  %v151 = vmul.f32 %v85, %v146
  %v152 = vmul.f32 %v86, %v146
  %v153 = vmul.f32 %v87, %v146
  %v154 = vmul.f32 %v88, %v146
  %v155 = vmul.f32 %v89, %v146
  %v156 = vmul.f32 %v90, %v146
  %v157 = vmul.f32 %v91, %v146
  %v158 = vmul.f32 %v92, %v146
  %v159 = vmul.f32 %v93, %v146
  %v160 = vmul.f32 %v94, %v146
  %v161 = vmul.f32 %v95, %v146
  %v162 = vmul.f32 %v96, %v146
  %v163 = vmul.f32 %v97, %v146
  %v164 = vmul.f32 %v98, %v146
  %v165 = vmul.f32 %v99, %v146
  %v166 = vmul.f32 %v100, %v146
  %v167 = vmul.f32 %v101, %v146
  %v168 = vmul.f32 %v102, %v146
  %v169 = vmul.f32 %v103, %v146
  %v170 = vmul.f32 %v104, %v146
  %v171 = vmul.f32 %v105, %v146
  %v172 = vmul.f32 %v106, %v146
  %v173 = vmul.f32 %v107, %v146
  %v174 = vmul.f32 %v108, %v146
  %v175 = vmul.f32 %v109, %v146
  %v176 = vmul.f32 %v110, %v146
  %v177 = vmul.f32 %v111, %v146
  %v178 = vmul.f32 %v112, %v146
  %v179 = vmul.f32 %v113, %v146
  %v180 = vmul.f32 %v114, %v146
  %v181 = vmul.f32 %v115, %v146
  %v182 = vmul.f32 %v116, %v146
  %v183 = vmul.f32 %v117, %v146
  %v184 = vmul.f32 %v118, %v146
  %v185 = vmul.f32 %v119, %v146
  %v186 = vmul.f32 %v120, %v146
  %v187 = vmul.f32 %v121, %v146
  %v188 = vmul.f32 %v122, %v146
  %v189 = vmul.f32 %v123, %v146
  %v190 = vmul.f32 %v124, %v146
  %v191 = vmul.f32 %v125, %v146
  %v192 = vmul.f32 %v126, %v146
  %v193 = vmul.f32 %v127, %v146
  %v194 = vmul.f32 %v128, %v146
  %v195 = vmul.f32 %v129, %v146
  %v196 = vmul.f32 %v130, %v146
  %v197 = vmul.f32 %v131, %v146
  %v198 = vmul.f32 %v132, %v146
  %v199 = vmul.f32 %v133, %v146
  %v200 = vmul.f32 %v134, %v146
  %v201 = vmul.f32 %v135, %v146
  %v202 = vmul.f32 %v136, %v146
  %v203 = vmul.f32 %v137, %v146
  %v204 = vmul.f32 %v138, %v146
  %v205 = vmul.f32 %v139, %v146
  %v206 = vmul.f32 %v140, %v146
  %v207 = vmul.f32 %v141, %v146
  %v208 = vmul.f32 %v142, %v146
  %v209 = vmul.f32 %v143, %v146
  %v210 = vmul.f32 %v144, %v146
  %v211 = vld [vmem:[%s1 + $0x1] sm:$0x1]
  %v212 = vperm.slane %v211, 0
  %v213 = vadd.f32 %v147, %v212
  %v214 = vadd.f32 %v148, %v212
  %v215 = vadd.f32 %v149, %v212
  %v216 = vadd.f32 %v150, %v212
  %v217 = vadd.f32 %v151, %v212
  %v218 = vadd.f32 %v152, %v212
  %v219 = vadd.f32 %v153, %v212
  %v220 = vadd.f32 %v154, %v212
  %v221 = vadd.f32 %v155, %v212
  %v222 = vadd.f32 %v156, %v212
  %v223 = vadd.f32 %v157, %v212
  %v224 = vadd.f32 %v158, %v212
  %v225 = vadd.f32 %v159, %v212
  %v226 = vadd.f32 %v160, %v212
  %v227 = vadd.f32 %v161, %v212
  %v228 = vadd.f32 %v162, %v212
  %v229 = vadd.f32 %v163, %v212
  %v230 = vadd.f32 %v164, %v212
  %v231 = vadd.f32 %v165, %v212
  %v232 = vadd.f32 %v166, %v212
  %v233 = vadd.f32 %v167, %v212
  %v234 = vadd.f32 %v168, %v212
  %v235 = vadd.f32 %v169, %v212
  %v236 = vadd.f32 %v170, %v212
  %v237 = vadd.f32 %v171, %v212
  %v238 = vadd.f32 %v172, %v212
  %v239 = vadd.f32 %v173, %v212
  %v240 = vadd.f32 %v174, %v212
  %v241 = vadd.f32 %v175, %v212
  %v242 = vadd.f32 %v176, %v212
  %v243 = vadd.f32 %v177, %v212
  %v244 = vadd.f32 %v178, %v212
  %v245 = vadd.f32 %v179, %v212
  %v246 = vadd.f32 %v180, %v212
  %v247 = vadd.f32 %v181, %v212
  %v248 = vadd.f32 %v182, %v212
  %v249 = vadd.f32 %v183, %v212
  %v250 = vadd.f32 %v184, %v212
  %v251 = vadd.f32 %v185, %v212
  %v252 = vadd.f32 %v186, %v212
  %v253 = vadd.f32 %v187, %v212
  %v254 = vadd.f32 %v188, %v212
  %v255 = vadd.f32 %v189, %v212
  %v256 = vadd.f32 %v190, %v212
  %v257 = vadd.f32 %v191, %v212
  %v258 = vadd.f32 %v192, %v212
  %v259 = vadd.f32 %v193, %v212
  %v260 = vadd.f32 %v194, %v212
  %v261 = vadd.f32 %v195, %v212
  %v262 = vadd.f32 %v196, %v212
  %v263 = vadd.f32 %v197, %v212
  %v264 = vadd.f32 %v198, %v212
  %v265 = vadd.f32 %v199, %v212
  %v266 = vadd.f32 %v200, %v212
  %v267 = vadd.f32 %v201, %v212
  %v268 = vadd.f32 %v202, %v212
  %v269 = vadd.f32 %v203, %v212
  %v270 = vadd.f32 %v204, %v212
  %v271 = vadd.f32 %v205, %v212
  %v272 = vadd.f32 %v206, %v212
  %v273 = vadd.f32 %v207, %v212
  %v274 = vadd.f32 %v208, %v212
  %v275 = vadd.f32 %v209, %v212
  %v276 = vadd.f32 %v210, %v212
  %v277 = vld [vmem:[%s2] sm:$0xf]
  %v278 = vld [vmem:[%s2 + $0x4] sm:$0xf]
  %v279 = vld [vmem:[%s2 + $0x8] sm:$0xf]
  %v280 = vld [vmem:[%s2 + $0xc] sm:$0xf]
  %v281 = vld [vmem:[%s2 + $0x10] sm:$0xf]
  %v282 = vld [vmem:[%s2 + $0x14] sm:$0xf]
  %v283 = vld [vmem:[%s2 + $0x18] sm:$0xf]
  %v284 = vld [vmem:[%s2 + $0x1c] sm:$0xf]
  %v285 = vld [vmem:[%s2 + $0x20] sm:$0xf]
  %v286 = vld [vmem:[%s2 + $0x24] sm:$0xf]
  %v287 = vld [vmem:[%s2 + $0x28] sm:$0xf]
  %v288 = vld [vmem:[%s2 + $0x2c] sm:$0xf]
  %v289 = vld [vmem:[%s2 + $0x30] sm:$0xf]
  %v290 = vld [vmem:[%s2 + $0x34] sm:$0xf]
  %v291 = vld [vmem:[%s2 + $0x38] sm:$0xf]
  %v292 = vld [vmem:[%s2 + $0x3c] sm:$0xf]
  %v293 = vld [vmem:[%s2 + $0x40] sm:$0xf]
  %v294 = vld [vmem:[%s2 + $0x44] sm:$0xf]
  %v295 = vld [vmem:[%s2 + $0x48] sm:$0xf]
  %v296 = vld [vmem:[%s2 + $0x4c] sm:$0xf]
  %v297 = vld [vmem:[%s2 + $0x50] sm:$0xf]
  %v298 = vld [vmem:[%s2 + $0x54] sm:$0xf]
  %v299 = vld [vmem:[%s2 + $0x58] sm:$0xf]
  %v300 = vld [vmem:[%s2 + $0x5c] sm:$0xf]
  %v301 = vld [vmem:[%s2 + $0x60] sm:$0xf]
  %v302 = vld [vmem:[%s2 + $0x64] sm:$0xf]
  %v303 = vld [vmem:[%s2 + $0x68] sm:$0xf]
  %v304 = vld [vmem:[%s2 + $0x6c] sm:$0xf]
  %v305 = vld [vmem:[%s2 + $0x70] sm:$0xf]
  %v306 = vld [vmem:[%s2 + $0x74] sm:$0xf]
  %v307 = vld [vmem:[%s2 + $0x78] sm:$0xf]
  %v308 = vld [vmem:[%s2 + $0x7c] sm:$0xf]
  %v309 = vld [vmem:[%s2 + $0x80] sm:$0xf]
  %v310 = vld [vmem:[%s2 + $0x84] sm:$0xf]
  %v311 = vld [vmem:[%s2 + $0x88] sm:$0xf]
  %v312 = vld [vmem:[%s2 + $0x8c] sm:$0xf]
  %v313 = vld [vmem:[%s2 + $0x90] sm:$0xf]
  %v314 = vld [vmem:[%s2 + $0x94] sm:$0xf]
  %v315 = vld [vmem:[%s2 + $0x98] sm:$0xf]
  %v316 = vld [vmem:[%s2 + $0x9c] sm:$0xf]
  %v317 = vld [vmem:[%s2 + $0xa0] sm:$0xf]
  %v318 = vld [vmem:[%s2 + $0xa4] sm:$0xf]
  %v319 = vld [vmem:[%s2 + $0xa8] sm:$0xf]
  %v320 = vld [vmem:[%s2 + $0xac] sm:$0xf]
  %v321 = vld [vmem:[%s2 + $0xb0] sm:$0xf]
  %v322 = vld [vmem:[%s2 + $0xb4] sm:$0xf]
  %v323 = vld [vmem:[%s2 + $0xb8] sm:$0xf]
  %v324 = vld [vmem:[%s2 + $0xbc] sm:$0xf]
  %v325 = vld [vmem:[%s2 + $0xc0] sm:$0xf]
  %v326 = vld [vmem:[%s2 + $0xc4] sm:$0xf]
  %v327 = vld [vmem:[%s2 + $0xc8] sm:$0xf]
  %v328 = vld [vmem:[%s2 + $0xcc] sm:$0xf]
  %v329 = vld [vmem:[%s2 + $0xd0] sm:$0xf]
  %v330 = vld [vmem:[%s2 + $0xd4] sm:$0xf]
  %v331 = vld [vmem:[%s2 + $0xd8] sm:$0xf]
  %v332 = vld [vmem:[%s2 + $0xdc] sm:$0xf]
  %v333 = vld [vmem:[%s2 + $0xe0] sm:$0xf]
  %v334 = vld [vmem:[%s2 + $0xe4] sm:$0xf]
  %v335 = vld [vmem:[%s2 + $0xe8] sm:$0xf]
  %v336 = vld [vmem:[%s2 + $0xec] sm:$0xf]
  %v337 = vld [vmem:[%s2 + $0xf0] sm:$0xf]
  %v338 = vld [vmem:[%s2 + $0xf4] sm:$0xf]
  %v339 = vld [vmem:[%s2 + $0xf8] sm:$0xf]
  %v340 = vld [vmem:[%s2 + $0xfc] sm:$0xf]
  %v341 = vunpack.c.l.bf16 %v277
  %v342 = vunpack.c.l.bf16 %v278
  %v343 = vunpack.c.l.bf16 %v279
  %v344 = vunpack.c.l.bf16 %v280
  %v345 = vunpack.c.l.bf16 %v281
  %v346 = vunpack.c.l.bf16 %v282
  %v347 = vunpack.c.l.bf16 %v283
  %v348 = vunpack.c.l.bf16 %v284
  %v349 = vunpack.c.l.bf16 %v285
  %v350 = vunpack.c.l.bf16 %v286
  %v351 = vunpack.c.l.bf16 %v287
  %v352 = vunpack.c.l.bf16 %v288
  %v353 = vunpack.c.l.bf16 %v289
  %v354 = vunpack.c.l.bf16 %v290
  %v355 = vunpack.c.l.bf16 %v291
  %v356 = vunpack.c.l.bf16 %v292
  %v357 = vunpack.c.l.bf16 %v293
  %v358 = vunpack.c.l.bf16 %v294
  %v359 = vunpack.c.l.bf16 %v295
  %v360 = vunpack.c.l.bf16 %v296
  %v361 = vunpack.c.l.bf16 %v297
  %v362 = vunpack.c.l.bf16 %v298
  %v363 = vunpack.c.l.bf16 %v299
  %v364 = vunpack.c.l.bf16 %v300
  %v365 = vunpack.c.l.bf16 %v301
  %v366 = vunpack.c.l.bf16 %v302
  %v367 = vunpack.c.l.bf16 %v303
  %v368 = vunpack.c.l.bf16 %v304
  %v369 = vunpack.c.l.bf16 %v305
  %v370 = vunpack.c.l.bf16 %v306
  %v371 = vunpack.c.l.bf16 %v307
  %v372 = vunpack.c.l.bf16 %v308
  %v373 = vunpack.c.l.bf16 %v309
  %v374 = vunpack.c.l.bf16 %v310
  %v375 = vunpack.c.l.bf16 %v311
  %v376 = vunpack.c.l.bf16 %v312
  %v377 = vunpack.c.l.bf16 %v313
  %v378 = vunpack.c.l.bf16 %v314
  %v379 = vunpack.c.l.bf16 %v315
  %v380 = vunpack.c.l.bf16 %v316
  %v381 = vunpack.c.l.bf16 %v317
  %v382 = vunpack.c.l.bf16 %v318
  %v383 = vunpack.c.l.bf16 %v319
  %v384 = vunpack.c.l.bf16 %v320
  %v385 = vunpack.c.l.bf16 %v321
  %v386 = vunpack.c.l.bf16 %v322
  %v387 = vunpack.c.l.bf16 %v323
  %v388 = vunpack.c.l.bf16 %v324
  %v389 = vunpack.c.l.bf16 %v325
  %v390 = vunpack.c.l.bf16 %v326
  %v391 = vunpack.c.l.bf16 %v327
  %v392 = vunpack.c.l.bf16 %v328
  %v393 = vunpack.c.l.bf16 %v329
  %v394 = vunpack.c.l.bf16 %v330
  %v395 = vunpack.c.l.bf16 %v331
  %v396 = vunpack.c.l.bf16 %v332
  %v397 = vunpack.c.l.bf16 %v333
  %v398 = vunpack.c.l.bf16 %v334
  %v399 = vunpack.c.l.bf16 %v335
  %v400 = vunpack.c.l.bf16 %v336
  %v401 = vunpack.c.l.bf16 %v337
  %v402 = vunpack.c.l.bf16 %v338
  %v403 = vunpack.c.l.bf16 %v339
  %v404 = vunpack.c.l.bf16 %v340
  %v405 = vld [vmem:[%s3] sm:$0x1]
  %v406 = vperm.slane %v405, 0
  %v407 = vmul.f32 %v341, %v406
  %v408 = vmul.f32 %v342, %v406
  %v409 = vmul.f32 %v343, %v406
  %v410 = vmul.f32 %v344, %v406
  %v411 = vmul.f32 %v345, %v406
  %v412 = vmul.f32 %v346, %v406
  %v413 = vmul.f32 %v347, %v406
  %v414 = vmul.f32 %v348, %v406
  %v415 = vmul.f32 %v349, %v406
  %v416 = vmul.f32 %v350, %v406
  %v417 = vmul.f32 %v351, %v406
  %v418 = vmul.f32 %v352, %v406
  %v419 = vmul.f32 %v353, %v406
  %v420 = vmul.f32 %v354, %v406
  %v421 = vmul.f32 %v355, %v406
  %v422 = vmul.f32 %v356, %v406
  %v423 = vmul.f32 %v357, %v406
  %v424 = vmul.f32 %v358, %v406
  %v425 = vmul.f32 %v359, %v406
  %v426 = vmul.f32 %v360, %v406
  %v427 = vmul.f32 %v361, %v406
  %v428 = vmul.f32 %v362, %v406
  %v429 = vmul.f32 %v363, %v406
  %v430 = vmul.f32 %v364, %v406
  %v431 = vmul.f32 %v365, %v406
  %v432 = vmul.f32 %v366, %v406
  %v433 = vmul.f32 %v367, %v406
  %v434 = vmul.f32 %v368, %v406
  %v435 = vmul.f32 %v369, %v406
  %v436 = vmul.f32 %v370, %v406
  %v437 = vmul.f32 %v371, %v406
  %v438 = vmul.f32 %v372, %v406
  %v439 = vmul.f32 %v373, %v406
  %v440 = vmul.f32 %v374, %v406
  %v441 = vmul.f32 %v375, %v406
  %v442 = vmul.f32 %v376, %v406
  %v443 = vmul.f32 %v377, %v406
  %v444 = vmul.f32 %v378, %v406
  %v445 = vmul.f32 %v379, %v406
  %v446 = vmul.f32 %v380, %v406
  %v447 = vmul.f32 %v381, %v406
  %v448 = vmul.f32 %v382, %v406
  %v449 = vmul.f32 %v383, %v406
  %v450 = vmul.f32 %v384, %v406
  %v451 = vmul.f32 %v385, %v406
  %v452 = vmul.f32 %v386, %v406
  %v453 = vmul.f32 %v387, %v406
  %v454 = vmul.f32 %v388, %v406
  %v455 = vmul.f32 %v389, %v406
  %v456 = vmul.f32 %v390, %v406
  %v457 = vmul.f32 %v391, %v406
  %v458 = vmul.f32 %v392, %v406
  %v459 = vmul.f32 %v393, %v406
  %v460 = vmul.f32 %v394, %v406
  %v461 = vmul.f32 %v395, %v406
  %v462 = vmul.f32 %v396, %v406
  %v463 = vmul.f32 %v397, %v406
  %v464 = vmul.f32 %v398, %v406
  %v465 = vmul.f32 %v399, %v406
  %v466 = vmul.f32 %v400, %v406
  %v467 = vmul.f32 %v401, %v406
  %v468 = vmul.f32 %v402, %v406
  %v469 = vmul.f32 %v403, %v406
  %v470 = vmul.f32 %v404, %v406
  %v471 = vld [vmem:[%s3 + $0x1] sm:$0x1]
  %v472 = vperm.slane %v471, 0
  %v473 = vadd.f32 %v407, %v472
  %v474 = vadd.f32 %v408, %v472
  %v475 = vadd.f32 %v409, %v472
  %v476 = vadd.f32 %v410, %v472
  %v477 = vadd.f32 %v411, %v472
  %v478 = vadd.f32 %v412, %v472
  %v479 = vadd.f32 %v413, %v472
  %v480 = vadd.f32 %v414, %v472
  %v481 = vadd.f32 %v415, %v472
  %v482 = vadd.f32 %v416, %v472
  %v483 = vadd.f32 %v417, %v472
  %v484 = vadd.f32 %v418, %v472
  %v485 = vadd.f32 %v419, %v472
  %v486 = vadd.f32 %v420, %v472
  %v487 = vadd.f32 %v421, %v472
  %v488 = vadd.f32 %v422, %v472
  %v489 = vadd.f32 %v423, %v472
  %v490 = vadd.f32 %v424, %v472
  %v491 = vadd.f32 %v425, %v472
  %v492 = vadd.f32 %v426, %v472
  %v493 = vadd.f32 %v427, %v472
  %v494 = vadd.f32 %v428, %v472
  %v495 = vadd.f32 %v429, %v472
  %v496 = vadd.f32 %v430, %v472
  %v497 = vadd.f32 %v431, %v472
  %v498 = vadd.f32 %v432, %v472
  %v499 = vadd.f32 %v433, %v472
  %v500 = vadd.f32 %v434, %v472
  %v501 = vadd.f32 %v435, %v472
  %v502 = vadd.f32 %v436, %v472
  %v503 = vadd.f32 %v437, %v472
  %v504 = vadd.f32 %v438, %v472
  %v505 = vadd.f32 %v439, %v472
  %v506 = vadd.f32 %v440, %v472
  %v507 = vadd.f32 %v441, %v472
  %v508 = vadd.f32 %v442, %v472
  %v509 = vadd.f32 %v443, %v472
  %v510 = vadd.f32 %v444, %v472
  %v511 = vadd.f32 %v445, %v472
  %v512 = vadd.f32 %v446, %v472
  %v513 = vadd.f32 %v447, %v472
  %v514 = vadd.f32 %v448, %v472
  %v515 = vadd.f32 %v449, %v472
  %v516 = vadd.f32 %v450, %v472
  %v517 = vadd.f32 %v451, %v472
  %v518 = vadd.f32 %v452, %v472
  %v519 = vadd.f32 %v453, %v472
  %v520 = vadd.f32 %v454, %v472
  %v521 = vadd.f32 %v455, %v472
  %v522 = vadd.f32 %v456, %v472
  %v523 = vadd.f32 %v457, %v472
  %v524 = vadd.f32 %v458, %v472
  %v525 = vadd.f32 %v459, %v472
  %v526 = vadd.f32 %v460, %v472
  %v527 = vadd.f32 %v461, %v472
  %v528 = vadd.f32 %v462, %v472
  %v529 = vadd.f32 %v463, %v472
  %v530 = vadd.f32 %v464, %v472
  %v531 = vadd.f32 %v465, %v472
  %v532 = vadd.f32 %v466, %v472
  %v533 = vadd.f32 %v467, %v472
  %v534 = vadd.f32 %v468, %v472
  %v535 = vadd.f32 %v469, %v472
  %v536 = vadd.f32 %v470, %v472
  %v537 = vadd.f32 %v213, %v473
  %v538 = vadd.f32 %v214, %v474
  %v539 = vadd.f32 %v215, %v475
  %v540 = vadd.f32 %v216, %v476
  %v541 = vadd.f32 %v217, %v477
  %v542 = vadd.f32 %v218, %v478
  %v543 = vadd.f32 %v219, %v479
  %v544 = vadd.f32 %v220, %v480
  %v545 = vadd.f32 %v221, %v481
  %v546 = vadd.f32 %v222, %v482
  %v547 = vadd.f32 %v223, %v483
  %v548 = vadd.f32 %v224, %v484
  %v549 = vadd.f32 %v225, %v485
  %v550 = vadd.f32 %v226, %v486
  %v551 = vadd.f32 %v227, %v487
  %v552 = vadd.f32 %v228, %v488
  %v553 = vadd.f32 %v229, %v489
  %v554 = vadd.f32 %v230, %v490
  %v555 = vadd.f32 %v231, %v491
  %v556 = vadd.f32 %v232, %v492
  %v557 = vadd.f32 %v233, %v493
  %v558 = vadd.f32 %v234, %v494
  %v559 = vadd.f32 %v235, %v495
  %v560 = vadd.f32 %v236, %v496
  %v561 = vadd.f32 %v237, %v497
  %v562 = vadd.f32 %v238, %v498
  %v563 = vadd.f32 %v239, %v499
  %v564 = vadd.f32 %v240, %v500
  %v565 = vadd.f32 %v241, %v501
  %v566 = vadd.f32 %v242, %v502
  %v567 = vadd.f32 %v243, %v503
  %v568 = vadd.f32 %v244, %v504
  %v569 = vadd.f32 %v245, %v505
  %v570 = vadd.f32 %v246, %v506
  %v571 = vadd.f32 %v247, %v507
  %v572 = vadd.f32 %v248, %v508
  %v573 = vadd.f32 %v249, %v509
  %v574 = vadd.f32 %v250, %v510
  %v575 = vadd.f32 %v251, %v511
  %v576 = vadd.f32 %v252, %v512
  %v577 = vadd.f32 %v253, %v513
  %v578 = vadd.f32 %v254, %v514
  %v579 = vadd.f32 %v255, %v515
  %v580 = vadd.f32 %v256, %v516
  %v581 = vadd.f32 %v257, %v517
  %v582 = vadd.f32 %v258, %v518
  %v583 = vadd.f32 %v259, %v519
  %v584 = vadd.f32 %v260, %v520
  %v585 = vadd.f32 %v261, %v521
  %v586 = vadd.f32 %v262, %v522
  %v587 = vadd.f32 %v263, %v523
  %v588 = vadd.f32 %v264, %v524
  %v589 = vadd.f32 %v265, %v525
  %v590 = vadd.f32 %v266, %v526
  %v591 = vadd.f32 %v267, %v527
  %v592 = vadd.f32 %v268, %v528
  %v593 = vadd.f32 %v269, %v529
  %v594 = vadd.f32 %v270, %v530
  %v595 = vadd.f32 %v271, %v531
  %v596 = vadd.f32 %v272, %v532
  %v597 = vadd.f32 %v273, %v533
  %v598 = vadd.f32 %v274, %v534
  %v599 = vadd.f32 %v275, %v535
  %v600 = vadd.f32 %v276, %v536
  %v601 = vmax.f32 %v537, 0.0
  %v602 = vmax.f32 %v538, 0.0
  %v603 = vmax.f32 %v539, 0.0
  %v604 = vmax.f32 %v540, 0.0
  %v605 = vmax.f32 %v541, 0.0
  %v606 = vmax.f32 %v542, 0.0
  %v607 = vmax.f32 %v543, 0.0
  %v608 = vmax.f32 %v544, 0.0
  %v609 = vmax.f32 %v545, 0.0
  %v610 = vmax.f32 %v546, 0.0
  %v611 = vmax.f32 %v547, 0.0
  %v612 = vmax.f32 %v548, 0.0
  %v613 = vmax.f32 %v549, 0.0
  %v614 = vmax.f32 %v550, 0.0
  %v615 = vmax.f32 %v551, 0.0
  %v616 = vmax.f32 %v552, 0.0
  %v617 = vmax.f32 %v553, 0.0
  %v618 = vmax.f32 %v554, 0.0
  %v619 = vmax.f32 %v555, 0.0
  %v620 = vmax.f32 %v556, 0.0
  %v621 = vmax.f32 %v557, 0.0
  %v622 = vmax.f32 %v558, 0.0
  %v623 = vmax.f32 %v559, 0.0
  %v624 = vmax.f32 %v560, 0.0
  %v625 = vmax.f32 %v561, 0.0
  %v626 = vmax.f32 %v562, 0.0
  %v627 = vmax.f32 %v563, 0.0
  %v628 = vmax.f32 %v564, 0.0
  %v629 = vmax.f32 %v565, 0.0
  %v630 = vmax.f32 %v566, 0.0
  %v631 = vmax.f32 %v567, 0.0
  %v632 = vmax.f32 %v568, 0.0
  %v633 = vmax.f32 %v569, 0.0
  %v634 = vmax.f32 %v570, 0.0
  %v635 = vmax.f32 %v571, 0.0
  %v636 = vmax.f32 %v572, 0.0
  %v637 = vmax.f32 %v573, 0.0
  %v638 = vmax.f32 %v574, 0.0
  %v639 = vmax.f32 %v575, 0.0
  %v640 = vmax.f32 %v576, 0.0
  %v641 = vmax.f32 %v577, 0.0
  %v642 = vmax.f32 %v578, 0.0
  %v643 = vmax.f32 %v579, 0.0
  %v644 = vmax.f32 %v580, 0.0
  %v645 = vmax.f32 %v581, 0.0
  %v646 = vmax.f32 %v582, 0.0
  %v647 = vmax.f32 %v583, 0.0
  %v648 = vmax.f32 %v584, 0.0
  %v649 = vmax.f32 %v585, 0.0
  %v650 = vmax.f32 %v586, 0.0
  %v651 = vmax.f32 %v587, 0.0
  %v652 = vmax.f32 %v588, 0.0
  %v653 = vmax.f32 %v589, 0.0
  %v654 = vmax.f32 %v590, 0.0
  %v655 = vmax.f32 %v591, 0.0
  %v656 = vmax.f32 %v592, 0.0
  %v657 = vmax.f32 %v593, 0.0
  %v658 = vmax.f32 %v594, 0.0
  %v659 = vmax.f32 %v595, 0.0
  %v660 = vmax.f32 %v596, 0.0
  %v661 = vmax.f32 %v597, 0.0
  %v662 = vmax.f32 %v598, 0.0
  %v663 = vmax.f32 %v599, 0.0
  %v664 = vmax.f32 %v600, 0.0
  %v665 = vpack.c.bf16 %v601, %v601
  %v666 = vpack.c.bf16 %v602, %v602
  %v667 = vpack.c.bf16 %v603, %v603
  %v668 = vpack.c.bf16 %v604, %v604
  %v669 = vpack.c.bf16 %v605, %v605
  %v670 = vpack.c.bf16 %v606, %v606
  %v671 = vpack.c.bf16 %v607, %v607
  %v672 = vpack.c.bf16 %v608, %v608
  %v673 = vpack.c.bf16 %v609, %v609
  %v674 = vpack.c.bf16 %v610, %v610
  %v675 = vpack.c.bf16 %v611, %v611
  %v676 = vpack.c.bf16 %v612, %v612
  %v677 = vpack.c.bf16 %v613, %v613
  %v678 = vpack.c.bf16 %v614, %v614
  %v679 = vpack.c.bf16 %v615, %v615
  %v680 = vpack.c.bf16 %v616, %v616
  %v681 = vpack.c.bf16 %v617, %v617
  %v682 = vpack.c.bf16 %v618, %v618
  %v683 = vpack.c.bf16 %v619, %v619
  %v684 = vpack.c.bf16 %v620, %v620
  %v685 = vpack.c.bf16 %v621, %v621
  %v686 = vpack.c.bf16 %v622, %v622
  %v687 = vpack.c.bf16 %v623, %v623
  %v688 = vpack.c.bf16 %v624, %v624
  %v689 = vpack.c.bf16 %v625, %v625
  %v690 = vpack.c.bf16 %v626, %v626
  %v691 = vpack.c.bf16 %v627, %v627
  %v692 = vpack.c.bf16 %v628, %v628
  %v693 = vpack.c.bf16 %v629, %v629
  %v694 = vpack.c.bf16 %v630, %v630
  %v695 = vpack.c.bf16 %v631, %v631
  %v696 = vpack.c.bf16 %v632, %v632
  %v697 = vpack.c.bf16 %v633, %v633
  %v698 = vpack.c.bf16 %v634, %v634
  %v699 = vpack.c.bf16 %v635, %v635
  %v700 = vpack.c.bf16 %v636, %v636
  %v701 = vpack.c.bf16 %v637, %v637
  %v702 = vpack.c.bf16 %v638, %v638
  %v703 = vpack.c.bf16 %v639, %v639
  %v704 = vpack.c.bf16 %v640, %v640
  %v705 = vpack.c.bf16 %v641, %v641
  %v706 = vpack.c.bf16 %v642, %v642
  %v707 = vpack.c.bf16 %v643, %v643
  %v708 = vpack.c.bf16 %v644, %v644
  %v709 = vpack.c.bf16 %v645, %v645
  %v710 = vpack.c.bf16 %v646, %v646
  %v711 = vpack.c.bf16 %v647, %v647
  %v712 = vpack.c.bf16 %v648, %v648
  %v713 = vpack.c.bf16 %v649, %v649
  %v714 = vpack.c.bf16 %v650, %v650
  %v715 = vpack.c.bf16 %v651, %v651
  %v716 = vpack.c.bf16 %v652, %v652
  %v717 = vpack.c.bf16 %v653, %v653
  %v718 = vpack.c.bf16 %v654, %v654
  %v719 = vpack.c.bf16 %v655, %v655
  %v720 = vpack.c.bf16 %v656, %v656
  %v721 = vpack.c.bf16 %v657, %v657
  %v722 = vpack.c.bf16 %v658, %v658
  %v723 = vpack.c.bf16 %v659, %v659
  %v724 = vpack.c.bf16 %v660, %v660
  %v725 = vpack.c.bf16 %v661, %v661
  %v726 = vpack.c.bf16 %v662, %v662
  %v727 = vpack.c.bf16 %v663, %v663
  %v728 = vpack.c.bf16 %v664, %v664
  %729 = vst [vmem:[%s4] sm:$0xf] %v665
  %730 = vst [vmem:[%s4 + $0x4] sm:$0xf] %v666
  %731 = vst [vmem:[%s4 + $0x8] sm:$0xf] %v667
  %732 = vst [vmem:[%s4 + $0xc] sm:$0xf] %v668
  %733 = vst [vmem:[%s4 + $0x10] sm:$0xf] %v669
  %734 = vst [vmem:[%s4 + $0x14] sm:$0xf] %v670
  %735 = vst [vmem:[%s4 + $0x18] sm:$0xf] %v671
  %736 = vst [vmem:[%s4 + $0x1c] sm:$0xf] %v672
  %737 = vst [vmem:[%s4 + $0x20] sm:$0xf] %v673
  %738 = vst [vmem:[%s4 + $0x24] sm:$0xf] %v674
  %739 = vst [vmem:[%s4 + $0x28] sm:$0xf] %v675
  %740 = vst [vmem:[%s4 + $0x2c] sm:$0xf] %v676
  %741 = vst [vmem:[%s4 + $0x30] sm:$0xf] %v677
  %742 = vst [vmem:[%s4 + $0x34] sm:$0xf] %v678
  %743 = vst [vmem:[%s4 + $0x38] sm:$0xf] %v679
  %744 = vst [vmem:[%s4 + $0x3c] sm:$0xf] %v680
  %745 = vst [vmem:[%s4 + $0x40] sm:$0xf] %v681
  %746 = vst [vmem:[%s4 + $0x44] sm:$0xf] %v682
  %747 = vst [vmem:[%s4 + $0x48] sm:$0xf] %v683
  %748 = vst [vmem:[%s4 + $0x4c] sm:$0xf] %v684
  %749 = vst [vmem:[%s4 + $0x50] sm:$0xf] %v685
  %750 = vst [vmem:[%s4 + $0x54] sm:$0xf] %v686
  %751 = vst [vmem:[%s4 + $0x58] sm:$0xf] %v687
  %752 = vst [vmem:[%s4 + $0x5c] sm:$0xf] %v688
  %753 = vst [vmem:[%s4 + $0x60] sm:$0xf] %v689
  %754 = vst [vmem:[%s4 + $0x64] sm:$0xf] %v690
  %755 = vst [vmem:[%s4 + $0x68] sm:$0xf] %v691
  %756 = vst [vmem:[%s4 + $0x6c] sm:$0xf] %v692
  %757 = vst [vmem:[%s4 + $0x70] sm:$0xf] %v693
  %758 = vst [vmem:[%s4 + $0x74] sm:$0xf] %v694
  %759 = vst [vmem:[%s4 + $0x78] sm:$0xf] %v695
  %760 = vst [vmem:[%s4 + $0x7c] sm:$0xf] %v696
  %761 = vst [vmem:[%s4 + $0x80] sm:$0xf] %v697
  %762 = vst [vmem:[%s4 + $0x84] sm:$0xf] %v698
  %763 = vst [vmem:[%s4 + $0x88] sm:$0xf] %v699
  %764 = vst [vmem:[%s4 + $0x8c] sm:$0xf] %v700
  %765 = vst [vmem:[%s4 + $0x90] sm:$0xf] %v701
  %766 = vst [vmem:[%s4 + $0x94] sm:$0xf] %v702
  %767 = vst [vmem:[%s4 + $0x98] sm:$0xf] %v703
  %768 = vst [vmem:[%s4 + $0x9c] sm:$0xf] %v704
  %769 = vst [vmem:[%s4 + $0xa0] sm:$0xf] %v705
  %770 = vst [vmem:[%s4 + $0xa4] sm:$0xf] %v706
  %771 = vst [vmem:[%s4 + $0xa8] sm:$0xf] %v707
  %772 = vst [vmem:[%s4 + $0xac] sm:$0xf] %v708
  %773 = vst [vmem:[%s4 + $0xb0] sm:$0xf] %v709
  %774 = vst [vmem:[%s4 + $0xb4] sm:$0xf] %v710
  %775 = vst [vmem:[%s4 + $0xb8] sm:$0xf] %v711
  %776 = vst [vmem:[%s4 + $0xbc] sm:$0xf] %v712
  %777 = vst [vmem:[%s4 + $0xc0] sm:$0xf] %v713
  %778 = vst [vmem:[%s4 + $0xc4] sm:$0xf] %v714
  %779 = vst [vmem:[%s4 + $0xc8] sm:$0xf] %v715
  %780 = vst [vmem:[%s4 + $0xcc] sm:$0xf] %v716
  %781 = vst [vmem:[%s4 + $0xd0] sm:$0xf] %v717
  %782 = vst [vmem:[%s4 + $0xd4] sm:$0xf] %v718
  %783 = vst [vmem:[%s4 + $0xd8] sm:$0xf] %v719
  %784 = vst [vmem:[%s4 + $0xdc] sm:$0xf] %v720
  %785 = vst [vmem:[%s4 + $0xe0] sm:$0xf] %v721
  %786 = vst [vmem:[%s4 + $0xe4] sm:$0xf] %v722
  %787 = vst [vmem:[%s4 + $0xe8] sm:$0xf] %v723
  %788 = vst [vmem:[%s4 + $0xec] sm:$0xf] %v724
  %789 = vst [vmem:[%s4 + $0xf0] sm:$0xf] %v725
  %790 = vst [vmem:[%s4 + $0xf4] sm:$0xf] %v726
  %791 = vst [vmem:[%s4 + $0xf8] sm:$0xf] %v727
  %792 = vst [vmem:[%s4 + $0xfc] sm:$0xf] %v728
  // Predicated region
  $region18: #{bottleneck_forward.7} parent=0 // pred_check
    _
  $region19: #{bottleneck_forward.7} parent=0 // pred_check_branch
    %794 = sbr.rel (0) target = $region21
  $region20: #{bottleneck_forward.7} parent=0 // pred_region
    _
  $region21: #{bottleneck_forward.7} parent=0 // pred_fallthru
    _
  // Predicated region
  $region22: #{bottleneck_forward.7} parent=0 // pred_check
    _
  $region23: #{bottleneck_forward.7} parent=0 // pred_check_branch
    %796 = sbr.rel (0) target = $region25
  $region24: #{bottleneck_forward.7} parent=0 // pred_region
    _
  $region25: #{bottleneck_forward.7} parent=0 // pred_fallthru
    _

// kernel: bottleneck_forward.6
$region0: #{bottleneck_forward.6}
  #allocation0 [shape = 'u32[]', space=smem, size = 0x4, offset = 0x4, fixed_abs, tag = 'smem constant byte address 0x4 - core index']
  #allocation1 [shape = 'u32[72,128]{1,0:T(1,128)}', space=vmem, size = 0x9000, scoped, tag = 'internal scratch']
  %s0 = inlined_call_operand.vmem [shape: bf16[512,128], index: 0, kind: input, shape index: {}]
  %s1 = inlined_call_operand.vmem [shape: f32[2,128], index: 1, kind: input, shape index: {}]
  %s2 = inlined_call_operand.vmem [shape: bf16[128,128], index: 2, kind: input, shape index: {}]
  %s3 = inlined_call_operand.vmem [shape: bf16[512,128], index: 3, kind: output, shape index: {0}]
  %s4 = inlined_call_operand.vmem [shape: f32[8,128], index: 4, kind: output, shape index: {1}]
  %5 = xla_tuple %s3, %s4
  %s6 = sld [smem:[#allocation0]]
  $region30: #{bottleneck_forward.6} parent=0
    _
  %s8 = ssub.s32 1, %s6
  %s9 = scalar_select 0, %s8, %s6
  // Predicated region
  $region2: #{bottleneck_forward.6} parent=0 // pred_check
    _
  $region3: #{bottleneck_forward.6} parent=0 // pred_check_branch
    %11 = sbr.rel (0) target = $region5
  $region4: #{bottleneck_forward.6} parent=0 // pred_region
    _
  $region5: #{bottleneck_forward.6} parent=0 // pred_fallthru
    _
  // Predicated region
  $region6: #{bottleneck_forward.6} parent=0 // pred_check
    _
  $region7: #{bottleneck_forward.6} parent=0 // pred_check_branch
    %13 = sbr.rel (0) target = $region9
  $region8: #{bottleneck_forward.6} parent=0 // pred_region
    _
  $region9: #{bottleneck_forward.6} parent=0 // pred_fallthru
    _
  // Predicated region
  $region10: #{bottleneck_forward.6} parent=0 // pred_check
    _
  $region11: #{bottleneck_forward.6} parent=0 // pred_check_branch
    %15 = sbr.rel (0) target = $region13
  $region12: #{bottleneck_forward.6} parent=0 // pred_region
    _
  $region13: #{bottleneck_forward.6} parent=0 // pred_fallthru
    _
  %v16 = vld [vmem:[%s0] sm:$0xf]
  %v17 = vld [vmem:[%s0 + $0x4] sm:$0xf]
  %v18 = vld [vmem:[%s0 + $0x8] sm:$0xf]
  %v19 = vld [vmem:[%s0 + $0xc] sm:$0xf]
  %v20 = vld [vmem:[%s0 + $0x10] sm:$0xf]
  %v21 = vld [vmem:[%s0 + $0x14] sm:$0xf]
  %v22 = vld [vmem:[%s0 + $0x18] sm:$0xf]
  %v23 = vld [vmem:[%s0 + $0x1c] sm:$0xf]
  %v24 = vld [vmem:[%s0 + $0x20] sm:$0xf]
  %v25 = vld [vmem:[%s0 + $0x24] sm:$0xf]
  %v26 = vld [vmem:[%s0 + $0x28] sm:$0xf]
  %v27 = vld [vmem:[%s0 + $0x2c] sm:$0xf]
  %v28 = vld [vmem:[%s0 + $0x30] sm:$0xf]
  %v29 = vld [vmem:[%s0 + $0x34] sm:$0xf]
  %v30 = vld [vmem:[%s0 + $0x38] sm:$0xf]
  %v31 = vld [vmem:[%s0 + $0x3c] sm:$0xf]
  %v32 = vld [vmem:[%s0 + $0x40] sm:$0xf]
  %v33 = vld [vmem:[%s0 + $0x44] sm:$0xf]
  %v34 = vld [vmem:[%s0 + $0x48] sm:$0xf]
  %v35 = vld [vmem:[%s0 + $0x4c] sm:$0xf]
  %v36 = vld [vmem:[%s0 + $0x50] sm:$0xf]
  %v37 = vld [vmem:[%s0 + $0x54] sm:$0xf]
  %v38 = vld [vmem:[%s0 + $0x58] sm:$0xf]
  %v39 = vld [vmem:[%s0 + $0x5c] sm:$0xf]
  %v40 = vld [vmem:[%s0 + $0x60] sm:$0xf]
  %v41 = vld [vmem:[%s0 + $0x64] sm:$0xf]
  %v42 = vld [vmem:[%s0 + $0x68] sm:$0xf]
  %v43 = vld [vmem:[%s0 + $0x6c] sm:$0xf]
  %v44 = vld [vmem:[%s0 + $0x70] sm:$0xf]
  %v45 = vld [vmem:[%s0 + $0x74] sm:$0xf]
  %v46 = vld [vmem:[%s0 + $0x78] sm:$0xf]
  %v47 = vld [vmem:[%s0 + $0x7c] sm:$0xf]
  %v48 = vld [vmem:[%s0 + $0x80] sm:$0xf]
  %v49 = vld [vmem:[%s0 + $0x84] sm:$0xf]
  %v50 = vld [vmem:[%s0 + $0x88] sm:$0xf]
  %v51 = vld [vmem:[%s0 + $0x8c] sm:$0xf]
  %v52 = vld [vmem:[%s0 + $0x90] sm:$0xf]
  %v53 = vld [vmem:[%s0 + $0x94] sm:$0xf]
  %v54 = vld [vmem:[%s0 + $0x98] sm:$0xf]
  %v55 = vld [vmem:[%s0 + $0x9c] sm:$0xf]
  %v56 = vld [vmem:[%s0 + $0xa0] sm:$0xf]
  %v57 = vld [vmem:[%s0 + $0xa4] sm:$0xf]
  %v58 = vld [vmem:[%s0 + $0xa8] sm:$0xf]
  %v59 = vld [vmem:[%s0 + $0xac] sm:$0xf]
  %v60 = vld [vmem:[%s0 + $0xb0] sm:$0xf]
  %v61 = vld [vmem:[%s0 + $0xb4] sm:$0xf]
  %v62 = vld [vmem:[%s0 + $0xb8] sm:$0xf]
  %v63 = vld [vmem:[%s0 + $0xbc] sm:$0xf]
  %v64 = vld [vmem:[%s0 + $0xc0] sm:$0xf]
  %v65 = vld [vmem:[%s0 + $0xc4] sm:$0xf]
  %v66 = vld [vmem:[%s0 + $0xc8] sm:$0xf]
  %v67 = vld [vmem:[%s0 + $0xcc] sm:$0xf]
  %v68 = vld [vmem:[%s0 + $0xd0] sm:$0xf]
  %v69 = vld [vmem:[%s0 + $0xd4] sm:$0xf]
  %v70 = vld [vmem:[%s0 + $0xd8] sm:$0xf]
  %v71 = vld [vmem:[%s0 + $0xdc] sm:$0xf]
  %v72 = vld [vmem:[%s0 + $0xe0] sm:$0xf]
  %v73 = vld [vmem:[%s0 + $0xe4] sm:$0xf]
  %v74 = vld [vmem:[%s0 + $0xe8] sm:$0xf]
  %v75 = vld [vmem:[%s0 + $0xec] sm:$0xf]
  %v76 = vld [vmem:[%s0 + $0xf0] sm:$0xf]
  %v77 = vld [vmem:[%s0 + $0xf4] sm:$0xf]
  %v78 = vld [vmem:[%s0 + $0xf8] sm:$0xf]
  %v79 = vld [vmem:[%s0 + $0xfc] sm:$0xf]
  %v80 = vunpack.c.l.bf16 %v16
  %v81 = vunpack.c.l.bf16 %v17
  %v82 = vunpack.c.l.bf16 %v18
  %v83 = vunpack.c.l.bf16 %v19
  %v84 = vunpack.c.l.bf16 %v20
  %v85 = vunpack.c.l.bf16 %v21
  %v86 = vunpack.c.l.bf16 %v22
  %v87 = vunpack.c.l.bf16 %v23
  %v88 = vunpack.c.l.bf16 %v24
  %v89 = vunpack.c.l.bf16 %v25
  %v90 = vunpack.c.l.bf16 %v26
  %v91 = vunpack.c.l.bf16 %v27
  %v92 = vunpack.c.l.bf16 %v28
  %v93 = vunpack.c.l.bf16 %v29
  %v94 = vunpack.c.l.bf16 %v30
  %v95 = vunpack.c.l.bf16 %v31
  %v96 = vunpack.c.l.bf16 %v32
  %v97 = vunpack.c.l.bf16 %v33
  %v98 = vunpack.c.l.bf16 %v34
  %v99 = vunpack.c.l.bf16 %v35
  %v100 = vunpack.c.l.bf16 %v36
  %v101 = vunpack.c.l.bf16 %v37
  %v102 = vunpack.c.l.bf16 %v38
  %v103 = vunpack.c.l.bf16 %v39
  %v104 = vunpack.c.l.bf16 %v40
  %v105 = vunpack.c.l.bf16 %v41
  %v106 = vunpack.c.l.bf16 %v42
  %v107 = vunpack.c.l.bf16 %v43
  %v108 = vunpack.c.l.bf16 %v44
  %v109 = vunpack.c.l.bf16 %v45
  %v110 = vunpack.c.l.bf16 %v46
  %v111 = vunpack.c.l.bf16 %v47
  %v112 = vunpack.c.l.bf16 %v48
  %v113 = vunpack.c.l.bf16 %v49
  %v114 = vunpack.c.l.bf16 %v50
  %v115 = vunpack.c.l.bf16 %v51
  %v116 = vunpack.c.l.bf16 %v52
  %v117 = vunpack.c.l.bf16 %v53
  %v118 = vunpack.c.l.bf16 %v54
  %v119 = vunpack.c.l.bf16 %v55
  %v120 = vunpack.c.l.bf16 %v56
  %v121 = vunpack.c.l.bf16 %v57
  %v122 = vunpack.c.l.bf16 %v58
  %v123 = vunpack.c.l.bf16 %v59
  %v124 = vunpack.c.l.bf16 %v60
  %v125 = vunpack.c.l.bf16 %v61
  %v126 = vunpack.c.l.bf16 %v62
  %v127 = vunpack.c.l.bf16 %v63
  %v128 = vunpack.c.l.bf16 %v64
  %v129 = vunpack.c.l.bf16 %v65
  %v130 = vunpack.c.l.bf16 %v66
  %v131 = vunpack.c.l.bf16 %v67
  %v132 = vunpack.c.l.bf16 %v68
  %v133 = vunpack.c.l.bf16 %v69
  %v134 = vunpack.c.l.bf16 %v70
  %v135 = vunpack.c.l.bf16 %v71
  %v136 = vunpack.c.l.bf16 %v72
  %v137 = vunpack.c.l.bf16 %v73
  %v138 = vunpack.c.l.bf16 %v74
  %v139 = vunpack.c.l.bf16 %v75
  %v140 = vunpack.c.l.bf16 %v76
  %v141 = vunpack.c.l.bf16 %v77
  %v142 = vunpack.c.l.bf16 %v78
  %v143 = vunpack.c.l.bf16 %v79
  %v144 = vld [vmem:[%s1] sm:$0x1]
  %v145 = vperm.slane %v144, 0
  %v146 = vmul.f32 %v80, %v145
  %v147 = vmul.f32 %v81, %v145
  %v148 = vmul.f32 %v82, %v145
  %v149 = vmul.f32 %v83, %v145
  %v150 = vmul.f32 %v84, %v145
  %v151 = vmul.f32 %v85, %v145
  %v152 = vmul.f32 %v86, %v145
  %v153 = vmul.f32 %v87, %v145
  %v154 = vmul.f32 %v88, %v145
  %v155 = vmul.f32 %v89, %v145
  %v156 = vmul.f32 %v90, %v145
  %v157 = vmul.f32 %v91, %v145
  %v158 = vmul.f32 %v92, %v145
  %v159 = vmul.f32 %v93, %v145
  %v160 = vmul.f32 %v94, %v145
  %v161 = vmul.f32 %v95, %v145
  %v162 = vmul.f32 %v96, %v145
  %v163 = vmul.f32 %v97, %v145
  %v164 = vmul.f32 %v98, %v145
  %v165 = vmul.f32 %v99, %v145
  %v166 = vmul.f32 %v100, %v145
  %v167 = vmul.f32 %v101, %v145
  %v168 = vmul.f32 %v102, %v145
  %v169 = vmul.f32 %v103, %v145
  %v170 = vmul.f32 %v104, %v145
  %v171 = vmul.f32 %v105, %v145
  %v172 = vmul.f32 %v106, %v145
  %v173 = vmul.f32 %v107, %v145
  %v174 = vmul.f32 %v108, %v145
  %v175 = vmul.f32 %v109, %v145
  %v176 = vmul.f32 %v110, %v145
  %v177 = vmul.f32 %v111, %v145
  %v178 = vmul.f32 %v112, %v145
  %v179 = vmul.f32 %v113, %v145
  %v180 = vmul.f32 %v114, %v145
  %v181 = vmul.f32 %v115, %v145
  %v182 = vmul.f32 %v116, %v145
  %v183 = vmul.f32 %v117, %v145
  %v184 = vmul.f32 %v118, %v145
  %v185 = vmul.f32 %v119, %v145
  %v186 = vmul.f32 %v120, %v145
  %v187 = vmul.f32 %v121, %v145
  %v188 = vmul.f32 %v122, %v145
  %v189 = vmul.f32 %v123, %v145
  %v190 = vmul.f32 %v124, %v145
  %v191 = vmul.f32 %v125, %v145
  %v192 = vmul.f32 %v126, %v145
  %v193 = vmul.f32 %v127, %v145
  %v194 = vmul.f32 %v128, %v145
  %v195 = vmul.f32 %v129, %v145
  %v196 = vmul.f32 %v130, %v145
  %v197 = vmul.f32 %v131, %v145
  %v198 = vmul.f32 %v132, %v145
  %v199 = vmul.f32 %v133, %v145
  %v200 = vmul.f32 %v134, %v145
  %v201 = vmul.f32 %v135, %v145
  %v202 = vmul.f32 %v136, %v145
  %v203 = vmul.f32 %v137, %v145
  %v204 = vmul.f32 %v138, %v145
  %v205 = vmul.f32 %v139, %v145
  %v206 = vmul.f32 %v140, %v145
  %v207 = vmul.f32 %v141, %v145
  %v208 = vmul.f32 %v142, %v145
  %v209 = vmul.f32 %v143, %v145
  %v210 = vld [vmem:[%s1 + $0x1] sm:$0x1]
  %v211 = vperm.slane %v210, 0
  %v212 = vadd.f32 %v146, %v211
  %v213 = vadd.f32 %v147, %v211
  %v214 = vadd.f32 %v148, %v211
  %v215 = vadd.f32 %v149, %v211
  %v216 = vadd.f32 %v150, %v211
  %v217 = vadd.f32 %v151, %v211
  %v218 = vadd.f32 %v152, %v211
  %v219 = vadd.f32 %v153, %v211
  %v220 = vadd.f32 %v154, %v211
  %v221 = vadd.f32 %v155, %v211
  %v222 = vadd.f32 %v156, %v211
  %v223 = vadd.f32 %v157, %v211
  %v224 = vadd.f32 %v158, %v211
  %v225 = vadd.f32 %v159, %v211
  %v226 = vadd.f32 %v160, %v211
  %v227 = vadd.f32 %v161, %v211
  %v228 = vadd.f32 %v162, %v211
  %v229 = vadd.f32 %v163, %v211
  %v230 = vadd.f32 %v164, %v211
  %v231 = vadd.f32 %v165, %v211
  %v232 = vadd.f32 %v166, %v211
  %v233 = vadd.f32 %v167, %v211
  %v234 = vadd.f32 %v168, %v211
  %v235 = vadd.f32 %v169, %v211
  %v236 = vadd.f32 %v170, %v211
  %v237 = vadd.f32 %v171, %v211
  %v238 = vadd.f32 %v172, %v211
  %v239 = vadd.f32 %v173, %v211
  %v240 = vadd.f32 %v174, %v211
  %v241 = vadd.f32 %v175, %v211
  %v242 = vadd.f32 %v176, %v211
  %v243 = vadd.f32 %v177, %v211
  %v244 = vadd.f32 %v178, %v211
  %v245 = vadd.f32 %v179, %v211
  %v246 = vadd.f32 %v180, %v211
  %v247 = vadd.f32 %v181, %v211
  %v248 = vadd.f32 %v182, %v211
  %v249 = vadd.f32 %v183, %v211
  %v250 = vadd.f32 %v184, %v211
  %v251 = vadd.f32 %v185, %v211
  %v252 = vadd.f32 %v186, %v211
  %v253 = vadd.f32 %v187, %v211
  %v254 = vadd.f32 %v188, %v211
  %v255 = vadd.f32 %v189, %v211
  %v256 = vadd.f32 %v190, %v211
  %v257 = vadd.f32 %v191, %v211
  %v258 = vadd.f32 %v192, %v211
  %v259 = vadd.f32 %v193, %v211
  %v260 = vadd.f32 %v194, %v211
  %v261 = vadd.f32 %v195, %v211
  %v262 = vadd.f32 %v196, %v211
  %v263 = vadd.f32 %v197, %v211
  %v264 = vadd.f32 %v198, %v211
  %v265 = vadd.f32 %v199, %v211
  %v266 = vadd.f32 %v200, %v211
  %v267 = vadd.f32 %v201, %v211
  %v268 = vadd.f32 %v202, %v211
  %v269 = vadd.f32 %v203, %v211
  %v270 = vadd.f32 %v204, %v211
  %v271 = vadd.f32 %v205, %v211
  %v272 = vadd.f32 %v206, %v211
  %v273 = vadd.f32 %v207, %v211
  %v274 = vadd.f32 %v208, %v211
  %v275 = vadd.f32 %v209, %v211
  %v276 = vmax.f32 %v212, 0.0
  %v277 = vmax.f32 %v213, 0.0
  %v278 = vmax.f32 %v214, 0.0
  %v279 = vmax.f32 %v215, 0.0
  %v280 = vmax.f32 %v216, 0.0
  %v281 = vmax.f32 %v217, 0.0
  %v282 = vmax.f32 %v218, 0.0
  %v283 = vmax.f32 %v219, 0.0
  %v284 = vmax.f32 %v220, 0.0
  %v285 = vmax.f32 %v221, 0.0
  %v286 = vmax.f32 %v222, 0.0
  %v287 = vmax.f32 %v223, 0.0
  %v288 = vmax.f32 %v224, 0.0
  %v289 = vmax.f32 %v225, 0.0
  %v290 = vmax.f32 %v226, 0.0
  %v291 = vmax.f32 %v227, 0.0
  %v292 = vmax.f32 %v228, 0.0
  %v293 = vmax.f32 %v229, 0.0
  %v294 = vmax.f32 %v230, 0.0
  %v295 = vmax.f32 %v231, 0.0
  %v296 = vmax.f32 %v232, 0.0
  %v297 = vmax.f32 %v233, 0.0
  %v298 = vmax.f32 %v234, 0.0
  %v299 = vmax.f32 %v235, 0.0
  %v300 = vmax.f32 %v236, 0.0
  %v301 = vmax.f32 %v237, 0.0
  %v302 = vmax.f32 %v238, 0.0
  %v303 = vmax.f32 %v239, 0.0
  %v304 = vmax.f32 %v240, 0.0
  %v305 = vmax.f32 %v241, 0.0
  %v306 = vmax.f32 %v242, 0.0
  %v307 = vmax.f32 %v243, 0.0
  %v308 = vmax.f32 %v244, 0.0
  %v309 = vmax.f32 %v245, 0.0
  %v310 = vmax.f32 %v246, 0.0
  %v311 = vmax.f32 %v247, 0.0
  %v312 = vmax.f32 %v248, 0.0
  %v313 = vmax.f32 %v249, 0.0
  %v314 = vmax.f32 %v250, 0.0
  %v315 = vmax.f32 %v251, 0.0
  %v316 = vmax.f32 %v252, 0.0
  %v317 = vmax.f32 %v253, 0.0
  %v318 = vmax.f32 %v254, 0.0
  %v319 = vmax.f32 %v255, 0.0
  %v320 = vmax.f32 %v256, 0.0
  %v321 = vmax.f32 %v257, 0.0
  %v322 = vmax.f32 %v258, 0.0
  %v323 = vmax.f32 %v259, 0.0
  %v324 = vmax.f32 %v260, 0.0
  %v325 = vmax.f32 %v261, 0.0
  %v326 = vmax.f32 %v262, 0.0
  %v327 = vmax.f32 %v263, 0.0
  %v328 = vmax.f32 %v264, 0.0
  %v329 = vmax.f32 %v265, 0.0
  %v330 = vmax.f32 %v266, 0.0
  %v331 = vmax.f32 %v267, 0.0
  %v332 = vmax.f32 %v268, 0.0
  %v333 = vmax.f32 %v269, 0.0
  %v334 = vmax.f32 %v270, 0.0
  %v335 = vmax.f32 %v271, 0.0
  %v336 = vmax.f32 %v272, 0.0
  %v337 = vmax.f32 %v273, 0.0
  %v338 = vmax.f32 %v274, 0.0
  %v339 = vmax.f32 %v275, 0.0
  %v340 = vpack.c.bf16 %v277, %v276
  %v341 = vpack.c.bf16 %v279, %v278
  %v342 = vpack.c.bf16 %v281, %v280
  %v343 = vpack.c.bf16 %v283, %v282
  %v344 = vpack.c.bf16 %v285, %v284
  %v345 = vpack.c.bf16 %v287, %v286
  %v346 = vpack.c.bf16 %v289, %v288
  %v347 = vpack.c.bf16 %v291, %v290
  %v348 = vpack.c.bf16 %v293, %v292
  %v349 = vpack.c.bf16 %v295, %v294
  %v350 = vpack.c.bf16 %v297, %v296
  %v351 = vpack.c.bf16 %v299, %v298
  %v352 = vpack.c.bf16 %v301, %v300
  %v353 = vpack.c.bf16 %v303, %v302
  %v354 = vpack.c.bf16 %v305, %v304
  %v355 = vpack.c.bf16 %v307, %v306
  %v356 = vpack.c.bf16 %v309, %v308
  %v357 = vpack.c.bf16 %v311, %v310
  %v358 = vpack.c.bf16 %v313, %v312
  %v359 = vpack.c.bf16 %v315, %v314
  %v360 = vpack.c.bf16 %v317, %v316
  %v361 = vpack.c.bf16 %v319, %v318
  %v362 = vpack.c.bf16 %v321, %v320
  %v363 = vpack.c.bf16 %v323, %v322
  %v364 = vpack.c.bf16 %v325, %v324
  %v365 = vpack.c.bf16 %v327, %v326
  %v366 = vpack.c.bf16 %v329, %v328
  %v367 = vpack.c.bf16 %v331, %v330
  %v368 = vpack.c.bf16 %v333, %v332
  %v369 = vpack.c.bf16 %v335, %v334
  %v370 = vpack.c.bf16 %v337, %v336
  %v371 = vpack.c.bf16 %v339, %v338
  %v372 = vld [vmem:[%s2] sm:$0xf]
  %v373 = vld [vmem:[%s2 + $0x4] sm:$0xf]
  %v374 = vld [vmem:[%s2 + $0x8] sm:$0xf]
  %v375 = vld [vmem:[%s2 + $0xc] sm:$0xf]
  %v376 = vld [vmem:[%s2 + $0x10] sm:$0xf]
  %v377 = vld [vmem:[%s2 + $0x14] sm:$0xf]
  %v378 = vld [vmem:[%s2 + $0x18] sm:$0xf]
  %v379 = vld [vmem:[%s2 + $0x1c] sm:$0xf]
  %v380 = vld [vmem:[%s2 + $0x20] sm:$0xf]
  %v381 = vld [vmem:[%s2 + $0x24] sm:$0xf]
  %v382 = vld [vmem:[%s2 + $0x28] sm:$0xf]
  %v383 = vld [vmem:[%s2 + $0x2c] sm:$0xf]
  %v384 = vld [vmem:[%s2 + $0x30] sm:$0xf]
  %v385 = vld [vmem:[%s2 + $0x34] sm:$0xf]
  %v386 = vld [vmem:[%s2 + $0x38] sm:$0xf]
  %v387 = vld [vmem:[%s2 + $0x3c] sm:$0xf]
  %v404 = vunpack.c.l.b16 %v372
  %v405 = vunpack.c.l.b16 %v373
  %v406 = vunpack.c.l.b16 %v374
  %v407 = vunpack.c.l.b16 %v375
  %v408 = vunpack.c.l.b16 %v376
  %v409 = vunpack.c.l.b16 %v377
  %v410 = vunpack.c.l.b16 %v378
  %v411 = vunpack.c.l.b16 %v379
  %v412 = vunpack.c.l.b16 %v380
  %v413 = vunpack.c.l.b16 %v381
  %v414 = vunpack.c.l.b16 %v382
  %v415 = vunpack.c.l.b16 %v383
  %v416 = vunpack.c.l.b16 %v384
  %v417 = vunpack.c.l.b16 %v385
  %v418 = vunpack.c.l.b16 %v386
  %v419 = vunpack.c.l.b16 %v387
  %v420 = vpack.c.b16 %v405, %v404
  %v421 = vpack.c.b16 %v407, %v406
  %v422 = vpack.c.b16 %v409, %v408
  %v423 = vpack.c.b16 %v411, %v410
  %v424 = vpack.c.b16 %v413, %v412
  %v425 = vpack.c.b16 %v415, %v414
  %v426 = vpack.c.b16 %v417, %v416
  %v427 = vpack.c.b16 %v419, %v418
  %436 = vmatpush.bf16.msra.mxu0 %v427
  %437 = vmatpush.bf16.msra.mxu0 %v426
  %438 = vmatpush.bf16.msra.mxu0 %v425
  %439 = vmatpush.bf16.msra.mxu0 %v424
  %440 = vmatpush.bf16.msra.mxu0 %v423
  %441 = vmatpush.bf16.msra.mxu0 %v422
  %442 = vmatpush.bf16.msra.mxu0 %v421
  %443 = vmatpush.bf16.msra.mxu0 %v420
  %444 = vmatmul.bf16.gmra.mxu0 %v340
  %v445 = vpop.f32.mrf.mxu0
  %v446 = vadd.f32 0.0, %v445
  %v447 = vpop.f32.mrf.mxu0
  %v448 = vadd.f32 0.0, %v447
  %449 = vmatmul.bf16.gmra.mxu0 %v341
  %v450 = vpop.f32.mrf.mxu0
  %v451 = vadd.f32 0.0, %v450
  %v452 = vpop.f32.mrf.mxu0
  %v453 = vadd.f32 0.0, %v452
  %454 = vmatmul.bf16.gmra.mxu0 %v342
  %v455 = vpop.f32.mrf.mxu0
  %v456 = vadd.f32 0.0, %v455
  %v457 = vpop.f32.mrf.mxu0
  %v458 = vadd.f32 0.0, %v457
  %459 = vmatmul.bf16.gmra.mxu0 %v343
  %v460 = vpop.f32.mrf.mxu0
  %v461 = vadd.f32 0.0, %v460
  %v462 = vpop.f32.mrf.mxu0
  %v463 = vadd.f32 0.0, %v462
  %464 = vmatmul.bf16.gmra.mxu0 %v344
  %v465 = vpop.f32.mrf.mxu0
  %v466 = vadd.f32 0.0, %v465
  %v467 = vpop.f32.mrf.mxu0
  %v468 = vadd.f32 0.0, %v467
  %469 = vmatmul.bf16.gmra.mxu0 %v345
  %v470 = vpop.f32.mrf.mxu0
  %v471 = vadd.f32 0.0, %v470
  %v472 = vpop.f32.mrf.mxu0
  %v473 = vadd.f32 0.0, %v472
  %474 = vmatmul.bf16.gmra.mxu0 %v346
  %v475 = vpop.f32.mrf.mxu0
  %v476 = vadd.f32 0.0, %v475
  %v477 = vpop.f32.mrf.mxu0
  %v478 = vadd.f32 0.0, %v477
  %479 = vmatmul.bf16.gmra.mxu0 %v347
  %v480 = vpop.f32.mrf.mxu0
  %v481 = vadd.f32 0.0, %v480
  %v482 = vpop.f32.mrf.mxu0
  %v483 = vadd.f32 0.0, %v482
  %484 = vmatmul.bf16.gmra.mxu0 %v348
  %v485 = vpop.f32.mrf.mxu0
  %v486 = vadd.f32 0.0, %v485
  %v487 = vpop.f32.mrf.mxu0
  %v488 = vadd.f32 0.0, %v487
  %489 = vmatmul.bf16.gmra.mxu0 %v349
  %v490 = vpop.f32.mrf.mxu0
  %v491 = vadd.f32 0.0, %v490
  %v492 = vpop.f32.mrf.mxu0
  %v493 = vadd.f32 0.0, %v492
  %494 = vmatmul.bf16.gmra.mxu0 %v350
  %v495 = vpop.f32.mrf.mxu0
  %v496 = vadd.f32 0.0, %v495
  %v497 = vpop.f32.mrf.mxu0
  %v498 = vadd.f32 0.0, %v497
  %499 = vmatmul.bf16.gmra.mxu0 %v351
  %v500 = vpop.f32.mrf.mxu0
  %v501 = vadd.f32 0.0, %v500
  %v502 = vpop.f32.mrf.mxu0
  %v503 = vadd.f32 0.0, %v502
  %504 = vmatmul.bf16.gmra.mxu0 %v352
  %v505 = vpop.f32.mrf.mxu0
  %v506 = vadd.f32 0.0, %v505
  %v507 = vpop.f32.mrf.mxu0
  %v508 = vadd.f32 0.0, %v507
  %509 = vmatmul.bf16.gmra.mxu0 %v353
  %v510 = vpop.f32.mrf.mxu0
  %v511 = vadd.f32 0.0, %v510
  %v512 = vpop.f32.mrf.mxu0
  %v513 = vadd.f32 0.0, %v512
  %514 = vmatmul.bf16.gmra.mxu0 %v354
  %v515 = vpop.f32.mrf.mxu0
  %v516 = vadd.f32 0.0, %v515
  %v517 = vpop.f32.mrf.mxu0
  %v518 = vadd.f32 0.0, %v517
  %519 = vmatmul.bf16.gmra.mxu0 %v355
  %v520 = vpop.f32.mrf.mxu0
  %v521 = vadd.f32 0.0, %v520
  %v522 = vpop.f32.mrf.mxu0
  %v523 = vadd.f32 0.0, %v522
  %524 = vmatmul.bf16.gmra.mxu0 %v356
  %v525 = vpop.f32.mrf.mxu0
  %v526 = vadd.f32 0.0, %v525
  %v527 = vpop.f32.mrf.mxu0
  %v528 = vadd.f32 0.0, %v527
  %529 = vmatmul.bf16.gmra.mxu0 %v357
  %v530 = vpop.f32.mrf.mxu0
  %v531 = vadd.f32 0.0, %v530
  %v532 = vpop.f32.mrf.mxu0
  %v533 = vadd.f32 0.0, %v532
  %534 = vmatmul.bf16.gmra.mxu0 %v358
  %v535 = vpop.f32.mrf.mxu0
  %v536 = vadd.f32 0.0, %v535
  %v537 = vpop.f32.mrf.mxu0
  %v538 = vadd.f32 0.0, %v537
  %539 = vmatmul.bf16.gmra.mxu0 %v359
  %v540 = vpop.f32.mrf.mxu0
  %v541 = vadd.f32 0.0, %v540
  %v542 = vpop.f32.mrf.mxu0
  %v543 = vadd.f32 0.0, %v542
  %544 = vmatmul.bf16.gmra.mxu0 %v360
  %v545 = vpop.f32.mrf.mxu0
  %v546 = vadd.f32 0.0, %v545
  %v547 = vpop.f32.mrf.mxu0
  %v548 = vadd.f32 0.0, %v547
  %549 = vmatmul.bf16.gmra.mxu0 %v361
  %v550 = vpop.f32.mrf.mxu0
  %v551 = vadd.f32 0.0, %v550
  %v552 = vpop.f32.mrf.mxu0
  %v553 = vadd.f32 0.0, %v552
  %554 = vmatmul.bf16.gmra.mxu0 %v362
  %v555 = vpop.f32.mrf.mxu0
  %v556 = vadd.f32 0.0, %v555
  %v557 = vpop.f32.mrf.mxu0
  %v558 = vadd.f32 0.0, %v557
  %559 = vmatmul.bf16.gmra.mxu0 %v363
  %v560 = vpop.f32.mrf.mxu0
  %v561 = vadd.f32 0.0, %v560
  %v562 = vpop.f32.mrf.mxu0
  %v563 = vadd.f32 0.0, %v562
  %564 = vmatmul.bf16.gmra.mxu0 %v364
  %v565 = vpop.f32.mrf.mxu0
  %v566 = vadd.f32 0.0, %v565
  %v567 = vpop.f32.mrf.mxu0
  %v568 = vadd.f32 0.0, %v567
  %569 = vmatmul.bf16.gmra.mxu0 %v365
  %v570 = vpop.f32.mrf.mxu0
  %v571 = vadd.f32 0.0, %v570
  %v572 = vpop.f32.mrf.mxu0
  %v573 = vadd.f32 0.0, %v572
  %574 = vmatmul.bf16.gmra.mxu0 %v366
  %v575 = vpop.f32.mrf.mxu0
  %v576 = vadd.f32 0.0, %v575
  %v577 = vpop.f32.mrf.mxu0
  %v578 = vadd.f32 0.0, %v577
  %579 = vmatmul.bf16.gmra.mxu0 %v367
  %v580 = vpop.f32.mrf.mxu0
  %v581 = vadd.f32 0.0, %v580
  %v582 = vpop.f32.mrf.mxu0
  %v583 = vadd.f32 0.0, %v582
  %584 = vmatmul.bf16.gmra.mxu0 %v368
  %v585 = vpop.f32.mrf.mxu0
  %v586 = vadd.f32 0.0, %v585
  %v587 = vpop.f32.mrf.mxu0
  %v588 = vadd.f32 0.0, %v587
  %589 = vmatmul.bf16.gmra.mxu0 %v369
  %v590 = vpop.f32.mrf.mxu0
  %v591 = vadd.f32 0.0, %v590
  %v592 = vpop.f32.mrf.mxu0
  %v593 = vadd.f32 0.0, %v592
  %594 = vmatmul.bf16.gmra.mxu0 %v370
  %v595 = vpop.f32.mrf.mxu0
  %v596 = vadd.f32 0.0, %v595
  %v597 = vpop.f32.mrf.mxu0
  %v598 = vadd.f32 0.0, %v597
  %599 = vmatmul.bf16.gmra.mxu0 %v371
  %v600 = vpop.f32.mrf.mxu0
  %v601 = vadd.f32 0.0, %v600
  %v602 = vpop.f32.mrf.mxu0
  %v603 = vadd.f32 0.0, %v602
  %604 = vdwg.mxu0
  %v605 = vpack.c.bf16 %v446, %v446
  %v606 = vpack.c.bf16 %v448, %v448
  %v607 = vpack.c.bf16 %v451, %v451
  %v608 = vpack.c.bf16 %v453, %v453
  %v609 = vpack.c.bf16 %v456, %v456
  %v610 = vpack.c.bf16 %v458, %v458
  %v611 = vpack.c.bf16 %v461, %v461
  %v612 = vpack.c.bf16 %v463, %v463
  %v613 = vpack.c.bf16 %v466, %v466
  %v614 = vpack.c.bf16 %v468, %v468
  %v615 = vpack.c.bf16 %v471, %v471
  %v616 = vpack.c.bf16 %v473, %v473
  %v617 = vpack.c.bf16 %v476, %v476
  %v618 = vpack.c.bf16 %v478, %v478
  %v619 = vpack.c.bf16 %v481, %v481
  %v620 = vpack.c.bf16 %v483, %v483
  %v621 = vpack.c.bf16 %v486, %v486
  %v622 = vpack.c.bf16 %v488, %v488
  %v623 = vpack.c.bf16 %v491, %v491
  %v624 = vpack.c.bf16 %v493, %v493
  %v625 = vpack.c.bf16 %v496, %v496
  %v626 = vpack.c.bf16 %v498, %v498
  %v627 = vpack.c.bf16 %v501, %v501
  %v628 = vpack.c.bf16 %v503, %v503
  %v629 = vpack.c.bf16 %v506, %v506
  %v630 = vpack.c.bf16 %v508, %v508
  %v631 = vpack.c.bf16 %v511, %v511
  %v632 = vpack.c.bf16 %v513, %v513
  %v633 = vpack.c.bf16 %v516, %v516
  %v634 = vpack.c.bf16 %v518, %v518
  %v635 = vpack.c.bf16 %v521, %v521
  %v636 = vpack.c.bf16 %v523, %v523
  %v637 = vpack.c.bf16 %v526, %v526
  %v638 = vpack.c.bf16 %v528, %v528
  %v639 = vpack.c.bf16 %v531, %v531
  %v640 = vpack.c.bf16 %v533, %v533
  %v641 = vpack.c.bf16 %v536, %v536
  %v642 = vpack.c.bf16 %v538, %v538
  %v643 = vpack.c.bf16 %v541, %v541
  %v644 = vpack.c.bf16 %v543, %v543
  %v645 = vpack.c.bf16 %v546, %v546
  %v646 = vpack.c.bf16 %v548, %v548
  %v647 = vpack.c.bf16 %v551, %v551
  %v648 = vpack.c.bf16 %v553, %v553
  %v649 = vpack.c.bf16 %v556, %v556
  %v650 = vpack.c.bf16 %v558, %v558
  %v651 = vpack.c.bf16 %v561, %v561
  %v652 = vpack.c.bf16 %v563, %v563
  %v653 = vpack.c.bf16 %v566, %v566
  %v654 = vpack.c.bf16 %v568, %v568
  %v655 = vpack.c.bf16 %v571, %v571
  %v656 = vpack.c.bf16 %v573, %v573
  %v657 = vpack.c.bf16 %v576, %v576
  %v658 = vpack.c.bf16 %v578, %v578
  %v659 = vpack.c.bf16 %v581, %v581
  %v660 = vpack.c.bf16 %v583, %v583
  %v661 = vpack.c.bf16 %v586, %v586
  %v662 = vpack.c.bf16 %v588, %v588
  %v663 = vpack.c.bf16 %v591, %v591
  %v664 = vpack.c.bf16 %v593, %v593
  %v665 = vpack.c.bf16 %v596, %v596
  %v666 = vpack.c.bf16 %v598, %v598
  %v667 = vpack.c.bf16 %v601, %v601
  %v668 = vpack.c.bf16 %v603, %v603
  %669 = vst [vmem:[%s3] sm:$0xf] %v605
  %670 = vst [vmem:[%s3 + $0x4] sm:$0xf] %v606
  %671 = vst [vmem:[%s3 + $0x8] sm:$0xf] %v607
  %672 = vst [vmem:[%s3 + $0xc] sm:$0xf] %v608
  %673 = vst [vmem:[%s3 + $0x10] sm:$0xf] %v609
  %674 = vst [vmem:[%s3 + $0x14] sm:$0xf] %v610
  %675 = vst [vmem:[%s3 + $0x18] sm:$0xf] %v611
  %676 = vst [vmem:[%s3 + $0x1c] sm:$0xf] %v612
  %677 = vst [vmem:[%s3 + $0x20] sm:$0xf] %v613
  %678 = vst [vmem:[%s3 + $0x24] sm:$0xf] %v614
  %679 = vst [vmem:[%s3 + $0x28] sm:$0xf] %v615
  %680 = vst [vmem:[%s3 + $0x2c] sm:$0xf] %v616
  %681 = vst [vmem:[%s3 + $0x30] sm:$0xf] %v617
  %682 = vst [vmem:[%s3 + $0x34] sm:$0xf] %v618
  %683 = vst [vmem:[%s3 + $0x38] sm:$0xf] %v619
  %684 = vst [vmem:[%s3 + $0x3c] sm:$0xf] %v620
  %685 = vst [vmem:[%s3 + $0x40] sm:$0xf] %v621
  %686 = vst [vmem:[%s3 + $0x44] sm:$0xf] %v622
  %687 = vst [vmem:[%s3 + $0x48] sm:$0xf] %v623
  %688 = vst [vmem:[%s3 + $0x4c] sm:$0xf] %v624
  %689 = vst [vmem:[%s3 + $0x50] sm:$0xf] %v625
  %690 = vst [vmem:[%s3 + $0x54] sm:$0xf] %v626
  %691 = vst [vmem:[%s3 + $0x58] sm:$0xf] %v627
  %692 = vst [vmem:[%s3 + $0x5c] sm:$0xf] %v628
  %693 = vst [vmem:[%s3 + $0x60] sm:$0xf] %v629
  %694 = vst [vmem:[%s3 + $0x64] sm:$0xf] %v630
  %695 = vst [vmem:[%s3 + $0x68] sm:$0xf] %v631
  %696 = vst [vmem:[%s3 + $0x6c] sm:$0xf] %v632
  %697 = vst [vmem:[%s3 + $0x70] sm:$0xf] %v633
  %698 = vst [vmem:[%s3 + $0x74] sm:$0xf] %v634
  %699 = vst [vmem:[%s3 + $0x78] sm:$0xf] %v635
  %700 = vst [vmem:[%s3 + $0x7c] sm:$0xf] %v636
  %701 = vst [vmem:[%s3 + $0x80] sm:$0xf] %v637
  %702 = vst [vmem:[%s3 + $0x84] sm:$0xf] %v638
  %703 = vst [vmem:[%s3 + $0x88] sm:$0xf] %v639
  %704 = vst [vmem:[%s3 + $0x8c] sm:$0xf] %v640
  %705 = vst [vmem:[%s3 + $0x90] sm:$0xf] %v641
  %706 = vst [vmem:[%s3 + $0x94] sm:$0xf] %v642
  %707 = vst [vmem:[%s3 + $0x98] sm:$0xf] %v643
  %708 = vst [vmem:[%s3 + $0x9c] sm:$0xf] %v644
  %709 = vst [vmem:[%s3 + $0xa0] sm:$0xf] %v645
  %710 = vst [vmem:[%s3 + $0xa4] sm:$0xf] %v646
  %711 = vst [vmem:[%s3 + $0xa8] sm:$0xf] %v647
  %712 = vst [vmem:[%s3 + $0xac] sm:$0xf] %v648
  %713 = vst [vmem:[%s3 + $0xb0] sm:$0xf] %v649
  %714 = vst [vmem:[%s3 + $0xb4] sm:$0xf] %v650
  %715 = vst [vmem:[%s3 + $0xb8] sm:$0xf] %v651
  %716 = vst [vmem:[%s3 + $0xbc] sm:$0xf] %v652
  %717 = vst [vmem:[%s3 + $0xc0] sm:$0xf] %v653
  %718 = vst [vmem:[%s3 + $0xc4] sm:$0xf] %v654
  %719 = vst [vmem:[%s3 + $0xc8] sm:$0xf] %v655
  %720 = vst [vmem:[%s3 + $0xcc] sm:$0xf] %v656
  %721 = vst [vmem:[%s3 + $0xd0] sm:$0xf] %v657
  %722 = vst [vmem:[%s3 + $0xd4] sm:$0xf] %v658
  %723 = vst [vmem:[%s3 + $0xd8] sm:$0xf] %v659
  %724 = vst [vmem:[%s3 + $0xdc] sm:$0xf] %v660
  %725 = vst [vmem:[%s3 + $0xe0] sm:$0xf] %v661
  %726 = vst [vmem:[%s3 + $0xe4] sm:$0xf] %v662
  %727 = vst [vmem:[%s3 + $0xe8] sm:$0xf] %v663
  %728 = vst [vmem:[%s3 + $0xec] sm:$0xf] %v664
  %729 = vst [vmem:[%s3 + $0xf0] sm:$0xf] %v665
  %730 = vst [vmem:[%s3 + $0xf4] sm:$0xf] %v666
  %731 = vst [vmem:[%s3 + $0xf8] sm:$0xf] %v667
  %732 = vst [vmem:[%s3 + $0xfc] sm:$0xf] %v668
  %v733 = vadd.f32 %v446, %v448
  %v734 = vadd.f32 %v733, %v451
  %v735 = vadd.f32 %v734, %v453
  %v736 = vadd.f32 %v735, %v456
  %v737 = vadd.f32 %v736, %v458
  %v738 = vadd.f32 %v737, %v461
  %v739 = vadd.f32 %v738, %v463
  %v740 = vadd.f32 %v739, %v466
  %v741 = vadd.f32 %v740, %v468
  %v742 = vadd.f32 %v741, %v471
  %v743 = vadd.f32 %v742, %v473
  %v744 = vadd.f32 %v743, %v476
  %v745 = vadd.f32 %v744, %v478
  %v746 = vadd.f32 %v745, %v481
  %v747 = vadd.f32 %v746, %v483
  %v748 = vadd.f32 %v747, %v486
  %v749 = vadd.f32 %v748, %v488
  %v750 = vadd.f32 %v749, %v491
  %v751 = vadd.f32 %v750, %v493
  %v752 = vadd.f32 %v751, %v496
  %v753 = vadd.f32 %v752, %v498
  %v754 = vadd.f32 %v753, %v501
  %v755 = vadd.f32 %v754, %v503
  %v756 = vadd.f32 %v755, %v506
  %v757 = vadd.f32 %v756, %v508
  %v758 = vadd.f32 %v757, %v511
  %v759 = vadd.f32 %v758, %v513
  %v760 = vadd.f32 %v759, %v516
  %v761 = vadd.f32 %v760, %v518
  %v762 = vadd.f32 %v761, %v521
  %v763 = vadd.f32 %v762, %v523
  %v764 = vadd.f32 %v763, %v526
  %v765 = vadd.f32 %v764, %v528
  %v766 = vadd.f32 %v765, %v531
  %v767 = vadd.f32 %v766, %v533
  %v768 = vadd.f32 %v767, %v536
  %v769 = vadd.f32 %v768, %v538
  %v770 = vadd.f32 %v769, %v541
  %v771 = vadd.f32 %v770, %v543
  %v772 = vadd.f32 %v771, %v546
  %v773 = vadd.f32 %v772, %v548
  %v774 = vadd.f32 %v773, %v551
  %v775 = vadd.f32 %v774, %v553
  %v776 = vadd.f32 %v775, %v556
  %v777 = vadd.f32 %v776, %v558
  %v778 = vadd.f32 %v777, %v561
  %v779 = vadd.f32 %v778, %v563
  %v780 = vadd.f32 %v779, %v566
  %v781 = vadd.f32 %v780, %v568
  %v782 = vadd.f32 %v781, %v571
  %v783 = vadd.f32 %v782, %v573
  %v784 = vadd.f32 %v783, %v576
  %v785 = vadd.f32 %v784, %v578
  %v786 = vadd.f32 %v785, %v581
  %v787 = vadd.f32 %v786, %v583
  %v788 = vadd.f32 %v787, %v586
  %v789 = vadd.f32 %v788, %v588
  %v790 = vadd.f32 %v789, %v591
  %v791 = vadd.f32 %v790, %v593
  %v792 = vadd.f32 %v791, %v596
  %v793 = vadd.f32 %v792, %v598
  %v794 = vadd.f32 %v793, %v601
  %v795 = vadd.f32 %v794, %v603
  %v796 = vrot.slane %v795, 4
  %v797 = vadd.f32 %v795, %v796
  %v798 = vrot.slane %v797, 2
  %v799 = vadd.f32 %v797, %v798
  %v800 = vrot.slane %v799, 1
  %v801 = vadd.f32 %v799, %v800
  %v802 = vmul.f32 %v446, %v446
  %v803 = vmul.f32 %v448, %v448
  %v804 = vmul.f32 %v451, %v451
  %v805 = vmul.f32 %v453, %v453
  %v806 = vmul.f32 %v456, %v456
  %v807 = vmul.f32 %v458, %v458
  %v808 = vmul.f32 %v461, %v461
  %v809 = vmul.f32 %v463, %v463
  %v810 = vmul.f32 %v466, %v466
  %v811 = vmul.f32 %v468, %v468
  %v812 = vmul.f32 %v471, %v471
  %v813 = vmul.f32 %v473, %v473
  %v814 = vmul.f32 %v476, %v476
  %v815 = vmul.f32 %v478, %v478
  %v816 = vmul.f32 %v481, %v481
  %v817 = vmul.f32 %v483, %v483
  %v818 = vmul.f32 %v486, %v486
  %v819 = vmul.f32 %v488, %v488
  %v820 = vmul.f32 %v491, %v491
  %v821 = vmul.f32 %v493, %v493
  %v822 = vmul.f32 %v496, %v496
  %v823 = vmul.f32 %v498, %v498
  %v824 = vmul.f32 %v501, %v501
  %v825 = vmul.f32 %v503, %v503
  %v826 = vmul.f32 %v506, %v506
  %v827 = vmul.f32 %v508, %v508
  %v828 = vmul.f32 %v511, %v511
  %v829 = vmul.f32 %v513, %v513
  %v830 = vmul.f32 %v516, %v516
  %v831 = vmul.f32 %v518, %v518
  %v832 = vmul.f32 %v521, %v521
  %v833 = vmul.f32 %v523, %v523
  %v834 = vmul.f32 %v526, %v526
  %v835 = vmul.f32 %v528, %v528
  %v836 = vmul.f32 %v531, %v531
  %v837 = vmul.f32 %v533, %v533
  %v838 = vmul.f32 %v536, %v536
  %v839 = vmul.f32 %v538, %v538
  %v840 = vmul.f32 %v541, %v541
  %v841 = vmul.f32 %v543, %v543
  %v842 = vmul.f32 %v546, %v546
  %v843 = vmul.f32 %v548, %v548
  %v844 = vmul.f32 %v551, %v551
  %v845 = vmul.f32 %v553, %v553
  %v846 = vmul.f32 %v556, %v556
  %v847 = vmul.f32 %v558, %v558
  %v848 = vmul.f32 %v561, %v561
  %v849 = vmul.f32 %v563, %v563
  %v850 = vmul.f32 %v566, %v566
  %v851 = vmul.f32 %v568, %v568
  %v852 = vmul.f32 %v571, %v571
  %v853 = vmul.f32 %v573, %v573
  %v854 = vmul.f32 %v576, %v576
  %v855 = vmul.f32 %v578, %v578
  %v856 = vmul.f32 %v581, %v581
  %v857 = vmul.f32 %v583, %v583
  %v858 = vmul.f32 %v586, %v586
  %v859 = vmul.f32 %v588, %v588
  %v860 = vmul.f32 %v591, %v591
  %v861 = vmul.f32 %v593, %v593
  %v862 = vmul.f32 %v596, %v596
  %v863 = vmul.f32 %v598, %v598
  %v864 = vmul.f32 %v601, %v601
  %v865 = vmul.f32 %v603, %v603
  %v866 = vadd.f32 %v802, %v803
  %v867 = vadd.f32 %v866, %v804
  %v868 = vadd.f32 %v867, %v805
  %v869 = vadd.f32 %v868, %v806
  %v870 = vadd.f32 %v869, %v807
  %v871 = vadd.f32 %v870, %v808
  %v872 = vadd.f32 %v871, %v809
  %v873 = vadd.f32 %v872, %v810
  %v874 = vadd.f32 %v873, %v811
  %v875 = vadd.f32 %v874, %v812
  %v876 = vadd.f32 %v875, %v813
  %v877 = vadd.f32 %v876, %v814
  %v878 = vadd.f32 %v877, %v815
  %v879 = vadd.f32 %v878, %v816
  %v880 = vadd.f32 %v879, %v817
  %v881 = vadd.f32 %v880, %v818
  %v882 = vadd.f32 %v881, %v819
  %v883 = vadd.f32 %v882, %v820
  %v884 = vadd.f32 %v883, %v821
  %v885 = vadd.f32 %v884, %v822
  %v886 = vadd.f32 %v885, %v823
  %v887 = vadd.f32 %v886, %v824
  %v888 = vadd.f32 %v887, %v825
  %v889 = vadd.f32 %v888, %v826
  %v890 = vadd.f32 %v889, %v827
  %v891 = vadd.f32 %v890, %v828
  %v892 = vadd.f32 %v891, %v829
  %v893 = vadd.f32 %v892, %v830
  %v894 = vadd.f32 %v893, %v831
  %v895 = vadd.f32 %v894, %v832
  %v896 = vadd.f32 %v895, %v833
  %v897 = vadd.f32 %v896, %v834
  %v898 = vadd.f32 %v897, %v835
  %v899 = vadd.f32 %v898, %v836
  %v900 = vadd.f32 %v899, %v837
  %v901 = vadd.f32 %v900, %v838
  %v902 = vadd.f32 %v901, %v839
  %v903 = vadd.f32 %v902, %v840
  %v904 = vadd.f32 %v903, %v841
  %v905 = vadd.f32 %v904, %v842
  %v906 = vadd.f32 %v905, %v843
  %v907 = vadd.f32 %v906, %v844
  %v908 = vadd.f32 %v907, %v845
  %v909 = vadd.f32 %v908, %v846
  %v910 = vadd.f32 %v909, %v847
  %v911 = vadd.f32 %v910, %v848
  %v912 = vadd.f32 %v911, %v849
  %v913 = vadd.f32 %v912, %v850
  %v914 = vadd.f32 %v913, %v851
  %v915 = vadd.f32 %v914, %v852
  %v916 = vadd.f32 %v915, %v853
  %v917 = vadd.f32 %v916, %v854
  %v918 = vadd.f32 %v917, %v855
  %v919 = vadd.f32 %v918, %v856
  %v920 = vadd.f32 %v919, %v857
  %v921 = vadd.f32 %v920, %v858
  %v922 = vadd.f32 %v921, %v859
  %v923 = vadd.f32 %v922, %v860
  %v924 = vadd.f32 %v923, %v861
  %v925 = vadd.f32 %v924, %v862
  %v926 = vadd.f32 %v925, %v863
  %v927 = vadd.f32 %v926, %v864
  %v928 = vadd.f32 %v927, %v865
  %v929 = vrot.slane %v928, 4
  %v930 = vadd.f32 %v928, %v929
  %v931 = vrot.slane %v930, 2
  %v932 = vadd.f32 %v930, %v931
  %v933 = vrot.slane %v932, 1
  %v934 = vadd.f32 %v932, %v933
  %v935 = vlaneseq
  %v936 = vshrl.u32 %v935, 7
  %vm937 = vcmp.eq.s32.totalorder %v936, 0
  %vm938 = vcmp.eq.s32.totalorder %v936, 1
  %v939 = vsel %vm938, %v934, 0.0
  %v940 = vsel %vm937, %v801, %v939
  %941 = vst [vmem:[%s4] sm:$0xff] %v940
  // Predicated region
  $region14: #{bottleneck_forward.6} parent=0 // pred_check
    _
  $region15: #{bottleneck_forward.6} parent=0 // pred_check_branch
    %943 = sbr.rel (0) target = $region17
  $region16: #{bottleneck_forward.6} parent=0 // pred_region
    _
  $region17: #{bottleneck_forward.6} parent=0 // pred_fallthru
    _
  // Predicated region
  $region18: #{bottleneck_forward.6} parent=0 // pred_check
    _
  $region19: #{bottleneck_forward.6} parent=0 // pred_check_branch
    %945 = sbr.rel (0) target = $region21
  $region20: #{bottleneck_forward.6} parent=0 // pred_region
    _
  $region21: #{bottleneck_forward.6} parent=0 // pred_fallthru
    _
  // Predicated region
  $region22: #{bottleneck_forward.6} parent=0 // pred_check
    _
  $region23: #{bottleneck_forward.6} parent=0 // pred_check_branch
    %947 = sbr.rel (0) target = $region25
  $region24: #{bottleneck_forward.6} parent=0 // pred_region
    _
  $region25: #{bottleneck_forward.6} parent=0 // pred_fallthru
    _
  // Predicated region
  $region26: #{bottleneck_forward.6} parent=0 // pred_check
    _
  $region27: #{bottleneck_forward.6} parent=0 // pred_check_branch
    %949 = sbr.rel (0) target = $region29
  $region28: #{bottleneck_forward.6} parent=0 // pred_region
    _
  $region29: #{bottleneck_forward.6} parent=0 // pred_fallthru
    _

// kernel: bottleneck_forward.5
$region0: #{bottleneck_forward.5}
  #allocation0 [shape = 'u32[]', space=smem, size = 0x4, offset = 0x4, fixed_abs, tag = 'smem constant byte address 0x4 - core index']
  #allocation1 [shape = 'u32[72,128]{1,0:T(1,128)}', space=vmem, size = 0x9000, scoped, tag = 'internal scratch']
  #allocation2 [shape = 'bf16[18,18,128]{2,1,0:T(8,128)(2,1)}', space=vmem, size = 0x1b000, scoped, tag = 'scratch operand']
  #allocation3 [shape = 'f32[256,128]{1,0:T(8,128)}', space=vmem, size = 0x20000, scoped, tag = 'scratch operand']
  %s0 = inlined_call_operand.vmem [shape: bf16[2,16,16,128], index: 0, kind: input, shape index: {}]
  %s1 = inlined_call_operand.vmem [shape: f32[2,128], index: 1, kind: input, shape index: {}]
  %s2 = inlined_call_operand.vmem [shape: bf16[9,128,128], index: 2, kind: input, shape index: {}]
  %s3 = inlined_call_operand.vmem [shape: bf16[2,1,256,128], index: 3, kind: output, shape index: {0}]
  %s4 = inlined_call_operand.vmem [shape: f32[16,128], index: 4, kind: output, shape index: {1}]
  %5 = xla_tuple %s3, %s4
  %s6 = sld [smem:[#allocation0]]
  $region53: #{bottleneck_forward.5} parent=0
    _
  %s8 = ssub.s32 1, %s6
  %s9 = scalar_select 0, %s8, %s6
  loop: start=0, step=1, limit=4
  $region2: #{bottleneck_forward.5} parent=0 // loop_pre_header
    _
  $region3: #{bottleneck_forward.5} parent=0 // loop_header
    %s11 = sphi 0, %s15
    %p12 = scmp.ge.s32.totalorder %s11, 4
    %s21 = sphi 0, %s23
    %s24 = sphi 0, %s21
    %s25 = sphi 0, %s24
    %s41 = sphi 0, %s25
    %s45 = sphi 0, %s45
    %s47 = sphi 0, %s45
    %s48 = sphi 0, %s47
    %s62 = sphi 0, %s48
    %s66 = sphi 0, %s66
    %s68 = sphi 0, %s66
    %s69 = sphi 0, %s68
    %s83 = sphi 0, %s69
    %s89 = sphi 0, %s91
    %s92 = sphi 0, %s89
    %s93 = sphi 0, %s92
    %s109 = sphi 0, %s93
    %s115 = sphi 0, %s117
    %s118 = sphi 0, %s115
    %s119 = sphi 0, %s118
    %s135 = sphi 0, %s119
  $region4: #{bottleneck_forward.5} parent=0 // loop_header_branch
    %14 = sbr.rel (%p12) target = $region8
  $region5: #{bottleneck_forward.5} parent=0 // loop_body
    %s16 = ssub.s32 %s11, 1
    %s17 = ssub.s32 %s11, 2
    %s18 = sadd.s32 %s11, 1
    %s19 = ssub.s32 %s11, %s18
    %p20 = scmp.eq.s32.totalorder %s19, 0
    %s22 = sadd.s32 %s21, 1
    %s23 = scalar_select %p20, %s21, %s22
    %p26 = pneg %p20
    %p27 = scmp.eq.s32.totalorder %s11, 1
    %p28 = por %p26, %p27
    %p29 = scmp.ne.s32.totalorder %s21, %s24
    %p30 = scmp.eq.s32.totalorder %s11, 0
    %p31 = por %p29, %p30
    %p32 = scmp.ne.s32.totalorder %s21, %s24
    %p33 = scmp.eq.s32.totalorder %s16, 1
    %p34 = por %p32, %p33
    %p35 = scmp.ne.s32.totalorder %s24, %s25
    %p36 = scmp.eq.s32.totalorder %s16, 0
    %p37 = por %p35, %p36
    %p38 = scmp.ne.s32.totalorder %s24, %s25
    %p39 = scmp.eq.s32.totalorder %s17, 1
    %p40 = por %p38, %p39
    %p42 = scmp.ne.s32.totalorder %s25, %s41
    %p43 = scmp.eq.s32.totalorder %s17, 0
    %p44 = por %p42, %p43
    %s46 = sadd.s32 %s45, 1
    %p49 = scmp.eq.s32.totalorder %s11, 1
    %p50 = scmp.ne.s32.totalorder %s45, %s47
    %p51 = scmp.eq.s32.totalorder %s11, 0
    %p52 = por %p50, %p51
    %p53 = scmp.ne.s32.totalorder %s45, %s47
    %p54 = scmp.eq.s32.totalorder %s16, 1
    %p55 = por %p53, %p54
    %p56 = scmp.ne.s32.totalorder %s47, %s48
    %p57 = scmp.eq.s32.totalorder %s16, 0
    %p58 = por %p56, %p57
    %p59 = scmp.ne.s32.totalorder %s47, %s48
    %p60 = scmp.eq.s32.totalorder %s17, 1
    %p61 = por %p59, %p60
    %p63 = scmp.ne.s32.totalorder %s48, %s62
    %p64 = scmp.eq.s32.totalorder %s17, 0
    %p65 = por %p63, %p64
    %s67 = sadd.s32 %s66, 1
    %p70 = scmp.eq.s32.totalorder %s11, 1
    %p71 = scmp.ne.s32.totalorder %s66, %s68
    %p72 = scmp.eq.s32.totalorder %s11, 0
    %p73 = por %p71, %p72
    %p74 = scmp.ne.s32.totalorder %s66, %s68
    %p75 = scmp.eq.s32.totalorder %s16, 1
    %p76 = por %p74, %p75
    %p77 = scmp.ne.s32.totalorder %s68, %s69
    %p78 = scmp.eq.s32.totalorder %s16, 0
    %p79 = por %p77, %p78
    %p80 = scmp.ne.s32.totalorder %s68, %s69
    %p81 = scmp.eq.s32.totalorder %s17, 1
    %p82 = por %p80, %p81
    %p84 = scmp.ne.s32.totalorder %s69, %s83
    %p85 = scmp.eq.s32.totalorder %s17, 0
    %p86 = por %p84, %p85
    %s87 = ssub.s32 %s11, %s18
    %p88 = scmp.eq.s32.totalorder %s87, 0
    %s90 = sadd.s32 %s89, 1
    %s91 = scalar_select %p88, %s89, %s90
    %p94 = pneg %p88
    %p95 = scmp.eq.s32.totalorder %s11, 1
    %p96 = por %p94, %p95
    %p97 = scmp.ne.s32.totalorder %s89, %s92
    %p98 = scmp.eq.s32.totalorder %s11, 0
    %p99 = por %p97, %p98
    %p100 = scmp.ne.s32.totalorder %s89, %s92
    %p101 = scmp.eq.s32.totalorder %s16, 1
    %p102 = por %p100, %p101
    %p103 = scmp.ne.s32.totalorder %s92, %s93
    %p104 = scmp.eq.s32.totalorder %s16, 0
    %p105 = por %p103, %p104
    %p106 = scmp.ne.s32.totalorder %s92, %s93
    %p107 = scmp.eq.s32.totalorder %s17, 1
    %p108 = por %p106, %p107
    %p110 = scmp.ne.s32.totalorder %s93, %s109
    %p111 = scmp.eq.s32.totalorder %s17, 0
    %p112 = por %p110, %p111
    %s113 = ssub.s32 %s11, %s18
    %p114 = scmp.eq.s32.totalorder %s113, 0
    %s116 = sadd.s32 %s115, 1
    %s117 = scalar_select %p114, %s115, %s116
    %p120 = pneg %p114
    %p121 = scmp.eq.s32.totalorder %s11, 1
    %p122 = por %p120, %p121
    %p123 = scmp.ne.s32.totalorder %s115, %s118
    %p124 = scmp.eq.s32.totalorder %s11, 0
    %p125 = por %p123, %p124
    %p126 = scmp.ne.s32.totalorder %s115, %s118
    %p127 = scmp.eq.s32.totalorder %s16, 1
    %p128 = por %p126, %p127
    %p129 = scmp.ne.s32.totalorder %s118, %s119
    %p130 = scmp.eq.s32.totalorder %s16, 0
    %p131 = por %p129, %p130
    %p132 = scmp.ne.s32.totalorder %s118, %s119
    %p133 = scmp.eq.s32.totalorder %s17, 1
    %p134 = por %p132, %p133
    %p136 = scmp.ne.s32.totalorder %s119, %s135
    %p137 = scmp.eq.s32.totalorder %s17, 0
    %p138 = por %p136, %p137
    %p139 = scmp.le.s32.totalorder 1, %s11
    %p140 = scmp.lt.s32.totalorder %s11, 3
    %p141 = pnand %p139, %p140
    %p142 = pneg %p141
    // Predicated region
    $region9: #{bottleneck_forward.5} parent=5 // pred_check
      _
    $region10: #{bottleneck_forward.5} parent=5 // pred_check_branch
      %144 = sbr.rel (%p141) target = $region12
    $region11: #{bottleneck_forward.5} parent=5 // pred_region
      %s145 = ssub.s32 %s11, 1
      // Predicated region
      $region13: #{bottleneck_forward.5} parent=11 // pred_check
        %p146 = pneg %p58
      $region14: #{bottleneck_forward.5} parent=11 // pred_check_branch
        %148 = sbr.rel (%p146) target = $region16
      $region15: #{bottleneck_forward.5} parent=11 // pred_region
        _
      $region16: #{bottleneck_forward.5} parent=11 // pred_fallthru
        _
      // Predicated region
      $region17: #{bottleneck_forward.5} parent=11 // pred_check
        %p149 = pneg %p79
      $region18: #{bottleneck_forward.5} parent=11 // pred_check_branch
        %151 = sbr.rel (%p149) target = $region20
      $region19: #{bottleneck_forward.5} parent=11 // pred_region
        _
      $region20: #{bottleneck_forward.5} parent=11 // pred_fallthru
        _
    $region12: #{bottleneck_forward.5} parent=5 // pred_fallthru
      _
    %p152 = scmp.lt.s32.totalorder %s11, 2
    // Predicated region
    $region21: #{bottleneck_forward.5} parent=5 // pred_check
      %p153 = pneg %p152
    $region22: #{bottleneck_forward.5} parent=5 // pred_check_branch
      %155 = sbr.rel (%p153) target = $region24
    $region23: #{bottleneck_forward.5} parent=5 // pred_region
      // Predicated region
      $region25: #{bottleneck_forward.5} parent=23 // pred_check
        %p156 = pneg %p31
      $region26: #{bottleneck_forward.5} parent=23 // pred_check_branch
        %158 = sbr.rel (%p156) target = $region28
      $region27: #{bottleneck_forward.5} parent=23 // pred_region
        %p159 = scmp.lt.s32.totalorder %s11, 1
        %s160 = scalar_select %p159, %s11, 1
        %s161 = smul.addr %s160, 32
        %s162 = smul.addr %s161, 4
        %s163 = scalar_lea.vmem %s0, %s162
      $region28: #{bottleneck_forward.5} parent=23 // pred_fallthru
        _
    $region24: #{bottleneck_forward.5} parent=5 // pred_fallthru
      _
    %p164 = scmp.le.s32.totalorder 1, %s11
    %p165 = scmp.lt.s32.totalorder %s11, 3
    %p166 = pnand %p164, %p165
    %p167 = pneg %p166
    // Predicated region
    $region29: #{bottleneck_forward.5} parent=5 // pred_check
      _
    $region30: #{bottleneck_forward.5} parent=5 // pred_check_branch
      %169 = sbr.rel (%p166) target = $region32
    $region31: #{bottleneck_forward.5} parent=5 // pred_region
      %s170 = ssub.s32 %s11, 1
      %p171 = scmp.lt.s32.totalorder %s16, 1
      %s172 = scalar_select %p171, %s16, 1
      %s173 = smul.addr %s172, 32
      %s174 = smul.addr %s173, 4
      %s175 = scalar_lea.vmem %s0, %s174
      %p176 = pneg %p37
      %p177 = pneg %p34
      %p178 = pneg %p58
      %p179 = pneg %p55
      %p180 = pneg %p79
      %p181 = pneg %p76
      %p182 = pneg %p105
      %p183 = pneg %p102
      %p184 = scmp.lt.s32.totalorder %s16, 1
      %s185 = scalar_select %p184, %s16, 1
      %s186 = smul.addr %s185, 32
      %s187 = smul.addr %s186, 4
      %s188 = scalar_lea.vmem %s3, %s187
      %p189 = pneg %p131
      %p190 = pneg %p128
      %p191 = scmp.lt.s32.totalorder %s16, 1
      %s192 = scalar_select %p191, %s16, 1
      %s193 = smul.addr %s192, 8
      %s194 = scalar_lea.vmem %s4, %s193
      %p195 = scmp.lt.s32.totalorder %s16, 1
      %s196 = scalar_select %p195, %s16, 1
      %s197 = smul.addr %s196, 32
      %s198 = smul.addr %s197, 4
      %s199 = scalar_lea.vmem %s0, %s198
      %p200 = scmp.lt.s32.totalorder %s16, 1
      %s201 = scalar_select %p200, %s16, 1
      %s202 = smul.addr %s201, 32
      %s203 = smul.addr %s202, 4
      %s204 = scalar_lea.vmem %s3, %s203
      %p205 = scmp.lt.s32.totalorder %s16, 1
      %s206 = scalar_select %p205, %s16, 1
      %s207 = smul.addr %s206, 8
      %s208 = scalar_lea.vmem %s4, %s207
      %210 = vst [vmem:[#allocation2] sm:$0xf] 0
      %211 = vst [vmem:[#allocation2 + $0x4] sm:$0xf] 0
      %212 = vst [vmem:[#allocation2 + $0x8] sm:$0x1] 0
      %213 = vst [vmem:[#allocation2 + $0xc] sm:$0xf] 0
      %214 = vst [vmem:[#allocation2 + $0x10] sm:$0xf] 0
      %215 = vst [vmem:[#allocation2 + $0x14] sm:$0x1] 0
      %216 = vst [vmem:[#allocation2 + $0x18] sm:$0xf] 0
      %217 = vst [vmem:[#allocation2 + $0x1c] sm:$0xf] 0
      %218 = vst [vmem:[#allocation2 + $0x20] sm:$0x1] 0
      %219 = vst [vmem:[#allocation2 + $0x24] sm:$0xf] 0
      %220 = vst [vmem:[#allocation2 + $0x28] sm:$0xf] 0
      %221 = vst [vmem:[#allocation2 + $0x2c] sm:$0x1] 0
      %222 = vst [vmem:[#allocation2 + $0x30] sm:$0xf] 0
      %223 = vst [vmem:[#allocation2 + $0x34] sm:$0xf] 0
      %224 = vst [vmem:[#allocation2 + $0x38] sm:$0x1] 0
      %225 = vst [vmem:[#allocation2 + $0x3c] sm:$0xf] 0
      %226 = vst [vmem:[#allocation2 + $0x40] sm:$0xf] 0
      %227 = vst [vmem:[#allocation2 + $0x44] sm:$0x1] 0
      %228 = vst [vmem:[#allocation2 + $0x48] sm:$0xf] 0
      %229 = vst [vmem:[#allocation2 + $0x4c] sm:$0xf] 0
      %230 = vst [vmem:[#allocation2 + $0x50] sm:$0x1] 0
      %231 = vst [vmem:[#allocation2 + $0x54] sm:$0xf] 0
      %232 = vst [vmem:[#allocation2 + $0x58] sm:$0xf] 0
      %233 = vst [vmem:[#allocation2 + $0x5c] sm:$0x1] 0
      %234 = vst [vmem:[#allocation2 + $0x60] sm:$0xf] 0
      %235 = vst [vmem:[#allocation2 + $0x64] sm:$0xf] 0
      %236 = vst [vmem:[#allocation2 + $0x68] sm:$0x1] 0
      %237 = vst [vmem:[#allocation2 + $0x6c] sm:$0xf] 0
      %238 = vst [vmem:[#allocation2 + $0x70] sm:$0xf] 0
      %239 = vst [vmem:[#allocation2 + $0x74] sm:$0x1] 0
      %240 = vst [vmem:[#allocation2 + $0x78] sm:$0xf] 0
      %241 = vst [vmem:[#allocation2 + $0x7c] sm:$0xf] 0
      %242 = vst [vmem:[#allocation2 + $0x80] sm:$0x1] 0
      %243 = vst [vmem:[#allocation2 + $0x84] sm:$0xf] 0
      %244 = vst [vmem:[#allocation2 + $0x88] sm:$0xf] 0
      %245 = vst [vmem:[#allocation2 + $0x8c] sm:$0x1] 0
      %246 = vst [vmem:[#allocation2 + $0x90] sm:$0xf] 0
      %247 = vst [vmem:[#allocation2 + $0x94] sm:$0xf] 0
      %248 = vst [vmem:[#allocation2 + $0x98] sm:$0x1] 0
      %249 = vst [vmem:[#allocation2 + $0x9c] sm:$0xf] 0
      %250 = vst [vmem:[#allocation2 + $0xa0] sm:$0xf] 0
      %251 = vst [vmem:[#allocation2 + $0xa4] sm:$0x1] 0
      %252 = vst [vmem:[#allocation2 + $0xa8] sm:$0xf] 0
      %253 = vst [vmem:[#allocation2 + $0xac] sm:$0xf] 0
      %254 = vst [vmem:[#allocation2 + $0xb0] sm:$0x1] 0
      %255 = vst [vmem:[#allocation2 + $0xb4] sm:$0xf] 0
      %256 = vst [vmem:[#allocation2 + $0xb8] sm:$0xf] 0
      %257 = vst [vmem:[#allocation2 + $0xbc] sm:$0x1] 0
      %258 = vst [vmem:[#allocation2 + $0xc0] sm:$0xf] 0
      %259 = vst [vmem:[#allocation2 + $0xc4] sm:$0xf] 0
      %260 = vst [vmem:[#allocation2 + $0xc8] sm:$0x1] 0
      %261 = vst [vmem:[#allocation2 + $0xcc] sm:$0xf] 0
      %262 = vst [vmem:[#allocation2 + $0xd0] sm:$0xf] 0
      %263 = vst [vmem:[#allocation2 + $0xd4] sm:$0x1] 0
      %v264 = vld [vmem:[%s199] sm:$0xf]
      %v265 = vld [vmem:[%s199 + $0x4] sm:$0xf]
      %v266 = vld [vmem:[%s199 + $0x8] sm:$0xf]
      %v267 = vld [vmem:[%s199 + $0xc] sm:$0xf]
      %v268 = vld [vmem:[%s199 + $0x10] sm:$0xf]
      %v269 = vld [vmem:[%s199 + $0x14] sm:$0xf]
      %v270 = vld [vmem:[%s199 + $0x18] sm:$0xf]
      %v271 = vld [vmem:[%s199 + $0x1c] sm:$0xf]
      %v272 = vld [vmem:[%s199 + $0x20] sm:$0xf]
      %v273 = vld [vmem:[%s199 + $0x24] sm:$0xf]
      %v274 = vld [vmem:[%s199 + $0x28] sm:$0xf]
      %v275 = vld [vmem:[%s199 + $0x2c] sm:$0xf]
      %v276 = vld [vmem:[%s199 + $0x30] sm:$0xf]
      %v277 = vld [vmem:[%s199 + $0x34] sm:$0xf]
      %v278 = vld [vmem:[%s199 + $0x38] sm:$0xf]
      %v279 = vld [vmem:[%s199 + $0x3c] sm:$0xf]
      %v280 = vld [vmem:[%s199 + $0x40] sm:$0xf]
      %v281 = vld [vmem:[%s199 + $0x44] sm:$0xf]
      %v282 = vld [vmem:[%s199 + $0x48] sm:$0xf]
      %v283 = vld [vmem:[%s199 + $0x4c] sm:$0xf]
      %v284 = vld [vmem:[%s199 + $0x50] sm:$0xf]
      %v285 = vld [vmem:[%s199 + $0x54] sm:$0xf]
      %v286 = vld [vmem:[%s199 + $0x58] sm:$0xf]
      %v287 = vld [vmem:[%s199 + $0x5c] sm:$0xf]
      %v288 = vld [vmem:[%s199 + $0x60] sm:$0xf]
      %v289 = vld [vmem:[%s199 + $0x64] sm:$0xf]
      %v290 = vld [vmem:[%s199 + $0x68] sm:$0xf]
      %v291 = vld [vmem:[%s199 + $0x6c] sm:$0xf]
      %v292 = vld [vmem:[%s199 + $0x70] sm:$0xf]
      %v293 = vld [vmem:[%s199 + $0x74] sm:$0xf]
      %v294 = vld [vmem:[%s199 + $0x78] sm:$0xf]
      %v295 = vld [vmem:[%s199 + $0x7c] sm:$0xf]
      %v296 = vunpack.c.l.bf16 %v264
      %v297 = vunpack.c.l.bf16 %v265
      %v298 = vunpack.c.l.bf16 %v266
      %v299 = vunpack.c.l.bf16 %v267
      %v300 = vunpack.c.l.bf16 %v268
      %v301 = vunpack.c.l.bf16 %v269
      %v302 = vunpack.c.l.bf16 %v270
      %v303 = vunpack.c.l.bf16 %v271
      %v304 = vunpack.c.l.bf16 %v272
      %v305 = vunpack.c.l.bf16 %v273
      %v306 = vunpack.c.l.bf16 %v274
      %v307 = vunpack.c.l.bf16 %v275
      %v308 = vunpack.c.l.bf16 %v276
      %v309 = vunpack.c.l.bf16 %v277
      %v310 = vunpack.c.l.bf16 %v278
      %v311 = vunpack.c.l.bf16 %v279
      %v312 = vunpack.c.l.bf16 %v280
      %v313 = vunpack.c.l.bf16 %v281
      %v314 = vunpack.c.l.bf16 %v282
      %v315 = vunpack.c.l.bf16 %v283
      %v316 = vunpack.c.l.bf16 %v284
      %v317 = vunpack.c.l.bf16 %v285
      %v318 = vunpack.c.l.bf16 %v286
      %v319 = vunpack.c.l.bf16 %v287
      %v320 = vunpack.c.l.bf16 %v288
      %v321 = vunpack.c.l.bf16 %v289
      %v322 = vunpack.c.l.bf16 %v290
      %v323 = vunpack.c.l.bf16 %v291
      %v324 = vunpack.c.l.bf16 %v292
      %v325 = vunpack.c.l.bf16 %v293
      %v326 = vunpack.c.l.bf16 %v294
      %v327 = vunpack.c.l.bf16 %v295
      %v328 = vld [vmem:[%s1] sm:$0x1]
      %v329 = vperm.slane %v328, 0
      %v330 = vmul.f32 %v296, %v329
      %v331 = vmul.f32 %v297, %v329
      %v332 = vmul.f32 %v298, %v329
      %v333 = vmul.f32 %v299, %v329
      %v334 = vmul.f32 %v300, %v329
      %v335 = vmul.f32 %v301, %v329
      %v336 = vmul.f32 %v302, %v329
      %v337 = vmul.f32 %v303, %v329
      %v338 = vmul.f32 %v304, %v329
      %v339 = vmul.f32 %v305, %v329
      %v340 = vmul.f32 %v306, %v329
      %v341 = vmul.f32 %v307, %v329
      %v342 = vmul.f32 %v308, %v329
      %v343 = vmul.f32 %v309, %v329
      %v344 = vmul.f32 %v310, %v329
      %v345 = vmul.f32 %v311, %v329
      %v346 = vmul.f32 %v312, %v329
      %v347 = vmul.f32 %v313, %v329
      %v348 = vmul.f32 %v314, %v329
      %v349 = vmul.f32 %v315, %v329
      %v350 = vmul.f32 %v316, %v329
      %v351 = vmul.f32 %v317, %v329
      %v352 = vmul.f32 %v318, %v329
      %v353 = vmul.f32 %v319, %v329
      %v354 = vmul.f32 %v320, %v329
      %v355 = vmul.f32 %v321, %v329
      %v356 = vmul.f32 %v322, %v329
      %v357 = vmul.f32 %v323, %v329
      %v358 = vmul.f32 %v324, %v329
      %v359 = vmul.f32 %v325, %v329
      %v360 = vmul.f32 %v326, %v329
      %v361 = vmul.f32 %v327, %v329
      %v362 = vld [vmem:[%s1 + $0x1] sm:$0x1]
      %v363 = vperm.slane %v362, 0
      %v364 = vadd.f32 %v330, %v363
      %v365 = vadd.f32 %v331, %v363
      %v366 = vadd.f32 %v332, %v363
      %v367 = vadd.f32 %v333, %v363
      %v368 = vadd.f32 %v334, %v363
      %v369 = vadd.f32 %v335, %v363
      %v370 = vadd.f32 %v336, %v363
      %v371 = vadd.f32 %v337, %v363
      %v372 = vadd.f32 %v338, %v363
      %v373 = vadd.f32 %v339, %v363
      %v374 = vadd.f32 %v340, %v363
      %v375 = vadd.f32 %v341, %v363
      %v376 = vadd.f32 %v342, %v363
      %v377 = vadd.f32 %v343, %v363
      %v378 = vadd.f32 %v344, %v363
      %v379 = vadd.f32 %v345, %v363
      %v380 = vadd.f32 %v346, %v363
      %v381 = vadd.f32 %v347, %v363
      %v382 = vadd.f32 %v348, %v363
      %v383 = vadd.f32 %v349, %v363
      %v384 = vadd.f32 %v350, %v363
      %v385 = vadd.f32 %v351, %v363
      %v386 = vadd.f32 %v352, %v363
      %v387 = vadd.f32 %v353, %v363
      %v388 = vadd.f32 %v354, %v363
      %v389 = vadd.f32 %v355, %v363
      %v390 = vadd.f32 %v356, %v363
      %v391 = vadd.f32 %v357, %v363
      %v392 = vadd.f32 %v358, %v363
      %v393 = vadd.f32 %v359, %v363
      %v394 = vadd.f32 %v360, %v363
      %v395 = vadd.f32 %v361, %v363
      %v396 = vmax.f32 %v364, 0.0
      %v397 = vmax.f32 %v365, 0.0
      %v398 = vmax.f32 %v366, 0.0
      %v399 = vmax.f32 %v367, 0.0
      %v400 = vmax.f32 %v368, 0.0
      %v401 = vmax.f32 %v369, 0.0
      %v402 = vmax.f32 %v370, 0.0
      %v403 = vmax.f32 %v371, 0.0
      %v404 = vmax.f32 %v372, 0.0
      %v405 = vmax.f32 %v373, 0.0
      %v406 = vmax.f32 %v374, 0.0
      %v407 = vmax.f32 %v375, 0.0
      %v408 = vmax.f32 %v376, 0.0
      %v409 = vmax.f32 %v377, 0.0
      %v410 = vmax.f32 %v378, 0.0
      %v411 = vmax.f32 %v379, 0.0
      %v412 = vmax.f32 %v380, 0.0
      %v413 = vmax.f32 %v381, 0.0
      %v414 = vmax.f32 %v382, 0.0
      %v415 = vmax.f32 %v383, 0.0
      %v416 = vmax.f32 %v384, 0.0
      %v417 = vmax.f32 %v385, 0.0
      %v418 = vmax.f32 %v386, 0.0
      %v419 = vmax.f32 %v387, 0.0
      %v420 = vmax.f32 %v388, 0.0
      %v421 = vmax.f32 %v389, 0.0
      %v422 = vmax.f32 %v390, 0.0
      %v423 = vmax.f32 %v391, 0.0
      %v424 = vmax.f32 %v392, 0.0
      %v425 = vmax.f32 %v393, 0.0
      %v426 = vmax.f32 %v394, 0.0
      %v427 = vmax.f32 %v395, 0.0
      %v428 = vpack.c.bf16 %v396, %v396
      %v429 = vpack.c.bf16 %v397, %v397
      %v430 = vpack.c.bf16 %v398, %v398
      %v431 = vpack.c.bf16 %v399, %v399
      %v432 = vpack.c.bf16 %v400, %v400
      %v433 = vpack.c.bf16 %v401, %v401
      %v434 = vpack.c.bf16 %v402, %v402
      %v435 = vpack.c.bf16 %v403, %v403
      %v436 = vpack.c.bf16 %v404, %v404
      %v437 = vpack.c.bf16 %v405, %v405
      %v438 = vpack.c.bf16 %v406, %v406
      %v439 = vpack.c.bf16 %v407, %v407
      %v440 = vpack.c.bf16 %v408, %v408
      %v441 = vpack.c.bf16 %v409, %v409
      %v442 = vpack.c.bf16 %v410, %v410
      %v443 = vpack.c.bf16 %v411, %v411
      %v444 = vpack.c.bf16 %v412, %v412
      %v445 = vpack.c.bf16 %v413, %v413
      %v446 = vpack.c.bf16 %v414, %v414
      %v447 = vpack.c.bf16 %v415, %v415
      %v448 = vpack.c.bf16 %v416, %v416
      %v449 = vpack.c.bf16 %v417, %v417
      %v450 = vpack.c.bf16 %v418, %v418
      %v451 = vpack.c.bf16 %v419, %v419
      %v452 = vpack.c.bf16 %v420, %v420
      %v453 = vpack.c.bf16 %v421, %v421
      %v454 = vpack.c.bf16 %v422, %v422
      %v455 = vpack.c.bf16 %v423, %v423
      %v456 = vpack.c.bf16 %v424, %v424
      %v457 = vpack.c.bf16 %v425, %v425
      %v458 = vpack.c.bf16 %v426, %v426
      %v459 = vpack.c.bf16 %v427, %v427
      %vm460 = vsmask.f32 256
      %vm461 = vsmask.f32 4368
      %vm462 = vmor %vm460, %vm461
      %v464 = vshrl.u32 %v428, 16
      %v466 = vrot.slane %v464, 7
      %v467 = vshll.u32 %v428, 16
      %v469 = vor.u32 %v466, %v467
      %v470 = vrot.slane %v466, 4
      %v472 = vshrl.u32 %v429, 16
      %v474 = vrot.slane %v472, 7
      %v475 = vshll.u32 %v429, 16
      %v477 = vor.u32 %v474, %v475
      %v478 = vsel %vm462, %v470, %v477
      %v479 = vrot.slane %v474, 4
      %v481 = vshrl.u32 %v430, 16
      %v483 = vrot.slane %v481, 7
      %v484 = vshll.u32 %v430, 16
      %v486 = vor.u32 %v483, %v484
      %v487 = vrot.slane %v483, 4
      %v489 = vshrl.u32 %v431, 16
      %v491 = vrot.slane %v489, 7
      %v492 = vshll.u32 %v431, 16
      %v494 = vor.u32 %v491, %v492
      %v495 = vsel %vm462, %v487, %v494
      %v496 = vrot.slane %v491, 4
      %v498 = vshrl.u32 %v432, 16
      %v500 = vrot.slane %v498, 7
      %v501 = vshll.u32 %v432, 16
      %v503 = vor.u32 %v500, %v501
      %v504 = vrot.slane %v500, 4
      %v506 = vshrl.u32 %v433, 16
      %v508 = vrot.slane %v506, 7
      %v509 = vshll.u32 %v433, 16
      %v511 = vor.u32 %v508, %v509
      %v512 = vsel %vm462, %v504, %v511
      %v513 = vrot.slane %v508, 4
      %v515 = vshrl.u32 %v434, 16
      %v517 = vrot.slane %v515, 7
      %v518 = vshll.u32 %v434, 16
      %v520 = vor.u32 %v517, %v518
      %v521 = vrot.slane %v517, 4
      %v523 = vshrl.u32 %v435, 16
      %v525 = vrot.slane %v523, 7
      %v526 = vshll.u32 %v435, 16
      %v528 = vor.u32 %v525, %v526
      %v529 = vsel %vm462, %v521, %v528
      %v530 = vrot.slane %v525, 4
      %v532 = vshrl.u32 %v436, 16
      %v534 = vrot.slane %v532, 7
      %v535 = vshll.u32 %v436, 16
      %v537 = vor.u32 %v534, %v535
      %v538 = vrot.slane %v534, 4
      %v540 = vshrl.u32 %v437, 16
      %v542 = vrot.slane %v540, 7
      %v543 = vshll.u32 %v437, 16
      %v545 = vor.u32 %v542, %v543
      %v546 = vsel %vm462, %v538, %v545
      %v547 = vrot.slane %v542, 4
      %v549 = vshrl.u32 %v438, 16
      %v551 = vrot.slane %v549, 7
      %v552 = vshll.u32 %v438, 16
      %v554 = vor.u32 %v551, %v552
      %v555 = vrot.slane %v551, 4
      %v557 = vshrl.u32 %v439, 16
      %v559 = vrot.slane %v557, 7
      %v560 = vshll.u32 %v439, 16
      %v562 = vor.u32 %v559, %v560
      %v563 = vsel %vm462, %v555, %v562
      %v564 = vrot.slane %v559, 4
      %v566 = vshrl.u32 %v440, 16
      %v568 = vrot.slane %v566, 7
      %v569 = vshll.u32 %v440, 16
      %v571 = vor.u32 %v568, %v569
      %v572 = vrot.slane %v568, 4
      %v574 = vshrl.u32 %v441, 16
      %v576 = vrot.slane %v574, 7
      %v577 = vshll.u32 %v441, 16
      %v579 = vor.u32 %v576, %v577
      %v580 = vsel %vm462, %v572, %v579
      %v581 = vrot.slane %v576, 4
      %v583 = vshrl.u32 %v442, 16
      %v585 = vrot.slane %v583, 7
      %v586 = vshll.u32 %v442, 16
      %v588 = vor.u32 %v585, %v586
      %v589 = vrot.slane %v585, 4
      %v591 = vshrl.u32 %v443, 16
      %v593 = vrot.slane %v591, 7
      %v594 = vshll.u32 %v443, 16
      %v596 = vor.u32 %v593, %v594
      %v597 = vsel %vm462, %v589, %v596
      %v598 = vrot.slane %v593, 4
      %v600 = vshrl.u32 %v444, 16
      %v602 = vrot.slane %v600, 7
      %v603 = vshll.u32 %v444, 16
      %v605 = vor.u32 %v602, %v603
      %v606 = vrot.slane %v602, 4
      %v608 = vshrl.u32 %v445, 16
      %v610 = vrot.slane %v608, 7
      %v611 = vshll.u32 %v445, 16
      %v613 = vor.u32 %v610, %v611
      %v614 = vsel %vm462, %v606, %v613
      %v615 = vrot.slane %v610, 4
      %v617 = vshrl.u32 %v446, 16
      %v619 = vrot.slane %v617, 7
      %v620 = vshll.u32 %v446, 16
      %v622 = vor.u32 %v619, %v620
      %v623 = vrot.slane %v619, 4
      %v625 = vshrl.u32 %v447, 16
      %v627 = vrot.slane %v625, 7
      %v628 = vshll.u32 %v447, 16
      %v630 = vor.u32 %v627, %v628
      %v631 = vsel %vm462, %v623, %v630
      %v632 = vrot.slane %v627, 4
      %v634 = vshrl.u32 %v448, 16
      %v636 = vrot.slane %v634, 7
      %v637 = vshll.u32 %v448, 16
      %v639 = vor.u32 %v636, %v637
      %v640 = vrot.slane %v636, 4
      %v642 = vshrl.u32 %v449, 16
      %v644 = vrot.slane %v642, 7
      %v645 = vshll.u32 %v449, 16
      %v647 = vor.u32 %v644, %v645
      %v648 = vsel %vm462, %v640, %v647
      %v649 = vrot.slane %v644, 4
      %v651 = vshrl.u32 %v450, 16
      %v653 = vrot.slane %v651, 7
      %v654 = vshll.u32 %v450, 16
      %v656 = vor.u32 %v653, %v654
      %v657 = vrot.slane %v653, 4
      %v659 = vshrl.u32 %v451, 16
      %v661 = vrot.slane %v659, 7
      %v662 = vshll.u32 %v451, 16
      %v664 = vor.u32 %v661, %v662
      %v665 = vsel %vm462, %v657, %v664
      %v666 = vrot.slane %v661, 4
      %v668 = vshrl.u32 %v452, 16
      %v670 = vrot.slane %v668, 7
      %v671 = vshll.u32 %v452, 16
      %v673 = vor.u32 %v670, %v671
      %v674 = vrot.slane %v670, 4
      %v676 = vshrl.u32 %v453, 16
      %v678 = vrot.slane %v676, 7
      %v679 = vshll.u32 %v453, 16
      %v681 = vor.u32 %v678, %v679
      %v682 = vsel %vm462, %v674, %v681
      %v683 = vrot.slane %v678, 4
      %v685 = vshrl.u32 %v454, 16
      %v687 = vrot.slane %v685, 7
      %v688 = vshll.u32 %v454, 16
      %v690 = vor.u32 %v687, %v688
      %v691 = vrot.slane %v687, 4
      %v693 = vshrl.u32 %v455, 16
      %v695 = vrot.slane %v693, 7
      %v696 = vshll.u32 %v455, 16
      %v698 = vor.u32 %v695, %v696
      %v699 = vsel %vm462, %v691, %v698
      %v700 = vrot.slane %v695, 4
      %v702 = vshrl.u32 %v456, 16
      %v704 = vrot.slane %v702, 7
      %v705 = vshll.u32 %v456, 16
      %v707 = vor.u32 %v704, %v705
      %v708 = vrot.slane %v704, 4
      %v710 = vshrl.u32 %v457, 16
      %v712 = vrot.slane %v710, 7
      %v713 = vshll.u32 %v457, 16
      %v715 = vor.u32 %v712, %v713
      %v716 = vsel %vm462, %v708, %v715
      %v717 = vrot.slane %v712, 4
      %v719 = vshrl.u32 %v458, 16
      %v721 = vrot.slane %v719, 7
      %v722 = vshll.u32 %v458, 16
      %v724 = vor.u32 %v721, %v722
      %v725 = vrot.slane %v721, 4
      %v727 = vshrl.u32 %v459, 16
      %v729 = vrot.slane %v727, 7
      %v730 = vshll.u32 %v459, 16
      %v732 = vor.u32 %v729, %v730
      %v733 = vsel %vm462, %v725, %v732
      %v734 = vrot.slane %v729, 4
      %s783 = scalar_lea.vmem [#allocation2], 12
      %vm784 = vcmask 1043456
      %vm785 = vsmask.f32 7938
      %vm786 = vmand %vm784, %vm785
      %v787 = vld [vmem:[%s783] sm:$0xf]
      %v788 = vsel %vm786, %v469, %v787
      %789 = vst [vmem:[%s783] sm:$0xf] %v788
      %790 = vst [vmem:[%s783 + $0x4] sm:$0xf] %v478
      %vm791 = vcmask 1040384
      %vm792 = vmand %vm791, %vm460
      %v793 = vld [vmem:[%s783 + $0x8] sm:$0x1]
      %v794 = vsel %vm792, %v479, %v793
      %795 = vst [vmem:[%s783 + $0x8] sm:$0x1] %v794
      %v796 = vld [vmem:[%s783 + $0xc] sm:$0xf]
      %v797 = vsel %vm786, %v486, %v796
      %798 = vst [vmem:[%s783 + $0xc] sm:$0xf] %v797
      %799 = vst [vmem:[%s783 + $0x10] sm:$0xf] %v495
      %v800 = vld [vmem:[%s783 + $0x14] sm:$0x1]
      %v801 = vsel %vm792, %v496, %v800
      %802 = vst [vmem:[%s783 + $0x14] sm:$0x1] %v801
      %v803 = vld [vmem:[%s783 + $0x18] sm:$0xf]
      %v804 = vsel %vm786, %v503, %v803
      %805 = vst [vmem:[%s783 + $0x18] sm:$0xf] %v804
      %806 = vst [vmem:[%s783 + $0x1c] sm:$0xf] %v512
      %v807 = vld [vmem:[%s783 + $0x20] sm:$0x1]
      %v808 = vsel %vm792, %v513, %v807
      %809 = vst [vmem:[%s783 + $0x20] sm:$0x1] %v808
      %v810 = vld [vmem:[%s783 + $0x24] sm:$0xf]
      %v811 = vsel %vm786, %v520, %v810
      %812 = vst [vmem:[%s783 + $0x24] sm:$0xf] %v811
      %813 = vst [vmem:[%s783 + $0x28] sm:$0xf] %v529
      %v814 = vld [vmem:[%s783 + $0x2c] sm:$0x1]
      %v815 = vsel %vm792, %v530, %v814
      %816 = vst [vmem:[%s783 + $0x2c] sm:$0x1] %v815
      %v817 = vld [vmem:[%s783 + $0x30] sm:$0xf]
      %v818 = vsel %vm786, %v537, %v817
      %819 = vst [vmem:[%s783 + $0x30] sm:$0xf] %v818
      %820 = vst [vmem:[%s783 + $0x34] sm:$0xf] %v546
      %v821 = vld [vmem:[%s783 + $0x38] sm:$0x1]
      %v822 = vsel %vm792, %v547, %v821
      %823 = vst [vmem:[%s783 + $0x38] sm:$0x1] %v822
      %v824 = vld [vmem:[%s783 + $0x3c] sm:$0xf]
      %v825 = vsel %vm786, %v554, %v824
      %826 = vst [vmem:[%s783 + $0x3c] sm:$0xf] %v825
      %827 = vst [vmem:[%s783 + $0x40] sm:$0xf] %v563
      %v828 = vld [vmem:[%s783 + $0x44] sm:$0x1]
      %v829 = vsel %vm792, %v564, %v828
      %830 = vst [vmem:[%s783 + $0x44] sm:$0x1] %v829
      %v831 = vld [vmem:[%s783 + $0x48] sm:$0xf]
      %v832 = vsel %vm786, %v571, %v831
      %833 = vst [vmem:[%s783 + $0x48] sm:$0xf] %v832
      %834 = vst [vmem:[%s783 + $0x4c] sm:$0xf] %v580
      %v835 = vld [vmem:[%s783 + $0x50] sm:$0x1]
      %v836 = vsel %vm792, %v581, %v835
      %837 = vst [vmem:[%s783 + $0x50] sm:$0x1] %v836
      %v838 = vld [vmem:[%s783 + $0x54] sm:$0xf]
      %v839 = vsel %vm786, %v588, %v838
      %840 = vst [vmem:[%s783 + $0x54] sm:$0xf] %v839
      %841 = vst [vmem:[%s783 + $0x58] sm:$0xf] %v597
      %v842 = vld [vmem:[%s783 + $0x5c] sm:$0x1]
      %v843 = vsel %vm792, %v598, %v842
      %844 = vst [vmem:[%s783 + $0x5c] sm:$0x1] %v843
      %v845 = vld [vmem:[%s783 + $0x60] sm:$0xf]
      %v846 = vsel %vm786, %v605, %v845
      %847 = vst [vmem:[%s783 + $0x60] sm:$0xf] %v846
      %848 = vst [vmem:[%s783 + $0x64] sm:$0xf] %v614
      %v849 = vld [vmem:[%s783 + $0x68] sm:$0x1]
      %v850 = vsel %vm792, %v615, %v849
      %851 = vst [vmem:[%s783 + $0x68] sm:$0x1] %v850
      %v852 = vld [vmem:[%s783 + $0x6c] sm:$0xf]
      %v853 = vsel %vm786, %v622, %v852
      %854 = vst [vmem:[%s783 + $0x6c] sm:$0xf] %v853
      %855 = vst [vmem:[%s783 + $0x70] sm:$0xf] %v631
      %v856 = vld [vmem:[%s783 + $0x74] sm:$0x1]
      %v857 = vsel %vm792, %v632, %v856
      %858 = vst [vmem:[%s783 + $0x74] sm:$0x1] %v857
      %v859 = vld [vmem:[%s783 + $0x78] sm:$0xf]
      %v860 = vsel %vm786, %v639, %v859
      %861 = vst [vmem:[%s783 + $0x78] sm:$0xf] %v860
      %862 = vst [vmem:[%s783 + $0x7c] sm:$0xf] %v648
      %v863 = vld [vmem:[%s783 + $0x80] sm:$0x1]
      %v864 = vsel %vm792, %v649, %v863
      %865 = vst [vmem:[%s783 + $0x80] sm:$0x1] %v864
      %v866 = vld [vmem:[%s783 + $0x84] sm:$0xf]
      %v867 = vsel %vm786, %v656, %v866
      %868 = vst [vmem:[%s783 + $0x84] sm:$0xf] %v867
      %869 = vst [vmem:[%s783 + $0x88] sm:$0xf] %v665
      %v870 = vld [vmem:[%s783 + $0x8c] sm:$0x1]
      %v871 = vsel %vm792, %v666, %v870
      %872 = vst [vmem:[%s783 + $0x8c] sm:$0x1] %v871
      %v873 = vld [vmem:[%s783 + $0x90] sm:$0xf]
      %v874 = vsel %vm786, %v673, %v873
      %875 = vst [vmem:[%s783 + $0x90] sm:$0xf] %v874
      %876 = vst [vmem:[%s783 + $0x94] sm:$0xf] %v682
      %v877 = vld [vmem:[%s783 + $0x98] sm:$0x1]
      %v878 = vsel %vm792, %v683, %v877
      %879 = vst [vmem:[%s783 + $0x98] sm:$0x1] %v878
      %v880 = vld [vmem:[%s783 + $0x9c] sm:$0xf]
      %v881 = vsel %vm786, %v690, %v880
      %882 = vst [vmem:[%s783 + $0x9c] sm:$0xf] %v881
      %883 = vst [vmem:[%s783 + $0xa0] sm:$0xf] %v699
      %v884 = vld [vmem:[%s783 + $0xa4] sm:$0x1]
      %v885 = vsel %vm792, %v700, %v884
      %886 = vst [vmem:[%s783 + $0xa4] sm:$0x1] %v885
      %v887 = vld [vmem:[%s783 + $0xa8] sm:$0xf]
      %v888 = vsel %vm786, %v707, %v887
      %889 = vst [vmem:[%s783 + $0xa8] sm:$0xf] %v888
      %890 = vst [vmem:[%s783 + $0xac] sm:$0xf] %v716
      %v891 = vld [vmem:[%s783 + $0xb0] sm:$0x1]
      %v892 = vsel %vm792, %v717, %v891
      %893 = vst [vmem:[%s783 + $0xb0] sm:$0x1] %v892
      %v894 = vld [vmem:[%s783 + $0xb4] sm:$0xf]
      %v895 = vsel %vm786, %v724, %v894
      %896 = vst [vmem:[%s783 + $0xb4] sm:$0xf] %v895
      %897 = vst [vmem:[%s783 + $0xb8] sm:$0xf] %v733
      %v898 = vld [vmem:[%s783 + $0xbc] sm:$0x1]
      %v899 = vsel %vm792, %v734, %v898
      %900 = vst [vmem:[%s783 + $0xbc] sm:$0x1] %v899
      %901 = vst [vmem:[%s208] sm:$0xff] 0.0
      %902 = vst [vmem:[#allocation3] sm:$0xff] 0.0
      %903 = vst [vmem:[#allocation3 + $0x8] sm:$0xff] 0.0
      %904 = vst [vmem:[#allocation3 + $0x10] sm:$0xff] 0.0
      %905 = vst [vmem:[#allocation3 + $0x18] sm:$0xff] 0.0
      %906 = vst [vmem:[#allocation3 + $0x20] sm:$0xff] 0.0
      %907 = vst [vmem:[#allocation3 + $0x28] sm:$0xff] 0.0
      %908 = vst [vmem:[#allocation3 + $0x30] sm:$0xff] 0.0
      %909 = vst [vmem:[#allocation3 + $0x38] sm:$0xff] 0.0
      %910 = vst [vmem:[#allocation3 + $0x40] sm:$0xff] 0.0
      %911 = vst [vmem:[#allocation3 + $0x48] sm:$0xff] 0.0
      %912 = vst [vmem:[#allocation3 + $0x50] sm:$0xff] 0.0
      %913 = vst [vmem:[#allocation3 + $0x58] sm:$0xff] 0.0
      %914 = vst [vmem:[#allocation3 + $0x60] sm:$0xff] 0.0
      %915 = vst [vmem:[#allocation3 + $0x68] sm:$0xff] 0.0
      %916 = vst [vmem:[#allocation3 + $0x70] sm:$0xff] 0.0
      %917 = vst [vmem:[#allocation3 + $0x78] sm:$0xff] 0.0
      %918 = vst [vmem:[#allocation3 + $0x80] sm:$0xff] 0.0
      %919 = vst [vmem:[#allocation3 + $0x88] sm:$0xff] 0.0
      %920 = vst [vmem:[#allocation3 + $0x90] sm:$0xff] 0.0
      %921 = vst [vmem:[#allocation3 + $0x98] sm:$0xff] 0.0
      %922 = vst [vmem:[#allocation3 + $0xa0] sm:$0xff] 0.0
      %923 = vst [vmem:[#allocation3 + $0xa8] sm:$0xff] 0.0
      %924 = vst [vmem:[#allocation3 + $0xb0] sm:$0xff] 0.0
      %925 = vst [vmem:[#allocation3 + $0xb8] sm:$0xff] 0.0
      %926 = vst [vmem:[#allocation3 + $0xc0] sm:$0xff] 0.0
      %927 = vst [vmem:[#allocation3 + $0xc8] sm:$0xff] 0.0
      %928 = vst [vmem:[#allocation3 + $0xd0] sm:$0xff] 0.0
      %929 = vst [vmem:[#allocation3 + $0xd8] sm:$0xff] 0.0
      %930 = vst [vmem:[#allocation3 + $0xe0] sm:$0xff] 0.0
      %931 = vst [vmem:[#allocation3 + $0xe8] sm:$0xff] 0.0
      %932 = vst [vmem:[#allocation3 + $0xf0] sm:$0xff] 0.0
      %933 = vst [vmem:[#allocation3 + $0xf8] sm:$0xff] 0.0
      %s934 = smul.u32 0, 3
      %s935 = smul.addr %s934, 4
      %s936 = scalar_lea.vmem [#allocation2], %s935
      %v937 = vld [vmem:[%s936] sm:$0xf]
      %v938 = vld [vmem:[%s936 + $0x4] sm:$0xf]
      %v939 = vld [vmem:[%s936 + $0xc] sm:$0xf]
      %v940 = vld [vmem:[%s936 + $0x10] sm:$0xf]
      %v941 = vld [vmem:[%s936 + $0x18] sm:$0xf]
      %v942 = vld [vmem:[%s936 + $0x1c] sm:$0xf]
      %v943 = vld [vmem:[%s936 + $0x24] sm:$0xf]
      %v944 = vld [vmem:[%s936 + $0x28] sm:$0xf]
      %v945 = vld [vmem:[%s936 + $0x30] sm:$0xf]
      %v946 = vld [vmem:[%s936 + $0x34] sm:$0xf]
      %v947 = vld [vmem:[%s936 + $0x3c] sm:$0xf]
      %v948 = vld [vmem:[%s936 + $0x40] sm:$0xf]
      %v949 = vld [vmem:[%s936 + $0x48] sm:$0xf]
      %v950 = vld [vmem:[%s936 + $0x4c] sm:$0xf]
      %v951 = vld [vmem:[%s936 + $0x54] sm:$0xf]
      %v952 = vld [vmem:[%s936 + $0x58] sm:$0xf]
      %v953 = vld [vmem:[%s936 + $0x60] sm:$0xf]
      %v954 = vld [vmem:[%s936 + $0x64] sm:$0xf]
      %v955 = vld [vmem:[%s936 + $0x6c] sm:$0xf]
      %v956 = vld [vmem:[%s936 + $0x70] sm:$0xf]
      %v957 = vld [vmem:[%s936 + $0x78] sm:$0xf]
      %v958 = vld [vmem:[%s936 + $0x7c] sm:$0xf]
      %v959 = vld [vmem:[%s936 + $0x84] sm:$0xf]
      %v960 = vld [vmem:[%s936 + $0x88] sm:$0xf]
      %v961 = vld [vmem:[%s936 + $0x90] sm:$0xf]
      %v962 = vld [vmem:[%s936 + $0x94] sm:$0xf]
      %v963 = vld [vmem:[%s936 + $0x9c] sm:$0xf]
      %v964 = vld [vmem:[%s936 + $0xa0] sm:$0xf]
      %v965 = vld [vmem:[%s936 + $0xa8] sm:$0xf]
      %v966 = vld [vmem:[%s936 + $0xac] sm:$0xf]
      %v967 = vld [vmem:[%s936 + $0xb4] sm:$0xf]
      %v968 = vld [vmem:[%s936 + $0xb8] sm:$0xf]
      %v969 = vld [vmem:[#allocation3] sm:$0xff]
      %v970 = vld [vmem:[#allocation3 + $0x8] sm:$0xff]
      %v971 = vld [vmem:[#allocation3 + $0x10] sm:$0xff]
      %v972 = vld [vmem:[#allocation3 + $0x18] sm:$0xff]
      %v973 = vld [vmem:[#allocation3 + $0x20] sm:$0xff]
      %v974 = vld [vmem:[#allocation3 + $0x28] sm:$0xff]
      %v975 = vld [vmem:[#allocation3 + $0x30] sm:$0xff]
      %v976 = vld [vmem:[#allocation3 + $0x38] sm:$0xff]
      %v977 = vld [vmem:[#allocation3 + $0x40] sm:$0xff]
      %v978 = vld [vmem:[#allocation3 + $0x48] sm:$0xff]
      %v979 = vld [vmem:[#allocation3 + $0x50] sm:$0xff]
      %v980 = vld [vmem:[#allocation3 + $0x58] sm:$0xff]
      %v981 = vld [vmem:[#allocation3 + $0x60] sm:$0xff]
      %v982 = vld [vmem:[#allocation3 + $0x68] sm:$0xff]
      %v983 = vld [vmem:[#allocation3 + $0x70] sm:$0xff]
      %v984 = vld [vmem:[#allocation3 + $0x78] sm:$0xff]
      %v985 = vld [vmem:[#allocation3 + $0x80] sm:$0xff]
      %v986 = vld [vmem:[#allocation3 + $0x88] sm:$0xff]
      %v987 = vld [vmem:[#allocation3 + $0x90] sm:$0xff]
      %v988 = vld [vmem:[#allocation3 + $0x98] sm:$0xff]
      %v989 = vld [vmem:[#allocation3 + $0xa0] sm:$0xff]
      %v990 = vld [vmem:[#allocation3 + $0xa8] sm:$0xff]
      %v991 = vld [vmem:[#allocation3 + $0xb0] sm:$0xff]
      %v992 = vld [vmem:[#allocation3 + $0xb8] sm:$0xff]
      %v993 = vld [vmem:[#allocation3 + $0xc0] sm:$0xff]
      %v994 = vld [vmem:[#allocation3 + $0xc8] sm:$0xff]
      %v995 = vld [vmem:[#allocation3 + $0xd0] sm:$0xff]
      %v996 = vld [vmem:[#allocation3 + $0xd8] sm:$0xff]
      %v997 = vld [vmem:[#allocation3 + $0xe0] sm:$0xff]
      %v998 = vld [vmem:[#allocation3 + $0xe8] sm:$0xff]
      %v999 = vld [vmem:[#allocation3 + $0xf0] sm:$0xff]
      %v1000 = vld [vmem:[#allocation3 + $0xf8] sm:$0xff]
      %v1001 = vld [vmem:[%s2] sm:$0xf]
      %v1002 = vld [vmem:[%s2 + $0x4] sm:$0xf]
      %v1003 = vld [vmem:[%s2 + $0x8] sm:$0xf]
      %v1004 = vld [vmem:[%s2 + $0xc] sm:$0xf]
      %v1005 = vld [vmem:[%s2 + $0x10] sm:$0xf]
      %v1006 = vld [vmem:[%s2 + $0x14] sm:$0xf]
      %v1007 = vld [vmem:[%s2 + $0x18] sm:$0xf]
      %v1008 = vld [vmem:[%s2 + $0x1c] sm:$0xf]
      %v1009 = vld [vmem:[%s2 + $0x20] sm:$0xf]
      %v1010 = vld [vmem:[%s2 + $0x24] sm:$0xf]
      %v1011 = vld [vmem:[%s2 + $0x28] sm:$0xf]
      %v1012 = vld [vmem:[%s2 + $0x2c] sm:$0xf]
      %v1013 = vld [vmem:[%s2 + $0x30] sm:$0xf]
      %v1014 = vld [vmem:[%s2 + $0x34] sm:$0xf]
      %v1015 = vld [vmem:[%s2 + $0x38] sm:$0xf]
      %v1016 = vld [vmem:[%s2 + $0x3c] sm:$0xf]
      %v1049 = vunpack.c.l.b16 %v937
      %v1050 = vunpack.c.l.b16 %v938
      %v1051 = vunpack.c.l.b16 %v939
      %v1052 = vunpack.c.l.b16 %v940
      %v1053 = vunpack.c.l.b16 %v941
      %v1054 = vunpack.c.l.b16 %v942
      %v1055 = vunpack.c.l.b16 %v943
      %v1056 = vunpack.c.l.b16 %v944
      %v1057 = vunpack.c.l.b16 %v945
      %v1058 = vunpack.c.l.b16 %v946
      %v1059 = vunpack.c.l.b16 %v947
      %v1060 = vunpack.c.l.b16 %v948
      %v1061 = vunpack.c.l.b16 %v949
      %v1062 = vunpack.c.l.b16 %v950
      %v1063 = vunpack.c.l.b16 %v951
      %v1064 = vunpack.c.l.b16 %v952
      %v1065 = vunpack.c.l.b16 %v953
      %v1066 = vunpack.c.l.b16 %v954
      %v1067 = vunpack.c.l.b16 %v955
      %v1068 = vunpack.c.l.b16 %v956
      %v1069 = vunpack.c.l.b16 %v957
      %v1070 = vunpack.c.l.b16 %v958
      %v1071 = vunpack.c.l.b16 %v959
      %v1072 = vunpack.c.l.b16 %v960
      %v1073 = vunpack.c.l.b16 %v961
      %v1074 = vunpack.c.l.b16 %v962
      %v1075 = vunpack.c.l.b16 %v963
      %v1076 = vunpack.c.l.b16 %v964
      %v1077 = vunpack.c.l.b16 %v965
      %v1078 = vunpack.c.l.b16 %v966
      %v1079 = vunpack.c.l.b16 %v967
      %v1080 = vunpack.c.l.b16 %v968
      %v1081 = vpack.c.b16 %v1050, %v1049
      %v1082 = vpack.c.b16 %v1052, %v1051
      %v1083 = vpack.c.b16 %v1054, %v1053
      %v1084 = vpack.c.b16 %v1056, %v1055
      %v1085 = vpack.c.b16 %v1058, %v1057
      %v1086 = vpack.c.b16 %v1060, %v1059
      %v1087 = vpack.c.b16 %v1062, %v1061
      %v1088 = vpack.c.b16 %v1064, %v1063
      %v1089 = vpack.c.b16 %v1066, %v1065
      %v1090 = vpack.c.b16 %v1068, %v1067
      %v1091 = vpack.c.b16 %v1070, %v1069
      %v1092 = vpack.c.b16 %v1072, %v1071
      %v1093 = vpack.c.b16 %v1074, %v1073
      %v1094 = vpack.c.b16 %v1076, %v1075
      %v1095 = vpack.c.b16 %v1078, %v1077
      %v1096 = vpack.c.b16 %v1080, %v1079
      %v1129 = vunpack.c.l.b16 %v1001
      %v1130 = vunpack.c.l.b16 %v1002
      %v1131 = vunpack.c.l.b16 %v1003
      %v1132 = vunpack.c.l.b16 %v1004
      %v1133 = vunpack.c.l.b16 %v1005
      %v1134 = vunpack.c.l.b16 %v1006
      %v1135 = vunpack.c.l.b16 %v1007
      %v1136 = vunpack.c.l.b16 %v1008
      %v1137 = vunpack.c.l.b16 %v1009
      %v1138 = vunpack.c.l.b16 %v1010
      %v1139 = vunpack.c.l.b16 %v1011
      %v1140 = vunpack.c.l.b16 %v1012
      %v1141 = vunpack.c.l.b16 %v1013
      %v1142 = vunpack.c.l.b16 %v1014
      %v1143 = vunpack.c.l.b16 %v1015
      %v1144 = vunpack.c.l.b16 %v1016
      %v1145 = vpack.c.b16 %v1130, %v1129
      %v1146 = vpack.c.b16 %v1132, %v1131
      %v1147 = vpack.c.b16 %v1134, %v1133
      %v1148 = vpack.c.b16 %v1136, %v1135
      %v1149 = vpack.c.b16 %v1138, %v1137
      %v1150 = vpack.c.b16 %v1140, %v1139
      %v1151 = vpack.c.b16 %v1142, %v1141
      %v1152 = vpack.c.b16 %v1144, %v1143
      %1161 = vmatpush.bf16.msra.mxu0 %v1152
      %1162 = vmatpush.bf16.msra.mxu0 %v1151
      %1163 = vmatpush.bf16.msra.mxu0 %v1150
      %1164 = vmatpush.bf16.msra.mxu0 %v1149
      %1165 = vmatpush.bf16.msra.mxu0 %v1148
      %1166 = vmatpush.bf16.msra.mxu0 %v1147
      %1167 = vmatpush.bf16.msra.mxu0 %v1146
      %1168 = vmatpush.bf16.msra.mxu0 %v1145
      %1169 = vmatmul.bf16.gmra.mxu0 %v1081
      %v1170 = vpop.f32.mrf.mxu0
      %v1171 = vadd.f32 0.0, %v1170
      %v1172 = vpop.f32.mrf.mxu0
      %v1173 = vadd.f32 0.0, %v1172
      %1174 = vmatmul.bf16.gmra.mxu0 %v1082
      %v1175 = vpop.f32.mrf.mxu0
      %v1176 = vadd.f32 0.0, %v1175
      %v1177 = vpop.f32.mrf.mxu0
      %v1178 = vadd.f32 0.0, %v1177
      %1179 = vmatmul.bf16.gmra.mxu0 %v1083
      %v1180 = vpop.f32.mrf.mxu0
      %v1181 = vadd.f32 0.0, %v1180
      %v1182 = vpop.f32.mrf.mxu0
      %v1183 = vadd.f32 0.0, %v1182
      %1184 = vmatmul.bf16.gmra.mxu0 %v1084
      %v1185 = vpop.f32.mrf.mxu0
      %v1186 = vadd.f32 0.0, %v1185
      %v1187 = vpop.f32.mrf.mxu0
      %v1188 = vadd.f32 0.0, %v1187
      %1189 = vmatmul.bf16.gmra.mxu0 %v1085
      %v1190 = vpop.f32.mrf.mxu0
      %v1191 = vadd.f32 0.0, %v1190
      %v1192 = vpop.f32.mrf.mxu0
      %v1193 = vadd.f32 0.0, %v1192
      %1194 = vmatmul.bf16.gmra.mxu0 %v1086
      %v1195 = vpop.f32.mrf.mxu0
      %v1196 = vadd.f32 0.0, %v1195
      %v1197 = vpop.f32.mrf.mxu0
      %v1198 = vadd.f32 0.0, %v1197
      %1199 = vmatmul.bf16.gmra.mxu0 %v1087
      %v1200 = vpop.f32.mrf.mxu0
      %v1201 = vadd.f32 0.0, %v1200
      %v1202 = vpop.f32.mrf.mxu0
      %v1203 = vadd.f32 0.0, %v1202
      %1204 = vmatmul.bf16.gmra.mxu0 %v1088
      %v1205 = vpop.f32.mrf.mxu0
      %v1206 = vadd.f32 0.0, %v1205
      %v1207 = vpop.f32.mrf.mxu0
      %v1208 = vadd.f32 0.0, %v1207
      %1209 = vmatmul.bf16.gmra.mxu0 %v1089
      %v1210 = vpop.f32.mrf.mxu0
      %v1211 = vadd.f32 0.0, %v1210
      %v1212 = vpop.f32.mrf.mxu0
      %v1213 = vadd.f32 0.0, %v1212
      %1214 = vmatmul.bf16.gmra.mxu0 %v1090
      %v1215 = vpop.f32.mrf.mxu0
      %v1216 = vadd.f32 0.0, %v1215
      %v1217 = vpop.f32.mrf.mxu0
      %v1218 = vadd.f32 0.0, %v1217
      %1219 = vmatmul.bf16.gmra.mxu0 %v1091
      %v1220 = vpop.f32.mrf.mxu0
      %v1221 = vadd.f32 0.0, %v1220
      %v1222 = vpop.f32.mrf.mxu0
      %v1223 = vadd.f32 0.0, %v1222
      %1224 = vmatmul.bf16.gmra.mxu0 %v1092
      %v1225 = vpop.f32.mrf.mxu0
      %v1226 = vadd.f32 0.0, %v1225
      %v1227 = vpop.f32.mrf.mxu0
      %v1228 = vadd.f32 0.0, %v1227
      %1229 = vmatmul.bf16.gmra.mxu0 %v1093
      %v1230 = vpop.f32.mrf.mxu0
      %v1231 = vadd.f32 0.0, %v1230
      %v1232 = vpop.f32.mrf.mxu0
      %v1233 = vadd.f32 0.0, %v1232
      %1234 = vmatmul.bf16.gmra.mxu0 %v1094
      %v1235 = vpop.f32.mrf.mxu0
      %v1236 = vadd.f32 0.0, %v1235
      %v1237 = vpop.f32.mrf.mxu0
      %v1238 = vadd.f32 0.0, %v1237
      %1239 = vmatmul.bf16.gmra.mxu0 %v1095
      %v1240 = vpop.f32.mrf.mxu0
      %v1241 = vadd.f32 0.0, %v1240
      %v1242 = vpop.f32.mrf.mxu0
      %v1243 = vadd.f32 0.0, %v1242
      %1244 = vmatmul.bf16.gmra.mxu0 %v1096
      %v1245 = vpop.f32.mrf.mxu0
      %v1246 = vadd.f32 0.0, %v1245
      %v1247 = vpop.f32.mrf.mxu0
      %v1248 = vadd.f32 0.0, %v1247
      %1249 = vdwg.mxu0
      %v1250 = vadd.f32 %v969, %v1171
      %v1251 = vadd.f32 %v970, %v1173
      %v1252 = vadd.f32 %v971, %v1176
      %v1253 = vadd.f32 %v972, %v1178
      %v1254 = vadd.f32 %v973, %v1181
      %v1255 = vadd.f32 %v974, %v1183
      %v1256 = vadd.f32 %v975, %v1186
      %v1257 = vadd.f32 %v976, %v1188
      %v1258 = vadd.f32 %v977, %v1191
      %v1259 = vadd.f32 %v978, %v1193
      %v1260 = vadd.f32 %v979, %v1196
      %v1261 = vadd.f32 %v980, %v1198
      %v1262 = vadd.f32 %v981, %v1201
      %v1263 = vadd.f32 %v982, %v1203
      %v1264 = vadd.f32 %v983, %v1206
      %v1265 = vadd.f32 %v984, %v1208
      %v1266 = vadd.f32 %v985, %v1211
      %v1267 = vadd.f32 %v986, %v1213
      %v1268 = vadd.f32 %v987, %v1216
      %v1269 = vadd.f32 %v988, %v1218
      %v1270 = vadd.f32 %v989, %v1221
      %v1271 = vadd.f32 %v990, %v1223
      %v1272 = vadd.f32 %v991, %v1226
      %v1273 = vadd.f32 %v992, %v1228
      %v1274 = vadd.f32 %v993, %v1231
      %v1275 = vadd.f32 %v994, %v1233
      %v1276 = vadd.f32 %v995, %v1236
      %v1277 = vadd.f32 %v996, %v1238
      %v1278 = vadd.f32 %v997, %v1241
      %v1279 = vadd.f32 %v998, %v1243
      %v1280 = vadd.f32 %v999, %v1246
      %v1281 = vadd.f32 %v1000, %v1248
      %1282 = vst [vmem:[#allocation3] sm:$0xff] %v1250
      %1283 = vst [vmem:[#allocation3 + $0x8] sm:$0xff] %v1251
      %1284 = vst [vmem:[#allocation3 + $0x10] sm:$0xff] %v1252
      %1285 = vst [vmem:[#allocation3 + $0x18] sm:$0xff] %v1253
      %1286 = vst [vmem:[#allocation3 + $0x20] sm:$0xff] %v1254
      %1287 = vst [vmem:[#allocation3 + $0x28] sm:$0xff] %v1255
      %1288 = vst [vmem:[#allocation3 + $0x30] sm:$0xff] %v1256
      %1289 = vst [vmem:[#allocation3 + $0x38] sm:$0xff] %v1257
      %1290 = vst [vmem:[#allocation3 + $0x40] sm:$0xff] %v1258
      %1291 = vst [vmem:[#allocation3 + $0x48] sm:$0xff] %v1259
      %1292 = vst [vmem:[#allocation3 + $0x50] sm:$0xff] %v1260
      %1293 = vst [vmem:[#allocation3 + $0x58] sm:$0xff] %v1261
      %1294 = vst [vmem:[#allocation3 + $0x60] sm:$0xff] %v1262
      %1295 = vst [vmem:[#allocation3 + $0x68] sm:$0xff] %v1263
      %1296 = vst [vmem:[#allocation3 + $0x70] sm:$0xff] %v1264
      %1297 = vst [vmem:[#allocation3 + $0x78] sm:$0xff] %v1265
      %1298 = vst [vmem:[#allocation3 + $0x80] sm:$0xff] %v1266
      %1299 = vst [vmem:[#allocation3 + $0x88] sm:$0xff] %v1267
      %1300 = vst [vmem:[#allocation3 + $0x90] sm:$0xff] %v1268
      %1301 = vst [vmem:[#allocation3 + $0x98] sm:$0xff] %v1269
      %1302 = vst [vmem:[#allocation3 + $0xa0] sm:$0xff] %v1270
      %1303 = vst [vmem:[#allocation3 + $0xa8] sm:$0xff] %v1271
      %1304 = vst [vmem:[#allocation3 + $0xb0] sm:$0xff] %v1272
      %1305 = vst [vmem:[#allocation3 + $0xb8] sm:$0xff] %v1273
      %1306 = vst [vmem:[#allocation3 + $0xc0] sm:$0xff] %v1274
      %1307 = vst [vmem:[#allocation3 + $0xc8] sm:$0xff] %v1275
      %1308 = vst [vmem:[#allocation3 + $0xd0] sm:$0xff] %v1276
      %1309 = vst [vmem:[#allocation3 + $0xd8] sm:$0xff] %v1277
      %1310 = vst [vmem:[#allocation3 + $0xe0] sm:$0xff] %v1278
      %1311 = vst [vmem:[#allocation3 + $0xe8] sm:$0xff] %v1279
      %1312 = vst [vmem:[#allocation3 + $0xf0] sm:$0xff] %v1280
      %1313 = vst [vmem:[#allocation3 + $0xf8] sm:$0xff] %v1281
      %v1314 = vld [vmem:[%s936] sm:$0xf]
      %v1315 = vld [vmem:[%s936 + $0x4] sm:$0xf]
      %v1316 = vld [vmem:[%s936 + $0x8] sm:$0x1]
      %v1317 = vld [vmem:[%s936 + $0xc] sm:$0xf]
      %v1318 = vld [vmem:[%s936 + $0x10] sm:$0xf]
      %v1319 = vld [vmem:[%s936 + $0x14] sm:$0x1]
      %v1320 = vld [vmem:[%s936 + $0x18] sm:$0xf]
      %v1321 = vld [vmem:[%s936 + $0x1c] sm:$0xf]
      %v1322 = vld [vmem:[%s936 + $0x20] sm:$0x1]
      %v1323 = vld [vmem:[%s936 + $0x24] sm:$0xf]
      %v1324 = vld [vmem:[%s936 + $0x28] sm:$0xf]
      %v1325 = vld [vmem:[%s936 + $0x2c] sm:$0x1]
      %v1326 = vld [vmem:[%s936 + $0x30] sm:$0xf]
      %v1327 = vld [vmem:[%s936 + $0x34] sm:$0xf]
      %v1328 = vld [vmem:[%s936 + $0x38] sm:$0x1]
      %v1329 = vld [vmem:[%s936 + $0x3c] sm:$0xf]
      %v1330 = vld [vmem:[%s936 + $0x40] sm:$0xf]
      %v1331 = vld [vmem:[%s936 + $0x44] sm:$0x1]
      %v1332 = vld [vmem:[%s936 + $0x48] sm:$0xf]
      %v1333 = vld [vmem:[%s936 + $0x4c] sm:$0xf]
      %v1334 = vld [vmem:[%s936 + $0x50] sm:$0x1]
      %v1335 = vld [vmem:[%s936 + $0x54] sm:$0xf]
      %v1336 = vld [vmem:[%s936 + $0x58] sm:$0xf]
      %v1337 = vld [vmem:[%s936 + $0x5c] sm:$0x1]
      %v1338 = vld [vmem:[%s936 + $0x60] sm:$0xf]
      %v1339 = vld [vmem:[%s936 + $0x64] sm:$0xf]
      %v1340 = vld [vmem:[%s936 + $0x68] sm:$0x1]
      %v1341 = vld [vmem:[%s936 + $0x6c] sm:$0xf]
      %v1342 = vld [vmem:[%s936 + $0x70] sm:$0xf]
      %v1343 = vld [vmem:[%s936 + $0x74] sm:$0x1]
      %v1344 = vld [vmem:[%s936 + $0x78] sm:$0xf]
      %v1345 = vld [vmem:[%s936 + $0x7c] sm:$0xf]
      %v1346 = vld [vmem:[%s936 + $0x80] sm:$0x1]
      %v1347 = vld [vmem:[%s936 + $0x84] sm:$0xf]
      %v1348 = vld [vmem:[%s936 + $0x88] sm:$0xf]
      %v1349 = vld [vmem:[%s936 + $0x8c] sm:$0x1]
      %v1350 = vld [vmem:[%s936 + $0x90] sm:$0xf]
      %v1351 = vld [vmem:[%s936 + $0x94] sm:$0xf]
      %v1352 = vld [vmem:[%s936 + $0x98] sm:$0x1]
      %v1353 = vld [vmem:[%s936 + $0x9c] sm:$0xf]
      %v1354 = vld [vmem:[%s936 + $0xa0] sm:$0xf]
      %v1355 = vld [vmem:[%s936 + $0xa4] sm:$0x1]
      %v1356 = vld [vmem:[%s936 + $0xa8] sm:$0xf]
      %v1357 = vld [vmem:[%s936 + $0xac] sm:$0xf]
      %v1358 = vld [vmem:[%s936 + $0xb0] sm:$0x1]
      %v1359 = vld [vmem:[%s936 + $0xb4] sm:$0xf]
      %v1360 = vld [vmem:[%s936 + $0xb8] sm:$0xf]
      %v1361 = vld [vmem:[%s936 + $0xbc] sm:$0x1]
      %v1362 = vld [vmem:[#allocation3] sm:$0xff]
      %v1363 = vld [vmem:[#allocation3 + $0x8] sm:$0xff]
      %v1364 = vld [vmem:[#allocation3 + $0x10] sm:$0xff]
      %v1365 = vld [vmem:[#allocation3 + $0x18] sm:$0xff]
      %v1366 = vld [vmem:[#allocation3 + $0x20] sm:$0xff]
      %v1367 = vld [vmem:[#allocation3 + $0x28] sm:$0xff]
      %v1368 = vld [vmem:[#allocation3 + $0x30] sm:$0xff]
      %v1369 = vld [vmem:[#allocation3 + $0x38] sm:$0xff]
      %v1370 = vld [vmem:[#allocation3 + $0x40] sm:$0xff]
      %v1371 = vld [vmem:[#allocation3 + $0x48] sm:$0xff]
      %v1372 = vld [vmem:[#allocation3 + $0x50] sm:$0xff]
      %v1373 = vld [vmem:[#allocation3 + $0x58] sm:$0xff]
      %v1374 = vld [vmem:[#allocation3 + $0x60] sm:$0xff]
      %v1375 = vld [vmem:[#allocation3 + $0x68] sm:$0xff]
      %v1376 = vld [vmem:[#allocation3 + $0x70] sm:$0xff]
      %v1377 = vld [vmem:[#allocation3 + $0x78] sm:$0xff]
      %v1378 = vld [vmem:[#allocation3 + $0x80] sm:$0xff]
      %v1379 = vld [vmem:[#allocation3 + $0x88] sm:$0xff]
      %v1380 = vld [vmem:[#allocation3 + $0x90] sm:$0xff]
      %v1381 = vld [vmem:[#allocation3 + $0x98] sm:$0xff]
      %v1382 = vld [vmem:[#allocation3 + $0xa0] sm:$0xff]
      %v1383 = vld [vmem:[#allocation3 + $0xa8] sm:$0xff]
      %v1384 = vld [vmem:[#allocation3 + $0xb0] sm:$0xff]
      %v1385 = vld [vmem:[#allocation3 + $0xb8] sm:$0xff]
      %v1386 = vld [vmem:[#allocation3 + $0xc0] sm:$0xff]
      %v1387 = vld [vmem:[#allocation3 + $0xc8] sm:$0xff]
      %v1388 = vld [vmem:[#allocation3 + $0xd0] sm:$0xff]
      %v1389 = vld [vmem:[#allocation3 + $0xd8] sm:$0xff]
      %v1390 = vld [vmem:[#allocation3 + $0xe0] sm:$0xff]
      %v1391 = vld [vmem:[#allocation3 + $0xe8] sm:$0xff]
      %v1392 = vld [vmem:[#allocation3 + $0xf0] sm:$0xff]
      %v1393 = vld [vmem:[#allocation3 + $0xf8] sm:$0xff]
      %vm1394 = vsmask.f32 3328
      %vm1395 = vsmask.f32 7440
      %vm1396 = vmor %vm1394, %vm1395
      %v1398 = vshrl.u32 %v1314, 16
      %v1400 = vrot.slane %v1398, 4
      %v1401 = vshll.u32 %v1314, 16
      %v1403 = vrot.slane %v1401, 5
      %v1404 = vor.u32 %v1400, %v1403
      %v1405 = vrot.slane %v1404, 4
      %v1407 = vshll.u32 %v1315, 16
      %v1409 = vrot.slane %v1407, 5
      %v1410 = vsel %vm1396, %v1405, %v1409
      %v1411 = vshrl.u32 %v1315, 16
      %v1413 = vrot.slane %v1411, 4
      %v1414 = vor.u32 %v1413, %v1409
      %v1415 = vrot.slane %v1414, 4
      %v1417 = vshll.u32 %v1316, 16
      %v1419 = vrot.slane %v1417, 5
      %v1420 = vsel %vm1396, %v1415, %v1419
      %v1422 = vshrl.u32 %v1317, 16
      %v1424 = vrot.slane %v1422, 4
      %v1425 = vshll.u32 %v1317, 16
      %v1427 = vrot.slane %v1425, 5
      %v1428 = vor.u32 %v1424, %v1427
      %v1429 = vrot.slane %v1428, 4
      %v1431 = vshll.u32 %v1318, 16
      %v1433 = vrot.slane %v1431, 5
      %v1434 = vsel %vm1396, %v1429, %v1433
      %v1435 = vshrl.u32 %v1318, 16
      %v1437 = vrot.slane %v1435, 4
      %v1438 = vor.u32 %v1437, %v1433
      %v1439 = vrot.slane %v1438, 4
      %v1441 = vshll.u32 %v1319, 16
      %v1443 = vrot.slane %v1441, 5
      %v1444 = vsel %vm1396, %v1439, %v1443
      %v1446 = vshrl.u32 %v1320, 16
      %v1448 = vrot.slane %v1446, 4
      %v1449 = vshll.u32 %v1320, 16
      %v1451 = vrot.slane %v1449, 5
      %v1452 = vor.u32 %v1448, %v1451
      %v1453 = vrot.slane %v1452, 4
      %v1455 = vshll.u32 %v1321, 16
      %v1457 = vrot.slane %v1455, 5
      %v1458 = vsel %vm1396, %v1453, %v1457
      %v1459 = vshrl.u32 %v1321, 16
      %v1461 = vrot.slane %v1459, 4
      %v1462 = vor.u32 %v1461, %v1457
      %v1463 = vrot.slane %v1462, 4
      %v1465 = vshll.u32 %v1322, 16
      %v1467 = vrot.slane %v1465, 5
      %v1468 = vsel %vm1396, %v1463, %v1467
      %v1470 = vshrl.u32 %v1323, 16
      %v1472 = vrot.slane %v1470, 4
      %v1473 = vshll.u32 %v1323, 16
      %v1475 = vrot.slane %v1473, 5
      %v1476 = vor.u32 %v1472, %v1475
      %v1477 = vrot.slane %v1476, 4
      %v1479 = vshll.u32 %v1324, 16
      %v1481 = vrot.slane %v1479, 5
      %v1482 = vsel %vm1396, %v1477, %v1481
      %v1483 = vshrl.u32 %v1324, 16
      %v1485 = vrot.slane %v1483, 4
      %v1486 = vor.u32 %v1485, %v1481
      %v1487 = vrot.slane %v1486, 4
      %v1489 = vshll.u32 %v1325, 16
      %v1491 = vrot.slane %v1489, 5
      %v1492 = vsel %vm1396, %v1487, %v1491
      %v1494 = vshrl.u32 %v1326, 16
      %v1496 = vrot.slane %v1494, 4
      %v1497 = vshll.u32 %v1326, 16
      %v1499 = vrot.slane %v1497, 5
      %v1500 = vor.u32 %v1496, %v1499
      %v1501 = vrot.slane %v1500, 4
      %v1503 = vshll.u32 %v1327, 16
      %v1505 = vrot.slane %v1503, 5
      %v1506 = vsel %vm1396, %v1501, %v1505
      %v1507 = vshrl.u32 %v1327, 16
      %v1509 = vrot.slane %v1507, 4
      %v1510 = vor.u32 %v1509, %v1505
      %v1511 = vrot.slane %v1510, 4
      %v1513 = vshll.u32 %v1328, 16
      %v1515 = vrot.slane %v1513, 5
      %v1516 = vsel %vm1396, %v1511, %v1515
      %v1518 = vshrl.u32 %v1329, 16
      %v1520 = vrot.slane %v1518, 4
      %v1521 = vshll.u32 %v1329, 16
      %v1523 = vrot.slane %v1521, 5
      %v1524 = vor.u32 %v1520, %v1523
      %v1525 = vrot.slane %v1524, 4
      %v1527 = vshll.u32 %v1330, 16
      %v1529 = vrot.slane %v1527, 5
      %v1530 = vsel %vm1396, %v1525, %v1529
      %v1531 = vshrl.u32 %v1330, 16
      %v1533 = vrot.slane %v1531, 4
      %v1534 = vor.u32 %v1533, %v1529
      %v1535 = vrot.slane %v1534, 4
      %v1537 = vshll.u32 %v1331, 16
      %v1539 = vrot.slane %v1537, 5
      %v1540 = vsel %vm1396, %v1535, %v1539
      %v1542 = vshrl.u32 %v1332, 16
      %v1544 = vrot.slane %v1542, 4
      %v1545 = vshll.u32 %v1332, 16
      %v1547 = vrot.slane %v1545, 5
      %v1548 = vor.u32 %v1544, %v1547
      %v1549 = vrot.slane %v1548, 4
      %v1551 = vshll.u32 %v1333, 16
      %v1553 = vrot.slane %v1551, 5
      %v1554 = vsel %vm1396, %v1549, %v1553
      %v1555 = vshrl.u32 %v1333, 16
      %v1557 = vrot.slane %v1555, 4
      %v1558 = vor.u32 %v1557, %v1553
      %v1559 = vrot.slane %v1558, 4
      %v1561 = vshll.u32 %v1334, 16
      %v1563 = vrot.slane %v1561, 5
      %v1564 = vsel %vm1396, %v1559, %v1563
      %v1566 = vshrl.u32 %v1335, 16
      %v1568 = vrot.slane %v1566, 4
      %v1569 = vshll.u32 %v1335, 16
      %v1571 = vrot.slane %v1569, 5
      %v1572 = vor.u32 %v1568, %v1571
      %v1573 = vrot.slane %v1572, 4
      %v1575 = vshll.u32 %v1336, 16
      %v1577 = vrot.slane %v1575, 5
      %v1578 = vsel %vm1396, %v1573, %v1577
      %v1579 = vshrl.u32 %v1336, 16
      %v1581 = vrot.slane %v1579, 4
      %v1582 = vor.u32 %v1581, %v1577
      %v1583 = vrot.slane %v1582, 4
      %v1585 = vshll.u32 %v1337, 16
      %v1587 = vrot.slane %v1585, 5
      %v1588 = vsel %vm1396, %v1583, %v1587
      %v1590 = vshrl.u32 %v1338, 16
      %v1592 = vrot.slane %v1590, 4
      %v1593 = vshll.u32 %v1338, 16
      %v1595 = vrot.slane %v1593, 5
      %v1596 = vor.u32 %v1592, %v1595
      %v1597 = vrot.slane %v1596, 4
      %v1599 = vshll.u32 %v1339, 16
      %v1601 = vrot.slane %v1599, 5
      %v1602 = vsel %vm1396, %v1597, %v1601
      %v1603 = vshrl.u32 %v1339, 16
      %v1605 = vrot.slane %v1603, 4
      %v1606 = vor.u32 %v1605, %v1601
      %v1607 = vrot.slane %v1606, 4
      %v1609 = vshll.u32 %v1340, 16
      %v1611 = vrot.slane %v1609, 5
      %v1612 = vsel %vm1396, %v1607, %v1611
      %v1614 = vshrl.u32 %v1341, 16
      %v1616 = vrot.slane %v1614, 4
      %v1617 = vshll.u32 %v1341, 16
      %v1619 = vrot.slane %v1617, 5
      %v1620 = vor.u32 %v1616, %v1619
      %v1621 = vrot.slane %v1620, 4
      %v1623 = vshll.u32 %v1342, 16
      %v1625 = vrot.slane %v1623, 5
      %v1626 = vsel %vm1396, %v1621, %v1625
      %v1627 = vshrl.u32 %v1342, 16
      %v1629 = vrot.slane %v1627, 4
      %v1630 = vor.u32 %v1629, %v1625
      %v1631 = vrot.slane %v1630, 4
      %v1633 = vshll.u32 %v1343, 16
      %v1635 = vrot.slane %v1633, 5
      %v1636 = vsel %vm1396, %v1631, %v1635
      %v1638 = vshrl.u32 %v1344, 16
      %v1640 = vrot.slane %v1638, 4
      %v1641 = vshll.u32 %v1344, 16
      %v1643 = vrot.slane %v1641, 5
      %v1644 = vor.u32 %v1640, %v1643
      %v1645 = vrot.slane %v1644, 4
      %v1647 = vshll.u32 %v1345, 16
      %v1649 = vrot.slane %v1647, 5
      %v1650 = vsel %vm1396, %v1645, %v1649
      %v1651 = vshrl.u32 %v1345, 16
      %v1653 = vrot.slane %v1651, 4
      %v1654 = vor.u32 %v1653, %v1649
      %v1655 = vrot.slane %v1654, 4
      %v1657 = vshll.u32 %v1346, 16
      %v1659 = vrot.slane %v1657, 5
      %v1660 = vsel %vm1396, %v1655, %v1659
      %v1662 = vshrl.u32 %v1347, 16
      %v1664 = vrot.slane %v1662, 4
      %v1665 = vshll.u32 %v1347, 16
      %v1667 = vrot.slane %v1665, 5
      %v1668 = vor.u32 %v1664, %v1667
      %v1669 = vrot.slane %v1668, 4
      %v1671 = vshll.u32 %v1348, 16
      %v1673 = vrot.slane %v1671, 5
      %v1674 = vsel %vm1396, %v1669, %v1673
      %v1675 = vshrl.u32 %v1348, 16
      %v1677 = vrot.slane %v1675, 4
      %v1678 = vor.u32 %v1677, %v1673
      %v1679 = vrot.slane %v1678, 4
      %v1681 = vshll.u32 %v1349, 16
      %v1683 = vrot.slane %v1681, 5
      %v1684 = vsel %vm1396, %v1679, %v1683
      %v1686 = vshrl.u32 %v1350, 16
      %v1688 = vrot.slane %v1686, 4
      %v1689 = vshll.u32 %v1350, 16
      %v1691 = vrot.slane %v1689, 5
      %v1692 = vor.u32 %v1688, %v1691
      %v1693 = vrot.slane %v1692, 4
      %v1695 = vshll.u32 %v1351, 16
      %v1697 = vrot.slane %v1695, 5
      %v1698 = vsel %vm1396, %v1693, %v1697
      %v1699 = vshrl.u32 %v1351, 16
      %v1701 = vrot.slane %v1699, 4
      %v1702 = vor.u32 %v1701, %v1697
      %v1703 = vrot.slane %v1702, 4
      %v1705 = vshll.u32 %v1352, 16
      %v1707 = vrot.slane %v1705, 5
      %v1708 = vsel %vm1396, %v1703, %v1707
      %v1710 = vshrl.u32 %v1353, 16
      %v1712 = vrot.slane %v1710, 4
      %v1713 = vshll.u32 %v1353, 16
      %v1715 = vrot.slane %v1713, 5
      %v1716 = vor.u32 %v1712, %v1715
      %v1717 = vrot.slane %v1716, 4
      %v1719 = vshll.u32 %v1354, 16
      %v1721 = vrot.slane %v1719, 5
      %v1722 = vsel %vm1396, %v1717, %v1721
      %v1723 = vshrl.u32 %v1354, 16
      %v1725 = vrot.slane %v1723, 4
      %v1726 = vor.u32 %v1725, %v1721
      %v1727 = vrot.slane %v1726, 4
      %v1729 = vshll.u32 %v1355, 16
      %v1731 = vrot.slane %v1729, 5
      %v1732 = vsel %vm1396, %v1727, %v1731
      %v1734 = vshrl.u32 %v1356, 16
      %v1736 = vrot.slane %v1734, 4
      %v1737 = vshll.u32 %v1356, 16
      %v1739 = vrot.slane %v1737, 5
      %v1740 = vor.u32 %v1736, %v1739
      %v1741 = vrot.slane %v1740, 4
      %v1743 = vshll.u32 %v1357, 16
      %v1745 = vrot.slane %v1743, 5
      %v1746 = vsel %vm1396, %v1741, %v1745
      %v1747 = vshrl.u32 %v1357, 16
      %v1749 = vrot.slane %v1747, 4
      %v1750 = vor.u32 %v1749, %v1745
      %v1751 = vrot.slane %v1750, 4
      %v1753 = vshll.u32 %v1358, 16
      %v1755 = vrot.slane %v1753, 5
      %v1756 = vsel %vm1396, %v1751, %v1755
      %v1758 = vshrl.u32 %v1359, 16
      %v1760 = vrot.slane %v1758, 4
      %v1761 = vshll.u32 %v1359, 16
      %v1763 = vrot.slane %v1761, 5
      %v1764 = vor.u32 %v1760, %v1763
      %v1765 = vrot.slane %v1764, 4
      %v1767 = vshll.u32 %v1360, 16
      %v1769 = vrot.slane %v1767, 5
      %v1770 = vsel %vm1396, %v1765, %v1769
      %v1771 = vshrl.u32 %v1360, 16
      %v1773 = vrot.slane %v1771, 4
      %v1774 = vor.u32 %v1773, %v1769
      %v1775 = vrot.slane %v1774, 4
      %v1777 = vshll.u32 %v1361, 16
      %v1779 = vrot.slane %v1777, 5
      %v1780 = vsel %vm1396, %v1775, %v1779
      %s1781 = scalar_lea.vmem %s2, 64
      %v1782 = vld [vmem:[%s1781] sm:$0xf]
      %v1783 = vld [vmem:[%s1781 + $0x4] sm:$0xf]
      %v1784 = vld [vmem:[%s1781 + $0x8] sm:$0xf]
      %v1785 = vld [vmem:[%s1781 + $0xc] sm:$0xf]
      %v1786 = vld [vmem:[%s1781 + $0x10] sm:$0xf]
      %v1787 = vld [vmem:[%s1781 + $0x14] sm:$0xf]
      %v1788 = vld [vmem:[%s1781 + $0x18] sm:$0xf]
      %v1789 = vld [vmem:[%s1781 + $0x1c] sm:$0xf]
      %v1790 = vld [vmem:[%s1781 + $0x20] sm:$0xf]
      %v1791 = vld [vmem:[%s1781 + $0x24] sm:$0xf]
      %v1792 = vld [vmem:[%s1781 + $0x28] sm:$0xf]
      %v1793 = vld [vmem:[%s1781 + $0x2c] sm:$0xf]
      %v1794 = vld [vmem:[%s1781 + $0x30] sm:$0xf]
      %v1795 = vld [vmem:[%s1781 + $0x34] sm:$0xf]
      %v1796 = vld [vmem:[%s1781 + $0x38] sm:$0xf]
      %v1797 = vld [vmem:[%s1781 + $0x3c] sm:$0xf]
      %v1798 = vunpack.c.l.b16 %v1410
      %v1799 = vunpack.c.l.b16 %v1420
      %v1800 = vunpack.c.l.b16 %v1434
      %v1801 = vunpack.c.l.b16 %v1444
      %v1802 = vunpack.c.l.b16 %v1458
      %v1803 = vunpack.c.l.b16 %v1468
      %v1804 = vunpack.c.l.b16 %v1482
      %v1805 = vunpack.c.l.b16 %v1492
      %v1806 = vunpack.c.l.b16 %v1506
      %v1807 = vunpack.c.l.b16 %v1516
      %v1808 = vunpack.c.l.b16 %v1530
      %v1809 = vunpack.c.l.b16 %v1540
      %v1810 = vunpack.c.l.b16 %v1554
      %v1811 = vunpack.c.l.b16 %v1564
      %v1812 = vunpack.c.l.b16 %v1578
      %v1813 = vunpack.c.l.b16 %v1588
      %v1814 = vunpack.c.l.b16 %v1602
      %v1815 = vunpack.c.l.b16 %v1612
      %v1816 = vunpack.c.l.b16 %v1626
      %v1817 = vunpack.c.l.b16 %v1636
      %v1818 = vunpack.c.l.b16 %v1650
      %v1819 = vunpack.c.l.b16 %v1660
      %v1820 = vunpack.c.l.b16 %v1674
      %v1821 = vunpack.c.l.b16 %v1684
      %v1822 = vunpack.c.l.b16 %v1698
      %v1823 = vunpack.c.l.b16 %v1708
      %v1824 = vunpack.c.l.b16 %v1722
      %v1825 = vunpack.c.l.b16 %v1732
      %v1826 = vunpack.c.l.b16 %v1746
      %v1827 = vunpack.c.l.b16 %v1756
      %v1828 = vunpack.c.l.b16 %v1770
      %v1829 = vunpack.c.l.b16 %v1780
      %v1830 = vpack.c.b16 %v1799, %v1798
      %v1831 = vpack.c.b16 %v1801, %v1800
      %v1832 = vpack.c.b16 %v1803, %v1802
      %v1833 = vpack.c.b16 %v1805, %v1804
      %v1834 = vpack.c.b16 %v1807, %v1806
      %v1835 = vpack.c.b16 %v1809, %v1808
      %v1836 = vpack.c.b16 %v1811, %v1810
      %v1837 = vpack.c.b16 %v1813, %v1812
      %v1838 = vpack.c.b16 %v1815, %v1814
      %v1839 = vpack.c.b16 %v1817, %v1816
      %v1840 = vpack.c.b16 %v1819, %v1818
      %v1841 = vpack.c.b16 %v1821, %v1820
      %v1842 = vpack.c.b16 %v1823, %v1822
      %v1843 = vpack.c.b16 %v1825, %v1824
      %v1844 = vpack.c.b16 %v1827, %v1826
      %v1845 = vpack.c.b16 %v1829, %v1828
      %v1878 = vunpack.c.l.b16 %v1782
      %v1879 = vunpack.c.l.b16 %v1783
      %v1880 = vunpack.c.l.b16 %v1784
      %v1881 = vunpack.c.l.b16 %v1785
      %v1882 = vunpack.c.l.b16 %v1786
      %v1883 = vunpack.c.l.b16 %v1787
      %v1884 = vunpack.c.l.b16 %v1788
      %v1885 = vunpack.c.l.b16 %v1789
      %v1886 = vunpack.c.l.b16 %v1790
      %v1887 = vunpack.c.l.b16 %v1791
      %v1888 = vunpack.c.l.b16 %v1792
      %v1889 = vunpack.c.l.b16 %v1793
      %v1890 = vunpack.c.l.b16 %v1794
      %v1891 = vunpack.c.l.b16 %v1795
      %v1892 = vunpack.c.l.b16 %v1796
      %v1893 = vunpack.c.l.b16 %v1797
      %v1894 = vpack.c.b16 %v1879, %v1878
      %v1895 = vpack.c.b16 %v1881, %v1880
      %v1896 = vpack.c.b16 %v1883, %v1882
      %v1897 = vpack.c.b16 %v1885, %v1884
      %v1898 = vpack.c.b16 %v1887, %v1886
      %v1899 = vpack.c.b16 %v1889, %v1888
      %v1900 = vpack.c.b16 %v1891, %v1890
      %v1901 = vpack.c.b16 %v1893, %v1892
      %1910 = vmatpush.bf16.msra.mxu0 %v1901
      %1911 = vmatpush.bf16.msra.mxu0 %v1900
      %1912 = vmatpush.bf16.msra.mxu0 %v1899
      %1913 = vmatpush.bf16.msra.mxu0 %v1898
      %1914 = vmatpush.bf16.msra.mxu0 %v1897
      %1915 = vmatpush.bf16.msra.mxu0 %v1896
      %1916 = vmatpush.bf16.msra.mxu0 %v1895
      %1917 = vmatpush.bf16.msra.mxu0 %v1894
      %1918 = vmatmul.bf16.gmra.mxu0 %v1830
      %v1919 = vpop.f32.mrf.mxu0
      %v1920 = vadd.f32 0.0, %v1919
      %v1921 = vpop.f32.mrf.mxu0
      %v1922 = vadd.f32 0.0, %v1921
      %1923 = vmatmul.bf16.gmra.mxu0 %v1831
      %v1924 = vpop.f32.mrf.mxu0
      %v1925 = vadd.f32 0.0, %v1924
      %v1926 = vpop.f32.mrf.mxu0
      %v1927 = vadd.f32 0.0, %v1926
      %1928 = vmatmul.bf16.gmra.mxu0 %v1832
      %v1929 = vpop.f32.mrf.mxu0
      %v1930 = vadd.f32 0.0, %v1929
      %v1931 = vpop.f32.mrf.mxu0
      %v1932 = vadd.f32 0.0, %v1931
      %1933 = vmatmul.bf16.gmra.mxu0 %v1833
      %v1934 = vpop.f32.mrf.mxu0
      %v1935 = vadd.f32 0.0, %v1934
      %v1936 = vpop.f32.mrf.mxu0
      %v1937 = vadd.f32 0.0, %v1936
      %1938 = vmatmul.bf16.gmra.mxu0 %v1834
      %v1939 = vpop.f32.mrf.mxu0
      %v1940 = vadd.f32 0.0, %v1939
      %v1941 = vpop.f32.mrf.mxu0
      %v1942 = vadd.f32 0.0, %v1941
      %1943 = vmatmul.bf16.gmra.mxu0 %v1835
      %v1944 = vpop.f32.mrf.mxu0
      %v1945 = vadd.f32 0.0, %v1944
      %v1946 = vpop.f32.mrf.mxu0
      %v1947 = vadd.f32 0.0, %v1946
      %1948 = vmatmul.bf16.gmra.mxu0 %v1836
      %v1949 = vpop.f32.mrf.mxu0
      %v1950 = vadd.f32 0.0, %v1949
      %v1951 = vpop.f32.mrf.mxu0
      %v1952 = vadd.f32 0.0, %v1951
      %1953 = vmatmul.bf16.gmra.mxu0 %v1837
      %v1954 = vpop.f32.mrf.mxu0
      %v1955 = vadd.f32 0.0, %v1954
      %v1956 = vpop.f32.mrf.mxu0
      %v1957 = vadd.f32 0.0, %v1956
      %1958 = vmatmul.bf16.gmra.mxu0 %v1838
      %v1959 = vpop.f32.mrf.mxu0
      %v1960 = vadd.f32 0.0, %v1959
      %v1961 = vpop.f32.mrf.mxu0
      %v1962 = vadd.f32 0.0, %v1961
      %1963 = vmatmul.bf16.gmra.mxu0 %v1839
      %v1964 = vpop.f32.mrf.mxu0
      %v1965 = vadd.f32 0.0, %v1964
      %v1966 = vpop.f32.mrf.mxu0
      %v1967 = vadd.f32 0.0, %v1966
      %1968 = vmatmul.bf16.gmra.mxu0 %v1840
      %v1969 = vpop.f32.mrf.mxu0
      %v1970 = vadd.f32 0.0, %v1969
      %v1971 = vpop.f32.mrf.mxu0
      %v1972 = vadd.f32 0.0, %v1971
      %1973 = vmatmul.bf16.gmra.mxu0 %v1841
      %v1974 = vpop.f32.mrf.mxu0
      %v1975 = vadd.f32 0.0, %v1974
      %v1976 = vpop.f32.mrf.mxu0
      %v1977 = vadd.f32 0.0, %v1976
      %1978 = vmatmul.bf16.gmra.mxu0 %v1842
      %v1979 = vpop.f32.mrf.mxu0
      %v1980 = vadd.f32 0.0, %v1979
      %v1981 = vpop.f32.mrf.mxu0
      %v1982 = vadd.f32 0.0, %v1981
      %1983 = vmatmul.bf16.gmra.mxu0 %v1843
      %v1984 = vpop.f32.mrf.mxu0
      %v1985 = vadd.f32 0.0, %v1984
      %v1986 = vpop.f32.mrf.mxu0
      %v1987 = vadd.f32 0.0, %v1986
      %1988 = vmatmul.bf16.gmra.mxu0 %v1844
      %v1989 = vpop.f32.mrf.mxu0
      %v1990 = vadd.f32 0.0, %v1989
      %v1991 = vpop.f32.mrf.mxu0
      %v1992 = vadd.f32 0.0, %v1991
      %1993 = vmatmul.bf16.gmra.mxu0 %v1845
      %v1994 = vpop.f32.mrf.mxu0
      %v1995 = vadd.f32 0.0, %v1994
      %v1996 = vpop.f32.mrf.mxu0
      %v1997 = vadd.f32 0.0, %v1996
      %1998 = vdwg.mxu0
      %v1999 = vadd.f32 %v1362, %v1920
      %v2000 = vadd.f32 %v1363, %v1922
      %v2001 = vadd.f32 %v1364, %v1925
      %v2002 = vadd.f32 %v1365, %v1927
      %v2003 = vadd.f32 %v1366, %v1930
      %v2004 = vadd.f32 %v1367, %v1932
      %v2005 = vadd.f32 %v1368, %v1935
      %v2006 = vadd.f32 %v1369, %v1937
      %v2007 = vadd.f32 %v1370, %v1940
      %v2008 = vadd.f32 %v1371, %v1942
      %v2009 = vadd.f32 %v1372, %v1945
      %v2010 = vadd.f32 %v1373, %v1947
      %v2011 = vadd.f32 %v1374, %v1950
      %v2012 = vadd.f32 %v1375, %v1952
      %v2013 = vadd.f32 %v1376, %v1955
      %v2014 = vadd.f32 %v1377, %v1957
      %v2015 = vadd.f32 %v1378, %v1960
      %v2016 = vadd.f32 %v1379, %v1962
      %v2017 = vadd.f32 %v1380, %v1965
      %v2018 = vadd.f32 %v1381, %v1967
      %v2019 = vadd.f32 %v1382, %v1970
      %v2020 = vadd.f32 %v1383, %v1972
      %v2021 = vadd.f32 %v1384, %v1975
      %v2022 = vadd.f32 %v1385, %v1977
      %v2023 = vadd.f32 %v1386, %v1980
      %v2024 = vadd.f32 %v1387, %v1982
      %v2025 = vadd.f32 %v1388, %v1985
      %v2026 = vadd.f32 %v1389, %v1987
      %v2027 = vadd.f32 %v1390, %v1990
      %v2028 = vadd.f32 %v1391, %v1992
      %v2029 = vadd.f32 %v1392, %v1995
      %v2030 = vadd.f32 %v1393, %v1997
      %2031 = vst [vmem:[#allocation3] sm:$0xff] %v1999
      %2032 = vst [vmem:[#allocation3 + $0x8] sm:$0xff] %v2000
      %2033 = vst [vmem:[#allocation3 + $0x10] sm:$0xff] %v2001
      %2034 = vst [vmem:[#allocation3 + $0x18] sm:$0xff] %v2002
      %2035 = vst [vmem:[#allocation3 + $0x20] sm:$0xff] %v2003
      %2036 = vst [vmem:[#allocation3 + $0x28] sm:$0xff] %v2004
      %2037 = vst [vmem:[#allocation3 + $0x30] sm:$0xff] %v2005
      %2038 = vst [vmem:[#allocation3 + $0x38] sm:$0xff] %v2006
      %2039 = vst [vmem:[#allocation3 + $0x40] sm:$0xff] %v2007
      %2040 = vst [vmem:[#allocation3 + $0x48] sm:$0xff] %v2008
      %2041 = vst [vmem:[#allocation3 + $0x50] sm:$0xff] %v2009
      %2042 = vst [vmem:[#allocation3 + $0x58] sm:$0xff] %v2010
      %2043 = vst [vmem:[#allocation3 + $0x60] sm:$0xff] %v2011
      %2044 = vst [vmem:[#allocation3 + $0x68] sm:$0xff] %v2012
      %2045 = vst [vmem:[#allocation3 + $0x70] sm:$0xff] %v2013
      %2046 = vst [vmem:[#allocation3 + $0x78] sm:$0xff] %v2014
      %2047 = vst [vmem:[#allocation3 + $0x80] sm:$0xff] %v2015
      %2048 = vst [vmem:[#allocation3 + $0x88] sm:$0xff] %v2016
      %2049 = vst [vmem:[#allocation3 + $0x90] sm:$0xff] %v2017
      %2050 = vst [vmem:[#allocation3 + $0x98] sm:$0xff] %v2018
      %2051 = vst [vmem:[#allocation3 + $0xa0] sm:$0xff] %v2019
      %2052 = vst [vmem:[#allocation3 + $0xa8] sm:$0xff] %v2020
      %2053 = vst [vmem:[#allocation3 + $0xb0] sm:$0xff] %v2021
      %2054 = vst [vmem:[#allocation3 + $0xb8] sm:$0xff] %v2022
      %2055 = vst [vmem:[#allocation3 + $0xc0] sm:$0xff] %v2023
      %2056 = vst [vmem:[#allocation3 + $0xc8] sm:$0xff] %v2024
      %2057 = vst [vmem:[#allocation3 + $0xd0] sm:$0xff] %v2025
      %2058 = vst [vmem:[#allocation3 + $0xd8] sm:$0xff] %v2026
      %2059 = vst [vmem:[#allocation3 + $0xe0] sm:$0xff] %v2027
      %2060 = vst [vmem:[#allocation3 + $0xe8] sm:$0xff] %v2028
      %2061 = vst [vmem:[#allocation3 + $0xf0] sm:$0xff] %v2029
      %2062 = vst [vmem:[#allocation3 + $0xf8] sm:$0xff] %v2030
      %v2063 = vld [vmem:[%s936] sm:$0xe]
      %v2064 = vld [vmem:[%s936 + $0x4] sm:$0xf]
      %v2065 = vld [vmem:[%s936 + $0x8] sm:$0x1]
      %v2066 = vld [vmem:[%s936 + $0xc] sm:$0xe]
      %v2067 = vld [vmem:[%s936 + $0x10] sm:$0xf]
      %v2068 = vld [vmem:[%s936 + $0x14] sm:$0x1]
      %v2069 = vld [vmem:[%s936 + $0x18] sm:$0xe]
      %v2070 = vld [vmem:[%s936 + $0x1c] sm:$0xf]
      %v2071 = vld [vmem:[%s936 + $0x20] sm:$0x1]
      %v2072 = vld [vmem:[%s936 + $0x24] sm:$0xe]
      %v2073 = vld [vmem:[%s936 + $0x28] sm:$0xf]
      %v2074 = vld [vmem:[%s936 + $0x2c] sm:$0x1]
      %v2075 = vld [vmem:[%s936 + $0x30] sm:$0xe]
      %v2076 = vld [vmem:[%s936 + $0x34] sm:$0xf]
      %v2077 = vld [vmem:[%s936 + $0x38] sm:$0x1]
      %v2078 = vld [vmem:[%s936 + $0x3c] sm:$0xe]
      %v2079 = vld [vmem:[%s936 + $0x40] sm:$0xf]
      %v2080 = vld [vmem:[%s936 + $0x44] sm:$0x1]
      %v2081 = vld [vmem:[%s936 + $0x48] sm:$0xe]
      %v2082 = vld [vmem:[%s936 + $0x4c] sm:$0xf]
      %v2083 = vld [vmem:[%s936 + $0x50] sm:$0x1]
      %v2084 = vld [vmem:[%s936 + $0x54] sm:$0xe]
      %v2085 = vld [vmem:[%s936 + $0x58] sm:$0xf]
      %v2086 = vld [vmem:[%s936 + $0x5c] sm:$0x1]
      %v2087 = vld [vmem:[%s936 + $0x60] sm:$0xe]
      %v2088 = vld [vmem:[%s936 + $0x64] sm:$0xf]
      %v2089 = vld [vmem:[%s936 + $0x68] sm:$0x1]
      %v2090 = vld [vmem:[%s936 + $0x6c] sm:$0xe]
      %v2091 = vld [vmem:[%s936 + $0x70] sm:$0xf]
      %v2092 = vld [vmem:[%s936 + $0x74] sm:$0x1]
      %v2093 = vld [vmem:[%s936 + $0x78] sm:$0xe]
      %v2094 = vld [vmem:[%s936 + $0x7c] sm:$0xf]
      %v2095 = vld [vmem:[%s936 + $0x80] sm:$0x1]
      %v2096 = vld [vmem:[%s936 + $0x84] sm:$0xe]
      %v2097 = vld [vmem:[%s936 + $0x88] sm:$0xf]
      %v2098 = vld [vmem:[%s936 + $0x8c] sm:$0x1]
      %v2099 = vld [vmem:[%s936 + $0x90] sm:$0xe]
      %v2100 = vld [vmem:[%s936 + $0x94] sm:$0xf]
      %v2101 = vld [vmem:[%s936 + $0x98] sm:$0x1]
      %v2102 = vld [vmem:[%s936 + $0x9c] sm:$0xe]
      %v2103 = vld [vmem:[%s936 + $0xa0] sm:$0xf]
      %v2104 = vld [vmem:[%s936 + $0xa4] sm:$0x1]
      %v2105 = vld [vmem:[%s936 + $0xa8] sm:$0xe]
      %v2106 = vld [vmem:[%s936 + $0xac] sm:$0xf]
      %v2107 = vld [vmem:[%s936 + $0xb0] sm:$0x1]
      %v2108 = vld [vmem:[%s936 + $0xb4] sm:$0xe]
      %v2109 = vld [vmem:[%s936 + $0xb8] sm:$0xf]
      %v2110 = vld [vmem:[%s936 + $0xbc] sm:$0x1]
      %v2111 = vld [vmem:[#allocation3] sm:$0xff]
      %v2112 = vld [vmem:[#allocation3 + $0x8] sm:$0xff]
      %v2113 = vld [vmem:[#allocation3 + $0x10] sm:$0xff]
      %v2114 = vld [vmem:[#allocation3 + $0x18] sm:$0xff]
      %v2115 = vld [vmem:[#allocation3 + $0x20] sm:$0xff]
      %v2116 = vld [vmem:[#allocation3 + $0x28] sm:$0xff]
      %v2117 = vld [vmem:[#allocation3 + $0x30] sm:$0xff]
      %v2118 = vld [vmem:[#allocation3 + $0x38] sm:$0xff]
      %v2119 = vld [vmem:[#allocation3 + $0x40] sm:$0xff]
      %v2120 = vld [vmem:[#allocation3 + $0x48] sm:$0xff]
      %v2121 = vld [vmem:[#allocation3 + $0x50] sm:$0xff]
      %v2122 = vld [vmem:[#allocation3 + $0x58] sm:$0xff]
      %v2123 = vld [vmem:[#allocation3 + $0x60] sm:$0xff]
      %v2124 = vld [vmem:[#allocation3 + $0x68] sm:$0xff]
      %v2125 = vld [vmem:[#allocation3 + $0x70] sm:$0xff]
      %v2126 = vld [vmem:[#allocation3 + $0x78] sm:$0xff]
      %v2127 = vld [vmem:[#allocation3 + $0x80] sm:$0xff]
      %v2128 = vld [vmem:[#allocation3 + $0x88] sm:$0xff]
      %v2129 = vld [vmem:[#allocation3 + $0x90] sm:$0xff]
      %v2130 = vld [vmem:[#allocation3 + $0x98] sm:$0xff]
      %v2131 = vld [vmem:[#allocation3 + $0xa0] sm:$0xff]
      %v2132 = vld [vmem:[#allocation3 + $0xa8] sm:$0xff]
      %v2133 = vld [vmem:[#allocation3 + $0xb0] sm:$0xff]
      %v2134 = vld [vmem:[#allocation3 + $0xb8] sm:$0xff]
      %v2135 = vld [vmem:[#allocation3 + $0xc0] sm:$0xff]
      %v2136 = vld [vmem:[#allocation3 + $0xc8] sm:$0xff]
      %v2137 = vld [vmem:[#allocation3 + $0xd0] sm:$0xff]
      %v2138 = vld [vmem:[#allocation3 + $0xd8] sm:$0xff]
      %v2139 = vld [vmem:[#allocation3 + $0xe0] sm:$0xff]
      %v2140 = vld [vmem:[#allocation3 + $0xe8] sm:$0xff]
      %v2141 = vld [vmem:[#allocation3 + $0xf0] sm:$0xff]
      %v2142 = vld [vmem:[#allocation3 + $0xf8] sm:$0xff]
      %vm2191 = vcmask 1042432
      %vm2192 = vcmask 1046532
      %vm2193 = vmor %vm2191, %vm2192
      %v2194 = vrot.slane %v2063, 5
      %v2195 = vrot.slane %v2194, 4
      %v2196 = vrot.slane %v2064, 5
      %v2197 = vsel %vm2193, %v2195, %v2196
      %v2198 = vrot.slane %v2196, 4
      %v2199 = vrot.slane %v2065, 5
      %v2200 = vsel %vm2193, %v2198, %v2199
      %v2201 = vrot.slane %v2066, 5
      %v2202 = vrot.slane %v2201, 4
      %v2203 = vrot.slane %v2067, 5
      %v2204 = vsel %vm2193, %v2202, %v2203
      %v2205 = vrot.slane %v2203, 4
      %v2206 = vrot.slane %v2068, 5
      %v2207 = vsel %vm2193, %v2205, %v2206
      %v2208 = vrot.slane %v2069, 5
      %v2209 = vrot.slane %v2208, 4
      %v2210 = vrot.slane %v2070, 5
      %v2211 = vsel %vm2193, %v2209, %v2210
      %v2212 = vrot.slane %v2210, 4
      %v2213 = vrot.slane %v2071, 5
      %v2214 = vsel %vm2193, %v2212, %v2213
      %v2215 = vrot.slane %v2072, 5
      %v2216 = vrot.slane %v2215, 4
      %v2217 = vrot.slane %v2073, 5
      %v2218 = vsel %vm2193, %v2216, %v2217
      %v2219 = vrot.slane %v2217, 4
      %v2220 = vrot.slane %v2074, 5
      %v2221 = vsel %vm2193, %v2219, %v2220
      %v2222 = vrot.slane %v2075, 5
      %v2223 = vrot.slane %v2222, 4
      %v2224 = vrot.slane %v2076, 5
      %v2225 = vsel %vm2193, %v2223, %v2224
      %v2226 = vrot.slane %v2224, 4
      %v2227 = vrot.slane %v2077, 5
      %v2228 = vsel %vm2193, %v2226, %v2227
      %v2229 = vrot.slane %v2078, 5
      %v2230 = vrot.slane %v2229, 4
      %v2231 = vrot.slane %v2079, 5
      %v2232 = vsel %vm2193, %v2230, %v2231
      %v2233 = vrot.slane %v2231, 4
      %v2234 = vrot.slane %v2080, 5
      %v2235 = vsel %vm2193, %v2233, %v2234
      %v2236 = vrot.slane %v2081, 5
      %v2237 = vrot.slane %v2236, 4
      %v2238 = vrot.slane %v2082, 5
      %v2239 = vsel %vm2193, %v2237, %v2238
      %v2240 = vrot.slane %v2238, 4
      %v2241 = vrot.slane %v2083, 5
      %v2242 = vsel %vm2193, %v2240, %v2241
      %v2243 = vrot.slane %v2084, 5
      %v2244 = vrot.slane %v2243, 4
      %v2245 = vrot.slane %v2085, 5
      %v2246 = vsel %vm2193, %v2244, %v2245
      %v2247 = vrot.slane %v2245, 4
      %v2248 = vrot.slane %v2086, 5
      %v2249 = vsel %vm2193, %v2247, %v2248
      %v2250 = vrot.slane %v2087, 5
      %v2251 = vrot.slane %v2250, 4
      %v2252 = vrot.slane %v2088, 5
      %v2253 = vsel %vm2193, %v2251, %v2252
      %v2254 = vrot.slane %v2252, 4
      %v2255 = vrot.slane %v2089, 5
      %v2256 = vsel %vm2193, %v2254, %v2255
      %v2257 = vrot.slane %v2090, 5
      %v2258 = vrot.slane %v2257, 4
      %v2259 = vrot.slane %v2091, 5
      %v2260 = vsel %vm2193, %v2258, %v2259
      %v2261 = vrot.slane %v2259, 4
      %v2262 = vrot.slane %v2092, 5
      %v2263 = vsel %vm2193, %v2261, %v2262
      %v2264 = vrot.slane %v2093, 5
      %v2265 = vrot.slane %v2264, 4
      %v2266 = vrot.slane %v2094, 5
      %v2267 = vsel %vm2193, %v2265, %v2266
      %v2268 = vrot.slane %v2266, 4
      %v2269 = vrot.slane %v2095, 5
      %v2270 = vsel %vm2193, %v2268, %v2269
      %v2271 = vrot.slane %v2096, 5
      %v2272 = vrot.slane %v2271, 4
      %v2273 = vrot.slane %v2097, 5
      %v2274 = vsel %vm2193, %v2272, %v2273
      %v2275 = vrot.slane %v2273, 4
      %v2276 = vrot.slane %v2098, 5
      %v2277 = vsel %vm2193, %v2275, %v2276
      %v2278 = vrot.slane %v2099, 5
      %v2279 = vrot.slane %v2278, 4
      %v2280 = vrot.slane %v2100, 5
      %v2281 = vsel %vm2193, %v2279, %v2280
      %v2282 = vrot.slane %v2280, 4
      %v2283 = vrot.slane %v2101, 5
      %v2284 = vsel %vm2193, %v2282, %v2283
      %v2285 = vrot.slane %v2102, 5
      %v2286 = vrot.slane %v2285, 4
      %v2287 = vrot.slane %v2103, 5
      %v2288 = vsel %vm2193, %v2286, %v2287
      %v2289 = vrot.slane %v2287, 4
      %v2290 = vrot.slane %v2104, 5
      %v2291 = vsel %vm2193, %v2289, %v2290
      %v2292 = vrot.slane %v2105, 5
      %v2293 = vrot.slane %v2292, 4
      %v2294 = vrot.slane %v2106, 5
      %v2295 = vsel %vm2193, %v2293, %v2294
      %v2296 = vrot.slane %v2294, 4
      %v2297 = vrot.slane %v2107, 5
      %v2298 = vsel %vm2193, %v2296, %v2297
      %v2299 = vrot.slane %v2108, 5
      %v2300 = vrot.slane %v2299, 4
      %v2301 = vrot.slane %v2109, 5
      %v2302 = vsel %vm2193, %v2300, %v2301
      %v2303 = vrot.slane %v2301, 4
      %v2304 = vrot.slane %v2110, 5
      %v2305 = vsel %vm2193, %v2303, %v2304
      %s2306 = scalar_lea.vmem %s2, 128
      %v2307 = vld [vmem:[%s2306] sm:$0xf]
      %v2308 = vld [vmem:[%s2306 + $0x4] sm:$0xf]
      %v2309 = vld [vmem:[%s2306 + $0x8] sm:$0xf]
      %v2310 = vld [vmem:[%s2306 + $0xc] sm:$0xf]
      %v2311 = vld [vmem:[%s2306 + $0x10] sm:$0xf]
      %v2312 = vld [vmem:[%s2306 + $0x14] sm:$0xf]
      %v2313 = vld [vmem:[%s2306 + $0x18] sm:$0xf]
      %v2314 = vld [vmem:[%s2306 + $0x1c] sm:$0xf]
      %v2315 = vld [vmem:[%s2306 + $0x20] sm:$0xf]
      %v2316 = vld [vmem:[%s2306 + $0x24] sm:$0xf]
      %v2317 = vld [vmem:[%s2306 + $0x28] sm:$0xf]
      %v2318 = vld [vmem:[%s2306 + $0x2c] sm:$0xf]
      %v2319 = vld [vmem:[%s2306 + $0x30] sm:$0xf]
      %v2320 = vld [vmem:[%s2306 + $0x34] sm:$0xf]
      %v2321 = vld [vmem:[%s2306 + $0x38] sm:$0xf]
      %v2322 = vld [vmem:[%s2306 + $0x3c] sm:$0xf]
      %v2323 = vunpack.c.l.b16 %v2197
      %v2324 = vunpack.c.l.b16 %v2200
      %v2325 = vunpack.c.l.b16 %v2204
      %v2326 = vunpack.c.l.b16 %v2207
      %v2327 = vunpack.c.l.b16 %v2211
      %v2328 = vunpack.c.l.b16 %v2214
      %v2329 = vunpack.c.l.b16 %v2218
      %v2330 = vunpack.c.l.b16 %v2221
      %v2331 = vunpack.c.l.b16 %v2225
      %v2332 = vunpack.c.l.b16 %v2228
      %v2333 = vunpack.c.l.b16 %v2232
      %v2334 = vunpack.c.l.b16 %v2235
      %v2335 = vunpack.c.l.b16 %v2239
      %v2336 = vunpack.c.l.b16 %v2242
      %v2337 = vunpack.c.l.b16 %v2246
      %v2338 = vunpack.c.l.b16 %v2249
      %v2339 = vunpack.c.l.b16 %v2253
      %v2340 = vunpack.c.l.b16 %v2256
      %v2341 = vunpack.c.l.b16 %v2260
      %v2342 = vunpack.c.l.b16 %v2263
      %v2343 = vunpack.c.l.b16 %v2267
      %v2344 = vunpack.c.l.b16 %v2270
      %v2345 = vunpack.c.l.b16 %v2274
      %v2346 = vunpack.c.l.b16 %v2277
      %v2347 = vunpack.c.l.b16 %v2281
      %v2348 = vunpack.c.l.b16 %v2284
      %v2349 = vunpack.c.l.b16 %v2288
      %v2350 = vunpack.c.l.b16 %v2291
      %v2351 = vunpack.c.l.b16 %v2295
      %v2352 = vunpack.c.l.b16 %v2298
      %v2353 = vunpack.c.l.b16 %v2302
      %v2354 = vunpack.c.l.b16 %v2305
      %v2355 = vpack.c.b16 %v2324, %v2323
      %v2356 = vpack.c.b16 %v2326, %v2325
      %v2357 = vpack.c.b16 %v2328, %v2327
      %v2358 = vpack.c.b16 %v2330, %v2329
      %v2359 = vpack.c.b16 %v2332, %v2331
      %v2360 = vpack.c.b16 %v2334, %v2333
      %v2361 = vpack.c.b16 %v2336, %v2335
      %v2362 = vpack.c.b16 %v2338, %v2337
      %v2363 = vpack.c.b16 %v2340, %v2339
      %v2364 = vpack.c.b16 %v2342, %v2341
      %v2365 = vpack.c.b16 %v2344, %v2343
      %v2366 = vpack.c.b16 %v2346, %v2345
      %v2367 = vpack.c.b16 %v2348, %v2347
      %v2368 = vpack.c.b16 %v2350, %v2349
      %v2369 = vpack.c.b16 %v2352, %v2351
      %v2370 = vpack.c.b16 %v2354, %v2353
      %v2403 = vunpack.c.l.b16 %v2307
      %v2404 = vunpack.c.l.b16 %v2308
      %v2405 = vunpack.c.l.b16 %v2309
      %v2406 = vunpack.c.l.b16 %v2310
      %v2407 = vunpack.c.l.b16 %v2311
      %v2408 = vunpack.c.l.b16 %v2312
      %v2409 = vunpack.c.l.b16 %v2313
      %v2410 = vunpack.c.l.b16 %v2314
      %v2411 = vunpack.c.l.b16 %v2315
      %v2412 = vunpack.c.l.b16 %v2316
      %v2413 = vunpack.c.l.b16 %v2317
      %v2414 = vunpack.c.l.b16 %v2318
      %v2415 = vunpack.c.l.b16 %v2319
      %v2416 = vunpack.c.l.b16 %v2320
      %v2417 = vunpack.c.l.b16 %v2321
      %v2418 = vunpack.c.l.b16 %v2322
      %v2419 = vpack.c.b16 %v2404, %v2403
      %v2420 = vpack.c.b16 %v2406, %v2405
      %v2421 = vpack.c.b16 %v2408, %v2407
      %v2422 = vpack.c.b16 %v2410, %v2409
      %v2423 = vpack.c.b16 %v2412, %v2411
      %v2424 = vpack.c.b16 %v2414, %v2413
      %v2425 = vpack.c.b16 %v2416, %v2415
      %v2426 = vpack.c.b16 %v2418, %v2417
      %2435 = vmatpush.bf16.msra.mxu0 %v2426
      %2436 = vmatpush.bf16.msra.mxu0 %v2425
      %2437 = vmatpush.bf16.msra.mxu0 %v2424
      %2438 = vmatpush.bf16.msra.mxu0 %v2423
      %2439 = vmatpush.bf16.msra.mxu0 %v2422
      %2440 = vmatpush.bf16.msra.mxu0 %v2421
      %2441 = vmatpush.bf16.msra.mxu0 %v2420
      %2442 = vmatpush.bf16.msra.mxu0 %v2419
      %2443 = vmatmul.bf16.gmra.mxu0 %v2355
      %v2444 = vpop.f32.mrf.mxu0
      %v2445 = vadd.f32 0.0, %v2444
      %v2446 = vpop.f32.mrf.mxu0
      %v2447 = vadd.f32 0.0, %v2446
      %2448 = vmatmul.bf16.gmra.mxu0 %v2356
      %v2449 = vpop.f32.mrf.mxu0
      %v2450 = vadd.f32 0.0, %v2449
      %v2451 = vpop.f32.mrf.mxu0
      %v2452 = vadd.f32 0.0, %v2451
      %2453 = vmatmul.bf16.gmra.mxu0 %v2357
      %v2454 = vpop.f32.mrf.mxu0
      %v2455 = vadd.f32 0.0, %v2454
      %v2456 = vpop.f32.mrf.mxu0
      %v2457 = vadd.f32 0.0, %v2456
      %2458 = vmatmul.bf16.gmra.mxu0 %v2358
      %v2459 = vpop.f32.mrf.mxu0
      %v2460 = vadd.f32 0.0, %v2459
      %v2461 = vpop.f32.mrf.mxu0
      %v2462 = vadd.f32 0.0, %v2461
      %2463 = vmatmul.bf16.gmra.mxu0 %v2359
      %v2464 = vpop.f32.mrf.mxu0
      %v2465 = vadd.f32 0.0, %v2464
      %v2466 = vpop.f32.mrf.mxu0
      %v2467 = vadd.f32 0.0, %v2466
      %2468 = vmatmul.bf16.gmra.mxu0 %v2360
      %v2469 = vpop.f32.mrf.mxu0
      %v2470 = vadd.f32 0.0, %v2469
      %v2471 = vpop.f32.mrf.mxu0
      %v2472 = vadd.f32 0.0, %v2471
      %2473 = vmatmul.bf16.gmra.mxu0 %v2361
      %v2474 = vpop.f32.mrf.mxu0
      %v2475 = vadd.f32 0.0, %v2474
      %v2476 = vpop.f32.mrf.mxu0
      %v2477 = vadd.f32 0.0, %v2476
      %2478 = vmatmul.bf16.gmra.mxu0 %v2362
      %v2479 = vpop.f32.mrf.mxu0
      %v2480 = vadd.f32 0.0, %v2479
      %v2481 = vpop.f32.mrf.mxu0
      %v2482 = vadd.f32 0.0, %v2481
      %2483 = vmatmul.bf16.gmra.mxu0 %v2363
      %v2484 = vpop.f32.mrf.mxu0
      %v2485 = vadd.f32 0.0, %v2484
      %v2486 = vpop.f32.mrf.mxu0
      %v2487 = vadd.f32 0.0, %v2486
      %2488 = vmatmul.bf16.gmra.mxu0 %v2364
      %v2489 = vpop.f32.mrf.mxu0
      %v2490 = vadd.f32 0.0, %v2489
      %v2491 = vpop.f32.mrf.mxu0
      %v2492 = vadd.f32 0.0, %v2491
      %2493 = vmatmul.bf16.gmra.mxu0 %v2365
      %v2494 = vpop.f32.mrf.mxu0
      %v2495 = vadd.f32 0.0, %v2494
      %v2496 = vpop.f32.mrf.mxu0
      %v2497 = vadd.f32 0.0, %v2496
      %2498 = vmatmul.bf16.gmra.mxu0 %v2366
      %v2499 = vpop.f32.mrf.mxu0
      %v2500 = vadd.f32 0.0, %v2499
      %v2501 = vpop.f32.mrf.mxu0
      %v2502 = vadd.f32 0.0, %v2501
      %2503 = vmatmul.bf16.gmra.mxu0 %v2367
      %v2504 = vpop.f32.mrf.mxu0
      %v2505 = vadd.f32 0.0, %v2504
      %v2506 = vpop.f32.mrf.mxu0
      %v2507 = vadd.f32 0.0, %v2506
      %2508 = vmatmul.bf16.gmra.mxu0 %v2368
      %v2509 = vpop.f32.mrf.mxu0
      %v2510 = vadd.f32 0.0, %v2509
      %v2511 = vpop.f32.mrf.mxu0
      %v2512 = vadd.f32 0.0, %v2511
      %2513 = vmatmul.bf16.gmra.mxu0 %v2369
      %v2514 = vpop.f32.mrf.mxu0
      %v2515 = vadd.f32 0.0, %v2514
      %v2516 = vpop.f32.mrf.mxu0
      %v2517 = vadd.f32 0.0, %v2516
      %2518 = vmatmul.bf16.gmra.mxu0 %v2370
      %v2519 = vpop.f32.mrf.mxu0
      %v2520 = vadd.f32 0.0, %v2519
      %v2521 = vpop.f32.mrf.mxu0
      %v2522 = vadd.f32 0.0, %v2521
      %2523 = vdwg.mxu0
      %v2524 = vadd.f32 %v2111, %v2445
      %v2525 = vadd.f32 %v2112, %v2447
      %v2526 = vadd.f32 %v2113, %v2450
      %v2527 = vadd.f32 %v2114, %v2452
      %v2528 = vadd.f32 %v2115, %v2455
      %v2529 = vadd.f32 %v2116, %v2457
      %v2530 = vadd.f32 %v2117, %v2460
      %v2531 = vadd.f32 %v2118, %v2462
      %v2532 = vadd.f32 %v2119, %v2465
      %v2533 = vadd.f32 %v2120, %v2467
      %v2534 = vadd.f32 %v2121, %v2470
      %v2535 = vadd.f32 %v2122, %v2472
      %v2536 = vadd.f32 %v2123, %v2475
      %v2537 = vadd.f32 %v2124, %v2477
      %v2538 = vadd.f32 %v2125, %v2480
      %v2539 = vadd.f32 %v2126, %v2482
      %v2540 = vadd.f32 %v2127, %v2485
      %v2541 = vadd.f32 %v2128, %v2487
      %v2542 = vadd.f32 %v2129, %v2490
      %v2543 = vadd.f32 %v2130, %v2492
      %v2544 = vadd.f32 %v2131, %v2495
      %v2545 = vadd.f32 %v2132, %v2497
      %v2546 = vadd.f32 %v2133, %v2500
      %v2547 = vadd.f32 %v2134, %v2502
      %v2548 = vadd.f32 %v2135, %v2505
      %v2549 = vadd.f32 %v2136, %v2507
      %v2550 = vadd.f32 %v2137, %v2510
      %v2551 = vadd.f32 %v2138, %v2512
      %v2552 = vadd.f32 %v2139, %v2515
      %v2553 = vadd.f32 %v2140, %v2517
      %v2554 = vadd.f32 %v2141, %v2520
      %v2555 = vadd.f32 %v2142, %v2522
      %2556 = vst [vmem:[#allocation3] sm:$0xff] %v2524
      %2557 = vst [vmem:[#allocation3 + $0x8] sm:$0xff] %v2525
      %2558 = vst [vmem:[#allocation3 + $0x10] sm:$0xff] %v2526
      %2559 = vst [vmem:[#allocation3 + $0x18] sm:$0xff] %v2527
      %2560 = vst [vmem:[#allocation3 + $0x20] sm:$0xff] %v2528
      %2561 = vst [vmem:[#allocation3 + $0x28] sm:$0xff] %v2529
      %2562 = vst [vmem:[#allocation3 + $0x30] sm:$0xff] %v2530
      %2563 = vst [vmem:[#allocation3 + $0x38] sm:$0xff] %v2531
      %2564 = vst [vmem:[#allocation3 + $0x40] sm:$0xff] %v2532
      %2565 = vst [vmem:[#allocation3 + $0x48] sm:$0xff] %v2533
      %2566 = vst [vmem:[#allocation3 + $0x50] sm:$0xff] %v2534
      %2567 = vst [vmem:[#allocation3 + $0x58] sm:$0xff] %v2535
      %2568 = vst [vmem:[#allocation3 + $0x60] sm:$0xff] %v2536
      %2569 = vst [vmem:[#allocation3 + $0x68] sm:$0xff] %v2537
      %2570 = vst [vmem:[#allocation3 + $0x70] sm:$0xff] %v2538
      %2571 = vst [vmem:[#allocation3 + $0x78] sm:$0xff] %v2539
      %2572 = vst [vmem:[#allocation3 + $0x80] sm:$0xff] %v2540
      %2573 = vst [vmem:[#allocation3 + $0x88] sm:$0xff] %v2541
      %2574 = vst [vmem:[#allocation3 + $0x90] sm:$0xff] %v2542
      %2575 = vst [vmem:[#allocation3 + $0x98] sm:$0xff] %v2543
      %2576 = vst [vmem:[#allocation3 + $0xa0] sm:$0xff] %v2544
      %2577 = vst [vmem:[#allocation3 + $0xa8] sm:$0xff] %v2545
      %2578 = vst [vmem:[#allocation3 + $0xb0] sm:$0xff] %v2546
      %2579 = vst [vmem:[#allocation3 + $0xb8] sm:$0xff] %v2547
      %2580 = vst [vmem:[#allocation3 + $0xc0] sm:$0xff] %v2548
      %2581 = vst [vmem:[#allocation3 + $0xc8] sm:$0xff] %v2549
      %2582 = vst [vmem:[#allocation3 + $0xd0] sm:$0xff] %v2550
      %2583 = vst [vmem:[#allocation3 + $0xd8] sm:$0xff] %v2551
      %2584 = vst [vmem:[#allocation3 + $0xe0] sm:$0xff] %v2552
      %2585 = vst [vmem:[#allocation3 + $0xe8] sm:$0xff] %v2553
      %2586 = vst [vmem:[#allocation3 + $0xf0] sm:$0xff] %v2554
      %2587 = vst [vmem:[#allocation3 + $0xf8] sm:$0xff] %v2555
      %s2588 = sadd.s32 0, 1
      %s2589 = smul.u32 %s2588, 3
      %s2590 = smul.addr %s2589, 4
      %s2591 = scalar_lea.vmem [#allocation2], %s2590
      %v2592 = vld [vmem:[%s2591] sm:$0xf]
      %v2593 = vld [vmem:[%s2591 + $0x4] sm:$0xf]
      %v2594 = vld [vmem:[%s2591 + $0xc] sm:$0xf]
      %v2595 = vld [vmem:[%s2591 + $0x10] sm:$0xf]
      %v2596 = vld [vmem:[%s2591 + $0x18] sm:$0xf]
      %v2597 = vld [vmem:[%s2591 + $0x1c] sm:$0xf]
      %v2598 = vld [vmem:[%s2591 + $0x24] sm:$0xf]
      %v2599 = vld [vmem:[%s2591 + $0x28] sm:$0xf]
      %v2600 = vld [vmem:[%s2591 + $0x30] sm:$0xf]
      %v2601 = vld [vmem:[%s2591 + $0x34] sm:$0xf]
      %v2602 = vld [vmem:[%s2591 + $0x3c] sm:$0xf]
      %v2603 = vld [vmem:[%s2591 + $0x40] sm:$0xf]
      %v2604 = vld [vmem:[%s2591 + $0x48] sm:$0xf]
      %v2605 = vld [vmem:[%s2591 + $0x4c] sm:$0xf]
      %v2606 = vld [vmem:[%s2591 + $0x54] sm:$0xf]
      %v2607 = vld [vmem:[%s2591 + $0x58] sm:$0xf]
      %v2608 = vld [vmem:[%s2591 + $0x60] sm:$0xf]
      %v2609 = vld [vmem:[%s2591 + $0x64] sm:$0xf]
      %v2610 = vld [vmem:[%s2591 + $0x6c] sm:$0xf]
      %v2611 = vld [vmem:[%s2591 + $0x70] sm:$0xf]
      %v2612 = vld [vmem:[%s2591 + $0x78] sm:$0xf]
      %v2613 = vld [vmem:[%s2591 + $0x7c] sm:$0xf]
      %v2614 = vld [vmem:[%s2591 + $0x84] sm:$0xf]
      %v2615 = vld [vmem:[%s2591 + $0x88] sm:$0xf]
      %v2616 = vld [vmem:[%s2591 + $0x90] sm:$0xf]
      %v2617 = vld [vmem:[%s2591 + $0x94] sm:$0xf]
      %v2618 = vld [vmem:[%s2591 + $0x9c] sm:$0xf]
      %v2619 = vld [vmem:[%s2591 + $0xa0] sm:$0xf]
      %v2620 = vld [vmem:[%s2591 + $0xa8] sm:$0xf]
      %v2621 = vld [vmem:[%s2591 + $0xac] sm:$0xf]
      %v2622 = vld [vmem:[%s2591 + $0xb4] sm:$0xf]
      %v2623 = vld [vmem:[%s2591 + $0xb8] sm:$0xf]
      %v2624 = vld [vmem:[#allocation3] sm:$0xff]
      %v2625 = vld [vmem:[#allocation3 + $0x8] sm:$0xff]
      %v2626 = vld [vmem:[#allocation3 + $0x10] sm:$0xff]
      %v2627 = vld [vmem:[#allocation3 + $0x18] sm:$0xff]
      %v2628 = vld [vmem:[#allocation3 + $0x20] sm:$0xff]
      %v2629 = vld [vmem:[#allocation3 + $0x28] sm:$0xff]
      %v2630 = vld [vmem:[#allocation3 + $0x30] sm:$0xff]
      %v2631 = vld [vmem:[#allocation3 + $0x38] sm:$0xff]
      %v2632 = vld [vmem:[#allocation3 + $0x40] sm:$0xff]
      %v2633 = vld [vmem:[#allocation3 + $0x48] sm:$0xff]
      %v2634 = vld [vmem:[#allocation3 + $0x50] sm:$0xff]
      %v2635 = vld [vmem:[#allocation3 + $0x58] sm:$0xff]
      %v2636 = vld [vmem:[#allocation3 + $0x60] sm:$0xff]
      %v2637 = vld [vmem:[#allocation3 + $0x68] sm:$0xff]
      %v2638 = vld [vmem:[#allocation3 + $0x70] sm:$0xff]
      %v2639 = vld [vmem:[#allocation3 + $0x78] sm:$0xff]
      %v2640 = vld [vmem:[#allocation3 + $0x80] sm:$0xff]
      %v2641 = vld [vmem:[#allocation3 + $0x88] sm:$0xff]
      %v2642 = vld [vmem:[#allocation3 + $0x90] sm:$0xff]
      %v2643 = vld [vmem:[#allocation3 + $0x98] sm:$0xff]
      %v2644 = vld [vmem:[#allocation3 + $0xa0] sm:$0xff]
      %v2645 = vld [vmem:[#allocation3 + $0xa8] sm:$0xff]
      %v2646 = vld [vmem:[#allocation3 + $0xb0] sm:$0xff]
      %v2647 = vld [vmem:[#allocation3 + $0xb8] sm:$0xff]
      %v2648 = vld [vmem:[#allocation3 + $0xc0] sm:$0xff]
      %v2649 = vld [vmem:[#allocation3 + $0xc8] sm:$0xff]
      %v2650 = vld [vmem:[#allocation3 + $0xd0] sm:$0xff]
      %v2651 = vld [vmem:[#allocation3 + $0xd8] sm:$0xff]
      %v2652 = vld [vmem:[#allocation3 + $0xe0] sm:$0xff]
      %v2653 = vld [vmem:[#allocation3 + $0xe8] sm:$0xff]
      %v2654 = vld [vmem:[#allocation3 + $0xf0] sm:$0xff]
      %v2655 = vld [vmem:[#allocation3 + $0xf8] sm:$0xff]
      %s2656 = scalar_lea.vmem %s2, 192
      %v2657 = vld [vmem:[%s2656] sm:$0xf]
      %v2658 = vld [vmem:[%s2656 + $0x4] sm:$0xf]
      %v2659 = vld [vmem:[%s2656 + $0x8] sm:$0xf]
      %v2660 = vld [vmem:[%s2656 + $0xc] sm:$0xf]
      %v2661 = vld [vmem:[%s2656 + $0x10] sm:$0xf]
      %v2662 = vld [vmem:[%s2656 + $0x14] sm:$0xf]
      %v2663 = vld [vmem:[%s2656 + $0x18] sm:$0xf]
      %v2664 = vld [vmem:[%s2656 + $0x1c] sm:$0xf]
      %v2665 = vld [vmem:[%s2656 + $0x20] sm:$0xf]
      %v2666 = vld [vmem:[%s2656 + $0x24] sm:$0xf]
      %v2667 = vld [vmem:[%s2656 + $0x28] sm:$0xf]
      %v2668 = vld [vmem:[%s2656 + $0x2c] sm:$0xf]
      %v2669 = vld [vmem:[%s2656 + $0x30] sm:$0xf]
      %v2670 = vld [vmem:[%s2656 + $0x34] sm:$0xf]
      %v2671 = vld [vmem:[%s2656 + $0x38] sm:$0xf]
      %v2672 = vld [vmem:[%s2656 + $0x3c] sm:$0xf]
      %v2705 = vunpack.c.l.b16 %v2592
      %v2706 = vunpack.c.l.b16 %v2593
      %v2707 = vunpack.c.l.b16 %v2594
      %v2708 = vunpack.c.l.b16 %v2595
      %v2709 = vunpack.c.l.b16 %v2596
      %v2710 = vunpack.c.l.b16 %v2597
      %v2711 = vunpack.c.l.b16 %v2598
      %v2712 = vunpack.c.l.b16 %v2599
      %v2713 = vunpack.c.l.b16 %v2600
      %v2714 = vunpack.c.l.b16 %v2601
      %v2715 = vunpack.c.l.b16 %v2602
      %v2716 = vunpack.c.l.b16 %v2603
      %v2717 = vunpack.c.l.b16 %v2604
      %v2718 = vunpack.c.l.b16 %v2605
      %v2719 = vunpack.c.l.b16 %v2606
      %v2720 = vunpack.c.l.b16 %v2607
      %v2721 = vunpack.c.l.b16 %v2608
      %v2722 = vunpack.c.l.b16 %v2609
      %v2723 = vunpack.c.l.b16 %v2610
      %v2724 = vunpack.c.l.b16 %v2611
      %v2725 = vunpack.c.l.b16 %v2612
      %v2726 = vunpack.c.l.b16 %v2613
      %v2727 = vunpack.c.l.b16 %v2614
      %v2728 = vunpack.c.l.b16 %v2615
      %v2729 = vunpack.c.l.b16 %v2616
      %v2730 = vunpack.c.l.b16 %v2617
      %v2731 = vunpack.c.l.b16 %v2618
      %v2732 = vunpack.c.l.b16 %v2619
      %v2733 = vunpack.c.l.b16 %v2620
      %v2734 = vunpack.c.l.b16 %v2621
      %v2735 = vunpack.c.l.b16 %v2622
      %v2736 = vunpack.c.l.b16 %v2623
      %v2737 = vpack.c.b16 %v2706, %v2705
      %v2738 = vpack.c.b16 %v2708, %v2707
      %v2739 = vpack.c.b16 %v2710, %v2709
      %v2740 = vpack.c.b16 %v2712, %v2711
      %v2741 = vpack.c.b16 %v2714, %v2713
      %v2742 = vpack.c.b16 %v2716, %v2715
      %v2743 = vpack.c.b16 %v2718, %v2717
      %v2744 = vpack.c.b16 %v2720, %v2719
      %v2745 = vpack.c.b16 %v2722, %v2721
      %v2746 = vpack.c.b16 %v2724, %v2723
      %v2747 = vpack.c.b16 %v2726, %v2725
      %v2748 = vpack.c.b16 %v2728, %v2727
      %v2749 = vpack.c.b16 %v2730, %v2729
      %v2750 = vpack.c.b16 %v2732, %v2731
      %v2751 = vpack.c.b16 %v2734, %v2733
      %v2752 = vpack.c.b16 %v2736, %v2735
      %v2785 = vunpack.c.l.b16 %v2657
      %v2786 = vunpack.c.l.b16 %v2658
      %v2787 = vunpack.c.l.b16 %v2659
      %v2788 = vunpack.c.l.b16 %v2660
      %v2789 = vunpack.c.l.b16 %v2661
      %v2790 = vunpack.c.l.b16 %v2662
      %v2791 = vunpack.c.l.b16 %v2663
      %v2792 = vunpack.c.l.b16 %v2664
      %v2793 = vunpack.c.l.b16 %v2665
      %v2794 = vunpack.c.l.b16 %v2666
      %v2795 = vunpack.c.l.b16 %v2667
      %v2796 = vunpack.c.l.b16 %v2668
      %v2797 = vunpack.c.l.b16 %v2669
      %v2798 = vunpack.c.l.b16 %v2670
      %v2799 = vunpack.c.l.b16 %v2671
      %v2800 = vunpack.c.l.b16 %v2672
      %v2801 = vpack.c.b16 %v2786, %v2785
      %v2802 = vpack.c.b16 %v2788, %v2787
      %v2803 = vpack.c.b16 %v2790, %v2789
      %v2804 = vpack.c.b16 %v2792, %v2791
      %v2805 = vpack.c.b16 %v2794, %v2793
      %v2806 = vpack.c.b16 %v2796, %v2795
      %v2807 = vpack.c.b16 %v2798, %v2797
      %v2808 = vpack.c.b16 %v2800, %v2799
      %2817 = vmatpush.bf16.msra.mxu0 %v2808
      %2818 = vmatpush.bf16.msra.mxu0 %v2807
      %2819 = vmatpush.bf16.msra.mxu0 %v2806
      %2820 = vmatpush.bf16.msra.mxu0 %v2805
      %2821 = vmatpush.bf16.msra.mxu0 %v2804
      %2822 = vmatpush.bf16.msra.mxu0 %v2803
      %2823 = vmatpush.bf16.msra.mxu0 %v2802
      %2824 = vmatpush.bf16.msra.mxu0 %v2801
      %2825 = vmatmul.bf16.gmra.mxu0 %v2737
      %v2826 = vpop.f32.mrf.mxu0
      %v2827 = vadd.f32 0.0, %v2826
      %v2828 = vpop.f32.mrf.mxu0
      %v2829 = vadd.f32 0.0, %v2828
      %2830 = vmatmul.bf16.gmra.mxu0 %v2738
      %v2831 = vpop.f32.mrf.mxu0
      %v2832 = vadd.f32 0.0, %v2831
      %v2833 = vpop.f32.mrf.mxu0
      %v2834 = vadd.f32 0.0, %v2833
      %2835 = vmatmul.bf16.gmra.mxu0 %v2739
      %v2836 = vpop.f32.mrf.mxu0
      %v2837 = vadd.f32 0.0, %v2836
      %v2838 = vpop.f32.mrf.mxu0
      %v2839 = vadd.f32 0.0, %v2838
      %2840 = vmatmul.bf16.gmra.mxu0 %v2740
      %v2841 = vpop.f32.mrf.mxu0
      %v2842 = vadd.f32 0.0, %v2841
      %v2843 = vpop.f32.mrf.mxu0
      %v2844 = vadd.f32 0.0, %v2843
      %2845 = vmatmul.bf16.gmra.mxu0 %v2741
      %v2846 = vpop.f32.mrf.mxu0
      %v2847 = vadd.f32 0.0, %v2846
      %v2848 = vpop.f32.mrf.mxu0
      %v2849 = vadd.f32 0.0, %v2848
      %2850 = vmatmul.bf16.gmra.mxu0 %v2742
      %v2851 = vpop.f32.mrf.mxu0
      %v2852 = vadd.f32 0.0, %v2851
      %v2853 = vpop.f32.mrf.mxu0
      %v2854 = vadd.f32 0.0, %v2853
      %2855 = vmatmul.bf16.gmra.mxu0 %v2743
      %v2856 = vpop.f32.mrf.mxu0
      %v2857 = vadd.f32 0.0, %v2856
      %v2858 = vpop.f32.mrf.mxu0
      %v2859 = vadd.f32 0.0, %v2858
      %2860 = vmatmul.bf16.gmra.mxu0 %v2744
      %v2861 = vpop.f32.mrf.mxu0
      %v2862 = vadd.f32 0.0, %v2861
      %v2863 = vpop.f32.mrf.mxu0
      %v2864 = vadd.f32 0.0, %v2863
      %2865 = vmatmul.bf16.gmra.mxu0 %v2745
      %v2866 = vpop.f32.mrf.mxu0
      %v2867 = vadd.f32 0.0, %v2866
      %v2868 = vpop.f32.mrf.mxu0
      %v2869 = vadd.f32 0.0, %v2868
      %2870 = vmatmul.bf16.gmra.mxu0 %v2746
      %v2871 = vpop.f32.mrf.mxu0
      %v2872 = vadd.f32 0.0, %v2871
      %v2873 = vpop.f32.mrf.mxu0
      %v2874 = vadd.f32 0.0, %v2873
      %2875 = vmatmul.bf16.gmra.mxu0 %v2747
      %v2876 = vpop.f32.mrf.mxu0
      %v2877 = vadd.f32 0.0, %v2876
      %v2878 = vpop.f32.mrf.mxu0
      %v2879 = vadd.f32 0.0, %v2878
      %2880 = vmatmul.bf16.gmra.mxu0 %v2748
      %v2881 = vpop.f32.mrf.mxu0
      %v2882 = vadd.f32 0.0, %v2881
      %v2883 = vpop.f32.mrf.mxu0
      %v2884 = vadd.f32 0.0, %v2883
      %2885 = vmatmul.bf16.gmra.mxu0 %v2749
      %v2886 = vpop.f32.mrf.mxu0
      %v2887 = vadd.f32 0.0, %v2886
      %v2888 = vpop.f32.mrf.mxu0
      %v2889 = vadd.f32 0.0, %v2888
      %2890 = vmatmul.bf16.gmra.mxu0 %v2750
      %v2891 = vpop.f32.mrf.mxu0
      %v2892 = vadd.f32 0.0, %v2891
      %v2893 = vpop.f32.mrf.mxu0
      %v2894 = vadd.f32 0.0, %v2893
      %2895 = vmatmul.bf16.gmra.mxu0 %v2751
      %v2896 = vpop.f32.mrf.mxu0
      %v2897 = vadd.f32 0.0, %v2896
      %v2898 = vpop.f32.mrf.mxu0
      %v2899 = vadd.f32 0.0, %v2898
      %2900 = vmatmul.bf16.gmra.mxu0 %v2752
      %v2901 = vpop.f32.mrf.mxu0
      %v2902 = vadd.f32 0.0, %v2901
      %v2903 = vpop.f32.mrf.mxu0
      %v2904 = vadd.f32 0.0, %v2903
      %2905 = vdwg.mxu0
      %v2906 = vadd.f32 %v2624, %v2827
      %v2907 = vadd.f32 %v2625, %v2829
      %v2908 = vadd.f32 %v2626, %v2832
      %v2909 = vadd.f32 %v2627, %v2834
      %v2910 = vadd.f32 %v2628, %v2837
      %v2911 = vadd.f32 %v2629, %v2839
      %v2912 = vadd.f32 %v2630, %v2842
      %v2913 = vadd.f32 %v2631, %v2844
      %v2914 = vadd.f32 %v2632, %v2847
      %v2915 = vadd.f32 %v2633, %v2849
      %v2916 = vadd.f32 %v2634, %v2852
      %v2917 = vadd.f32 %v2635, %v2854
      %v2918 = vadd.f32 %v2636, %v2857
      %v2919 = vadd.f32 %v2637, %v2859
      %v2920 = vadd.f32 %v2638, %v2862
      %v2921 = vadd.f32 %v2639, %v2864
      %v2922 = vadd.f32 %v2640, %v2867
      %v2923 = vadd.f32 %v2641, %v2869
      %v2924 = vadd.f32 %v2642, %v2872
      %v2925 = vadd.f32 %v2643, %v2874
      %v2926 = vadd.f32 %v2644, %v2877
      %v2927 = vadd.f32 %v2645, %v2879
      %v2928 = vadd.f32 %v2646, %v2882
      %v2929 = vadd.f32 %v2647, %v2884
      %v2930 = vadd.f32 %v2648, %v2887
      %v2931 = vadd.f32 %v2649, %v2889
      %v2932 = vadd.f32 %v2650, %v2892
      %v2933 = vadd.f32 %v2651, %v2894
      %v2934 = vadd.f32 %v2652, %v2897
      %v2935 = vadd.f32 %v2653, %v2899
      %v2936 = vadd.f32 %v2654, %v2902
      %v2937 = vadd.f32 %v2655, %v2904
      %2938 = vst [vmem:[#allocation3] sm:$0xff] %v2906
      %2939 = vst [vmem:[#allocation3 + $0x8] sm:$0xff] %v2907
      %2940 = vst [vmem:[#allocation3 + $0x10] sm:$0xff] %v2908
      %2941 = vst [vmem:[#allocation3 + $0x18] sm:$0xff] %v2909
      %2942 = vst [vmem:[#allocation3 + $0x20] sm:$0xff] %v2910
      %2943 = vst [vmem:[#allocation3 + $0x28] sm:$0xff] %v2911
      %2944 = vst [vmem:[#allocation3 + $0x30] sm:$0xff] %v2912
      %2945 = vst [vmem:[#allocation3 + $0x38] sm:$0xff] %v2913
      %2946 = vst [vmem:[#allocation3 + $0x40] sm:$0xff] %v2914
      %2947 = vst [vmem:[#allocation3 + $0x48] sm:$0xff] %v2915
      %2948 = vst [vmem:[#allocation3 + $0x50] sm:$0xff] %v2916
      %2949 = vst [vmem:[#allocation3 + $0x58] sm:$0xff] %v2917
      %2950 = vst [vmem:[#allocation3 + $0x60] sm:$0xff] %v2918
      %2951 = vst [vmem:[#allocation3 + $0x68] sm:$0xff] %v2919
      %2952 = vst [vmem:[#allocation3 + $0x70] sm:$0xff] %v2920
      %2953 = vst [vmem:[#allocation3 + $0x78] sm:$0xff] %v2921
      %2954 = vst [vmem:[#allocation3 + $0x80] sm:$0xff] %v2922
      %2955 = vst [vmem:[#allocation3 + $0x88] sm:$0xff] %v2923
      %2956 = vst [vmem:[#allocation3 + $0x90] sm:$0xff] %v2924
      %2957 = vst [vmem:[#allocation3 + $0x98] sm:$0xff] %v2925
      %2958 = vst [vmem:[#allocation3 + $0xa0] sm:$0xff] %v2926
      %2959 = vst [vmem:[#allocation3 + $0xa8] sm:$0xff] %v2927
      %2960 = vst [vmem:[#allocation3 + $0xb0] sm:$0xff] %v2928
      %2961 = vst [vmem:[#allocation3 + $0xb8] sm:$0xff] %v2929
      %2962 = vst [vmem:[#allocation3 + $0xc0] sm:$0xff] %v2930
      %2963 = vst [vmem:[#allocation3 + $0xc8] sm:$0xff] %v2931
      %2964 = vst [vmem:[#allocation3 + $0xd0] sm:$0xff] %v2932
      %2965 = vst [vmem:[#allocation3 + $0xd8] sm:$0xff] %v2933
      %2966 = vst [vmem:[#allocation3 + $0xe0] sm:$0xff] %v2934
      %2967 = vst [vmem:[#allocation3 + $0xe8] sm:$0xff] %v2935
      %2968 = vst [vmem:[#allocation3 + $0xf0] sm:$0xff] %v2936
      %2969 = vst [vmem:[#allocation3 + $0xf8] sm:$0xff] %v2937
      %v2970 = vld [vmem:[%s2591] sm:$0xf]
      %v2971 = vld [vmem:[%s2591 + $0x4] sm:$0xf]
      %v2972 = vld [vmem:[%s2591 + $0x8] sm:$0x1]
      %v2973 = vld [vmem:[%s2591 + $0xc] sm:$0xf]
      %v2974 = vld [vmem:[%s2591 + $0x10] sm:$0xf]
      %v2975 = vld [vmem:[%s2591 + $0x14] sm:$0x1]
      %v2976 = vld [vmem:[%s2591 + $0x18] sm:$0xf]
      %v2977 = vld [vmem:[%s2591 + $0x1c] sm:$0xf]
      %v2978 = vld [vmem:[%s2591 + $0x20] sm:$0x1]
      %v2979 = vld [vmem:[%s2591 + $0x24] sm:$0xf]
      %v2980 = vld [vmem:[%s2591 + $0x28] sm:$0xf]
      %v2981 = vld [vmem:[%s2591 + $0x2c] sm:$0x1]
      %v2982 = vld [vmem:[%s2591 + $0x30] sm:$0xf]
      %v2983 = vld [vmem:[%s2591 + $0x34] sm:$0xf]
      %v2984 = vld [vmem:[%s2591 + $0x38] sm:$0x1]
      %v2985 = vld [vmem:[%s2591 + $0x3c] sm:$0xf]
      %v2986 = vld [vmem:[%s2591 + $0x40] sm:$0xf]
      %v2987 = vld [vmem:[%s2591 + $0x44] sm:$0x1]
      %v2988 = vld [vmem:[%s2591 + $0x48] sm:$0xf]
      %v2989 = vld [vmem:[%s2591 + $0x4c] sm:$0xf]
      %v2990 = vld [vmem:[%s2591 + $0x50] sm:$0x1]
      %v2991 = vld [vmem:[%s2591 + $0x54] sm:$0xf]
      %v2992 = vld [vmem:[%s2591 + $0x58] sm:$0xf]
      %v2993 = vld [vmem:[%s2591 + $0x5c] sm:$0x1]
      %v2994 = vld [vmem:[%s2591 + $0x60] sm:$0xf]
      %v2995 = vld [vmem:[%s2591 + $0x64] sm:$0xf]
      %v2996 = vld [vmem:[%s2591 + $0x68] sm:$0x1]
      %v2997 = vld [vmem:[%s2591 + $0x6c] sm:$0xf]
      %v2998 = vld [vmem:[%s2591 + $0x70] sm:$0xf]
      %v2999 = vld [vmem:[%s2591 + $0x74] sm:$0x1]
      %v3000 = vld [vmem:[%s2591 + $0x78] sm:$0xf]
      %v3001 = vld [vmem:[%s2591 + $0x7c] sm:$0xf]
      %v3002 = vld [vmem:[%s2591 + $0x80] sm:$0x1]
      %v3003 = vld [vmem:[%s2591 + $0x84] sm:$0xf]
      %v3004 = vld [vmem:[%s2591 + $0x88] sm:$0xf]
      %v3005 = vld [vmem:[%s2591 + $0x8c] sm:$0x1]
      %v3006 = vld [vmem:[%s2591 + $0x90] sm:$0xf]
      %v3007 = vld [vmem:[%s2591 + $0x94] sm:$0xf]
      %v3008 = vld [vmem:[%s2591 + $0x98] sm:$0x1]
      %v3009 = vld [vmem:[%s2591 + $0x9c] sm:$0xf]
      %v3010 = vld [vmem:[%s2591 + $0xa0] sm:$0xf]
      %v3011 = vld [vmem:[%s2591 + $0xa4] sm:$0x1]
      %v3012 = vld [vmem:[%s2591 + $0xa8] sm:$0xf]
      %v3013 = vld [vmem:[%s2591 + $0xac] sm:$0xf]
      %v3014 = vld [vmem:[%s2591 + $0xb0] sm:$0x1]
      %v3015 = vld [vmem:[%s2591 + $0xb4] sm:$0xf]
      %v3016 = vld [vmem:[%s2591 + $0xb8] sm:$0xf]
      %v3017 = vld [vmem:[%s2591 + $0xbc] sm:$0x1]
      %v3018 = vld [vmem:[#allocation3] sm:$0xff]
      %v3019 = vld [vmem:[#allocation3 + $0x8] sm:$0xff]
      %v3020 = vld [vmem:[#allocation3 + $0x10] sm:$0xff]
      %v3021 = vld [vmem:[#allocation3 + $0x18] sm:$0xff]
      %v3022 = vld [vmem:[#allocation3 + $0x20] sm:$0xff]
      %v3023 = vld [vmem:[#allocation3 + $0x28] sm:$0xff]
      %v3024 = vld [vmem:[#allocation3 + $0x30] sm:$0xff]
      %v3025 = vld [vmem:[#allocation3 + $0x38] sm:$0xff]
      %v3026 = vld [vmem:[#allocation3 + $0x40] sm:$0xff]
      %v3027 = vld [vmem:[#allocation3 + $0x48] sm:$0xff]
      %v3028 = vld [vmem:[#allocation3 + $0x50] sm:$0xff]
      %v3029 = vld [vmem:[#allocation3 + $0x58] sm:$0xff]
      %v3030 = vld [vmem:[#allocation3 + $0x60] sm:$0xff]
      %v3031 = vld [vmem:[#allocation3 + $0x68] sm:$0xff]
      %v3032 = vld [vmem:[#allocation3 + $0x70] sm:$0xff]
      %v3033 = vld [vmem:[#allocation3 + $0x78] sm:$0xff]
      %v3034 = vld [vmem:[#allocation3 + $0x80] sm:$0xff]
      %v3035 = vld [vmem:[#allocation3 + $0x88] sm:$0xff]
      %v3036 = vld [vmem:[#allocation3 + $0x90] sm:$0xff]
      %v3037 = vld [vmem:[#allocation3 + $0x98] sm:$0xff]
      %v3038 = vld [vmem:[#allocation3 + $0xa0] sm:$0xff]
      %v3039 = vld [vmem:[#allocation3 + $0xa8] sm:$0xff]
      %v3040 = vld [vmem:[#allocation3 + $0xb0] sm:$0xff]
      %v3041 = vld [vmem:[#allocation3 + $0xb8] sm:$0xff]
      %v3042 = vld [vmem:[#allocation3 + $0xc0] sm:$0xff]
      %v3043 = vld [vmem:[#allocation3 + $0xc8] sm:$0xff]
      %v3044 = vld [vmem:[#allocation3 + $0xd0] sm:$0xff]
      %v3045 = vld [vmem:[#allocation3 + $0xd8] sm:$0xff]
      %v3046 = vld [vmem:[#allocation3 + $0xe0] sm:$0xff]
      %v3047 = vld [vmem:[#allocation3 + $0xe8] sm:$0xff]
      %v3048 = vld [vmem:[#allocation3 + $0xf0] sm:$0xff]
      %v3049 = vld [vmem:[#allocation3 + $0xf8] sm:$0xff]
      %v3051 = vshrl.u32 %v2970, 16
      %v3053 = vrot.slane %v3051, 4
      %v3054 = vshll.u32 %v2970, 16
      %v3056 = vrot.slane %v3054, 5
      %v3057 = vor.u32 %v3053, %v3056
      %v3058 = vrot.slane %v3057, 4
      %v3060 = vshll.u32 %v2971, 16
      %v3062 = vrot.slane %v3060, 5
      %v3063 = vsel %vm1396, %v3058, %v3062
      %v3064 = vshrl.u32 %v2971, 16
      %v3066 = vrot.slane %v3064, 4
      %v3067 = vor.u32 %v3066, %v3062
      %v3068 = vrot.slane %v3067, 4
      %v3070 = vshll.u32 %v2972, 16
      %v3072 = vrot.slane %v3070, 5
      %v3073 = vsel %vm1396, %v3068, %v3072
      %v3075 = vshrl.u32 %v2973, 16
      %v3077 = vrot.slane %v3075, 4
      %v3078 = vshll.u32 %v2973, 16
      %v3080 = vrot.slane %v3078, 5
      %v3081 = vor.u32 %v3077, %v3080
      %v3082 = vrot.slane %v3081, 4
      %v3084 = vshll.u32 %v2974, 16
      %v3086 = vrot.slane %v3084, 5
      %v3087 = vsel %vm1396, %v3082, %v3086
      %v3088 = vshrl.u32 %v2974, 16
      %v3090 = vrot.slane %v3088, 4
      %v3091 = vor.u32 %v3090, %v3086
      %v3092 = vrot.slane %v3091, 4
      %v3094 = vshll.u32 %v2975, 16
      %v3096 = vrot.slane %v3094, 5
      %v3097 = vsel %vm1396, %v3092, %v3096
      %v3099 = vshrl.u32 %v2976, 16
      %v3101 = vrot.slane %v3099, 4
      %v3102 = vshll.u32 %v2976, 16
      %v3104 = vrot.slane %v3102, 5
      %v3105 = vor.u32 %v3101, %v3104
      %v3106 = vrot.slane %v3105, 4
      %v3108 = vshll.u32 %v2977, 16
      %v3110 = vrot.slane %v3108, 5
      %v3111 = vsel %vm1396, %v3106, %v3110
      %v3112 = vshrl.u32 %v2977, 16
      %v3114 = vrot.slane %v3112, 4
      %v3115 = vor.u32 %v3114, %v3110
      %v3116 = vrot.slane %v3115, 4
      %v3118 = vshll.u32 %v2978, 16
      %v3120 = vrot.slane %v3118, 5
      %v3121 = vsel %vm1396, %v3116, %v3120
      %v3123 = vshrl.u32 %v2979, 16
      %v3125 = vrot.slane %v3123, 4
      %v3126 = vshll.u32 %v2979, 16
      %v3128 = vrot.slane %v3126, 5
      %v3129 = vor.u32 %v3125, %v3128
      %v3130 = vrot.slane %v3129, 4
      %v3132 = vshll.u32 %v2980, 16
      %v3134 = vrot.slane %v3132, 5
      %v3135 = vsel %vm1396, %v3130, %v3134
      %v3136 = vshrl.u32 %v2980, 16
      %v3138 = vrot.slane %v3136, 4
      %v3139 = vor.u32 %v3138, %v3134
      %v3140 = vrot.slane %v3139, 4
      %v3142 = vshll.u32 %v2981, 16
      %v3144 = vrot.slane %v3142, 5
      %v3145 = vsel %vm1396, %v3140, %v3144
      %v3147 = vshrl.u32 %v2982, 16
      %v3149 = vrot.slane %v3147, 4
      %v3150 = vshll.u32 %v2982, 16
      %v3152 = vrot.slane %v3150, 5
      %v3153 = vor.u32 %v3149, %v3152
      %v3154 = vrot.slane %v3153, 4
      %v3156 = vshll.u32 %v2983, 16
      %v3158 = vrot.slane %v3156, 5
      %v3159 = vsel %vm1396, %v3154, %v3158
      %v3160 = vshrl.u32 %v2983, 16
      %v3162 = vrot.slane %v3160, 4
      %v3163 = vor.u32 %v3162, %v3158
      %v3164 = vrot.slane %v3163, 4
      %v3166 = vshll.u32 %v2984, 16
      %v3168 = vrot.slane %v3166, 5
      %v3169 = vsel %vm1396, %v3164, %v3168
      %v3171 = vshrl.u32 %v2985, 16
      %v3173 = vrot.slane %v3171, 4
      %v3174 = vshll.u32 %v2985, 16
      %v3176 = vrot.slane %v3174, 5
      %v3177 = vor.u32 %v3173, %v3176
      %v3178 = vrot.slane %v3177, 4
      %v3180 = vshll.u32 %v2986, 16
      %v3182 = vrot.slane %v3180, 5
      %v3183 = vsel %vm1396, %v3178, %v3182
      %v3184 = vshrl.u32 %v2986, 16
      %v3186 = vrot.slane %v3184, 4
      %v3187 = vor.u32 %v3186, %v3182
      %v3188 = vrot.slane %v3187, 4
      %v3190 = vshll.u32 %v2987, 16
      %v3192 = vrot.slane %v3190, 5
      %v3193 = vsel %vm1396, %v3188, %v3192
      %v3195 = vshrl.u32 %v2988, 16
      %v3197 = vrot.slane %v3195, 4
      %v3198 = vshll.u32 %v2988, 16
      %v3200 = vrot.slane %v3198, 5
      %v3201 = vor.u32 %v3197, %v3200
      %v3202 = vrot.slane %v3201, 4
      %v3204 = vshll.u32 %v2989, 16
      %v3206 = vrot.slane %v3204, 5
      %v3207 = vsel %vm1396, %v3202, %v3206
      %v3208 = vshrl.u32 %v2989, 16
      %v3210 = vrot.slane %v3208, 4
      %v3211 = vor.u32 %v3210, %v3206
      %v3212 = vrot.slane %v3211, 4
      %v3214 = vshll.u32 %v2990, 16
      %v3216 = vrot.slane %v3214, 5
      %v3217 = vsel %vm1396, %v3212, %v3216
      %v3219 = vshrl.u32 %v2991, 16
      %v3221 = vrot.slane %v3219, 4
      %v3222 = vshll.u32 %v2991, 16
      %v3224 = vrot.slane %v3222, 5
      %v3225 = vor.u32 %v3221, %v3224
      %v3226 = vrot.slane %v3225, 4
      %v3228 = vshll.u32 %v2992, 16
      %v3230 = vrot.slane %v3228, 5
      %v3231 = vsel %vm1396, %v3226, %v3230
      %v3232 = vshrl.u32 %v2992, 16
      %v3234 = vrot.slane %v3232, 4
      %v3235 = vor.u32 %v3234, %v3230
      %v3236 = vrot.slane %v3235, 4
      %v3238 = vshll.u32 %v2993, 16
      %v3240 = vrot.slane %v3238, 5
      %v3241 = vsel %vm1396, %v3236, %v3240
      %v3243 = vshrl.u32 %v2994, 16
      %v3245 = vrot.slane %v3243, 4
      %v3246 = vshll.u32 %v2994, 16
      %v3248 = vrot.slane %v3246, 5
      %v3249 = vor.u32 %v3245, %v3248
      %v3250 = vrot.slane %v3249, 4
      %v3252 = vshll.u32 %v2995, 16
      %v3254 = vrot.slane %v3252, 5
      %v3255 = vsel %vm1396, %v3250, %v3254
      %v3256 = vshrl.u32 %v2995, 16
      %v3258 = vrot.slane %v3256, 4
      %v3259 = vor.u32 %v3258, %v3254
      %v3260 = vrot.slane %v3259, 4
      %v3262 = vshll.u32 %v2996, 16
      %v3264 = vrot.slane %v3262, 5
      %v3265 = vsel %vm1396, %v3260, %v3264
      %v3267 = vshrl.u32 %v2997, 16
      %v3269 = vrot.slane %v3267, 4
      %v3270 = vshll.u32 %v2997, 16
      %v3272 = vrot.slane %v3270, 5
      %v3273 = vor.u32 %v3269, %v3272
      %v3274 = vrot.slane %v3273, 4
      %v3276 = vshll.u32 %v2998, 16
      %v3278 = vrot.slane %v3276, 5
      %v3279 = vsel %vm1396, %v3274, %v3278
      %v3280 = vshrl.u32 %v2998, 16
      %v3282 = vrot.slane %v3280, 4
      %v3283 = vor.u32 %v3282, %v3278
      %v3284 = vrot.slane %v3283, 4
      %v3286 = vshll.u32 %v2999, 16
      %v3288 = vrot.slane %v3286, 5
      %v3289 = vsel %vm1396, %v3284, %v3288
      %v3291 = vshrl.u32 %v3000, 16
      %v3293 = vrot.slane %v3291, 4
      %v3294 = vshll.u32 %v3000, 16
      %v3296 = vrot.slane %v3294, 5
      %v3297 = vor.u32 %v3293, %v3296
      %v3298 = vrot.slane %v3297, 4
      %v3300 = vshll.u32 %v3001, 16
      %v3302 = vrot.slane %v3300, 5
      %v3303 = vsel %vm1396, %v3298, %v3302
      %v3304 = vshrl.u32 %v3001, 16
      %v3306 = vrot.slane %v3304, 4
      %v3307 = vor.u32 %v3306, %v3302
      %v3308 = vrot.slane %v3307, 4
      %v3310 = vshll.u32 %v3002, 16
      %v3312 = vrot.slane %v3310, 5
      %v3313 = vsel %vm1396, %v3308, %v3312
      %v3315 = vshrl.u32 %v3003, 16
      %v3317 = vrot.slane %v3315, 4
      %v3318 = vshll.u32 %v3003, 16
      %v3320 = vrot.slane %v3318, 5
      %v3321 = vor.u32 %v3317, %v3320
      %v3322 = vrot.slane %v3321, 4
      %v3324 = vshll.u32 %v3004, 16
      %v3326 = vrot.slane %v3324, 5
      %v3327 = vsel %vm1396, %v3322, %v3326
      %v3328 = vshrl.u32 %v3004, 16
      %v3330 = vrot.slane %v3328, 4
      %v3331 = vor.u32 %v3330, %v3326
      %v3332 = vrot.slane %v3331, 4
      %v3334 = vshll.u32 %v3005, 16
      %v3336 = vrot.slane %v3334, 5
      %v3337 = vsel %vm1396, %v3332, %v3336
      %v3339 = vshrl.u32 %v3006, 16
      %v3341 = vrot.slane %v3339, 4
      %v3342 = vshll.u32 %v3006, 16
      %v3344 = vrot.slane %v3342, 5
      %v3345 = vor.u32 %v3341, %v3344
      %v3346 = vrot.slane %v3345, 4
      %v3348 = vshll.u32 %v3007, 16
      %v3350 = vrot.slane %v3348, 5
      %v3351 = vsel %vm1396, %v3346, %v3350
      %v3352 = vshrl.u32 %v3007, 16
      %v3354 = vrot.slane %v3352, 4
      %v3355 = vor.u32 %v3354, %v3350
      %v3356 = vrot.slane %v3355, 4
      %v3358 = vshll.u32 %v3008, 16
      %v3360 = vrot.slane %v3358, 5
      %v3361 = vsel %vm1396, %v3356, %v3360
      %v3363 = vshrl.u32 %v3009, 16
      %v3365 = vrot.slane %v3363, 4
      %v3366 = vshll.u32 %v3009, 16
      %v3368 = vrot.slane %v3366, 5
      %v3369 = vor.u32 %v3365, %v3368
      %v3370 = vrot.slane %v3369, 4
      %v3372 = vshll.u32 %v3010, 16
      %v3374 = vrot.slane %v3372, 5
      %v3375 = vsel %vm1396, %v3370, %v3374
      %v3376 = vshrl.u32 %v3010, 16
      %v3378 = vrot.slane %v3376, 4
      %v3379 = vor.u32 %v3378, %v3374
      %v3380 = vrot.slane %v3379, 4
      %v3382 = vshll.u32 %v3011, 16
      %v3384 = vrot.slane %v3382, 5
      %v3385 = vsel %vm1396, %v3380, %v3384
      %v3387 = vshrl.u32 %v3012, 16
      %v3389 = vrot.slane %v3387, 4
      %v3390 = vshll.u32 %v3012, 16
      %v3392 = vrot.slane %v3390, 5
      %v3393 = vor.u32 %v3389, %v3392
      %v3394 = vrot.slane %v3393, 4
      %v3396 = vshll.u32 %v3013, 16
      %v3398 = vrot.slane %v3396, 5
      %v3399 = vsel %vm1396, %v3394, %v3398
      %v3400 = vshrl.u32 %v3013, 16
      %v3402 = vrot.slane %v3400, 4
      %v3403 = vor.u32 %v3402, %v3398
      %v3404 = vrot.slane %v3403, 4
      %v3406 = vshll.u32 %v3014, 16
      %v3408 = vrot.slane %v3406, 5
      %v3409 = vsel %vm1396, %v3404, %v3408
      %v3411 = vshrl.u32 %v3015, 16
      %v3413 = vrot.slane %v3411, 4
      %v3414 = vshll.u32 %v3015, 16
      %v3416 = vrot.slane %v3414, 5
      %v3417 = vor.u32 %v3413, %v3416
      %v3418 = vrot.slane %v3417, 4
      %v3420 = vshll.u32 %v3016, 16
      %v3422 = vrot.slane %v3420, 5
      %v3423 = vsel %vm1396, %v3418, %v3422
      %v3424 = vshrl.u32 %v3016, 16
      %v3426 = vrot.slane %v3424, 4
      %v3427 = vor.u32 %v3426, %v3422
      %v3428 = vrot.slane %v3427, 4
      %v3430 = vshll.u32 %v3017, 16
      %v3432 = vrot.slane %v3430, 5
      %v3433 = vsel %vm1396, %v3428, %v3432
      %s3434 = scalar_lea.vmem %s2, 256
      %v3435 = vld [vmem:[%s3434] sm:$0xf]
      %v3436 = vld [vmem:[%s3434 + $0x4] sm:$0xf]
      %v3437 = vld [vmem:[%s3434 + $0x8] sm:$0xf]
      %v3438 = vld [vmem:[%s3434 + $0xc] sm:$0xf]
      %v3439 = vld [vmem:[%s3434 + $0x10] sm:$0xf]
      %v3440 = vld [vmem:[%s3434 + $0x14] sm:$0xf]
      %v3441 = vld [vmem:[%s3434 + $0x18] sm:$0xf]
      %v3442 = vld [vmem:[%s3434 + $0x1c] sm:$0xf]
      %v3443 = vld [vmem:[%s3434 + $0x20] sm:$0xf]
      %v3444 = vld [vmem:[%s3434 + $0x24] sm:$0xf]
      %v3445 = vld [vmem:[%s3434 + $0x28] sm:$0xf]
      %v3446 = vld [vmem:[%s3434 + $0x2c] sm:$0xf]
      %v3447 = vld [vmem:[%s3434 + $0x30] sm:$0xf]
      %v3448 = vld [vmem:[%s3434 + $0x34] sm:$0xf]
      %v3449 = vld [vmem:[%s3434 + $0x38] sm:$0xf]
      %v3450 = vld [vmem:[%s3434 + $0x3c] sm:$0xf]
      %v3451 = vunpack.c.l.b16 %v3063
      %v3452 = vunpack.c.l.b16 %v3073
      %v3453 = vunpack.c.l.b16 %v3087
      %v3454 = vunpack.c.l.b16 %v3097
      %v3455 = vunpack.c.l.b16 %v3111
      %v3456 = vunpack.c.l.b16 %v3121
      %v3457 = vunpack.c.l.b16 %v3135
      %v3458 = vunpack.c.l.b16 %v3145
      %v3459 = vunpack.c.l.b16 %v3159
      %v3460 = vunpack.c.l.b16 %v3169
      %v3461 = vunpack.c.l.b16 %v3183
      %v3462 = vunpack.c.l.b16 %v3193
      %v3463 = vunpack.c.l.b16 %v3207
      %v3464 = vunpack.c.l.b16 %v3217
      %v3465 = vunpack.c.l.b16 %v3231
      %v3466 = vunpack.c.l.b16 %v3241
      %v3467 = vunpack.c.l.b16 %v3255
      %v3468 = vunpack.c.l.b16 %v3265
      %v3469 = vunpack.c.l.b16 %v3279
      %v3470 = vunpack.c.l.b16 %v3289
      %v3471 = vunpack.c.l.b16 %v3303
      %v3472 = vunpack.c.l.b16 %v3313
      %v3473 = vunpack.c.l.b16 %v3327
      %v3474 = vunpack.c.l.b16 %v3337
      %v3475 = vunpack.c.l.b16 %v3351
      %v3476 = vunpack.c.l.b16 %v3361
      %v3477 = vunpack.c.l.b16 %v3375
      %v3478 = vunpack.c.l.b16 %v3385
      %v3479 = vunpack.c.l.b16 %v3399
      %v3480 = vunpack.c.l.b16 %v3409
      %v3481 = vunpack.c.l.b16 %v3423
      %v3482 = vunpack.c.l.b16 %v3433
      %v3483 = vpack.c.b16 %v3452, %v3451
      %v3484 = vpack.c.b16 %v3454, %v3453
      %v3485 = vpack.c.b16 %v3456, %v3455
      %v3486 = vpack.c.b16 %v3458, %v3457
      %v3487 = vpack.c.b16 %v3460, %v3459
      %v3488 = vpack.c.b16 %v3462, %v3461
      %v3489 = vpack.c.b16 %v3464, %v3463
      %v3490 = vpack.c.b16 %v3466, %v3465
      %v3491 = vpack.c.b16 %v3468, %v3467
      %v3492 = vpack.c.b16 %v3470, %v3469
      %v3493 = vpack.c.b16 %v3472, %v3471
      %v3494 = vpack.c.b16 %v3474, %v3473
      %v3495 = vpack.c.b16 %v3476, %v3475
      %v3496 = vpack.c.b16 %v3478, %v3477
      %v3497 = vpack.c.b16 %v3480, %v3479
      %v3498 = vpack.c.b16 %v3482, %v3481
      %v3531 = vunpack.c.l.b16 %v3435
      %v3532 = vunpack.c.l.b16 %v3436
      %v3533 = vunpack.c.l.b16 %v3437
      %v3534 = vunpack.c.l.b16 %v3438
      %v3535 = vunpack.c.l.b16 %v3439
      %v3536 = vunpack.c.l.b16 %v3440
      %v3537 = vunpack.c.l.b16 %v3441
      %v3538 = vunpack.c.l.b16 %v3442
      %v3539 = vunpack.c.l.b16 %v3443
      %v3540 = vunpack.c.l.b16 %v3444
      %v3541 = vunpack.c.l.b16 %v3445
      %v3542 = vunpack.c.l.b16 %v3446
      %v3543 = vunpack.c.l.b16 %v3447
      %v3544 = vunpack.c.l.b16 %v3448
      %v3545 = vunpack.c.l.b16 %v3449
      %v3546 = vunpack.c.l.b16 %v3450
      %v3547 = vpack.c.b16 %v3532, %v3531
      %v3548 = vpack.c.b16 %v3534, %v3533
      %v3549 = vpack.c.b16 %v3536, %v3535
      %v3550 = vpack.c.b16 %v3538, %v3537
      %v3551 = vpack.c.b16 %v3540, %v3539
      %v3552 = vpack.c.b16 %v3542, %v3541
      %v3553 = vpack.c.b16 %v3544, %v3543
      %v3554 = vpack.c.b16 %v3546, %v3545
      %3563 = vmatpush.bf16.msra.mxu0 %v3554
      %3564 = vmatpush.bf16.msra.mxu0 %v3553
      %3565 = vmatpush.bf16.msra.mxu0 %v3552
      %3566 = vmatpush.bf16.msra.mxu0 %v3551
      %3567 = vmatpush.bf16.msra.mxu0 %v3550
      %3568 = vmatpush.bf16.msra.mxu0 %v3549
      %3569 = vmatpush.bf16.msra.mxu0 %v3548
      %3570 = vmatpush.bf16.msra.mxu0 %v3547
      %3571 = vmatmul.bf16.gmra.mxu0 %v3483
      %v3572 = vpop.f32.mrf.mxu0
      %v3573 = vadd.f32 0.0, %v3572
      %v3574 = vpop.f32.mrf.mxu0
      %v3575 = vadd.f32 0.0, %v3574
      %3576 = vmatmul.bf16.gmra.mxu0 %v3484
      %v3577 = vpop.f32.mrf.mxu0
      %v3578 = vadd.f32 0.0, %v3577
      %v3579 = vpop.f32.mrf.mxu0
      %v3580 = vadd.f32 0.0, %v3579
      %3581 = vmatmul.bf16.gmra.mxu0 %v3485
      %v3582 = vpop.f32.mrf.mxu0
      %v3583 = vadd.f32 0.0, %v3582
      %v3584 = vpop.f32.mrf.mxu0
      %v3585 = vadd.f32 0.0, %v3584
      %3586 = vmatmul.bf16.gmra.mxu0 %v3486
      %v3587 = vpop.f32.mrf.mxu0
      %v3588 = vadd.f32 0.0, %v3587
      %v3589 = vpop.f32.mrf.mxu0
      %v3590 = vadd.f32 0.0, %v3589
      %3591 = vmatmul.bf16.gmra.mxu0 %v3487
      %v3592 = vpop.f32.mrf.mxu0
      %v3593 = vadd.f32 0.0, %v3592
      %v3594 = vpop.f32.mrf.mxu0
      %v3595 = vadd.f32 0.0, %v3594
      %3596 = vmatmul.bf16.gmra.mxu0 %v3488
      %v3597 = vpop.f32.mrf.mxu0
      %v3598 = vadd.f32 0.0, %v3597
      %v3599 = vpop.f32.mrf.mxu0
      %v3600 = vadd.f32 0.0, %v3599
      %3601 = vmatmul.bf16.gmra.mxu0 %v3489
      %v3602 = vpop.f32.mrf.mxu0
      %v3603 = vadd.f32 0.0, %v3602
      %v3604 = vpop.f32.mrf.mxu0
      %v3605 = vadd.f32 0.0, %v3604
      %3606 = vmatmul.bf16.gmra.mxu0 %v3490
      %v3607 = vpop.f32.mrf.mxu0
      %v3608 = vadd.f32 0.0, %v3607
      %v3609 = vpop.f32.mrf.mxu0
      %v3610 = vadd.f32 0.0, %v3609
      %3611 = vmatmul.bf16.gmra.mxu0 %v3491
      %v3612 = vpop.f32.mrf.mxu0
      %v3613 = vadd.f32 0.0, %v3612
      %v3614 = vpop.f32.mrf.mxu0
      %v3615 = vadd.f32 0.0, %v3614
      %3616 = vmatmul.bf16.gmra.mxu0 %v3492
      %v3617 = vpop.f32.mrf.mxu0
      %v3618 = vadd.f32 0.0, %v3617
      %v3619 = vpop.f32.mrf.mxu0
      %v3620 = vadd.f32 0.0, %v3619
      %3621 = vmatmul.bf16.gmra.mxu0 %v3493
      %v3622 = vpop.f32.mrf.mxu0
      %v3623 = vadd.f32 0.0, %v3622
      %v3624 = vpop.f32.mrf.mxu0
      %v3625 = vadd.f32 0.0, %v3624
      %3626 = vmatmul.bf16.gmra.mxu0 %v3494
      %v3627 = vpop.f32.mrf.mxu0
      %v3628 = vadd.f32 0.0, %v3627
      %v3629 = vpop.f32.mrf.mxu0
      %v3630 = vadd.f32 0.0, %v3629
      %3631 = vmatmul.bf16.gmra.mxu0 %v3495
      %v3632 = vpop.f32.mrf.mxu0
      %v3633 = vadd.f32 0.0, %v3632
      %v3634 = vpop.f32.mrf.mxu0
      %v3635 = vadd.f32 0.0, %v3634
      %3636 = vmatmul.bf16.gmra.mxu0 %v3496
      %v3637 = vpop.f32.mrf.mxu0
      %v3638 = vadd.f32 0.0, %v3637
      %v3639 = vpop.f32.mrf.mxu0
      %v3640 = vadd.f32 0.0, %v3639
      %3641 = vmatmul.bf16.gmra.mxu0 %v3497
      %v3642 = vpop.f32.mrf.mxu0
      %v3643 = vadd.f32 0.0, %v3642
      %v3644 = vpop.f32.mrf.mxu0
      %v3645 = vadd.f32 0.0, %v3644
      %3646 = vmatmul.bf16.gmra.mxu0 %v3498
      %v3647 = vpop.f32.mrf.mxu0
      %v3648 = vadd.f32 0.0, %v3647
      %v3649 = vpop.f32.mrf.mxu0
      %v3650 = vadd.f32 0.0, %v3649
      %3651 = vdwg.mxu0
      %v3652 = vadd.f32 %v3018, %v3573
      %v3653 = vadd.f32 %v3019, %v3575
      %v3654 = vadd.f32 %v3020, %v3578
      %v3655 = vadd.f32 %v3021, %v3580
      %v3656 = vadd.f32 %v3022, %v3583
      %v3657 = vadd.f32 %v3023, %v3585
      %v3658 = vadd.f32 %v3024, %v3588
      %v3659 = vadd.f32 %v3025, %v3590
      %v3660 = vadd.f32 %v3026, %v3593
      %v3661 = vadd.f32 %v3027, %v3595
      %v3662 = vadd.f32 %v3028, %v3598
      %v3663 = vadd.f32 %v3029, %v3600
      %v3664 = vadd.f32 %v3030, %v3603
      %v3665 = vadd.f32 %v3031, %v3605
      %v3666 = vadd.f32 %v3032, %v3608
      %v3667 = vadd.f32 %v3033, %v3610
      %v3668 = vadd.f32 %v3034, %v3613
      %v3669 = vadd.f32 %v3035, %v3615
      %v3670 = vadd.f32 %v3036, %v3618
      %v3671 = vadd.f32 %v3037, %v3620
      %v3672 = vadd.f32 %v3038, %v3623
      %v3673 = vadd.f32 %v3039, %v3625
      %v3674 = vadd.f32 %v3040, %v3628
      %v3675 = vadd.f32 %v3041, %v3630
      %v3676 = vadd.f32 %v3042, %v3633
      %v3677 = vadd.f32 %v3043, %v3635
      %v3678 = vadd.f32 %v3044, %v3638
      %v3679 = vadd.f32 %v3045, %v3640
      %v3680 = vadd.f32 %v3046, %v3643
      %v3681 = vadd.f32 %v3047, %v3645
      %v3682 = vadd.f32 %v3048, %v3648
      %v3683 = vadd.f32 %v3049, %v3650
      %3684 = vst [vmem:[#allocation3] sm:$0xff] %v3652
      %3685 = vst [vmem:[#allocation3 + $0x8] sm:$0xff] %v3653
      %3686 = vst [vmem:[#allocation3 + $0x10] sm:$0xff] %v3654
      %3687 = vst [vmem:[#allocation3 + $0x18] sm:$0xff] %v3655
      %3688 = vst [vmem:[#allocation3 + $0x20] sm:$0xff] %v3656
      %3689 = vst [vmem:[#allocation3 + $0x28] sm:$0xff] %v3657
      %3690 = vst [vmem:[#allocation3 + $0x30] sm:$0xff] %v3658
      %3691 = vst [vmem:[#allocation3 + $0x38] sm:$0xff] %v3659
      %3692 = vst [vmem:[#allocation3 + $0x40] sm:$0xff] %v3660
      %3693 = vst [vmem:[#allocation3 + $0x48] sm:$0xff] %v3661
      %3694 = vst [vmem:[#allocation3 + $0x50] sm:$0xff] %v3662
      %3695 = vst [vmem:[#allocation3 + $0x58] sm:$0xff] %v3663
      %3696 = vst [vmem:[#allocation3 + $0x60] sm:$0xff] %v3664
      %3697 = vst [vmem:[#allocation3 + $0x68] sm:$0xff] %v3665
      %3698 = vst [vmem:[#allocation3 + $0x70] sm:$0xff] %v3666
      %3699 = vst [vmem:[#allocation3 + $0x78] sm:$0xff] %v3667
      %3700 = vst [vmem:[#allocation3 + $0x80] sm:$0xff] %v3668
      %3701 = vst [vmem:[#allocation3 + $0x88] sm:$0xff] %v3669
      %3702 = vst [vmem:[#allocation3 + $0x90] sm:$0xff] %v3670
      %3703 = vst [vmem:[#allocation3 + $0x98] sm:$0xff] %v3671
      %3704 = vst [vmem:[#allocation3 + $0xa0] sm:$0xff] %v3672
      %3705 = vst [vmem:[#allocation3 + $0xa8] sm:$0xff] %v3673
      %3706 = vst [vmem:[#allocation3 + $0xb0] sm:$0xff] %v3674
      %3707 = vst [vmem:[#allocation3 + $0xb8] sm:$0xff] %v3675
      %3708 = vst [vmem:[#allocation3 + $0xc0] sm:$0xff] %v3676
      %3709 = vst [vmem:[#allocation3 + $0xc8] sm:$0xff] %v3677
      %3710 = vst [vmem:[#allocation3 + $0xd0] sm:$0xff] %v3678
      %3711 = vst [vmem:[#allocation3 + $0xd8] sm:$0xff] %v3679
      %3712 = vst [vmem:[#allocation3 + $0xe0] sm:$0xff] %v3680
      %3713 = vst [vmem:[#allocation3 + $0xe8] sm:$0xff] %v3681
      %3714 = vst [vmem:[#allocation3 + $0xf0] sm:$0xff] %v3682
      %3715 = vst [vmem:[#allocation3 + $0xf8] sm:$0xff] %v3683
      %v3716 = vld [vmem:[%s2591] sm:$0xe]
      %v3717 = vld [vmem:[%s2591 + $0x4] sm:$0xf]
      %v3718 = vld [vmem:[%s2591 + $0x8] sm:$0x1]
      %v3719 = vld [vmem:[%s2591 + $0xc] sm:$0xe]
      %v3720 = vld [vmem:[%s2591 + $0x10] sm:$0xf]
      %v3721 = vld [vmem:[%s2591 + $0x14] sm:$0x1]
      %v3722 = vld [vmem:[%s2591 + $0x18] sm:$0xe]
      %v3723 = vld [vmem:[%s2591 + $0x1c] sm:$0xf]
      %v3724 = vld [vmem:[%s2591 + $0x20] sm:$0x1]
      %v3725 = vld [vmem:[%s2591 + $0x24] sm:$0xe]
      %v3726 = vld [vmem:[%s2591 + $0x28] sm:$0xf]
      %v3727 = vld [vmem:[%s2591 + $0x2c] sm:$0x1]
      %v3728 = vld [vmem:[%s2591 + $0x30] sm:$0xe]
      %v3729 = vld [vmem:[%s2591 + $0x34] sm:$0xf]
      %v3730 = vld [vmem:[%s2591 + $0x38] sm:$0x1]
      %v3731 = vld [vmem:[%s2591 + $0x3c] sm:$0xe]
      %v3732 = vld [vmem:[%s2591 + $0x40] sm:$0xf]
      %v3733 = vld [vmem:[%s2591 + $0x44] sm:$0x1]
      %v3734 = vld [vmem:[%s2591 + $0x48] sm:$0xe]
      %v3735 = vld [vmem:[%s2591 + $0x4c] sm:$0xf]
      %v3736 = vld [vmem:[%s2591 + $0x50] sm:$0x1]
      %v3737 = vld [vmem:[%s2591 + $0x54] sm:$0xe]
      %v3738 = vld [vmem:[%s2591 + $0x58] sm:$0xf]
      %v3739 = vld [vmem:[%s2591 + $0x5c] sm:$0x1]
      %v3740 = vld [vmem:[%s2591 + $0x60] sm:$0xe]
      %v3741 = vld [vmem:[%s2591 + $0x64] sm:$0xf]
      %v3742 = vld [vmem:[%s2591 + $0x68] sm:$0x1]
      %v3743 = vld [vmem:[%s2591 + $0x6c] sm:$0xe]
      %v3744 = vld [vmem:[%s2591 + $0x70] sm:$0xf]
      %v3745 = vld [vmem:[%s2591 + $0x74] sm:$0x1]
      %v3746 = vld [vmem:[%s2591 + $0x78] sm:$0xe]
      %v3747 = vld [vmem:[%s2591 + $0x7c] sm:$0xf]
      %v3748 = vld [vmem:[%s2591 + $0x80] sm:$0x1]
      %v3749 = vld [vmem:[%s2591 + $0x84] sm:$0xe]
      %v3750 = vld [vmem:[%s2591 + $0x88] sm:$0xf]
      %v3751 = vld [vmem:[%s2591 + $0x8c] sm:$0x1]
      %v3752 = vld [vmem:[%s2591 + $0x90] sm:$0xe]
      %v3753 = vld [vmem:[%s2591 + $0x94] sm:$0xf]
      %v3754 = vld [vmem:[%s2591 + $0x98] sm:$0x1]
      %v3755 = vld [vmem:[%s2591 + $0x9c] sm:$0xe]
      %v3756 = vld [vmem:[%s2591 + $0xa0] sm:$0xf]
      %v3757 = vld [vmem:[%s2591 + $0xa4] sm:$0x1]
      %v3758 = vld [vmem:[%s2591 + $0xa8] sm:$0xe]
      %v3759 = vld [vmem:[%s2591 + $0xac] sm:$0xf]
      %v3760 = vld [vmem:[%s2591 + $0xb0] sm:$0x1]
      %v3761 = vld [vmem:[%s2591 + $0xb4] sm:$0xe]
      %v3762 = vld [vmem:[%s2591 + $0xb8] sm:$0xf]
      %v3763 = vld [vmem:[%s2591 + $0xbc] sm:$0x1]
      %v3764 = vld [vmem:[#allocation3] sm:$0xff]
      %v3765 = vld [vmem:[#allocation3 + $0x8] sm:$0xff]
      %v3766 = vld [vmem:[#allocation3 + $0x10] sm:$0xff]
      %v3767 = vld [vmem:[#allocation3 + $0x18] sm:$0xff]
      %v3768 = vld [vmem:[#allocation3 + $0x20] sm:$0xff]
      %v3769 = vld [vmem:[#allocation3 + $0x28] sm:$0xff]
      %v3770 = vld [vmem:[#allocation3 + $0x30] sm:$0xff]
      %v3771 = vld [vmem:[#allocation3 + $0x38] sm:$0xff]
      %v3772 = vld [vmem:[#allocation3 + $0x40] sm:$0xff]
      %v3773 = vld [vmem:[#allocation3 + $0x48] sm:$0xff]
      %v3774 = vld [vmem:[#allocation3 + $0x50] sm:$0xff]
      %v3775 = vld [vmem:[#allocation3 + $0x58] sm:$0xff]
      %v3776 = vld [vmem:[#allocation3 + $0x60] sm:$0xff]
      %v3777 = vld [vmem:[#allocation3 + $0x68] sm:$0xff]
      %v3778 = vld [vmem:[#allocation3 + $0x70] sm:$0xff]
      %v3779 = vld [vmem:[#allocation3 + $0x78] sm:$0xff]
      %v3780 = vld [vmem:[#allocation3 + $0x80] sm:$0xff]
      %v3781 = vld [vmem:[#allocation3 + $0x88] sm:$0xff]
      %v3782 = vld [vmem:[#allocation3 + $0x90] sm:$0xff]
      %v3783 = vld [vmem:[#allocation3 + $0x98] sm:$0xff]
      %v3784 = vld [vmem:[#allocation3 + $0xa0] sm:$0xff]
      %v3785 = vld [vmem:[#allocation3 + $0xa8] sm:$0xff]
      %v3786 = vld [vmem:[#allocation3 + $0xb0] sm:$0xff]
      %v3787 = vld [vmem:[#allocation3 + $0xb8] sm:$0xff]
      %v3788 = vld [vmem:[#allocation3 + $0xc0] sm:$0xff]
      %v3789 = vld [vmem:[#allocation3 + $0xc8] sm:$0xff]
      %v3790 = vld [vmem:[#allocation3 + $0xd0] sm:$0xff]
      %v3791 = vld [vmem:[#allocation3 + $0xd8] sm:$0xff]
      %v3792 = vld [vmem:[#allocation3 + $0xe0] sm:$0xff]
      %v3793 = vld [vmem:[#allocation3 + $0xe8] sm:$0xff]
      %v3794 = vld [vmem:[#allocation3 + $0xf0] sm:$0xff]
      %v3795 = vld [vmem:[#allocation3 + $0xf8] sm:$0xff]
      %v3844 = vrot.slane %v3716, 5
      %v3845 = vrot.slane %v3844, 4
      %v3846 = vrot.slane %v3717, 5
      %v3847 = vsel %vm2193, %v3845, %v3846
      %v3848 = vrot.slane %v3846, 4
      %v3849 = vrot.slane %v3718, 5
      %v3850 = vsel %vm2193, %v3848, %v3849
      %v3851 = vrot.slane %v3719, 5
      %v3852 = vrot.slane %v3851, 4
      %v3853 = vrot.slane %v3720, 5
      %v3854 = vsel %vm2193, %v3852, %v3853
      %v3855 = vrot.slane %v3853, 4
      %v3856 = vrot.slane %v3721, 5
      %v3857 = vsel %vm2193, %v3855, %v3856
      %v3858 = vrot.slane %v3722, 5
      %v3859 = vrot.slane %v3858, 4
      %v3860 = vrot.slane %v3723, 5
      %v3861 = vsel %vm2193, %v3859, %v3860
      %v3862 = vrot.slane %v3860, 4
      %v3863 = vrot.slane %v3724, 5
      %v3864 = vsel %vm2193, %v3862, %v3863
      %v3865 = vrot.slane %v3725, 5
      %v3866 = vrot.slane %v3865, 4
      %v3867 = vrot.slane %v3726, 5
      %v3868 = vsel %vm2193, %v3866, %v3867
      %v3869 = vrot.slane %v3867, 4
      %v3870 = vrot.slane %v3727, 5
      %v3871 = vsel %vm2193, %v3869, %v3870
      %v3872 = vrot.slane %v3728, 5
      %v3873 = vrot.slane %v3872, 4
      %v3874 = vrot.slane %v3729, 5
      %v3875 = vsel %vm2193, %v3873, %v3874
      %v3876 = vrot.slane %v3874, 4
      %v3877 = vrot.slane %v3730, 5
      %v3878 = vsel %vm2193, %v3876, %v3877
      %v3879 = vrot.slane %v3731, 5
      %v3880 = vrot.slane %v3879, 4
      %v3881 = vrot.slane %v3732, 5
      %v3882 = vsel %vm2193, %v3880, %v3881
      %v3883 = vrot.slane %v3881, 4
      %v3884 = vrot.slane %v3733, 5
      %v3885 = vsel %vm2193, %v3883, %v3884
      %v3886 = vrot.slane %v3734, 5
      %v3887 = vrot.slane %v3886, 4
      %v3888 = vrot.slane %v3735, 5
      %v3889 = vsel %vm2193, %v3887, %v3888
      %v3890 = vrot.slane %v3888, 4
      %v3891 = vrot.slane %v3736, 5
      %v3892 = vsel %vm2193, %v3890, %v3891
      %v3893 = vrot.slane %v3737, 5
      %v3894 = vrot.slane %v3893, 4
      %v3895 = vrot.slane %v3738, 5
      %v3896 = vsel %vm2193, %v3894, %v3895
      %v3897 = vrot.slane %v3895, 4
      %v3898 = vrot.slane %v3739, 5
      %v3899 = vsel %vm2193, %v3897, %v3898
      %v3900 = vrot.slane %v3740, 5
      %v3901 = vrot.slane %v3900, 4
      %v3902 = vrot.slane %v3741, 5
      %v3903 = vsel %vm2193, %v3901, %v3902
      %v3904 = vrot.slane %v3902, 4
      %v3905 = vrot.slane %v3742, 5
      %v3906 = vsel %vm2193, %v3904, %v3905
      %v3907 = vrot.slane %v3743, 5
      %v3908 = vrot.slane %v3907, 4
      %v3909 = vrot.slane %v3744, 5
      %v3910 = vsel %vm2193, %v3908, %v3909
      %v3911 = vrot.slane %v3909, 4
      %v3912 = vrot.slane %v3745, 5
      %v3913 = vsel %vm2193, %v3911, %v3912
      %v3914 = vrot.slane %v3746, 5
      %v3915 = vrot.slane %v3914, 4
      %v3916 = vrot.slane %v3747, 5
      %v3917 = vsel %vm2193, %v3915, %v3916
      %v3918 = vrot.slane %v3916, 4
      %v3919 = vrot.slane %v3748, 5
      %v3920 = vsel %vm2193, %v3918, %v3919
      %v3921 = vrot.slane %v3749, 5
      %v3922 = vrot.slane %v3921, 4
      %v3923 = vrot.slane %v3750, 5
      %v3924 = vsel %vm2193, %v3922, %v3923
      %v3925 = vrot.slane %v3923, 4
      %v3926 = vrot.slane %v3751, 5
      %v3927 = vsel %vm2193, %v3925, %v3926
      %v3928 = vrot.slane %v3752, 5
      %v3929 = vrot.slane %v3928, 4
      %v3930 = vrot.slane %v3753, 5
      %v3931 = vsel %vm2193, %v3929, %v3930
      %v3932 = vrot.slane %v3930, 4
      %v3933 = vrot.slane %v3754, 5
      %v3934 = vsel %vm2193, %v3932, %v3933
      %v3935 = vrot.slane %v3755, 5
      %v3936 = vrot.slane %v3935, 4
      %v3937 = vrot.slane %v3756, 5
      %v3938 = vsel %vm2193, %v3936, %v3937
      %v3939 = vrot.slane %v3937, 4
      %v3940 = vrot.slane %v3757, 5
      %v3941 = vsel %vm2193, %v3939, %v3940
      %v3942 = vrot.slane %v3758, 5
      %v3943 = vrot.slane %v3942, 4
      %v3944 = vrot.slane %v3759, 5
      %v3945 = vsel %vm2193, %v3943, %v3944
      %v3946 = vrot.slane %v3944, 4
      %v3947 = vrot.slane %v3760, 5
      %v3948 = vsel %vm2193, %v3946, %v3947
      %v3949 = vrot.slane %v3761, 5
      %v3950 = vrot.slane %v3949, 4
      %v3951 = vrot.slane %v3762, 5
      %v3952 = vsel %vm2193, %v3950, %v3951
      %v3953 = vrot.slane %v3951, 4
      %v3954 = vrot.slane %v3763, 5
      %v3955 = vsel %vm2193, %v3953, %v3954
      %s3956 = scalar_lea.vmem %s2, 320
      %v3957 = vld [vmem:[%s3956] sm:$0xf]
      %v3958 = vld [vmem:[%s3956 + $0x4] sm:$0xf]
      %v3959 = vld [vmem:[%s3956 + $0x8] sm:$0xf]
      %v3960 = vld [vmem:[%s3956 + $0xc] sm:$0xf]
      %v3961 = vld [vmem:[%s3956 + $0x10] sm:$0xf]
      %v3962 = vld [vmem:[%s3956 + $0x14] sm:$0xf]
      %v3963 = vld [vmem:[%s3956 + $0x18] sm:$0xf]
      %v3964 = vld [vmem:[%s3956 + $0x1c] sm:$0xf]
      %v3965 = vld [vmem:[%s3956 + $0x20] sm:$0xf]
      %v3966 = vld [vmem:[%s3956 + $0x24] sm:$0xf]
      %v3967 = vld [vmem:[%s3956 + $0x28] sm:$0xf]
      %v3968 = vld [vmem:[%s3956 + $0x2c] sm:$0xf]
      %v3969 = vld [vmem:[%s3956 + $0x30] sm:$0xf]
      %v3970 = vld [vmem:[%s3956 + $0x34] sm:$0xf]
      %v3971 = vld [vmem:[%s3956 + $0x38] sm:$0xf]
      %v3972 = vld [vmem:[%s3956 + $0x3c] sm:$0xf]
      %v3973 = vunpack.c.l.b16 %v3847
      %v3974 = vunpack.c.l.b16 %v3850
      %v3975 = vunpack.c.l.b16 %v3854
      %v3976 = vunpack.c.l.b16 %v3857
      %v3977 = vunpack.c.l.b16 %v3861
      %v3978 = vunpack.c.l.b16 %v3864
      %v3979 = vunpack.c.l.b16 %v3868
      %v3980 = vunpack.c.l.b16 %v3871
      %v3981 = vunpack.c.l.b16 %v3875
      %v3982 = vunpack.c.l.b16 %v3878
      %v3983 = vunpack.c.l.b16 %v3882
      %v3984 = vunpack.c.l.b16 %v3885
      %v3985 = vunpack.c.l.b16 %v3889
      %v3986 = vunpack.c.l.b16 %v3892
      %v3987 = vunpack.c.l.b16 %v3896
      %v3988 = vunpack.c.l.b16 %v3899
      %v3989 = vunpack.c.l.b16 %v3903
      %v3990 = vunpack.c.l.b16 %v3906
      %v3991 = vunpack.c.l.b16 %v3910
      %v3992 = vunpack.c.l.b16 %v3913
      %v3993 = vunpack.c.l.b16 %v3917
      %v3994 = vunpack.c.l.b16 %v3920
      %v3995 = vunpack.c.l.b16 %v3924
      %v3996 = vunpack.c.l.b16 %v3927
      %v3997 = vunpack.c.l.b16 %v3931
      %v3998 = vunpack.c.l.b16 %v3934
      %v3999 = vunpack.c.l.b16 %v3938
      %v4000 = vunpack.c.l.b16 %v3941
      %v4001 = vunpack.c.l.b16 %v3945
      %v4002 = vunpack.c.l.b16 %v3948
      %v4003 = vunpack.c.l.b16 %v3952
      %v4004 = vunpack.c.l.b16 %v3955
      %v4005 = vpack.c.b16 %v3974, %v3973
      %v4006 = vpack.c.b16 %v3976, %v3975
      %v4007 = vpack.c.b16 %v3978, %v3977
      %v4008 = vpack.c.b16 %v3980, %v3979
      %v4009 = vpack.c.b16 %v3982, %v3981
      %v4010 = vpack.c.b16 %v3984, %v3983
      %v4011 = vpack.c.b16 %v3986, %v3985
      %v4012 = vpack.c.b16 %v3988, %v3987
      %v4013 = vpack.c.b16 %v3990, %v3989
      %v4014 = vpack.c.b16 %v3992, %v3991
      %v4015 = vpack.c.b16 %v3994, %v3993
      %v4016 = vpack.c.b16 %v3996, %v3995
      %v4017 = vpack.c.b16 %v3998, %v3997
      %v4018 = vpack.c.b16 %v4000, %v3999
      %v4019 = vpack.c.b16 %v4002, %v4001
      %v4020 = vpack.c.b16 %v4004, %v4003
      %v4053 = vunpack.c.l.b16 %v3957
      %v4054 = vunpack.c.l.b16 %v3958
      %v4055 = vunpack.c.l.b16 %v3959
      %v4056 = vunpack.c.l.b16 %v3960
      %v4057 = vunpack.c.l.b16 %v3961
      %v4058 = vunpack.c.l.b16 %v3962
      %v4059 = vunpack.c.l.b16 %v3963
      %v4060 = vunpack.c.l.b16 %v3964
      %v4061 = vunpack.c.l.b16 %v3965
      %v4062 = vunpack.c.l.b16 %v3966
      %v4063 = vunpack.c.l.b16 %v3967
      %v4064 = vunpack.c.l.b16 %v3968
      %v4065 = vunpack.c.l.b16 %v3969
      %v4066 = vunpack.c.l.b16 %v3970
      %v4067 = vunpack.c.l.b16 %v3971
      %v4068 = vunpack.c.l.b16 %v3972
      %v4069 = vpack.c.b16 %v4054, %v4053
      %v4070 = vpack.c.b16 %v4056, %v4055
      %v4071 = vpack.c.b16 %v4058, %v4057
      %v4072 = vpack.c.b16 %v4060, %v4059
      %v4073 = vpack.c.b16 %v4062, %v4061
      %v4074 = vpack.c.b16 %v4064, %v4063
      %v4075 = vpack.c.b16 %v4066, %v4065
      %v4076 = vpack.c.b16 %v4068, %v4067
      %4085 = vmatpush.bf16.msra.mxu0 %v4076
      %4086 = vmatpush.bf16.msra.mxu0 %v4075
      %4087 = vmatpush.bf16.msra.mxu0 %v4074
      %4088 = vmatpush.bf16.msra.mxu0 %v4073
      %4089 = vmatpush.bf16.msra.mxu0 %v4072
      %4090 = vmatpush.bf16.msra.mxu0 %v4071
      %4091 = vmatpush.bf16.msra.mxu0 %v4070
      %4092 = vmatpush.bf16.msra.mxu0 %v4069
      %4093 = vmatmul.bf16.gmra.mxu0 %v4005
      %v4094 = vpop.f32.mrf.mxu0
      %v4095 = vadd.f32 0.0, %v4094
      %v4096 = vpop.f32.mrf.mxu0
      %v4097 = vadd.f32 0.0, %v4096
      %4098 = vmatmul.bf16.gmra.mxu0 %v4006
      %v4099 = vpop.f32.mrf.mxu0
      %v4100 = vadd.f32 0.0, %v4099
      %v4101 = vpop.f32.mrf.mxu0
      %v4102 = vadd.f32 0.0, %v4101
      %4103 = vmatmul.bf16.gmra.mxu0 %v4007
      %v4104 = vpop.f32.mrf.mxu0
      %v4105 = vadd.f32 0.0, %v4104
      %v4106 = vpop.f32.mrf.mxu0
      %v4107 = vadd.f32 0.0, %v4106
      %4108 = vmatmul.bf16.gmra.mxu0 %v4008
      %v4109 = vpop.f32.mrf.mxu0
      %v4110 = vadd.f32 0.0, %v4109
      %v4111 = vpop.f32.mrf.mxu0
      %v4112 = vadd.f32 0.0, %v4111
      %4113 = vmatmul.bf16.gmra.mxu0 %v4009
      %v4114 = vpop.f32.mrf.mxu0
      %v4115 = vadd.f32 0.0, %v4114
      %v4116 = vpop.f32.mrf.mxu0
      %v4117 = vadd.f32 0.0, %v4116
      %4118 = vmatmul.bf16.gmra.mxu0 %v4010
      %v4119 = vpop.f32.mrf.mxu0
      %v4120 = vadd.f32 0.0, %v4119
      %v4121 = vpop.f32.mrf.mxu0
      %v4122 = vadd.f32 0.0, %v4121
      %4123 = vmatmul.bf16.gmra.mxu0 %v4011
      %v4124 = vpop.f32.mrf.mxu0
      %v4125 = vadd.f32 0.0, %v4124
      %v4126 = vpop.f32.mrf.mxu0
      %v4127 = vadd.f32 0.0, %v4126
      %4128 = vmatmul.bf16.gmra.mxu0 %v4012
      %v4129 = vpop.f32.mrf.mxu0
      %v4130 = vadd.f32 0.0, %v4129
      %v4131 = vpop.f32.mrf.mxu0
      %v4132 = vadd.f32 0.0, %v4131
      %4133 = vmatmul.bf16.gmra.mxu0 %v4013
      %v4134 = vpop.f32.mrf.mxu0
      %v4135 = vadd.f32 0.0, %v4134
      %v4136 = vpop.f32.mrf.mxu0
      %v4137 = vadd.f32 0.0, %v4136
      %4138 = vmatmul.bf16.gmra.mxu0 %v4014
      %v4139 = vpop.f32.mrf.mxu0
      %v4140 = vadd.f32 0.0, %v4139
      %v4141 = vpop.f32.mrf.mxu0
      %v4142 = vadd.f32 0.0, %v4141
      %4143 = vmatmul.bf16.gmra.mxu0 %v4015
      %v4144 = vpop.f32.mrf.mxu0
      %v4145 = vadd.f32 0.0, %v4144
      %v4146 = vpop.f32.mrf.mxu0
      %v4147 = vadd.f32 0.0, %v4146
      %4148 = vmatmul.bf16.gmra.mxu0 %v4016
      %v4149 = vpop.f32.mrf.mxu0
      %v4150 = vadd.f32 0.0, %v4149
      %v4151 = vpop.f32.mrf.mxu0
      %v4152 = vadd.f32 0.0, %v4151
      %4153 = vmatmul.bf16.gmra.mxu0 %v4017
      %v4154 = vpop.f32.mrf.mxu0
      %v4155 = vadd.f32 0.0, %v4154
      %v4156 = vpop.f32.mrf.mxu0
      %v4157 = vadd.f32 0.0, %v4156
      %4158 = vmatmul.bf16.gmra.mxu0 %v4018
      %v4159 = vpop.f32.mrf.mxu0
      %v4160 = vadd.f32 0.0, %v4159
      %v4161 = vpop.f32.mrf.mxu0
      %v4162 = vadd.f32 0.0, %v4161
      %4163 = vmatmul.bf16.gmra.mxu0 %v4019
      %v4164 = vpop.f32.mrf.mxu0
      %v4165 = vadd.f32 0.0, %v4164
      %v4166 = vpop.f32.mrf.mxu0
      %v4167 = vadd.f32 0.0, %v4166
      %4168 = vmatmul.bf16.gmra.mxu0 %v4020
      %v4169 = vpop.f32.mrf.mxu0
      %v4170 = vadd.f32 0.0, %v4169
      %v4171 = vpop.f32.mrf.mxu0
      %v4172 = vadd.f32 0.0, %v4171
      %4173 = vdwg.mxu0
      %v4174 = vadd.f32 %v3764, %v4095
      %v4175 = vadd.f32 %v3765, %v4097
      %v4176 = vadd.f32 %v3766, %v4100
      %v4177 = vadd.f32 %v3767, %v4102
      %v4178 = vadd.f32 %v3768, %v4105
      %v4179 = vadd.f32 %v3769, %v4107
      %v4180 = vadd.f32 %v3770, %v4110
      %v4181 = vadd.f32 %v3771, %v4112
      %v4182 = vadd.f32 %v3772, %v4115
      %v4183 = vadd.f32 %v3773, %v4117
      %v4184 = vadd.f32 %v3774, %v4120
      %v4185 = vadd.f32 %v3775, %v4122
      %v4186 = vadd.f32 %v3776, %v4125
      %v4187 = vadd.f32 %v3777, %v4127
      %v4188 = vadd.f32 %v3778, %v4130
      %v4189 = vadd.f32 %v3779, %v4132
      %v4190 = vadd.f32 %v3780, %v4135
      %v4191 = vadd.f32 %v3781, %v4137
      %v4192 = vadd.f32 %v3782, %v4140
      %v4193 = vadd.f32 %v3783, %v4142
      %v4194 = vadd.f32 %v3784, %v4145
      %v4195 = vadd.f32 %v3785, %v4147
      %v4196 = vadd.f32 %v3786, %v4150
      %v4197 = vadd.f32 %v3787, %v4152
      %v4198 = vadd.f32 %v3788, %v4155
      %v4199 = vadd.f32 %v3789, %v4157
      %v4200 = vadd.f32 %v3790, %v4160
      %v4201 = vadd.f32 %v3791, %v4162
      %v4202 = vadd.f32 %v3792, %v4165
      %v4203 = vadd.f32 %v3793, %v4167
      %v4204 = vadd.f32 %v3794, %v4170
      %v4205 = vadd.f32 %v3795, %v4172
      %4206 = vst [vmem:[#allocation3] sm:$0xff] %v4174
      %4207 = vst [vmem:[#allocation3 + $0x8] sm:$0xff] %v4175
      %4208 = vst [vmem:[#allocation3 + $0x10] sm:$0xff] %v4176
      %4209 = vst [vmem:[#allocation3 + $0x18] sm:$0xff] %v4177
      %4210 = vst [vmem:[#allocation3 + $0x20] sm:$0xff] %v4178
      %4211 = vst [vmem:[#allocation3 + $0x28] sm:$0xff] %v4179
      %4212 = vst [vmem:[#allocation3 + $0x30] sm:$0xff] %v4180
      %4213 = vst [vmem:[#allocation3 + $0x38] sm:$0xff] %v4181
      %4214 = vst [vmem:[#allocation3 + $0x40] sm:$0xff] %v4182
      %4215 = vst [vmem:[#allocation3 + $0x48] sm:$0xff] %v4183
      %4216 = vst [vmem:[#allocation3 + $0x50] sm:$0xff] %v4184
      %4217 = vst [vmem:[#allocation3 + $0x58] sm:$0xff] %v4185
      %4218 = vst [vmem:[#allocation3 + $0x60] sm:$0xff] %v4186
      %4219 = vst [vmem:[#allocation3 + $0x68] sm:$0xff] %v4187
      %4220 = vst [vmem:[#allocation3 + $0x70] sm:$0xff] %v4188
      %4221 = vst [vmem:[#allocation3 + $0x78] sm:$0xff] %v4189
      %4222 = vst [vmem:[#allocation3 + $0x80] sm:$0xff] %v4190
      %4223 = vst [vmem:[#allocation3 + $0x88] sm:$0xff] %v4191
      %4224 = vst [vmem:[#allocation3 + $0x90] sm:$0xff] %v4192
      %4225 = vst [vmem:[#allocation3 + $0x98] sm:$0xff] %v4193
      %4226 = vst [vmem:[#allocation3 + $0xa0] sm:$0xff] %v4194
      %4227 = vst [vmem:[#allocation3 + $0xa8] sm:$0xff] %v4195
      %4228 = vst [vmem:[#allocation3 + $0xb0] sm:$0xff] %v4196
      %4229 = vst [vmem:[#allocation3 + $0xb8] sm:$0xff] %v4197
      %4230 = vst [vmem:[#allocation3 + $0xc0] sm:$0xff] %v4198
      %4231 = vst [vmem:[#allocation3 + $0xc8] sm:$0xff] %v4199
      %4232 = vst [vmem:[#allocation3 + $0xd0] sm:$0xff] %v4200
      %4233 = vst [vmem:[#allocation3 + $0xd8] sm:$0xff] %v4201
      %4234 = vst [vmem:[#allocation3 + $0xe0] sm:$0xff] %v4202
      %4235 = vst [vmem:[#allocation3 + $0xe8] sm:$0xff] %v4203
      %4236 = vst [vmem:[#allocation3 + $0xf0] sm:$0xff] %v4204
      %4237 = vst [vmem:[#allocation3 + $0xf8] sm:$0xff] %v4205
      %s4238 = sadd.s32 0, 2
      %s4239 = smul.u32 %s4238, 3
      %s4240 = smul.addr %s4239, 4
      %s4241 = scalar_lea.vmem [#allocation2], %s4240
      %v4242 = vld [vmem:[%s4241] sm:$0xf]
      %v4243 = vld [vmem:[%s4241 + $0x4] sm:$0xf]
      %v4244 = vld [vmem:[%s4241 + $0xc] sm:$0xf]
      %v4245 = vld [vmem:[%s4241 + $0x10] sm:$0xf]
      %v4246 = vld [vmem:[%s4241 + $0x18] sm:$0xf]
      %v4247 = vld [vmem:[%s4241 + $0x1c] sm:$0xf]
      %v4248 = vld [vmem:[%s4241 + $0x24] sm:$0xf]
      %v4249 = vld [vmem:[%s4241 + $0x28] sm:$0xf]
      %v4250 = vld [vmem:[%s4241 + $0x30] sm:$0xf]
      %v4251 = vld [vmem:[%s4241 + $0x34] sm:$0xf]
      %v4252 = vld [vmem:[%s4241 + $0x3c] sm:$0xf]
      %v4253 = vld [vmem:[%s4241 + $0x40] sm:$0xf]
      %v4254 = vld [vmem:[%s4241 + $0x48] sm:$0xf]
      %v4255 = vld [vmem:[%s4241 + $0x4c] sm:$0xf]
      %v4256 = vld [vmem:[%s4241 + $0x54] sm:$0xf]
      %v4257 = vld [vmem:[%s4241 + $0x58] sm:$0xf]
      %v4258 = vld [vmem:[%s4241 + $0x60] sm:$0xf]
      %v4259 = vld [vmem:[%s4241 + $0x64] sm:$0xf]
      %v4260 = vld [vmem:[%s4241 + $0x6c] sm:$0xf]
      %v4261 = vld [vmem:[%s4241 + $0x70] sm:$0xf]
      %v4262 = vld [vmem:[%s4241 + $0x78] sm:$0xf]
      %v4263 = vld [vmem:[%s4241 + $0x7c] sm:$0xf]
      %v4264 = vld [vmem:[%s4241 + $0x84] sm:$0xf]
      %v4265 = vld [vmem:[%s4241 + $0x88] sm:$0xf]
      %v4266 = vld [vmem:[%s4241 + $0x90] sm:$0xf]
      %v4267 = vld [vmem:[%s4241 + $0x94] sm:$0xf]
      %v4268 = vld [vmem:[%s4241 + $0x9c] sm:$0xf]
      %v4269 = vld [vmem:[%s4241 + $0xa0] sm:$0xf]
      %v4270 = vld [vmem:[%s4241 + $0xa8] sm:$0xf]
      %v4271 = vld [vmem:[%s4241 + $0xac] sm:$0xf]
      %v4272 = vld [vmem:[%s4241 + $0xb4] sm:$0xf]
      %v4273 = vld [vmem:[%s4241 + $0xb8] sm:$0xf]
      %v4274 = vld [vmem:[#allocation3] sm:$0xff]
      %v4275 = vld [vmem:[#allocation3 + $0x8] sm:$0xff]
      %v4276 = vld [vmem:[#allocation3 + $0x10] sm:$0xff]
      %v4277 = vld [vmem:[#allocation3 + $0x18] sm:$0xff]
      %v4278 = vld [vmem:[#allocation3 + $0x20] sm:$0xff]
      %v4279 = vld [vmem:[#allocation3 + $0x28] sm:$0xff]
      %v4280 = vld [vmem:[#allocation3 + $0x30] sm:$0xff]
      %v4281 = vld [vmem:[#allocation3 + $0x38] sm:$0xff]
      %v4282 = vld [vmem:[#allocation3 + $0x40] sm:$0xff]
      %v4283 = vld [vmem:[#allocation3 + $0x48] sm:$0xff]
      %v4284 = vld [vmem:[#allocation3 + $0x50] sm:$0xff]
      %v4285 = vld [vmem:[#allocation3 + $0x58] sm:$0xff]
      %v4286 = vld [vmem:[#allocation3 + $0x60] sm:$0xff]
      %v4287 = vld [vmem:[#allocation3 + $0x68] sm:$0xff]
      %v4288 = vld [vmem:[#allocation3 + $0x70] sm:$0xff]
      %v4289 = vld [vmem:[#allocation3 + $0x78] sm:$0xff]
      %v4290 = vld [vmem:[#allocation3 + $0x80] sm:$0xff]
      %v4291 = vld [vmem:[#allocation3 + $0x88] sm:$0xff]
      %v4292 = vld [vmem:[#allocation3 + $0x90] sm:$0xff]
      %v4293 = vld [vmem:[#allocation3 + $0x98] sm:$0xff]
      %v4294 = vld [vmem:[#allocation3 + $0xa0] sm:$0xff]
      %v4295 = vld [vmem:[#allocation3 + $0xa8] sm:$0xff]
      %v4296 = vld [vmem:[#allocation3 + $0xb0] sm:$0xff]
      %v4297 = vld [vmem:[#allocation3 + $0xb8] sm:$0xff]
      %v4298 = vld [vmem:[#allocation3 + $0xc0] sm:$0xff]
      %v4299 = vld [vmem:[#allocation3 + $0xc8] sm:$0xff]
      %v4300 = vld [vmem:[#allocation3 + $0xd0] sm:$0xff]
      %v4301 = vld [vmem:[#allocation3 + $0xd8] sm:$0xff]
      %v4302 = vld [vmem:[#allocation3 + $0xe0] sm:$0xff]
      %v4303 = vld [vmem:[#allocation3 + $0xe8] sm:$0xff]
      %v4304 = vld [vmem:[#allocation3 + $0xf0] sm:$0xff]
      %v4305 = vld [vmem:[#allocation3 + $0xf8] sm:$0xff]
      %s4306 = scalar_lea.vmem %s2, 384
      %v4307 = vld [vmem:[%s4306] sm:$0xf]
      %v4308 = vld [vmem:[%s4306 + $0x4] sm:$0xf]
      %v4309 = vld [vmem:[%s4306 + $0x8] sm:$0xf]
      %v4310 = vld [vmem:[%s4306 + $0xc] sm:$0xf]
      %v4311 = vld [vmem:[%s4306 + $0x10] sm:$0xf]
      %v4312 = vld [vmem:[%s4306 + $0x14] sm:$0xf]
      %v4313 = vld [vmem:[%s4306 + $0x18] sm:$0xf]
      %v4314 = vld [vmem:[%s4306 + $0x1c] sm:$0xf]
      %v4315 = vld [vmem:[%s4306 + $0x20] sm:$0xf]
      %v4316 = vld [vmem:[%s4306 + $0x24] sm:$0xf]
      %v4317 = vld [vmem:[%s4306 + $0x28] sm:$0xf]
      %v4318 = vld [vmem:[%s4306 + $0x2c] sm:$0xf]
      %v4319 = vld [vmem:[%s4306 + $0x30] sm:$0xf]
      %v4320 = vld [vmem:[%s4306 + $0x34] sm:$0xf]
      %v4321 = vld [vmem:[%s4306 + $0x38] sm:$0xf]
      %v4322 = vld [vmem:[%s4306 + $0x3c] sm:$0xf]
      %v4355 = vunpack.c.l.b16 %v4242
      %v4356 = vunpack.c.l.b16 %v4243
      %v4357 = vunpack.c.l.b16 %v4244
      %v4358 = vunpack.c.l.b16 %v4245
      %v4359 = vunpack.c.l.b16 %v4246
      %v4360 = vunpack.c.l.b16 %v4247
      %v4361 = vunpack.c.l.b16 %v4248
      %v4362 = vunpack.c.l.b16 %v4249
      %v4363 = vunpack.c.l.b16 %v4250
      %v4364 = vunpack.c.l.b16 %v4251
      %v4365 = vunpack.c.l.b16 %v4252
      %v4366 = vunpack.c.l.b16 %v4253
      %v4367 = vunpack.c.l.b16 %v4254
      %v4368 = vunpack.c.l.b16 %v4255
      %v4369 = vunpack.c.l.b16 %v4256
      %v4370 = vunpack.c.l.b16 %v4257
      %v4371 = vunpack.c.l.b16 %v4258
      %v4372 = vunpack.c.l.b16 %v4259
      %v4373 = vunpack.c.l.b16 %v4260
      %v4374 = vunpack.c.l.b16 %v4261
      %v4375 = vunpack.c.l.b16 %v4262
      %v4376 = vunpack.c.l.b16 %v4263
      %v4377 = vunpack.c.l.b16 %v4264
      %v4378 = vunpack.c.l.b16 %v4265
      %v4379 = vunpack.c.l.b16 %v4266
      %v4380 = vunpack.c.l.b16 %v4267
      %v4381 = vunpack.c.l.b16 %v4268
      %v4382 = vunpack.c.l.b16 %v4269
      %v4383 = vunpack.c.l.b16 %v4270
      %v4384 = vunpack.c.l.b16 %v4271
      %v4385 = vunpack.c.l.b16 %v4272
      %v4386 = vunpack.c.l.b16 %v4273
      %v4387 = vpack.c.b16 %v4356, %v4355
      %v4388 = vpack.c.b16 %v4358, %v4357
      %v4389 = vpack.c.b16 %v4360, %v4359
      %v4390 = vpack.c.b16 %v4362, %v4361
      %v4391 = vpack.c.b16 %v4364, %v4363
      %v4392 = vpack.c.b16 %v4366, %v4365
      %v4393 = vpack.c.b16 %v4368, %v4367
      %v4394 = vpack.c.b16 %v4370, %v4369
      %v4395 = vpack.c.b16 %v4372, %v4371
      %v4396 = vpack.c.b16 %v4374, %v4373
      %v4397 = vpack.c.b16 %v4376, %v4375
      %v4398 = vpack.c.b16 %v4378, %v4377
      %v4399 = vpack.c.b16 %v4380, %v4379
      %v4400 = vpack.c.b16 %v4382, %v4381
      %v4401 = vpack.c.b16 %v4384, %v4383
      %v4402 = vpack.c.b16 %v4386, %v4385
      %v4435 = vunpack.c.l.b16 %v4307
      %v4436 = vunpack.c.l.b16 %v4308
      %v4437 = vunpack.c.l.b16 %v4309
      %v4438 = vunpack.c.l.b16 %v4310
      %v4439 = vunpack.c.l.b16 %v4311
      %v4440 = vunpack.c.l.b16 %v4312
      %v4441 = vunpack.c.l.b16 %v4313
      %v4442 = vunpack.c.l.b16 %v4314
      %v4443 = vunpack.c.l.b16 %v4315
      %v4444 = vunpack.c.l.b16 %v4316
      %v4445 = vunpack.c.l.b16 %v4317
      %v4446 = vunpack.c.l.b16 %v4318
      %v4447 = vunpack.c.l.b16 %v4319
      %v4448 = vunpack.c.l.b16 %v4320
      %v4449 = vunpack.c.l.b16 %v4321
      %v4450 = vunpack.c.l.b16 %v4322
      %v4451 = vpack.c.b16 %v4436, %v4435
      %v4452 = vpack.c.b16 %v4438, %v4437
      %v4453 = vpack.c.b16 %v4440, %v4439
      %v4454 = vpack.c.b16 %v4442, %v4441
      %v4455 = vpack.c.b16 %v4444, %v4443
      %v4456 = vpack.c.b16 %v4446, %v4445
      %v4457 = vpack.c.b16 %v4448, %v4447
      %v4458 = vpack.c.b16 %v4450, %v4449
      %4467 = vmatpush.bf16.msra.mxu0 %v4458
      %4468 = vmatpush.bf16.msra.mxu0 %v4457
      %4469 = vmatpush.bf16.msra.mxu0 %v4456
      %4470 = vmatpush.bf16.msra.mxu0 %v4455
      %4471 = vmatpush.bf16.msra.mxu0 %v4454
      %4472 = vmatpush.bf16.msra.mxu0 %v4453
      %4473 = vmatpush.bf16.msra.mxu0 %v4452
      %4474 = vmatpush.bf16.msra.mxu0 %v4451
      %4475 = vmatmul.bf16.gmra.mxu0 %v4387
      %v4476 = vpop.f32.mrf.mxu0
      %v4477 = vadd.f32 0.0, %v4476
      %v4478 = vpop.f32.mrf.mxu0
      %v4479 = vadd.f32 0.0, %v4478
      %4480 = vmatmul.bf16.gmra.mxu0 %v4388
      %v4481 = vpop.f32.mrf.mxu0
      %v4482 = vadd.f32 0.0, %v4481
      %v4483 = vpop.f32.mrf.mxu0
      %v4484 = vadd.f32 0.0, %v4483
      %4485 = vmatmul.bf16.gmra.mxu0 %v4389
      %v4486 = vpop.f32.mrf.mxu0
      %v4487 = vadd.f32 0.0, %v4486
      %v4488 = vpop.f32.mrf.mxu0
      %v4489 = vadd.f32 0.0, %v4488
      %4490 = vmatmul.bf16.gmra.mxu0 %v4390
      %v4491 = vpop.f32.mrf.mxu0
      %v4492 = vadd.f32 0.0, %v4491
      %v4493 = vpop.f32.mrf.mxu0
      %v4494 = vadd.f32 0.0, %v4493
      %4495 = vmatmul.bf16.gmra.mxu0 %v4391
      %v4496 = vpop.f32.mrf.mxu0
      %v4497 = vadd.f32 0.0, %v4496
      %v4498 = vpop.f32.mrf.mxu0
      %v4499 = vadd.f32 0.0, %v4498
      %4500 = vmatmul.bf16.gmra.mxu0 %v4392
      %v4501 = vpop.f32.mrf.mxu0
      %v4502 = vadd.f32 0.0, %v4501
      %v4503 = vpop.f32.mrf.mxu0
      %v4504 = vadd.f32 0.0, %v4503
      %4505 = vmatmul.bf16.gmra.mxu0 %v4393
      %v4506 = vpop.f32.mrf.mxu0
      %v4507 = vadd.f32 0.0, %v4506
      %v4508 = vpop.f32.mrf.mxu0
      %v4509 = vadd.f32 0.0, %v4508
      %4510 = vmatmul.bf16.gmra.mxu0 %v4394
      %v4511 = vpop.f32.mrf.mxu0
      %v4512 = vadd.f32 0.0, %v4511
      %v4513 = vpop.f32.mrf.mxu0
      %v4514 = vadd.f32 0.0, %v4513
      %4515 = vmatmul.bf16.gmra.mxu0 %v4395
      %v4516 = vpop.f32.mrf.mxu0
      %v4517 = vadd.f32 0.0, %v4516
      %v4518 = vpop.f32.mrf.mxu0
      %v4519 = vadd.f32 0.0, %v4518
      %4520 = vmatmul.bf16.gmra.mxu0 %v4396
      %v4521 = vpop.f32.mrf.mxu0
      %v4522 = vadd.f32 0.0, %v4521
      %v4523 = vpop.f32.mrf.mxu0
      %v4524 = vadd.f32 0.0, %v4523
      %4525 = vmatmul.bf16.gmra.mxu0 %v4397
      %v4526 = vpop.f32.mrf.mxu0
      %v4527 = vadd.f32 0.0, %v4526
      %v4528 = vpop.f32.mrf.mxu0
      %v4529 = vadd.f32 0.0, %v4528
      %4530 = vmatmul.bf16.gmra.mxu0 %v4398
      %v4531 = vpop.f32.mrf.mxu0
      %v4532 = vadd.f32 0.0, %v4531
      %v4533 = vpop.f32.mrf.mxu0
      %v4534 = vadd.f32 0.0, %v4533
      %4535 = vmatmul.bf16.gmra.mxu0 %v4399
      %v4536 = vpop.f32.mrf.mxu0
      %v4537 = vadd.f32 0.0, %v4536
      %v4538 = vpop.f32.mrf.mxu0
      %v4539 = vadd.f32 0.0, %v4538
      %4540 = vmatmul.bf16.gmra.mxu0 %v4400
      %v4541 = vpop.f32.mrf.mxu0
      %v4542 = vadd.f32 0.0, %v4541
      %v4543 = vpop.f32.mrf.mxu0
      %v4544 = vadd.f32 0.0, %v4543
      %4545 = vmatmul.bf16.gmra.mxu0 %v4401
      %v4546 = vpop.f32.mrf.mxu0
      %v4547 = vadd.f32 0.0, %v4546
      %v4548 = vpop.f32.mrf.mxu0
      %v4549 = vadd.f32 0.0, %v4548
      %4550 = vmatmul.bf16.gmra.mxu0 %v4402
      %v4551 = vpop.f32.mrf.mxu0
      %v4552 = vadd.f32 0.0, %v4551
      %v4553 = vpop.f32.mrf.mxu0
      %v4554 = vadd.f32 0.0, %v4553
      %4555 = vdwg.mxu0
      %v4556 = vadd.f32 %v4274, %v4477
      %v4557 = vadd.f32 %v4275, %v4479
      %v4558 = vadd.f32 %v4276, %v4482
      %v4559 = vadd.f32 %v4277, %v4484
      %v4560 = vadd.f32 %v4278, %v4487
      %v4561 = vadd.f32 %v4279, %v4489
      %v4562 = vadd.f32 %v4280, %v4492
      %v4563 = vadd.f32 %v4281, %v4494
      %v4564 = vadd.f32 %v4282, %v4497
      %v4565 = vadd.f32 %v4283, %v4499
      %v4566 = vadd.f32 %v4284, %v4502
      %v4567 = vadd.f32 %v4285, %v4504
      %v4568 = vadd.f32 %v4286, %v4507
      %v4569 = vadd.f32 %v4287, %v4509
      %v4570 = vadd.f32 %v4288, %v4512
      %v4571 = vadd.f32 %v4289, %v4514
      %v4572 = vadd.f32 %v4290, %v4517
      %v4573 = vadd.f32 %v4291, %v4519
      %v4574 = vadd.f32 %v4292, %v4522
      %v4575 = vadd.f32 %v4293, %v4524
      %v4576 = vadd.f32 %v4294, %v4527
      %v4577 = vadd.f32 %v4295, %v4529
      %v4578 = vadd.f32 %v4296, %v4532
      %v4579 = vadd.f32 %v4297, %v4534
      %v4580 = vadd.f32 %v4298, %v4537
      %v4581 = vadd.f32 %v4299, %v4539
      %v4582 = vadd.f32 %v4300, %v4542
      %v4583 = vadd.f32 %v4301, %v4544
      %v4584 = vadd.f32 %v4302, %v4547
      %v4585 = vadd.f32 %v4303, %v4549
      %v4586 = vadd.f32 %v4304, %v4552
      %v4587 = vadd.f32 %v4305, %v4554
      %4588 = vst [vmem:[#allocation3] sm:$0xff] %v4556
      %4589 = vst [vmem:[#allocation3 + $0x8] sm:$0xff] %v4557
      %4590 = vst [vmem:[#allocation3 + $0x10] sm:$0xff] %v4558
      %4591 = vst [vmem:[#allocation3 + $0x18] sm:$0xff] %v4559
      %4592 = vst [vmem:[#allocation3 + $0x20] sm:$0xff] %v4560
      %4593 = vst [vmem:[#allocation3 + $0x28] sm:$0xff] %v4561
      %4594 = vst [vmem:[#allocation3 + $0x30] sm:$0xff] %v4562
      %4595 = vst [vmem:[#allocation3 + $0x38] sm:$0xff] %v4563
      %4596 = vst [vmem:[#allocation3 + $0x40] sm:$0xff] %v4564
      %4597 = vst [vmem:[#allocation3 + $0x48] sm:$0xff] %v4565
      %4598 = vst [vmem:[#allocation3 + $0x50] sm:$0xff] %v4566
      %4599 = vst [vmem:[#allocation3 + $0x58] sm:$0xff] %v4567
      %4600 = vst [vmem:[#allocation3 + $0x60] sm:$0xff] %v4568
      %4601 = vst [vmem:[#allocation3 + $0x68] sm:$0xff] %v4569
      %4602 = vst [vmem:[#allocation3 + $0x70] sm:$0xff] %v4570
      %4603 = vst [vmem:[#allocation3 + $0x78] sm:$0xff] %v4571
      %4604 = vst [vmem:[#allocation3 + $0x80] sm:$0xff] %v4572
      %4605 = vst [vmem:[#allocation3 + $0x88] sm:$0xff] %v4573
      %4606 = vst [vmem:[#allocation3 + $0x90] sm:$0xff] %v4574
      %4607 = vst [vmem:[#allocation3 + $0x98] sm:$0xff] %v4575
      %4608 = vst [vmem:[#allocation3 + $0xa0] sm:$0xff] %v4576
      %4609 = vst [vmem:[#allocation3 + $0xa8] sm:$0xff] %v4577
      %4610 = vst [vmem:[#allocation3 + $0xb0] sm:$0xff] %v4578
      %4611 = vst [vmem:[#allocation3 + $0xb8] sm:$0xff] %v4579
      %4612 = vst [vmem:[#allocation3 + $0xc0] sm:$0xff] %v4580
      %4613 = vst [vmem:[#allocation3 + $0xc8] sm:$0xff] %v4581
      %4614 = vst [vmem:[#allocation3 + $0xd0] sm:$0xff] %v4582
      %4615 = vst [vmem:[#allocation3 + $0xd8] sm:$0xff] %v4583
      %4616 = vst [vmem:[#allocation3 + $0xe0] sm:$0xff] %v4584
      %4617 = vst [vmem:[#allocation3 + $0xe8] sm:$0xff] %v4585
      %4618 = vst [vmem:[#allocation3 + $0xf0] sm:$0xff] %v4586
      %4619 = vst [vmem:[#allocation3 + $0xf8] sm:$0xff] %v4587
      %v4620 = vld [vmem:[%s4241] sm:$0xf]
      %v4621 = vld [vmem:[%s4241 + $0x4] sm:$0xf]
      %v4622 = vld [vmem:[%s4241 + $0x8] sm:$0x1]
      %v4623 = vld [vmem:[%s4241 + $0xc] sm:$0xf]
      %v4624 = vld [vmem:[%s4241 + $0x10] sm:$0xf]
      %v4625 = vld [vmem:[%s4241 + $0x14] sm:$0x1]
      %v4626 = vld [vmem:[%s4241 + $0x18] sm:$0xf]
      %v4627 = vld [vmem:[%s4241 + $0x1c] sm:$0xf]
      %v4628 = vld [vmem:[%s4241 + $0x20] sm:$0x1]
      %v4629 = vld [vmem:[%s4241 + $0x24] sm:$0xf]
      %v4630 = vld [vmem:[%s4241 + $0x28] sm:$0xf]
      %v4631 = vld [vmem:[%s4241 + $0x2c] sm:$0x1]
      %v4632 = vld [vmem:[%s4241 + $0x30] sm:$0xf]
      %v4633 = vld [vmem:[%s4241 + $0x34] sm:$0xf]
      %v4634 = vld [vmem:[%s4241 + $0x38] sm:$0x1]
      %v4635 = vld [vmem:[%s4241 + $0x3c] sm:$0xf]
      %v4636 = vld [vmem:[%s4241 + $0x40] sm:$0xf]
      %v4637 = vld [vmem:[%s4241 + $0x44] sm:$0x1]
      %v4638 = vld [vmem:[%s4241 + $0x48] sm:$0xf]
      %v4639 = vld [vmem:[%s4241 + $0x4c] sm:$0xf]
      %v4640 = vld [vmem:[%s4241 + $0x50] sm:$0x1]
      %v4641 = vld [vmem:[%s4241 + $0x54] sm:$0xf]
      %v4642 = vld [vmem:[%s4241 + $0x58] sm:$0xf]
      %v4643 = vld [vmem:[%s4241 + $0x5c] sm:$0x1]
      %v4644 = vld [vmem:[%s4241 + $0x60] sm:$0xf]
      %v4645 = vld [vmem:[%s4241 + $0x64] sm:$0xf]
      %v4646 = vld [vmem:[%s4241 + $0x68] sm:$0x1]
      %v4647 = vld [vmem:[%s4241 + $0x6c] sm:$0xf]
      %v4648 = vld [vmem:[%s4241 + $0x70] sm:$0xf]
      %v4649 = vld [vmem:[%s4241 + $0x74] sm:$0x1]
      %v4650 = vld [vmem:[%s4241 + $0x78] sm:$0xf]
      %v4651 = vld [vmem:[%s4241 + $0x7c] sm:$0xf]
      %v4652 = vld [vmem:[%s4241 + $0x80] sm:$0x1]
      %v4653 = vld [vmem:[%s4241 + $0x84] sm:$0xf]
      %v4654 = vld [vmem:[%s4241 + $0x88] sm:$0xf]
      %v4655 = vld [vmem:[%s4241 + $0x8c] sm:$0x1]
      %v4656 = vld [vmem:[%s4241 + $0x90] sm:$0xf]
      %v4657 = vld [vmem:[%s4241 + $0x94] sm:$0xf]
      %v4658 = vld [vmem:[%s4241 + $0x98] sm:$0x1]
      %v4659 = vld [vmem:[%s4241 + $0x9c] sm:$0xf]
      %v4660 = vld [vmem:[%s4241 + $0xa0] sm:$0xf]
      %v4661 = vld [vmem:[%s4241 + $0xa4] sm:$0x1]
      %v4662 = vld [vmem:[%s4241 + $0xa8] sm:$0xf]
      %v4663 = vld [vmem:[%s4241 + $0xac] sm:$0xf]
      %v4664 = vld [vmem:[%s4241 + $0xb0] sm:$0x1]
      %v4665 = vld [vmem:[%s4241 + $0xb4] sm:$0xf]
      %v4666 = vld [vmem:[%s4241 + $0xb8] sm:$0xf]
      %v4667 = vld [vmem:[%s4241 + $0xbc] sm:$0x1]
      %v4668 = vld [vmem:[#allocation3] sm:$0xff]
      %v4669 = vld [vmem:[#allocation3 + $0x8] sm:$0xff]
      %v4670 = vld [vmem:[#allocation3 + $0x10] sm:$0xff]
      %v4671 = vld [vmem:[#allocation3 + $0x18] sm:$0xff]
      %v4672 = vld [vmem:[#allocation3 + $0x20] sm:$0xff]
      %v4673 = vld [vmem:[#allocation3 + $0x28] sm:$0xff]
      %v4674 = vld [vmem:[#allocation3 + $0x30] sm:$0xff]
      %v4675 = vld [vmem:[#allocation3 + $0x38] sm:$0xff]
      %v4676 = vld [vmem:[#allocation3 + $0x40] sm:$0xff]
      %v4677 = vld [vmem:[#allocation3 + $0x48] sm:$0xff]
      %v4678 = vld [vmem:[#allocation3 + $0x50] sm:$0xff]
      %v4679 = vld [vmem:[#allocation3 + $0x58] sm:$0xff]
      %v4680 = vld [vmem:[#allocation3 + $0x60] sm:$0xff]
      %v4681 = vld [vmem:[#allocation3 + $0x68] sm:$0xff]
      %v4682 = vld [vmem:[#allocation3 + $0x70] sm:$0xff]
      %v4683 = vld [vmem:[#allocation3 + $0x78] sm:$0xff]
      %v4684 = vld [vmem:[#allocation3 + $0x80] sm:$0xff]
      %v4685 = vld [vmem:[#allocation3 + $0x88] sm:$0xff]
      %v4686 = vld [vmem:[#allocation3 + $0x90] sm:$0xff]
      %v4687 = vld [vmem:[#allocation3 + $0x98] sm:$0xff]
      %v4688 = vld [vmem:[#allocation3 + $0xa0] sm:$0xff]
      %v4689 = vld [vmem:[#allocation3 + $0xa8] sm:$0xff]
      %v4690 = vld [vmem:[#allocation3 + $0xb0] sm:$0xff]
      %v4691 = vld [vmem:[#allocation3 + $0xb8] sm:$0xff]
      %v4692 = vld [vmem:[#allocation3 + $0xc0] sm:$0xff]
      %v4693 = vld [vmem:[#allocation3 + $0xc8] sm:$0xff]
      %v4694 = vld [vmem:[#allocation3 + $0xd0] sm:$0xff]
      %v4695 = vld [vmem:[#allocation3 + $0xd8] sm:$0xff]
      %v4696 = vld [vmem:[#allocation3 + $0xe0] sm:$0xff]
      %v4697 = vld [vmem:[#allocation3 + $0xe8] sm:$0xff]
      %v4698 = vld [vmem:[#allocation3 + $0xf0] sm:$0xff]
      %v4699 = vld [vmem:[#allocation3 + $0xf8] sm:$0xff]
      %v4701 = vshrl.u32 %v4620, 16
      %v4703 = vrot.slane %v4701, 4
      %v4704 = vshll.u32 %v4620, 16
      %v4706 = vrot.slane %v4704, 5
      %v4707 = vor.u32 %v4703, %v4706
      %v4708 = vrot.slane %v4707, 4
      %v4710 = vshll.u32 %v4621, 16
      %v4712 = vrot.slane %v4710, 5
      %v4713 = vsel %vm1396, %v4708, %v4712
      %v4714 = vshrl.u32 %v4621, 16
      %v4716 = vrot.slane %v4714, 4
      %v4717 = vor.u32 %v4716, %v4712
      %v4718 = vrot.slane %v4717, 4
      %v4720 = vshll.u32 %v4622, 16
      %v4722 = vrot.slane %v4720, 5
      %v4723 = vsel %vm1396, %v4718, %v4722
      %v4725 = vshrl.u32 %v4623, 16
      %v4727 = vrot.slane %v4725, 4
      %v4728 = vshll.u32 %v4623, 16
      %v4730 = vrot.slane %v4728, 5
      %v4731 = vor.u32 %v4727, %v4730
      %v4732 = vrot.slane %v4731, 4
      %v4734 = vshll.u32 %v4624, 16
      %v4736 = vrot.slane %v4734, 5
      %v4737 = vsel %vm1396, %v4732, %v4736
      %v4738 = vshrl.u32 %v4624, 16
      %v4740 = vrot.slane %v4738, 4
      %v4741 = vor.u32 %v4740, %v4736
      %v4742 = vrot.slane %v4741, 4
      %v4744 = vshll.u32 %v4625, 16
      %v4746 = vrot.slane %v4744, 5
      %v4747 = vsel %vm1396, %v4742, %v4746
      %v4749 = vshrl.u32 %v4626, 16
      %v4751 = vrot.slane %v4749, 4
      %v4752 = vshll.u32 %v4626, 16
      %v4754 = vrot.slane %v4752, 5
      %v4755 = vor.u32 %v4751, %v4754
      %v4756 = vrot.slane %v4755, 4
      %v4758 = vshll.u32 %v4627, 16
      %v4760 = vrot.slane %v4758, 5
      %v4761 = vsel %vm1396, %v4756, %v4760
      %v4762 = vshrl.u32 %v4627, 16
      %v4764 = vrot.slane %v4762, 4
      %v4765 = vor.u32 %v4764, %v4760
      %v4766 = vrot.slane %v4765, 4
      %v4768 = vshll.u32 %v4628, 16
      %v4770 = vrot.slane %v4768, 5
      %v4771 = vsel %vm1396, %v4766, %v4770
      %v4773 = vshrl.u32 %v4629, 16
      %v4775 = vrot.slane %v4773, 4
      %v4776 = vshll.u32 %v4629, 16
      %v4778 = vrot.slane %v4776, 5
      %v4779 = vor.u32 %v4775, %v4778
      %v4780 = vrot.slane %v4779, 4
      %v4782 = vshll.u32 %v4630, 16
      %v4784 = vrot.slane %v4782, 5
      %v4785 = vsel %vm1396, %v4780, %v4784
      %v4786 = vshrl.u32 %v4630, 16
      %v4788 = vrot.slane %v4786, 4
      %v4789 = vor.u32 %v4788, %v4784
      %v4790 = vrot.slane %v4789, 4
      %v4792 = vshll.u32 %v4631, 16
      %v4794 = vrot.slane %v4792, 5
      %v4795 = vsel %vm1396, %v4790, %v4794
      %v4797 = vshrl.u32 %v4632, 16
      %v4799 = vrot.slane %v4797, 4
      %v4800 = vshll.u32 %v4632, 16
      %v4802 = vrot.slane %v4800, 5
      %v4803 = vor.u32 %v4799, %v4802
      %v4804 = vrot.slane %v4803, 4
      %v4806 = vshll.u32 %v4633, 16
      %v4808 = vrot.slane %v4806, 5
      %v4809 = vsel %vm1396, %v4804, %v4808
      %v4810 = vshrl.u32 %v4633, 16
      %v4812 = vrot.slane %v4810, 4
      %v4813 = vor.u32 %v4812, %v4808
      %v4814 = vrot.slane %v4813, 4
      %v4816 = vshll.u32 %v4634, 16
      %v4818 = vrot.slane %v4816, 5
      %v4819 = vsel %vm1396, %v4814, %v4818
      %v4821 = vshrl.u32 %v4635, 16
      %v4823 = vrot.slane %v4821, 4
      %v4824 = vshll.u32 %v4635, 16
      %v4826 = vrot.slane %v4824, 5
      %v4827 = vor.u32 %v4823, %v4826
      %v4828 = vrot.slane %v4827, 4
      %v4830 = vshll.u32 %v4636, 16
      %v4832 = vrot.slane %v4830, 5
      %v4833 = vsel %vm1396, %v4828, %v4832
      %v4834 = vshrl.u32 %v4636, 16
      %v4836 = vrot.slane %v4834, 4
      %v4837 = vor.u32 %v4836, %v4832
      %v4838 = vrot.slane %v4837, 4
      %v4840 = vshll.u32 %v4637, 16
      %v4842 = vrot.slane %v4840, 5
      %v4843 = vsel %vm1396, %v4838, %v4842
      %v4845 = vshrl.u32 %v4638, 16
      %v4847 = vrot.slane %v4845, 4
      %v4848 = vshll.u32 %v4638, 16
      %v4850 = vrot.slane %v4848, 5
      %v4851 = vor.u32 %v4847, %v4850
      %v4852 = vrot.slane %v4851, 4
      %v4854 = vshll.u32 %v4639, 16
      %v4856 = vrot.slane %v4854, 5
      %v4857 = vsel %vm1396, %v4852, %v4856
      %v4858 = vshrl.u32 %v4639, 16
      %v4860 = vrot.slane %v4858, 4
      %v4861 = vor.u32 %v4860, %v4856
      %v4862 = vrot.slane %v4861, 4
      %v4864 = vshll.u32 %v4640, 16
      %v4866 = vrot.slane %v4864, 5
      %v4867 = vsel %vm1396, %v4862, %v4866
      %v4869 = vshrl.u32 %v4641, 16
      %v4871 = vrot.slane %v4869, 4
      %v4872 = vshll.u32 %v4641, 16
      %v4874 = vrot.slane %v4872, 5
      %v4875 = vor.u32 %v4871, %v4874
      %v4876 = vrot.slane %v4875, 4
      %v4878 = vshll.u32 %v4642, 16
      %v4880 = vrot.slane %v4878, 5
      %v4881 = vsel %vm1396, %v4876, %v4880
      %v4882 = vshrl.u32 %v4642, 16
      %v4884 = vrot.slane %v4882, 4
      %v4885 = vor.u32 %v4884, %v4880
      %v4886 = vrot.slane %v4885, 4
      %v4888 = vshll.u32 %v4643, 16
      %v4890 = vrot.slane %v4888, 5
      %v4891 = vsel %vm1396, %v4886, %v4890
      %v4893 = vshrl.u32 %v4644, 16
      %v4895 = vrot.slane %v4893, 4
      %v4896 = vshll.u32 %v4644, 16
      %v4898 = vrot.slane %v4896, 5
      %v4899 = vor.u32 %v4895, %v4898
      %v4900 = vrot.slane %v4899, 4
      %v4902 = vshll.u32 %v4645, 16
      %v4904 = vrot.slane %v4902, 5
      %v4905 = vsel %vm1396, %v4900, %v4904
      %v4906 = vshrl.u32 %v4645, 16
      %v4908 = vrot.slane %v4906, 4
      %v4909 = vor.u32 %v4908, %v4904
      %v4910 = vrot.slane %v4909, 4
      %v4912 = vshll.u32 %v4646, 16
      %v4914 = vrot.slane %v4912, 5
      %v4915 = vsel %vm1396, %v4910, %v4914
      %v4917 = vshrl.u32 %v4647, 16
      %v4919 = vrot.slane %v4917, 4
      %v4920 = vshll.u32 %v4647, 16
      %v4922 = vrot.slane %v4920, 5
      %v4923 = vor.u32 %v4919, %v4922
      %v4924 = vrot.slane %v4923, 4
      %v4926 = vshll.u32 %v4648, 16
      %v4928 = vrot.slane %v4926, 5
      %v4929 = vsel %vm1396, %v4924, %v4928
      %v4930 = vshrl.u32 %v4648, 16
      %v4932 = vrot.slane %v4930, 4
      %v4933 = vor.u32 %v4932, %v4928
      %v4934 = vrot.slane %v4933, 4
      %v4936 = vshll.u32 %v4649, 16
      %v4938 = vrot.slane %v4936, 5
      %v4939 = vsel %vm1396, %v4934, %v4938
      %v4941 = vshrl.u32 %v4650, 16
      %v4943 = vrot.slane %v4941, 4
      %v4944 = vshll.u32 %v4650, 16
      %v4946 = vrot.slane %v4944, 5
      %v4947 = vor.u32 %v4943, %v4946
      %v4948 = vrot.slane %v4947, 4
      %v4950 = vshll.u32 %v4651, 16
      %v4952 = vrot.slane %v4950, 5
      %v4953 = vsel %vm1396, %v4948, %v4952
      %v4954 = vshrl.u32 %v4651, 16
      %v4956 = vrot.slane %v4954, 4
      %v4957 = vor.u32 %v4956, %v4952
      %v4958 = vrot.slane %v4957, 4
      %v4960 = vshll.u32 %v4652, 16
      %v4962 = vrot.slane %v4960, 5
      %v4963 = vsel %vm1396, %v4958, %v4962
      %v4965 = vshrl.u32 %v4653, 16
      %v4967 = vrot.slane %v4965, 4
      %v4968 = vshll.u32 %v4653, 16
      %v4970 = vrot.slane %v4968, 5
      %v4971 = vor.u32 %v4967, %v4970
      %v4972 = vrot.slane %v4971, 4
      %v4974 = vshll.u32 %v4654, 16
      %v4976 = vrot.slane %v4974, 5
      %v4977 = vsel %vm1396, %v4972, %v4976
      %v4978 = vshrl.u32 %v4654, 16
      %v4980 = vrot.slane %v4978, 4
      %v4981 = vor.u32 %v4980, %v4976
      %v4982 = vrot.slane %v4981, 4
      %v4984 = vshll.u32 %v4655, 16
      %v4986 = vrot.slane %v4984, 5
      %v4987 = vsel %vm1396, %v4982, %v4986
      %v4989 = vshrl.u32 %v4656, 16
      %v4991 = vrot.slane %v4989, 4
      %v4992 = vshll.u32 %v4656, 16
      %v4994 = vrot.slane %v4992, 5
      %v4995 = vor.u32 %v4991, %v4994
      %v4996 = vrot.slane %v4995, 4
      %v4998 = vshll.u32 %v4657, 16
      %v5000 = vrot.slane %v4998, 5
      %v5001 = vsel %vm1396, %v4996, %v5000
      %v5002 = vshrl.u32 %v4657, 16
      %v5004 = vrot.slane %v5002, 4
      %v5005 = vor.u32 %v5004, %v5000
      %v5006 = vrot.slane %v5005, 4
      %v5008 = vshll.u32 %v4658, 16
      %v5010 = vrot.slane %v5008, 5
      %v5011 = vsel %vm1396, %v5006, %v5010
      %v5013 = vshrl.u32 %v4659, 16
      %v5015 = vrot.slane %v5013, 4
      %v5016 = vshll.u32 %v4659, 16
      %v5018 = vrot.slane %v5016, 5
      %v5019 = vor.u32 %v5015, %v5018
      %v5020 = vrot.slane %v5019, 4
      %v5022 = vshll.u32 %v4660, 16
      %v5024 = vrot.slane %v5022, 5
      %v5025 = vsel %vm1396, %v5020, %v5024
      %v5026 = vshrl.u32 %v4660, 16
      %v5028 = vrot.slane %v5026, 4
      %v5029 = vor.u32 %v5028, %v5024
      %v5030 = vrot.slane %v5029, 4
      %v5032 = vshll.u32 %v4661, 16
      %v5034 = vrot.slane %v5032, 5
      %v5035 = vsel %vm1396, %v5030, %v5034
      %v5037 = vshrl.u32 %v4662, 16
      %v5039 = vrot.slane %v5037, 4
      %v5040 = vshll.u32 %v4662, 16
      %v5042 = vrot.slane %v5040, 5
      %v5043 = vor.u32 %v5039, %v5042
      %v5044 = vrot.slane %v5043, 4
      %v5046 = vshll.u32 %v4663, 16
      %v5048 = vrot.slane %v5046, 5
      %v5049 = vsel %vm1396, %v5044, %v5048
      %v5050 = vshrl.u32 %v4663, 16
      %v5052 = vrot.slane %v5050, 4
      %v5053 = vor.u32 %v5052, %v5048
      %v5054 = vrot.slane %v5053, 4
      %v5056 = vshll.u32 %v4664, 16
      %v5058 = vrot.slane %v5056, 5
      %v5059 = vsel %vm1396, %v5054, %v5058
      %v5061 = vshrl.u32 %v4665, 16
      %v5063 = vrot.slane %v5061, 4
      %v5064 = vshll.u32 %v4665, 16
      %v5066 = vrot.slane %v5064, 5
      %v5067 = vor.u32 %v5063, %v5066
      %v5068 = vrot.slane %v5067, 4
      %v5070 = vshll.u32 %v4666, 16
      %v5072 = vrot.slane %v5070, 5
      %v5073 = vsel %vm1396, %v5068, %v5072
      %v5074 = vshrl.u32 %v4666, 16
      %v5076 = vrot.slane %v5074, 4
      %v5077 = vor.u32 %v5076, %v5072
      %v5078 = vrot.slane %v5077, 4
      %v5080 = vshll.u32 %v4667, 16
      %v5082 = vrot.slane %v5080, 5
      %v5083 = vsel %vm1396, %v5078, %v5082
      %s5084 = scalar_lea.vmem %s2, 448
      %v5085 = vld [vmem:[%s5084] sm:$0xf]
      %v5086 = vld [vmem:[%s5084 + $0x4] sm:$0xf]
      %v5087 = vld [vmem:[%s5084 + $0x8] sm:$0xf]
      %v5088 = vld [vmem:[%s5084 + $0xc] sm:$0xf]
      %v5089 = vld [vmem:[%s5084 + $0x10] sm:$0xf]
      %v5090 = vld [vmem:[%s5084 + $0x14] sm:$0xf]
      %v5091 = vld [vmem:[%s5084 + $0x18] sm:$0xf]
      %v5092 = vld [vmem:[%s5084 + $0x1c] sm:$0xf]
      %v5093 = vld [vmem:[%s5084 + $0x20] sm:$0xf]
      %v5094 = vld [vmem:[%s5084 + $0x24] sm:$0xf]
      %v5095 = vld [vmem:[%s5084 + $0x28] sm:$0xf]
      %v5096 = vld [vmem:[%s5084 + $0x2c] sm:$0xf]
      %v5097 = vld [vmem:[%s5084 + $0x30] sm:$0xf]
      %v5098 = vld [vmem:[%s5084 + $0x34] sm:$0xf]
      %v5099 = vld [vmem:[%s5084 + $0x38] sm:$0xf]
      %v5100 = vld [vmem:[%s5084 + $0x3c] sm:$0xf]
      %v5101 = vunpack.c.l.b16 %v4713
      %v5102 = vunpack.c.l.b16 %v4723
      %v5103 = vunpack.c.l.b16 %v4737
      %v5104 = vunpack.c.l.b16 %v4747
      %v5105 = vunpack.c.l.b16 %v4761
      %v5106 = vunpack.c.l.b16 %v4771
      %v5107 = vunpack.c.l.b16 %v4785
      %v5108 = vunpack.c.l.b16 %v4795
      %v5109 = vunpack.c.l.b16 %v4809
      %v5110 = vunpack.c.l.b16 %v4819
      %v5111 = vunpack.c.l.b16 %v4833
      %v5112 = vunpack.c.l.b16 %v4843
      %v5113 = vunpack.c.l.b16 %v4857
      %v5114 = vunpack.c.l.b16 %v4867
      %v5115 = vunpack.c.l.b16 %v4881
      %v5116 = vunpack.c.l.b16 %v4891
      %v5117 = vunpack.c.l.b16 %v4905
      %v5118 = vunpack.c.l.b16 %v4915
      %v5119 = vunpack.c.l.b16 %v4929
      %v5120 = vunpack.c.l.b16 %v4939
      %v5121 = vunpack.c.l.b16 %v4953
      %v5122 = vunpack.c.l.b16 %v4963
      %v5123 = vunpack.c.l.b16 %v4977
      %v5124 = vunpack.c.l.b16 %v4987
      %v5125 = vunpack.c.l.b16 %v5001
      %v5126 = vunpack.c.l.b16 %v5011
      %v5127 = vunpack.c.l.b16 %v5025
      %v5128 = vunpack.c.l.b16 %v5035
      %v5129 = vunpack.c.l.b16 %v5049
      %v5130 = vunpack.c.l.b16 %v5059
      %v5131 = vunpack.c.l.b16 %v5073
      %v5132 = vunpack.c.l.b16 %v5083
      %v5133 = vpack.c.b16 %v5102, %v5101
      %v5134 = vpack.c.b16 %v5104, %v5103
      %v5135 = vpack.c.b16 %v5106, %v5105
      %v5136 = vpack.c.b16 %v5108, %v5107
      %v5137 = vpack.c.b16 %v5110, %v5109
      %v5138 = vpack.c.b16 %v5112, %v5111
      %v5139 = vpack.c.b16 %v5114, %v5113
      %v5140 = vpack.c.b16 %v5116, %v5115
      %v5141 = vpack.c.b16 %v5118, %v5117
      %v5142 = vpack.c.b16 %v5120, %v5119
      %v5143 = vpack.c.b16 %v5122, %v5121
      %v5144 = vpack.c.b16 %v5124, %v5123
      %v5145 = vpack.c.b16 %v5126, %v5125
      %v5146 = vpack.c.b16 %v5128, %v5127
      %v5147 = vpack.c.b16 %v5130, %v5129
      %v5148 = vpack.c.b16 %v5132, %v5131
      %v5181 = vunpack.c.l.b16 %v5085
      %v5182 = vunpack.c.l.b16 %v5086
      %v5183 = vunpack.c.l.b16 %v5087
      %v5184 = vunpack.c.l.b16 %v5088
      %v5185 = vunpack.c.l.b16 %v5089
      %v5186 = vunpack.c.l.b16 %v5090
      %v5187 = vunpack.c.l.b16 %v5091
      %v5188 = vunpack.c.l.b16 %v5092
      %v5189 = vunpack.c.l.b16 %v5093
      %v5190 = vunpack.c.l.b16 %v5094
      %v5191 = vunpack.c.l.b16 %v5095
      %v5192 = vunpack.c.l.b16 %v5096
      %v5193 = vunpack.c.l.b16 %v5097
      %v5194 = vunpack.c.l.b16 %v5098
      %v5195 = vunpack.c.l.b16 %v5099
      %v5196 = vunpack.c.l.b16 %v5100
      %v5197 = vpack.c.b16 %v5182, %v5181
      %v5198 = vpack.c.b16 %v5184, %v5183
      %v5199 = vpack.c.b16 %v5186, %v5185
      %v5200 = vpack.c.b16 %v5188, %v5187
      %v5201 = vpack.c.b16 %v5190, %v5189
      %v5202 = vpack.c.b16 %v5192, %v5191
      %v5203 = vpack.c.b16 %v5194, %v5193
      %v5204 = vpack.c.b16 %v5196, %v5195
      %5213 = vmatpush.bf16.msra.mxu0 %v5204
      %5214 = vmatpush.bf16.msra.mxu0 %v5203
      %5215 = vmatpush.bf16.msra.mxu0 %v5202
      %5216 = vmatpush.bf16.msra.mxu0 %v5201
      %5217 = vmatpush.bf16.msra.mxu0 %v5200
      %5218 = vmatpush.bf16.msra.mxu0 %v5199
      %5219 = vmatpush.bf16.msra.mxu0 %v5198
      %5220 = vmatpush.bf16.msra.mxu0 %v5197
      %5221 = vmatmul.bf16.gmra.mxu0 %v5133
      %v5222 = vpop.f32.mrf.mxu0
      %v5223 = vadd.f32 0.0, %v5222
      %v5224 = vpop.f32.mrf.mxu0
      %v5225 = vadd.f32 0.0, %v5224
      %5226 = vmatmul.bf16.gmra.mxu0 %v5134
      %v5227 = vpop.f32.mrf.mxu0
      %v5228 = vadd.f32 0.0, %v5227
      %v5229 = vpop.f32.mrf.mxu0
      %v5230 = vadd.f32 0.0, %v5229
      %5231 = vmatmul.bf16.gmra.mxu0 %v5135
      %v5232 = vpop.f32.mrf.mxu0
      %v5233 = vadd.f32 0.0, %v5232
      %v5234 = vpop.f32.mrf.mxu0
      %v5235 = vadd.f32 0.0, %v5234
      %5236 = vmatmul.bf16.gmra.mxu0 %v5136
      %v5237 = vpop.f32.mrf.mxu0
      %v5238 = vadd.f32 0.0, %v5237
      %v5239 = vpop.f32.mrf.mxu0
      %v5240 = vadd.f32 0.0, %v5239
      %5241 = vmatmul.bf16.gmra.mxu0 %v5137
      %v5242 = vpop.f32.mrf.mxu0
      %v5243 = vadd.f32 0.0, %v5242
      %v5244 = vpop.f32.mrf.mxu0
      %v5245 = vadd.f32 0.0, %v5244
      %5246 = vmatmul.bf16.gmra.mxu0 %v5138
      %v5247 = vpop.f32.mrf.mxu0
      %v5248 = vadd.f32 0.0, %v5247
      %v5249 = vpop.f32.mrf.mxu0
      %v5250 = vadd.f32 0.0, %v5249
      %5251 = vmatmul.bf16.gmra.mxu0 %v5139
      %v5252 = vpop.f32.mrf.mxu0
      %v5253 = vadd.f32 0.0, %v5252
      %v5254 = vpop.f32.mrf.mxu0
      %v5255 = vadd.f32 0.0, %v5254
      %5256 = vmatmul.bf16.gmra.mxu0 %v5140
      %v5257 = vpop.f32.mrf.mxu0
      %v5258 = vadd.f32 0.0, %v5257
      %v5259 = vpop.f32.mrf.mxu0
      %v5260 = vadd.f32 0.0, %v5259
      %5261 = vmatmul.bf16.gmra.mxu0 %v5141
      %v5262 = vpop.f32.mrf.mxu0
      %v5263 = vadd.f32 0.0, %v5262
      %v5264 = vpop.f32.mrf.mxu0
      %v5265 = vadd.f32 0.0, %v5264
      %5266 = vmatmul.bf16.gmra.mxu0 %v5142
      %v5267 = vpop.f32.mrf.mxu0
      %v5268 = vadd.f32 0.0, %v5267
      %v5269 = vpop.f32.mrf.mxu0
      %v5270 = vadd.f32 0.0, %v5269
      %5271 = vmatmul.bf16.gmra.mxu0 %v5143
      %v5272 = vpop.f32.mrf.mxu0
      %v5273 = vadd.f32 0.0, %v5272
      %v5274 = vpop.f32.mrf.mxu0
      %v5275 = vadd.f32 0.0, %v5274
      %5276 = vmatmul.bf16.gmra.mxu0 %v5144
      %v5277 = vpop.f32.mrf.mxu0
      %v5278 = vadd.f32 0.0, %v5277
      %v5279 = vpop.f32.mrf.mxu0
      %v5280 = vadd.f32 0.0, %v5279
      %5281 = vmatmul.bf16.gmra.mxu0 %v5145
      %v5282 = vpop.f32.mrf.mxu0
      %v5283 = vadd.f32 0.0, %v5282
      %v5284 = vpop.f32.mrf.mxu0
      %v5285 = vadd.f32 0.0, %v5284
      %5286 = vmatmul.bf16.gmra.mxu0 %v5146
      %v5287 = vpop.f32.mrf.mxu0
      %v5288 = vadd.f32 0.0, %v5287
      %v5289 = vpop.f32.mrf.mxu0
      %v5290 = vadd.f32 0.0, %v5289
      %5291 = vmatmul.bf16.gmra.mxu0 %v5147
      %v5292 = vpop.f32.mrf.mxu0
      %v5293 = vadd.f32 0.0, %v5292
      %v5294 = vpop.f32.mrf.mxu0
      %v5295 = vadd.f32 0.0, %v5294
      %5296 = vmatmul.bf16.gmra.mxu0 %v5148
      %v5297 = vpop.f32.mrf.mxu0
      %v5298 = vadd.f32 0.0, %v5297
      %v5299 = vpop.f32.mrf.mxu0
      %v5300 = vadd.f32 0.0, %v5299
      %5301 = vdwg.mxu0
      %v5302 = vadd.f32 %v4668, %v5223
      %v5303 = vadd.f32 %v4669, %v5225
      %v5304 = vadd.f32 %v4670, %v5228
      %v5305 = vadd.f32 %v4671, %v5230
      %v5306 = vadd.f32 %v4672, %v5233
      %v5307 = vadd.f32 %v4673, %v5235
      %v5308 = vadd.f32 %v4674, %v5238
      %v5309 = vadd.f32 %v4675, %v5240
      %v5310 = vadd.f32 %v4676, %v5243
      %v5311 = vadd.f32 %v4677, %v5245
      %v5312 = vadd.f32 %v4678, %v5248
      %v5313 = vadd.f32 %v4679, %v5250
      %v5314 = vadd.f32 %v4680, %v5253
      %v5315 = vadd.f32 %v4681, %v5255
      %v5316 = vadd.f32 %v4682, %v5258
      %v5317 = vadd.f32 %v4683, %v5260
      %v5318 = vadd.f32 %v4684, %v5263
      %v5319 = vadd.f32 %v4685, %v5265
      %v5320 = vadd.f32 %v4686, %v5268
      %v5321 = vadd.f32 %v4687, %v5270
      %v5322 = vadd.f32 %v4688, %v5273
      %v5323 = vadd.f32 %v4689, %v5275
      %v5324 = vadd.f32 %v4690, %v5278
      %v5325 = vadd.f32 %v4691, %v5280
      %v5326 = vadd.f32 %v4692, %v5283
      %v5327 = vadd.f32 %v4693, %v5285
      %v5328 = vadd.f32 %v4694, %v5288
      %v5329 = vadd.f32 %v4695, %v5290
      %v5330 = vadd.f32 %v4696, %v5293
      %v5331 = vadd.f32 %v4697, %v5295
      %v5332 = vadd.f32 %v4698, %v5298
      %v5333 = vadd.f32 %v4699, %v5300
      %5334 = vst [vmem:[#allocation3] sm:$0xff] %v5302
      %5335 = vst [vmem:[#allocation3 + $0x8] sm:$0xff] %v5303
      %5336 = vst [vmem:[#allocation3 + $0x10] sm:$0xff] %v5304
      %5337 = vst [vmem:[#allocation3 + $0x18] sm:$0xff] %v5305
      %5338 = vst [vmem:[#allocation3 + $0x20] sm:$0xff] %v5306
      %5339 = vst [vmem:[#allocation3 + $0x28] sm:$0xff] %v5307
      %5340 = vst [vmem:[#allocation3 + $0x30] sm:$0xff] %v5308
      %5341 = vst [vmem:[#allocation3 + $0x38] sm:$0xff] %v5309
      %5342 = vst [vmem:[#allocation3 + $0x40] sm:$0xff] %v5310
      %5343 = vst [vmem:[#allocation3 + $0x48] sm:$0xff] %v5311
      %5344 = vst [vmem:[#allocation3 + $0x50] sm:$0xff] %v5312
      %5345 = vst [vmem:[#allocation3 + $0x58] sm:$0xff] %v5313
      %5346 = vst [vmem:[#allocation3 + $0x60] sm:$0xff] %v5314
      %5347 = vst [vmem:[#allocation3 + $0x68] sm:$0xff] %v5315
      %5348 = vst [vmem:[#allocation3 + $0x70] sm:$0xff] %v5316
      %5349 = vst [vmem:[#allocation3 + $0x78] sm:$0xff] %v5317
      %5350 = vst [vmem:[#allocation3 + $0x80] sm:$0xff] %v5318
      %5351 = vst [vmem:[#allocation3 + $0x88] sm:$0xff] %v5319
      %5352 = vst [vmem:[#allocation3 + $0x90] sm:$0xff] %v5320
      %5353 = vst [vmem:[#allocation3 + $0x98] sm:$0xff] %v5321
      %5354 = vst [vmem:[#allocation3 + $0xa0] sm:$0xff] %v5322
      %5355 = vst [vmem:[#allocation3 + $0xa8] sm:$0xff] %v5323
      %5356 = vst [vmem:[#allocation3 + $0xb0] sm:$0xff] %v5324
      %5357 = vst [vmem:[#allocation3 + $0xb8] sm:$0xff] %v5325
      %5358 = vst [vmem:[#allocation3 + $0xc0] sm:$0xff] %v5326
      %5359 = vst [vmem:[#allocation3 + $0xc8] sm:$0xff] %v5327
      %5360 = vst [vmem:[#allocation3 + $0xd0] sm:$0xff] %v5328
      %5361 = vst [vmem:[#allocation3 + $0xd8] sm:$0xff] %v5329
      %5362 = vst [vmem:[#allocation3 + $0xe0] sm:$0xff] %v5330
      %5363 = vst [vmem:[#allocation3 + $0xe8] sm:$0xff] %v5331
      %5364 = vst [vmem:[#allocation3 + $0xf0] sm:$0xff] %v5332
      %5365 = vst [vmem:[#allocation3 + $0xf8] sm:$0xff] %v5333
      %v5366 = vld [vmem:[%s4241] sm:$0xe]
      %v5367 = vld [vmem:[%s4241 + $0x4] sm:$0xf]
      %v5368 = vld [vmem:[%s4241 + $0x8] sm:$0x1]
      %v5369 = vld [vmem:[%s4241 + $0xc] sm:$0xe]
      %v5370 = vld [vmem:[%s4241 + $0x10] sm:$0xf]
      %v5371 = vld [vmem:[%s4241 + $0x14] sm:$0x1]
      %v5372 = vld [vmem:[%s4241 + $0x18] sm:$0xe]
      %v5373 = vld [vmem:[%s4241 + $0x1c] sm:$0xf]
      %v5374 = vld [vmem:[%s4241 + $0x20] sm:$0x1]
      %v5375 = vld [vmem:[%s4241 + $0x24] sm:$0xe]
      %v5376 = vld [vmem:[%s4241 + $0x28] sm:$0xf]
      %v5377 = vld [vmem:[%s4241 + $0x2c] sm:$0x1]
      %v5378 = vld [vmem:[%s4241 + $0x30] sm:$0xe]
      %v5379 = vld [vmem:[%s4241 + $0x34] sm:$0xf]
      %v5380 = vld [vmem:[%s4241 + $0x38] sm:$0x1]
      %v5381 = vld [vmem:[%s4241 + $0x3c] sm:$0xe]
      %v5382 = vld [vmem:[%s4241 + $0x40] sm:$0xf]
      %v5383 = vld [vmem:[%s4241 + $0x44] sm:$0x1]
      %v5384 = vld [vmem:[%s4241 + $0x48] sm:$0xe]
      %v5385 = vld [vmem:[%s4241 + $0x4c] sm:$0xf]
      %v5386 = vld [vmem:[%s4241 + $0x50] sm:$0x1]
      %v5387 = vld [vmem:[%s4241 + $0x54] sm:$0xe]
      %v5388 = vld [vmem:[%s4241 + $0x58] sm:$0xf]
      %v5389 = vld [vmem:[%s4241 + $0x5c] sm:$0x1]
      %v5390 = vld [vmem:[%s4241 + $0x60] sm:$0xe]
      %v5391 = vld [vmem:[%s4241 + $0x64] sm:$0xf]
      %v5392 = vld [vmem:[%s4241 + $0x68] sm:$0x1]
      %v5393 = vld [vmem:[%s4241 + $0x6c] sm:$0xe]
      %v5394 = vld [vmem:[%s4241 + $0x70] sm:$0xf]
      %v5395 = vld [vmem:[%s4241 + $0x74] sm:$0x1]
      %v5396 = vld [vmem:[%s4241 + $0x78] sm:$0xe]
      %v5397 = vld [vmem:[%s4241 + $0x7c] sm:$0xf]
      %v5398 = vld [vmem:[%s4241 + $0x80] sm:$0x1]
      %v5399 = vld [vmem:[%s4241 + $0x84] sm:$0xe]
      %v5400 = vld [vmem:[%s4241 + $0x88] sm:$0xf]
      %v5401 = vld [vmem:[%s4241 + $0x8c] sm:$0x1]
      %v5402 = vld [vmem:[%s4241 + $0x90] sm:$0xe]
      %v5403 = vld [vmem:[%s4241 + $0x94] sm:$0xf]
      %v5404 = vld [vmem:[%s4241 + $0x98] sm:$0x1]
      %v5405 = vld [vmem:[%s4241 + $0x9c] sm:$0xe]
      %v5406 = vld [vmem:[%s4241 + $0xa0] sm:$0xf]
      %v5407 = vld [vmem:[%s4241 + $0xa4] sm:$0x1]
      %v5408 = vld [vmem:[%s4241 + $0xa8] sm:$0xe]
      %v5409 = vld [vmem:[%s4241 + $0xac] sm:$0xf]
      %v5410 = vld [vmem:[%s4241 + $0xb0] sm:$0x1]
      %v5411 = vld [vmem:[%s4241 + $0xb4] sm:$0xe]
      %v5412 = vld [vmem:[%s4241 + $0xb8] sm:$0xf]
      %v5413 = vld [vmem:[%s4241 + $0xbc] sm:$0x1]
      %v5414 = vld [vmem:[#allocation3] sm:$0xff]
      %v5415 = vld [vmem:[#allocation3 + $0x8] sm:$0xff]
      %v5416 = vld [vmem:[#allocation3 + $0x10] sm:$0xff]
      %v5417 = vld [vmem:[#allocation3 + $0x18] sm:$0xff]
      %v5418 = vld [vmem:[#allocation3 + $0x20] sm:$0xff]
      %v5419 = vld [vmem:[#allocation3 + $0x28] sm:$0xff]
      %v5420 = vld [vmem:[#allocation3 + $0x30] sm:$0xff]
      %v5421 = vld [vmem:[#allocation3 + $0x38] sm:$0xff]
      %v5422 = vld [vmem:[#allocation3 + $0x40] sm:$0xff]
      %v5423 = vld [vmem:[#allocation3 + $0x48] sm:$0xff]
      %v5424 = vld [vmem:[#allocation3 + $0x50] sm:$0xff]
      %v5425 = vld [vmem:[#allocation3 + $0x58] sm:$0xff]
      %v5426 = vld [vmem:[#allocation3 + $0x60] sm:$0xff]
      %v5427 = vld [vmem:[#allocation3 + $0x68] sm:$0xff]
      %v5428 = vld [vmem:[#allocation3 + $0x70] sm:$0xff]
      %v5429 = vld [vmem:[#allocation3 + $0x78] sm:$0xff]
      %v5430 = vld [vmem:[#allocation3 + $0x80] sm:$0xff]
      %v5431 = vld [vmem:[#allocation3 + $0x88] sm:$0xff]
      %v5432 = vld [vmem:[#allocation3 + $0x90] sm:$0xff]
      %v5433 = vld [vmem:[#allocation3 + $0x98] sm:$0xff]
      %v5434 = vld [vmem:[#allocation3 + $0xa0] sm:$0xff]
      %v5435 = vld [vmem:[#allocation3 + $0xa8] sm:$0xff]
      %v5436 = vld [vmem:[#allocation3 + $0xb0] sm:$0xff]
      %v5437 = vld [vmem:[#allocation3 + $0xb8] sm:$0xff]
      %v5438 = vld [vmem:[#allocation3 + $0xc0] sm:$0xff]
      %v5439 = vld [vmem:[#allocation3 + $0xc8] sm:$0xff]
      %v5440 = vld [vmem:[#allocation3 + $0xd0] sm:$0xff]
      %v5441 = vld [vmem:[#allocation3 + $0xd8] sm:$0xff]
      %v5442 = vld [vmem:[#allocation3 + $0xe0] sm:$0xff]
      %v5443 = vld [vmem:[#allocation3 + $0xe8] sm:$0xff]
      %v5444 = vld [vmem:[#allocation3 + $0xf0] sm:$0xff]
      %v5445 = vld [vmem:[#allocation3 + $0xf8] sm:$0xff]
      %v5494 = vrot.slane %v5366, 5
      %v5495 = vrot.slane %v5494, 4
      %v5496 = vrot.slane %v5367, 5
      %v5497 = vsel %vm2193, %v5495, %v5496
      %v5498 = vrot.slane %v5496, 4
      %v5499 = vrot.slane %v5368, 5
      %v5500 = vsel %vm2193, %v5498, %v5499
      %v5501 = vrot.slane %v5369, 5
      %v5502 = vrot.slane %v5501, 4
      %v5503 = vrot.slane %v5370, 5
      %v5504 = vsel %vm2193, %v5502, %v5503
      %v5505 = vrot.slane %v5503, 4
      %v5506 = vrot.slane %v5371, 5
      %v5507 = vsel %vm2193, %v5505, %v5506
      %v5508 = vrot.slane %v5372, 5
      %v5509 = vrot.slane %v5508, 4
      %v5510 = vrot.slane %v5373, 5
      %v5511 = vsel %vm2193, %v5509, %v5510
      %v5512 = vrot.slane %v5510, 4
      %v5513 = vrot.slane %v5374, 5
      %v5514 = vsel %vm2193, %v5512, %v5513
      %v5515 = vrot.slane %v5375, 5
      %v5516 = vrot.slane %v5515, 4
      %v5517 = vrot.slane %v5376, 5
      %v5518 = vsel %vm2193, %v5516, %v5517
      %v5519 = vrot.slane %v5517, 4
      %v5520 = vrot.slane %v5377, 5
      %v5521 = vsel %vm2193, %v5519, %v5520
      %v5522 = vrot.slane %v5378, 5
      %v5523 = vrot.slane %v5522, 4
      %v5524 = vrot.slane %v5379, 5
      %v5525 = vsel %vm2193, %v5523, %v5524
      %v5526 = vrot.slane %v5524, 4
      %v5527 = vrot.slane %v5380, 5
      %v5528 = vsel %vm2193, %v5526, %v5527
      %v5529 = vrot.slane %v5381, 5
      %v5530 = vrot.slane %v5529, 4
      %v5531 = vrot.slane %v5382, 5
      %v5532 = vsel %vm2193, %v5530, %v5531
      %v5533 = vrot.slane %v5531, 4
      %v5534 = vrot.slane %v5383, 5
      %v5535 = vsel %vm2193, %v5533, %v5534
      %v5536 = vrot.slane %v5384, 5
      %v5537 = vrot.slane %v5536, 4
      %v5538 = vrot.slane %v5385, 5
      %v5539 = vsel %vm2193, %v5537, %v5538
      %v5540 = vrot.slane %v5538, 4
      %v5541 = vrot.slane %v5386, 5
      %v5542 = vsel %vm2193, %v5540, %v5541
      %v5543 = vrot.slane %v5387, 5
      %v5544 = vrot.slane %v5543, 4
      %v5545 = vrot.slane %v5388, 5
      %v5546 = vsel %vm2193, %v5544, %v5545
      %v5547 = vrot.slane %v5545, 4
      %v5548 = vrot.slane %v5389, 5
      %v5549 = vsel %vm2193, %v5547, %v5548
      %v5550 = vrot.slane %v5390, 5
      %v5551 = vrot.slane %v5550, 4
      %v5552 = vrot.slane %v5391, 5
      %v5553 = vsel %vm2193, %v5551, %v5552
      %v5554 = vrot.slane %v5552, 4
      %v5555 = vrot.slane %v5392, 5
      %v5556 = vsel %vm2193, %v5554, %v5555
      %v5557 = vrot.slane %v5393, 5
      %v5558 = vrot.slane %v5557, 4
      %v5559 = vrot.slane %v5394, 5
      %v5560 = vsel %vm2193, %v5558, %v5559
      %v5561 = vrot.slane %v5559, 4
      %v5562 = vrot.slane %v5395, 5
      %v5563 = vsel %vm2193, %v5561, %v5562
      %v5564 = vrot.slane %v5396, 5
      %v5565 = vrot.slane %v5564, 4
      %v5566 = vrot.slane %v5397, 5
      %v5567 = vsel %vm2193, %v5565, %v5566
      %v5568 = vrot.slane %v5566, 4
      %v5569 = vrot.slane %v5398, 5
      %v5570 = vsel %vm2193, %v5568, %v5569
      %v5571 = vrot.slane %v5399, 5
      %v5572 = vrot.slane %v5571, 4
      %v5573 = vrot.slane %v5400, 5
      %v5574 = vsel %vm2193, %v5572, %v5573
      %v5575 = vrot.slane %v5573, 4
      %v5576 = vrot.slane %v5401, 5
      %v5577 = vsel %vm2193, %v5575, %v5576
      %v5578 = vrot.slane %v5402, 5
      %v5579 = vrot.slane %v5578, 4
      %v5580 = vrot.slane %v5403, 5
      %v5581 = vsel %vm2193, %v5579, %v5580
      %v5582 = vrot.slane %v5580, 4
      %v5583 = vrot.slane %v5404, 5
      %v5584 = vsel %vm2193, %v5582, %v5583
      %v5585 = vrot.slane %v5405, 5
      %v5586 = vrot.slane %v5585, 4
      %v5587 = vrot.slane %v5406, 5
      %v5588 = vsel %vm2193, %v5586, %v5587
      %v5589 = vrot.slane %v5587, 4
      %v5590 = vrot.slane %v5407, 5
      %v5591 = vsel %vm2193, %v5589, %v5590
      %v5592 = vrot.slane %v5408, 5
      %v5593 = vrot.slane %v5592, 4
      %v5594 = vrot.slane %v5409, 5
      %v5595 = vsel %vm2193, %v5593, %v5594
      %v5596 = vrot.slane %v5594, 4
      %v5597 = vrot.slane %v5410, 5
      %v5598 = vsel %vm2193, %v5596, %v5597
      %v5599 = vrot.slane %v5411, 5
      %v5600 = vrot.slane %v5599, 4
      %v5601 = vrot.slane %v5412, 5
      %v5602 = vsel %vm2193, %v5600, %v5601
      %v5603 = vrot.slane %v5601, 4
      %v5604 = vrot.slane %v5413, 5
      %v5605 = vsel %vm2193, %v5603, %v5604
      %s5606 = scalar_lea.vmem %s2, 512
      %v5607 = vld [vmem:[%s5606] sm:$0xf]
      %v5608 = vld [vmem:[%s5606 + $0x4] sm:$0xf]
      %v5609 = vld [vmem:[%s5606 + $0x8] sm:$0xf]
      %v5610 = vld [vmem:[%s5606 + $0xc] sm:$0xf]
      %v5611 = vld [vmem:[%s5606 + $0x10] sm:$0xf]
      %v5612 = vld [vmem:[%s5606 + $0x14] sm:$0xf]
      %v5613 = vld [vmem:[%s5606 + $0x18] sm:$0xf]
      %v5614 = vld [vmem:[%s5606 + $0x1c] sm:$0xf]
      %v5615 = vld [vmem:[%s5606 + $0x20] sm:$0xf]
      %v5616 = vld [vmem:[%s5606 + $0x24] sm:$0xf]
      %v5617 = vld [vmem:[%s5606 + $0x28] sm:$0xf]
      %v5618 = vld [vmem:[%s5606 + $0x2c] sm:$0xf]
      %v5619 = vld [vmem:[%s5606 + $0x30] sm:$0xf]
      %v5620 = vld [vmem:[%s5606 + $0x34] sm:$0xf]
      %v5621 = vld [vmem:[%s5606 + $0x38] sm:$0xf]
      %v5622 = vld [vmem:[%s5606 + $0x3c] sm:$0xf]
      %v5623 = vunpack.c.l.b16 %v5497
      %v5624 = vunpack.c.l.b16 %v5500
      %v5625 = vunpack.c.l.b16 %v5504
      %v5626 = vunpack.c.l.b16 %v5507
      %v5627 = vunpack.c.l.b16 %v5511
      %v5628 = vunpack.c.l.b16 %v5514
      %v5629 = vunpack.c.l.b16 %v5518
      %v5630 = vunpack.c.l.b16 %v5521
      %v5631 = vunpack.c.l.b16 %v5525
      %v5632 = vunpack.c.l.b16 %v5528
      %v5633 = vunpack.c.l.b16 %v5532
      %v5634 = vunpack.c.l.b16 %v5535
      %v5635 = vunpack.c.l.b16 %v5539
      %v5636 = vunpack.c.l.b16 %v5542
      %v5637 = vunpack.c.l.b16 %v5546
      %v5638 = vunpack.c.l.b16 %v5549
      %v5639 = vunpack.c.l.b16 %v5553
      %v5640 = vunpack.c.l.b16 %v5556
      %v5641 = vunpack.c.l.b16 %v5560
      %v5642 = vunpack.c.l.b16 %v5563
      %v5643 = vunpack.c.l.b16 %v5567
      %v5644 = vunpack.c.l.b16 %v5570
      %v5645 = vunpack.c.l.b16 %v5574
      %v5646 = vunpack.c.l.b16 %v5577
      %v5647 = vunpack.c.l.b16 %v5581
      %v5648 = vunpack.c.l.b16 %v5584
      %v5649 = vunpack.c.l.b16 %v5588
      %v5650 = vunpack.c.l.b16 %v5591
      %v5651 = vunpack.c.l.b16 %v5595
      %v5652 = vunpack.c.l.b16 %v5598
      %v5653 = vunpack.c.l.b16 %v5602
      %v5654 = vunpack.c.l.b16 %v5605
      %v5655 = vpack.c.b16 %v5624, %v5623
      %v5656 = vpack.c.b16 %v5626, %v5625
      %v5657 = vpack.c.b16 %v5628, %v5627
      %v5658 = vpack.c.b16 %v5630, %v5629
      %v5659 = vpack.c.b16 %v5632, %v5631
      %v5660 = vpack.c.b16 %v5634, %v5633
      %v5661 = vpack.c.b16 %v5636, %v5635
      %v5662 = vpack.c.b16 %v5638, %v5637
      %v5663 = vpack.c.b16 %v5640, %v5639
      %v5664 = vpack.c.b16 %v5642, %v5641
      %v5665 = vpack.c.b16 %v5644, %v5643
      %v5666 = vpack.c.b16 %v5646, %v5645
      %v5667 = vpack.c.b16 %v5648, %v5647
      %v5668 = vpack.c.b16 %v5650, %v5649
      %v5669 = vpack.c.b16 %v5652, %v5651
      %v5670 = vpack.c.b16 %v5654, %v5653
      %v5703 = vunpack.c.l.b16 %v5607
      %v5704 = vunpack.c.l.b16 %v5608
      %v5705 = vunpack.c.l.b16 %v5609
      %v5706 = vunpack.c.l.b16 %v5610
      %v5707 = vunpack.c.l.b16 %v5611
      %v5708 = vunpack.c.l.b16 %v5612
      %v5709 = vunpack.c.l.b16 %v5613
      %v5710 = vunpack.c.l.b16 %v5614
      %v5711 = vunpack.c.l.b16 %v5615
      %v5712 = vunpack.c.l.b16 %v5616
      %v5713 = vunpack.c.l.b16 %v5617
      %v5714 = vunpack.c.l.b16 %v5618
      %v5715 = vunpack.c.l.b16 %v5619
      %v5716 = vunpack.c.l.b16 %v5620
      %v5717 = vunpack.c.l.b16 %v5621
      %v5718 = vunpack.c.l.b16 %v5622
      %v5719 = vpack.c.b16 %v5704, %v5703
      %v5720 = vpack.c.b16 %v5706, %v5705
      %v5721 = vpack.c.b16 %v5708, %v5707
      %v5722 = vpack.c.b16 %v5710, %v5709
      %v5723 = vpack.c.b16 %v5712, %v5711
      %v5724 = vpack.c.b16 %v5714, %v5713
      %v5725 = vpack.c.b16 %v5716, %v5715
      %v5726 = vpack.c.b16 %v5718, %v5717
      %5735 = vmatpush.bf16.msra.mxu0 %v5726
      %5736 = vmatpush.bf16.msra.mxu0 %v5725
      %5737 = vmatpush.bf16.msra.mxu0 %v5724
      %5738 = vmatpush.bf16.msra.mxu0 %v5723
      %5739 = vmatpush.bf16.msra.mxu0 %v5722
      %5740 = vmatpush.bf16.msra.mxu0 %v5721
      %5741 = vmatpush.bf16.msra.mxu0 %v5720
      %5742 = vmatpush.bf16.msra.mxu0 %v5719
      %5743 = vmatmul.bf16.gmra.mxu0 %v5655
      %v5744 = vpop.f32.mrf.mxu0
      %v5745 = vadd.f32 0.0, %v5744
      %v5746 = vpop.f32.mrf.mxu0
      %v5747 = vadd.f32 0.0, %v5746
      %5748 = vmatmul.bf16.gmra.mxu0 %v5656
      %v5749 = vpop.f32.mrf.mxu0
      %v5750 = vadd.f32 0.0, %v5749
      %v5751 = vpop.f32.mrf.mxu0
      %v5752 = vadd.f32 0.0, %v5751
      %5753 = vmatmul.bf16.gmra.mxu0 %v5657
      %v5754 = vpop.f32.mrf.mxu0
      %v5755 = vadd.f32 0.0, %v5754
      %v5756 = vpop.f32.mrf.mxu0
      %v5757 = vadd.f32 0.0, %v5756
      %5758 = vmatmul.bf16.gmra.mxu0 %v5658
      %v5759 = vpop.f32.mrf.mxu0
      %v5760 = vadd.f32 0.0, %v5759
      %v5761 = vpop.f32.mrf.mxu0
      %v5762 = vadd.f32 0.0, %v5761
      %5763 = vmatmul.bf16.gmra.mxu0 %v5659
      %v5764 = vpop.f32.mrf.mxu0
      %v5765 = vadd.f32 0.0, %v5764
      %v5766 = vpop.f32.mrf.mxu0
      %v5767 = vadd.f32 0.0, %v5766
      %5768 = vmatmul.bf16.gmra.mxu0 %v5660
      %v5769 = vpop.f32.mrf.mxu0
      %v5770 = vadd.f32 0.0, %v5769
      %v5771 = vpop.f32.mrf.mxu0
      %v5772 = vadd.f32 0.0, %v5771
      %5773 = vmatmul.bf16.gmra.mxu0 %v5661
      %v5774 = vpop.f32.mrf.mxu0
      %v5775 = vadd.f32 0.0, %v5774
      %v5776 = vpop.f32.mrf.mxu0
      %v5777 = vadd.f32 0.0, %v5776
      %5778 = vmatmul.bf16.gmra.mxu0 %v5662
      %v5779 = vpop.f32.mrf.mxu0
      %v5780 = vadd.f32 0.0, %v5779
      %v5781 = vpop.f32.mrf.mxu0
      %v5782 = vadd.f32 0.0, %v5781
      %5783 = vmatmul.bf16.gmra.mxu0 %v5663
      %v5784 = vpop.f32.mrf.mxu0
      %v5785 = vadd.f32 0.0, %v5784
      %v5786 = vpop.f32.mrf.mxu0
      %v5787 = vadd.f32 0.0, %v5786
      %5788 = vmatmul.bf16.gmra.mxu0 %v5664
      %v5789 = vpop.f32.mrf.mxu0
      %v5790 = vadd.f32 0.0, %v5789
      %v5791 = vpop.f32.mrf.mxu0
      %v5792 = vadd.f32 0.0, %v5791
      %5793 = vmatmul.bf16.gmra.mxu0 %v5665
      %v5794 = vpop.f32.mrf.mxu0
      %v5795 = vadd.f32 0.0, %v5794
      %v5796 = vpop.f32.mrf.mxu0
      %v5797 = vadd.f32 0.0, %v5796
      %5798 = vmatmul.bf16.gmra.mxu0 %v5666
      %v5799 = vpop.f32.mrf.mxu0
      %v5800 = vadd.f32 0.0, %v5799
      %v5801 = vpop.f32.mrf.mxu0
      %v5802 = vadd.f32 0.0, %v5801
      %5803 = vmatmul.bf16.gmra.mxu0 %v5667
      %v5804 = vpop.f32.mrf.mxu0
      %v5805 = vadd.f32 0.0, %v5804
      %v5806 = vpop.f32.mrf.mxu0
      %v5807 = vadd.f32 0.0, %v5806
      %5808 = vmatmul.bf16.gmra.mxu0 %v5668
      %v5809 = vpop.f32.mrf.mxu0
      %v5810 = vadd.f32 0.0, %v5809
      %v5811 = vpop.f32.mrf.mxu0
      %v5812 = vadd.f32 0.0, %v5811
      %5813 = vmatmul.bf16.gmra.mxu0 %v5669
      %v5814 = vpop.f32.mrf.mxu0
      %v5815 = vadd.f32 0.0, %v5814
      %v5816 = vpop.f32.mrf.mxu0
      %v5817 = vadd.f32 0.0, %v5816
      %5818 = vmatmul.bf16.gmra.mxu0 %v5670
      %v5819 = vpop.f32.mrf.mxu0
      %v5820 = vadd.f32 0.0, %v5819
      %v5821 = vpop.f32.mrf.mxu0
      %v5822 = vadd.f32 0.0, %v5821
      %5823 = vdwg.mxu0
      %v5824 = vadd.f32 %v5414, %v5745
      %v5825 = vadd.f32 %v5415, %v5747
      %v5826 = vadd.f32 %v5416, %v5750
      %v5827 = vadd.f32 %v5417, %v5752
      %v5828 = vadd.f32 %v5418, %v5755
      %v5829 = vadd.f32 %v5419, %v5757
      %v5830 = vadd.f32 %v5420, %v5760
      %v5831 = vadd.f32 %v5421, %v5762
      %v5832 = vadd.f32 %v5422, %v5765
      %v5833 = vadd.f32 %v5423, %v5767
      %v5834 = vadd.f32 %v5424, %v5770
      %v5835 = vadd.f32 %v5425, %v5772
      %v5836 = vadd.f32 %v5426, %v5775
      %v5837 = vadd.f32 %v5427, %v5777
      %v5838 = vadd.f32 %v5428, %v5780
      %v5839 = vadd.f32 %v5429, %v5782
      %v5840 = vadd.f32 %v5430, %v5785
      %v5841 = vadd.f32 %v5431, %v5787
      %v5842 = vadd.f32 %v5432, %v5790
      %v5843 = vadd.f32 %v5433, %v5792
      %v5844 = vadd.f32 %v5434, %v5795
      %v5845 = vadd.f32 %v5435, %v5797
      %v5846 = vadd.f32 %v5436, %v5800
      %v5847 = vadd.f32 %v5437, %v5802
      %v5848 = vadd.f32 %v5438, %v5805
      %v5849 = vadd.f32 %v5439, %v5807
      %v5850 = vadd.f32 %v5440, %v5810
      %v5851 = vadd.f32 %v5441, %v5812
      %v5852 = vadd.f32 %v5442, %v5815
      %v5853 = vadd.f32 %v5443, %v5817
      %v5854 = vadd.f32 %v5444, %v5820
      %v5855 = vadd.f32 %v5445, %v5822
      %5856 = vst [vmem:[#allocation3] sm:$0xff] %v5824
      %5857 = vst [vmem:[#allocation3 + $0x8] sm:$0xff] %v5825
      %5858 = vst [vmem:[#allocation3 + $0x10] sm:$0xff] %v5826
      %5859 = vst [vmem:[#allocation3 + $0x18] sm:$0xff] %v5827
      %5860 = vst [vmem:[#allocation3 + $0x20] sm:$0xff] %v5828
      %5861 = vst [vmem:[#allocation3 + $0x28] sm:$0xff] %v5829
      %5862 = vst [vmem:[#allocation3 + $0x30] sm:$0xff] %v5830
      %5863 = vst [vmem:[#allocation3 + $0x38] sm:$0xff] %v5831
      %5864 = vst [vmem:[#allocation3 + $0x40] sm:$0xff] %v5832
      %5865 = vst [vmem:[#allocation3 + $0x48] sm:$0xff] %v5833
      %5866 = vst [vmem:[#allocation3 + $0x50] sm:$0xff] %v5834
      %5867 = vst [vmem:[#allocation3 + $0x58] sm:$0xff] %v5835
      %5868 = vst [vmem:[#allocation3 + $0x60] sm:$0xff] %v5836
      %5869 = vst [vmem:[#allocation3 + $0x68] sm:$0xff] %v5837
      %5870 = vst [vmem:[#allocation3 + $0x70] sm:$0xff] %v5838
      %5871 = vst [vmem:[#allocation3 + $0x78] sm:$0xff] %v5839
      %5872 = vst [vmem:[#allocation3 + $0x80] sm:$0xff] %v5840
      %5873 = vst [vmem:[#allocation3 + $0x88] sm:$0xff] %v5841
      %5874 = vst [vmem:[#allocation3 + $0x90] sm:$0xff] %v5842
      %5875 = vst [vmem:[#allocation3 + $0x98] sm:$0xff] %v5843
      %5876 = vst [vmem:[#allocation3 + $0xa0] sm:$0xff] %v5844
      %5877 = vst [vmem:[#allocation3 + $0xa8] sm:$0xff] %v5845
      %5878 = vst [vmem:[#allocation3 + $0xb0] sm:$0xff] %v5846
      %5879 = vst [vmem:[#allocation3 + $0xb8] sm:$0xff] %v5847
      %5880 = vst [vmem:[#allocation3 + $0xc0] sm:$0xff] %v5848
      %5881 = vst [vmem:[#allocation3 + $0xc8] sm:$0xff] %v5849
      %5882 = vst [vmem:[#allocation3 + $0xd0] sm:$0xff] %v5850
      %5883 = vst [vmem:[#allocation3 + $0xd8] sm:$0xff] %v5851
      %5884 = vst [vmem:[#allocation3 + $0xe0] sm:$0xff] %v5852
      %5885 = vst [vmem:[#allocation3 + $0xe8] sm:$0xff] %v5853
      %5886 = vst [vmem:[#allocation3 + $0xf0] sm:$0xff] %v5854
      %5887 = vst [vmem:[#allocation3 + $0xf8] sm:$0xff] %v5855
      %v5888 = vld [vmem:[#allocation3] sm:$0xff]
      %v5889 = vld [vmem:[#allocation3 + $0x8] sm:$0xff]
      %v5890 = vld [vmem:[#allocation3 + $0x10] sm:$0xff]
      %v5891 = vld [vmem:[#allocation3 + $0x18] sm:$0xff]
      %v5892 = vld [vmem:[#allocation3 + $0x20] sm:$0xff]
      %v5893 = vld [vmem:[#allocation3 + $0x28] sm:$0xff]
      %v5894 = vld [vmem:[#allocation3 + $0x30] sm:$0xff]
      %v5895 = vld [vmem:[#allocation3 + $0x38] sm:$0xff]
      %v5896 = vld [vmem:[#allocation3 + $0x40] sm:$0xff]
      %v5897 = vld [vmem:[#allocation3 + $0x48] sm:$0xff]
      %v5898 = vld [vmem:[#allocation3 + $0x50] sm:$0xff]
      %v5899 = vld [vmem:[#allocation3 + $0x58] sm:$0xff]
      %v5900 = vld [vmem:[#allocation3 + $0x60] sm:$0xff]
      %v5901 = vld [vmem:[#allocation3 + $0x68] sm:$0xff]
      %v5902 = vld [vmem:[#allocation3 + $0x70] sm:$0xff]
      %v5903 = vld [vmem:[#allocation3 + $0x78] sm:$0xff]
      %v5904 = vld [vmem:[#allocation3 + $0x80] sm:$0xff]
      %v5905 = vld [vmem:[#allocation3 + $0x88] sm:$0xff]
      %v5906 = vld [vmem:[#allocation3 + $0x90] sm:$0xff]
      %v5907 = vld [vmem:[#allocation3 + $0x98] sm:$0xff]
      %v5908 = vld [vmem:[#allocation3 + $0xa0] sm:$0xff]
      %v5909 = vld [vmem:[#allocation3 + $0xa8] sm:$0xff]
      %v5910 = vld [vmem:[#allocation3 + $0xb0] sm:$0xff]
      %v5911 = vld [vmem:[#allocation3 + $0xb8] sm:$0xff]
      %v5912 = vld [vmem:[#allocation3 + $0xc0] sm:$0xff]
      %v5913 = vld [vmem:[#allocation3 + $0xc8] sm:$0xff]
      %v5914 = vld [vmem:[#allocation3 + $0xd0] sm:$0xff]
      %v5915 = vld [vmem:[#allocation3 + $0xd8] sm:$0xff]
      %v5916 = vld [vmem:[#allocation3 + $0xe0] sm:$0xff]
      %v5917 = vld [vmem:[#allocation3 + $0xe8] sm:$0xff]
      %v5918 = vld [vmem:[#allocation3 + $0xf0] sm:$0xff]
      %v5919 = vld [vmem:[#allocation3 + $0xf8] sm:$0xff]
      %v5920 = vpack.c.bf16 %v5888, %v5888
      %v5921 = vpack.c.bf16 %v5889, %v5889
      %v5922 = vpack.c.bf16 %v5890, %v5890
      %v5923 = vpack.c.bf16 %v5891, %v5891
      %v5924 = vpack.c.bf16 %v5892, %v5892
      %v5925 = vpack.c.bf16 %v5893, %v5893
      %v5926 = vpack.c.bf16 %v5894, %v5894
      %v5927 = vpack.c.bf16 %v5895, %v5895
      %v5928 = vpack.c.bf16 %v5896, %v5896
      %v5929 = vpack.c.bf16 %v5897, %v5897
      %v5930 = vpack.c.bf16 %v5898, %v5898
      %v5931 = vpack.c.bf16 %v5899, %v5899
      %v5932 = vpack.c.bf16 %v5900, %v5900
      %v5933 = vpack.c.bf16 %v5901, %v5901
      %v5934 = vpack.c.bf16 %v5902, %v5902
      %v5935 = vpack.c.bf16 %v5903, %v5903
      %v5936 = vpack.c.bf16 %v5904, %v5904
      %v5937 = vpack.c.bf16 %v5905, %v5905
      %v5938 = vpack.c.bf16 %v5906, %v5906
      %v5939 = vpack.c.bf16 %v5907, %v5907
      %v5940 = vpack.c.bf16 %v5908, %v5908
      %v5941 = vpack.c.bf16 %v5909, %v5909
      %v5942 = vpack.c.bf16 %v5910, %v5910
      %v5943 = vpack.c.bf16 %v5911, %v5911
      %v5944 = vpack.c.bf16 %v5912, %v5912
      %v5945 = vpack.c.bf16 %v5913, %v5913
      %v5946 = vpack.c.bf16 %v5914, %v5914
      %v5947 = vpack.c.bf16 %v5915, %v5915
      %v5948 = vpack.c.bf16 %v5916, %v5916
      %v5949 = vpack.c.bf16 %v5917, %v5917
      %v5950 = vpack.c.bf16 %v5918, %v5918
      %v5951 = vpack.c.bf16 %v5919, %v5919
      %5952 = vst [vmem:[%s204] sm:$0xf] %v5920
      %5953 = vst [vmem:[%s204 + $0x4] sm:$0xf] %v5921
      %5954 = vst [vmem:[%s204 + $0x8] sm:$0xf] %v5922
      %5955 = vst [vmem:[%s204 + $0xc] sm:$0xf] %v5923
      %5956 = vst [vmem:[%s204 + $0x10] sm:$0xf] %v5924
      %5957 = vst [vmem:[%s204 + $0x14] sm:$0xf] %v5925
      %5958 = vst [vmem:[%s204 + $0x18] sm:$0xf] %v5926
      %5959 = vst [vmem:[%s204 + $0x1c] sm:$0xf] %v5927
      %5960 = vst [vmem:[%s204 + $0x20] sm:$0xf] %v5928
      %5961 = vst [vmem:[%s204 + $0x24] sm:$0xf] %v5929
      %5962 = vst [vmem:[%s204 + $0x28] sm:$0xf] %v5930
      %5963 = vst [vmem:[%s204 + $0x2c] sm:$0xf] %v5931
      %5964 = vst [vmem:[%s204 + $0x30] sm:$0xf] %v5932
      %5965 = vst [vmem:[%s204 + $0x34] sm:$0xf] %v5933
      %5966 = vst [vmem:[%s204 + $0x38] sm:$0xf] %v5934
      %5967 = vst [vmem:[%s204 + $0x3c] sm:$0xf] %v5935
      %5968 = vst [vmem:[%s204 + $0x40] sm:$0xf] %v5936
      %5969 = vst [vmem:[%s204 + $0x44] sm:$0xf] %v5937
      %5970 = vst [vmem:[%s204 + $0x48] sm:$0xf] %v5938
      %5971 = vst [vmem:[%s204 + $0x4c] sm:$0xf] %v5939
      %5972 = vst [vmem:[%s204 + $0x50] sm:$0xf] %v5940
      %5973 = vst [vmem:[%s204 + $0x54] sm:$0xf] %v5941
      %5974 = vst [vmem:[%s204 + $0x58] sm:$0xf] %v5942
      %5975 = vst [vmem:[%s204 + $0x5c] sm:$0xf] %v5943
      %5976 = vst [vmem:[%s204 + $0x60] sm:$0xf] %v5944
      %5977 = vst [vmem:[%s204 + $0x64] sm:$0xf] %v5945
      %5978 = vst [vmem:[%s204 + $0x68] sm:$0xf] %v5946
      %5979 = vst [vmem:[%s204 + $0x6c] sm:$0xf] %v5947
      %5980 = vst [vmem:[%s204 + $0x70] sm:$0xf] %v5948
      %5981 = vst [vmem:[%s204 + $0x74] sm:$0xf] %v5949
      %5982 = vst [vmem:[%s204 + $0x78] sm:$0xf] %v5950
      %5983 = vst [vmem:[%s204 + $0x7c] sm:$0xf] %v5951
      %v5984 = vld [vmem:[%s208] sm:$0x1]
      %v5985 = vadd.f32 %v5888, %v5889
      %v5986 = vadd.f32 %v5985, %v5890
      %v5987 = vadd.f32 %v5986, %v5891
      %v5988 = vadd.f32 %v5987, %v5892
      %v5989 = vadd.f32 %v5988, %v5893
      %v5990 = vadd.f32 %v5989, %v5894
      %v5991 = vadd.f32 %v5990, %v5895
      %v5992 = vadd.f32 %v5991, %v5896
      %v5993 = vadd.f32 %v5992, %v5897
      %v5994 = vadd.f32 %v5993, %v5898
      %v5995 = vadd.f32 %v5994, %v5899
      %v5996 = vadd.f32 %v5995, %v5900
      %v5997 = vadd.f32 %v5996, %v5901
      %v5998 = vadd.f32 %v5997, %v5902
      %v5999 = vadd.f32 %v5998, %v5903
      %v6000 = vadd.f32 %v5999, %v5904
      %v6001 = vadd.f32 %v6000, %v5905
      %v6002 = vadd.f32 %v6001, %v5906
      %v6003 = vadd.f32 %v6002, %v5907
      %v6004 = vadd.f32 %v6003, %v5908
      %v6005 = vadd.f32 %v6004, %v5909
      %v6006 = vadd.f32 %v6005, %v5910
      %v6007 = vadd.f32 %v6006, %v5911
      %v6008 = vadd.f32 %v6007, %v5912
      %v6009 = vadd.f32 %v6008, %v5913
      %v6010 = vadd.f32 %v6009, %v5914
      %v6011 = vadd.f32 %v6010, %v5915
      %v6012 = vadd.f32 %v6011, %v5916
      %v6013 = vadd.f32 %v6012, %v5917
      %v6014 = vadd.f32 %v6013, %v5918
      %v6015 = vadd.f32 %v6014, %v5919
      %v6016 = vrot.slane %v6015, 4
      %v6017 = vadd.f32 %v6015, %v6016
      %v6018 = vrot.slane %v6017, 2
      %v6019 = vadd.f32 %v6017, %v6018
      %v6020 = vrot.slane %v6019, 1
      %v6021 = vadd.f32 %v6019, %v6020
      %v6022 = vadd.f32 %v5984, %v6021
      %6023 = vst [vmem:[%s208] sm:$0x1] %v6022
      %v6024 = vld [vmem:[%s208 + $0x1] sm:$0x1]
      %v6025 = vmul.f32 %v5888, %v5888
      %v6026 = vmul.f32 %v5889, %v5889
      %v6027 = vmul.f32 %v5890, %v5890
      %v6028 = vmul.f32 %v5891, %v5891
      %v6029 = vmul.f32 %v5892, %v5892
      %v6030 = vmul.f32 %v5893, %v5893
      %v6031 = vmul.f32 %v5894, %v5894
      %v6032 = vmul.f32 %v5895, %v5895
      %v6033 = vmul.f32 %v5896, %v5896
      %v6034 = vmul.f32 %v5897, %v5897
      %v6035 = vmul.f32 %v5898, %v5898
      %v6036 = vmul.f32 %v5899, %v5899
      %v6037 = vmul.f32 %v5900, %v5900
      %v6038 = vmul.f32 %v5901, %v5901
      %v6039 = vmul.f32 %v5902, %v5902
      %v6040 = vmul.f32 %v5903, %v5903
      %v6041 = vmul.f32 %v5904, %v5904
      %v6042 = vmul.f32 %v5905, %v5905
      %v6043 = vmul.f32 %v5906, %v5906
      %v6044 = vmul.f32 %v5907, %v5907
      %v6045 = vmul.f32 %v5908, %v5908
      %v6046 = vmul.f32 %v5909, %v5909
      %v6047 = vmul.f32 %v5910, %v5910
      %v6048 = vmul.f32 %v5911, %v5911
      %v6049 = vmul.f32 %v5912, %v5912
      %v6050 = vmul.f32 %v5913, %v5913
      %v6051 = vmul.f32 %v5914, %v5914
      %v6052 = vmul.f32 %v5915, %v5915
      %v6053 = vmul.f32 %v5916, %v5916
      %v6054 = vmul.f32 %v5917, %v5917
      %v6055 = vmul.f32 %v5918, %v5918
      %v6056 = vmul.f32 %v5919, %v5919
      %v6057 = vadd.f32 %v6025, %v6026
      %v6058 = vadd.f32 %v6057, %v6027
      %v6059 = vadd.f32 %v6058, %v6028
      %v6060 = vadd.f32 %v6059, %v6029
      %v6061 = vadd.f32 %v6060, %v6030
      %v6062 = vadd.f32 %v6061, %v6031
      %v6063 = vadd.f32 %v6062, %v6032
      %v6064 = vadd.f32 %v6063, %v6033
      %v6065 = vadd.f32 %v6064, %v6034
      %v6066 = vadd.f32 %v6065, %v6035
      %v6067 = vadd.f32 %v6066, %v6036
      %v6068 = vadd.f32 %v6067, %v6037
      %v6069 = vadd.f32 %v6068, %v6038
      %v6070 = vadd.f32 %v6069, %v6039
      %v6071 = vadd.f32 %v6070, %v6040
      %v6072 = vadd.f32 %v6071, %v6041
      %v6073 = vadd.f32 %v6072, %v6042
      %v6074 = vadd.f32 %v6073, %v6043
      %v6075 = vadd.f32 %v6074, %v6044
      %v6076 = vadd.f32 %v6075, %v6045
      %v6077 = vadd.f32 %v6076, %v6046
      %v6078 = vadd.f32 %v6077, %v6047
      %v6079 = vadd.f32 %v6078, %v6048
      %v6080 = vadd.f32 %v6079, %v6049
      %v6081 = vadd.f32 %v6080, %v6050
      %v6082 = vadd.f32 %v6081, %v6051
      %v6083 = vadd.f32 %v6082, %v6052
      %v6084 = vadd.f32 %v6083, %v6053
      %v6085 = vadd.f32 %v6084, %v6054
      %v6086 = vadd.f32 %v6085, %v6055
      %v6087 = vadd.f32 %v6086, %v6056
      %v6088 = vrot.slane %v6087, 4
      %v6089 = vadd.f32 %v6087, %v6088
      %v6090 = vrot.slane %v6089, 2
      %v6091 = vadd.f32 %v6089, %v6090
      %v6092 = vrot.slane %v6091, 1
      %v6093 = vadd.f32 %v6091, %v6092
      %v6094 = vadd.f32 %v6024, %v6093
      %6095 = vst [vmem:[%s208 + $0x1] sm:$0x1] %v6094
      %p6096 = scmp.lt.s32.totalorder %s16, 1
      %s6097 = scalar_select %p6096, %s16, 1
      %s6098 = smul.addr %s6097, 32
      %s6099 = smul.addr %s6098, 4
      %s6100 = scalar_lea.vmem %s3, %s6099
      %p6101 = scmp.lt.s32.totalorder %s16, 1
      %s6102 = scalar_select %p6101, %s16, 1
      %s6103 = smul.addr %s6102, 8
      %s6104 = scalar_lea.vmem %s4, %s6103
      // Predicated region
      $region33: #{bottleneck_forward.5} parent=31 // pred_check
        %p6105 = pneg %p102
      $region34: #{bottleneck_forward.5} parent=31 // pred_check_branch
        %6107 = sbr.rel (%p6105) target = $region36
      $region35: #{bottleneck_forward.5} parent=31 // pred_region
        _
      $region36: #{bottleneck_forward.5} parent=31 // pred_fallthru
        _
      // Predicated region
      $region37: #{bottleneck_forward.5} parent=31 // pred_check
        %p6108 = pneg %p128
      $region38: #{bottleneck_forward.5} parent=31 // pred_check_branch
        %6110 = sbr.rel (%p6108) target = $region40
      $region39: #{bottleneck_forward.5} parent=31 // pred_region
        _
      $region40: #{bottleneck_forward.5} parent=31 // pred_fallthru
        _
    $region32: #{bottleneck_forward.5} parent=5 // pred_fallthru
      _
    %p6111 = scmp.le.s32.totalorder 2, %s11
    // Predicated region
    $region41: #{bottleneck_forward.5} parent=5 // pred_check
      %p6112 = pneg %p6111
    $region42: #{bottleneck_forward.5} parent=5 // pred_check_branch
      %6114 = sbr.rel (%p6112) target = $region44
    $region43: #{bottleneck_forward.5} parent=5 // pred_region
      %s6115 = ssub.s32 %s11, 2
      // Predicated region
      $region45: #{bottleneck_forward.5} parent=43 // pred_check
        %p6116 = pneg %p108
      $region46: #{bottleneck_forward.5} parent=43 // pred_check_branch
        %6118 = sbr.rel (%p6116) target = $region48
      $region47: #{bottleneck_forward.5} parent=43 // pred_region
        %p6119 = scmp.lt.s32.totalorder %s17, 1
        %s6120 = scalar_select %p6119, %s17, 1
        %s6121 = smul.addr %s6120, 32
        %s6122 = smul.addr %s6121, 4
        %s6123 = scalar_lea.vmem %s3, %s6122
      $region48: #{bottleneck_forward.5} parent=43 // pred_fallthru
        _
      // Predicated region
      $region49: #{bottleneck_forward.5} parent=43 // pred_check
        %p6124 = pneg %p134
      $region50: #{bottleneck_forward.5} parent=43 // pred_check_branch
        %6126 = sbr.rel (%p6124) target = $region52
      $region51: #{bottleneck_forward.5} parent=43 // pred_region
        %p6127 = scmp.lt.s32.totalorder %s17, 1
        %s6128 = scalar_select %p6127, %s17, 1
        %s6129 = smul.addr %s6128, 8
        %s6130 = scalar_lea.vmem %s4, %s6129
      $region52: #{bottleneck_forward.5} parent=43 // pred_fallthru
        _
    $region44: #{bottleneck_forward.5} parent=5 // pred_fallthru
      _
  $region6: #{bottleneck_forward.5} parent=0 // loop_footer
    %s15 = sadd.s32 1, %s11
  $region7: #{bottleneck_forward.5} parent=0 // loop_footer_branch
    %10 = sbr.rel target = $region3
  $region8: #{bottleneck_forward.5} parent=0 // loop_exit
    _

</llo_original>
